<compile_context>
chip_gen: v7x
topology: tpu7x:2x2x1
jax: 0.10.0
libtpu: 0.0.40
codegen_flags: <defaults>
</compile_context>

<pallas_src>
import jax
import jax.numpy as jnp
from jax.experimental import pallas as pl
from jax.experimental.pallas import tpu as pltpu

# ----- model dimensions implied by the PyTorch module -----
L_IN = 34              # input sequence length ((34-3+1)*32 = 1024 = fc1 in-features)
L_OUT = 32             # valid-conv output length
C = 256                # conv hidden channels
C_LAST = 32            # conv_last output channels
N_CLASSES = 34
N_PAD = 128            # head output padded to one full lane tile

# ----- kernel tiling -----
TB = 16                # samples per grid step
Q = L_IN + 2           # padded positions (-1 .. 34)
ROWS_PAD = Q * TB      # 576 scratch rows (position-major, TB rows per position)
M_SAME = L_IN * TB     # 544 rows carrying the 34 'same'-conv positions
M_VALID = L_OUT * TB   # 512 rows carrying the 32 valid-conv output positions


def _discard_kernel(x_ref, w1_ref, b1_ref, w2_ref, b2_ref, wl_ref, bl_ref,
                    wf_ref, bf_ref, out_ref, pad_ref):
    """Whole forward pass for TB samples per grid step.

    Scratch row (p+1)*TB + b of pad_ref holds position p of sample b; the TB rows
    at the top (pos -1) and bottom (pos 34) are the 'same'-conv zero padding, so the
    three taps of a k=3 conv are contiguous 544-row slices -> one MXU matmul each.
    """
    zeros_blk = jnp.zeros((TB, C), jnp.float32)
    pad_ref[0:TB, :] = zeros_blk                       # position -1 (left pad)
    pad_ref[TB + M_SAME:ROWS_PAD, :] = zeros_blk       # position 34 (right pad)

    # ---- conv1: cin = 1, so the three taps are cheap VPU outer products (f32) ----
    x = x_ref[...]                                     # (576, 1) position-major, padded
    w1 = w1_ref[...]                                   # (3, 256)
    h = (x[0:M_SAME] * w1[0:1, :]
         + x[TB:TB + M_SAME] * w1[1:2, :]
         + x[2 * TB:2 * TB + M_SAME] * w1[2:3, :]
         + b1_ref[...])
    pad_ref[TB:TB + M_SAME, :] = jnp.maximum(h, 0.0)

    # ---- conv2 applied TWICE with the SAME weights (as in the nn.Module) ----
    for _ in range(2):
        t0 = pad_ref[0:M_SAME, :].astype(jnp.bfloat16)
        t1 = pad_ref[TB:TB + M_SAME, :].astype(jnp.bfloat16)
        t2 = pad_ref[2 * TB:2 * TB + M_SAME, :].astype(jnp.bfloat16)
        y = (jnp.dot(t0, w2_ref[0], preferred_element_type=jnp.float32)
             + jnp.dot(t1, w2_ref[1], preferred_element_type=jnp.float32)
             + jnp.dot(t2, w2_ref[2], preferred_element_type=jnp.float32)
             + b2_ref[...])
        pad_ref[TB:TB + M_SAME, :] = jnp.maximum(y, 0.0)

    # ---- conv_last: valid conv, 34 -> 32 positions, 256 -> 32 channels ----
    u0 = pad_ref[TB:TB + M_VALID, :].astype(jnp.bfloat16)
    u1 = pad_ref[2 * TB:2 * TB + M_VALID, :].astype(jnp.bfloat16)
    u2 = pad_ref[3 * TB:3 * TB + M_VALID, :].astype(jnp.bfloat16)
    g = (jnp.dot(u0, wl_ref[0], preferred_element_type=jnp.float32)
         + jnp.dot(u1, wl_ref[1], preferred_element_type=jnp.float32)
         + jnp.dot(u2, wl_ref[2], preferred_element_type=jnp.float32)
         + bl_ref[...])
    g = jnp.maximum(g, 0.0).astype(jnp.bfloat16)       # (512, 32) = (pos*TB+b, ch)

    # ---- fused fc1@fc2 head (no nonlinearity between them in the module) ----
    # wf_ref[p] is the (32ch, 128) block of the folded (1024 -> 34, zero-padded)
    # weight for conv position p; rows for position p are the contiguous slice
    # g[p*TB:(p+1)*TB], so the channel-major PyTorch .view never materializes.
    acc = jnp.zeros((TB, N_PAD), jnp.float32)
    for p in range(L_OUT):
        acc = acc + jnp.dot(g[p * TB:(p + 1) * TB, :], wf_ref[p],
                            preferred_element_type=jnp.float32)
    logits = acc + bf_ref[...]                         # padded classes get -1e30 bias

    m = jnp.max(logits, axis=-1, keepdims=True)
    e = jnp.exp(logits - m)                            # exp(-1e30 - m) == 0 on pads
    out_ref[...] = e / jnp.sum(e, axis=-1, keepdims=True)


def discard_model_forward(x, params):
    """x: (B, 1, 34) float32 in PyTorch NCL layout. Returns (B, 34) softmax probs."""
    B = x.shape[0]
    nb = pl.cdiv(B, TB)
    B_pad = nb * TB

    # Position-major input column with the 'same' zero padding already in place:
    # row i*576 + (p+1)*TB + b  holds  x[b_global, p]  (p = -1 and 34 are zeros).
    x2 = jnp.pad(x.reshape(B, L_IN).astype(jnp.float32),
                 ((0, B_pad - B), (1, 1)))                      # (B_pad, 36)
    x_pm = jnp.transpose(x2.reshape(nb, TB, Q), (0, 2, 1)).reshape(nb * ROWS_PAD, 1)

    probs = pl.pallas_call(
        _discard_kernel,
        out_shape=jax.ShapeDtypeStruct((B_pad, N_PAD), jnp.float32),
        grid_spec=pltpu.PrefetchScalarGridSpec(
            num_scalar_prefetch=0,
            grid=(nb,),
            in_specs=[
                pl.BlockSpec((ROWS_PAD, 1), lambda i: (i, 0)),        # input column
                pl.BlockSpec((3, C), lambda i: (0, 0)),               # conv1 w (f32)
                pl.BlockSpec((1, C), lambda i: (0, 0)),               # conv1 b
                pl.BlockSpec((3, C, C), lambda i: (0, 0, 0)),         # conv2 w (bf16)
                pl.BlockSpec((1, C), lambda i: (0, 0)),               # conv2 b
                pl.BlockSpec((3, C, C_LAST), lambda i: (0, 0, 0)),    # conv_last w (bf16)
                pl.BlockSpec((1, C_LAST), lambda i: (0, 0)),          # conv_last b
                pl.BlockSpec((L_OUT, C_LAST, N_PAD), lambda i: (0, 0, 0)),  # folded fc w
                pl.BlockSpec((1, N_PAD), lambda i: (0, 0)),           # folded fc b
            ],
            out_specs=pl.BlockSpec((TB, N_PAD), lambda i: (i, 0)),
            scratch_shapes=[pltpu.VMEM((ROWS_PAD, C), jnp.float32)],
        ),
        compiler_params=pltpu.CompilerParams(dimension_semantics=("parallel",)),
    )(x_pm, params["w1"], params["b1"], params["w2"], params["b2"],
      params["wl"], params["bl"], params["wf"], params["bf"])

    return probs[:B, :N_CLASSES]


# --------------------------- parameters --------------------------------------

def init_torch_params(key):
    """Deterministic synthetic parameters in the *PyTorch* layouts."""
    FLAT = L_OUT * C_LAST
    FC_H = 256
    ks = jax.random.split(key, 10)
    return {
        "conv1_w": 0.50 * jax.random.normal(ks[0], (C, 1, 3), jnp.float32),
        "conv1_b": 0.10 * jax.random.normal(ks[1], (C,), jnp.float32),
        "conv2_w": 0.04 * jax.random.normal(ks[2], (C, C, 3), jnp.float32),
        "conv2_b": 0.04 * jax.random.normal(ks[3], (C,), jnp.float32),
        "convl_w": 0.04 * jax.random.normal(ks[4], (C_LAST, C, 3), jnp.float32),
        "convl_b": 0.04 * jax.random.normal(ks[5], (C_LAST,), jnp.float32),
        "fc1_w": 0.03 * jax.random.normal(ks[6], (FC_H, FLAT), jnp.float32),
        "fc1_b": 0.03 * jax.random.normal(ks[7], (FC_H,), jnp.float32),
        "fc2_w": 0.06 * jax.random.normal(ks[8], (N_CLASSES, FC_H), jnp.float32),
        "fc2_b": 0.06 * jax.random.normal(ks[9], (N_CLASSES,), jnp.float32),
    }


def prepare_params(tp):
    """PyTorch layouts -> kernel layouts (transposes, fc fold, bf16 casts)."""
    hi = jax.lax.Precision.HIGHEST
    p = {}
    # Conv1d weight (cout, cin, k) -> [k, cin, cout]
    p["w1"] = jnp.transpose(tp["conv1_w"], (2, 1, 0))[:, 0, :]               # (3, 256) f32
    p["b1"] = tp["conv1_b"][None, :]
    p["w2"] = jnp.transpose(tp["conv2_w"], (2, 1, 0)).astype(jnp.bfloat16)   # (3, 256, 256)
    p["b2"] = tp["conv2_b"][None, :]
    p["wl"] = jnp.transpose(tp["convl_w"], (2, 1, 0)).astype(jnp.bfloat16)   # (3, 256, 32)
    p["bl"] = tp["convl_b"][None, :]
    # fc2(fc1(v)) is linear (no ReLU in between in the module): fold offline in f32.
    wf = jnp.dot(tp["fc2_w"], tp["fc1_w"], precision=hi)                     # (34, 1024)
    bf = jnp.dot(tp["fc2_w"], tp["fc1_b"], precision=hi) + tp["fc2_b"]       # (34,)
    # PyTorch flatten index j = ch*32 + pos; re-block per conv position for the kernel.
    wf3 = wf.T.reshape(C_LAST, L_OUT, N_CLASSES)            # [ch, pos, out]
    wf3 = jnp.transpose(wf3, (1, 0, 2))                     # [pos, ch, out]
    p["wf"] = jnp.pad(wf3, ((0, 0), (0, 0), (0, N_PAD - N_CLASSES))
                      ).astype(jnp.bfloat16)                                  # (32, 32, 128)
    p["bf"] = jnp.pad(bf, (0, N_PAD - N_CLASSES),
                      constant_values=-1e30)[None, :]                         # (1, 128) f32
    return p


# --------------------------- pure-JAX reference -------------------------------

def reference_forward(x, tp):
    """Float32 reference with exact PyTorch semantics (PyTorch-layout params)."""
    B = x.shape[0]

    def conv_same(h, w, b):                       # h (B,Cin,L), w (Cout,Cin,3)
        L = h.shape[-1]
        hp = jnp.pad(h, ((0, 0), (0, 0), (1, 1)))
        out = sum(jnp.einsum('bcl,oc->bol', hp[:, :, k:k + L], w[:, :, k])
                  for k in range(3))
        return out + b[None, :, None]

    def conv_valid(h, w, b):
        L = h.shape[-1] - 2
        out = sum(jnp.einsum('bcl,oc->bol', h[:, :, k:k + L], w[:, :, k])
                  for k in range(3))
        return out + b[None, :, None]

    h = jax.nn.relu(conv_same(x, tp["conv1_w"], tp["conv1_b"]))
    for _ in range(2):
        h = jax.nn.relu(conv_same(h, tp["conv2_w"], tp["conv2_b"]))
    h = jax.nn.relu(conv_valid(h, tp["convl_w"], tp["convl_b"]))
    v = h.reshape(B, -1)                                       # channel-major .view
    z = v @ tp["fc1_w"].T + tp["fc1_b"]
    logits = z @ tp["fc2_w"].T + tp["fc2_b"]
    return jax.nn.softmax(logits, axis=1)


if __name__ == "__main__":
    key = jax.random.PRNGKey(0)
    pkey, xkey = jax.random.split(key)
    torch_params = init_torch_params(pkey)
    params = prepare_params(torch_params)

    B = 2
    x = jax.random.normal(xkey, (B, 1, L_IN), jnp.float32)     # PyTorch NCL input

    fwd = jax.jit(discard_model_forward)
    out = jax.block_until_ready(fwd(x, params))

    assert out.shape == (B, N_CLASSES), out.shape
    assert bool(jnp.all(jnp.isfinite(out)))
    assert bool(jnp.allclose(jnp.sum(out, axis=1), 1.0, atol=1e-4))  # softmax rows sum to 1

    ref = reference_forward(x, torch_params)
    err = float(jnp.max(jnp.abs(out - ref)))
    assert err < 1e-2, f"max |pallas - reference| = {err}"

    print("KERNEL_OK")
</pallas_src>

<mosaic_0001>
module attributes {stable_mosaic.version = 11 : i64} {
  func.func @_discard_kernel(%arg0: i32, %arg1: memref<576x1xf32, #tpu.memory_space<vmem>>, %arg2: memref<3x256xf32, #tpu.memory_space<vmem>>, %arg3: memref<1x256xf32, #tpu.memory_space<vmem>>, %arg4: memref<3x256x256xbf16, #tpu.memory_space<vmem>>, %arg5: memref<1x256xf32, #tpu.memory_space<vmem>>, %arg6: memref<3x256x32xbf16, #tpu.memory_space<vmem>>, %arg7: memref<1x32xf32, #tpu.memory_space<vmem>>, %arg8: memref<32x32x128xbf16, #tpu.memory_space<vmem>>, %arg9: memref<1x128xf32, #tpu.memory_space<vmem>>, %arg10: memref<16x128xf32, #tpu.memory_space<vmem>>, %arg11: memref<576x256xf32, #tpu.memory_space<vmem>>) attributes {dimension_semantics = [#tpu.dimension_semantics<parallel>], iteration_bounds = array<i64: 1>, scalar_prefetch = 0 : i64, scratch_operands = 1 : i64, tpu.core_type = #tpu.core_type<tc>, window_params = [{transform_indices = @transform_0, window_bounds = array<i64: 576, 1>}, {pipeline_mode = #tpu.pipeline_mode<synchronous>, transform_indices = @transform_1, window_bounds = array<i64: 3, 256>}, {pipeline_mode = #tpu.pipeline_mode<synchronous>, transform_indices = @transform_2, window_bounds = array<i64: 1, 256>}, {pipeline_mode = #tpu.pipeline_mode<synchronous>, transform_indices = @transform_3, window_bounds = array<i64: 3, 256, 256>}, {pipeline_mode = #tpu.pipeline_mode<synchronous>, transform_indices = @transform_4, window_bounds = array<i64: 1, 256>}, {pipeline_mode = #tpu.pipeline_mode<synchronous>, transform_indices = @transform_5, window_bounds = array<i64: 3, 256, 32>}, {pipeline_mode = #tpu.pipeline_mode<synchronous>, transform_indices = @transform_6, window_bounds = array<i64: 1, 32>}, {pipeline_mode = #tpu.pipeline_mode<synchronous>, transform_indices = @transform_7, window_bounds = array<i64: 32, 32, 128>}, {pipeline_mode = #tpu.pipeline_mode<synchronous>, transform_indices = @transform_8, window_bounds = array<i64: 1, 128>}, {transform_indices = @transform_9, window_bounds = array<i64: 16, 128>}]} {
    %cst = arith.constant 0.000000e+00 : f32
    %0 = vector.broadcast %cst : f32 to vector<16x256xf32>
    %c0 = arith.constant 0 : index
    %c0_0 = arith.constant 0 : index
    %1 = vector.load %arg11[%c0, %c0_0] : memref<576x256xf32, #tpu.memory_space<vmem>>, vector<16x256xf32>
    tpu.vector_store %arg11[%c0, %c0_0], %0 {strides = array<i32>} : memref<576x256xf32, #tpu.memory_space<vmem>>, vector<16x256xf32>,
    %c560 = arith.constant 560 : index
    %c0_1 = arith.constant 0 : index
    %2 = vector.load %arg11[%c560, %c0_1] : memref<576x256xf32, #tpu.memory_space<vmem>>, vector<16x256xf32>
    tpu.vector_store %arg11[%c560, %c0_1], %0 {strides = array<i32>} : memref<576x256xf32, #tpu.memory_space<vmem>>, vector<16x256xf32>,
    %c0_2 = arith.constant 0 : index
    %c0_3 = arith.constant 0 : index
    %3 = vector.load %arg1[%c0_2, %c0_3] : memref<576x1xf32, #tpu.memory_space<vmem>>, vector<576x1xf32>
    %c0_4 = arith.constant 0 : index
    %c0_5 = arith.constant 0 : index
    %4 = vector.load %arg2[%c0_4, %c0_5] : memref<3x256xf32, #tpu.memory_space<vmem>>, vector<3x256xf32>
    %5 = vector.extract_strided_slice %3 {offsets = [0, 0], sizes = [544, 1], strides = [1, 1]} : vector<576x1xf32> to vector<544x1xf32>
    %6 = vector.extract_strided_slice %4 {offsets = [0, 0], sizes = [1, 256], strides = [1, 1]} : vector<3x256xf32> to vector<1x256xf32>
    %7 = vector.broadcast %5 : vector<544x1xf32> to vector<544x256xf32>
    %8 = vector.broadcast %6 : vector<1x256xf32> to vector<544x256xf32>
    %9 = arith.mulf %7, %8 : vector<544x256xf32>
    %10 = vector.extract_strided_slice %3 {offsets = [16, 0], sizes = [544, 1], strides = [1, 1]} : vector<576x1xf32> to vector<544x1xf32>
    %11 = vector.extract_strided_slice %4 {offsets = [1, 0], sizes = [1, 256], strides = [1, 1]} : vector<3x256xf32> to vector<1x256xf32>
    %12 = vector.broadcast %10 : vector<544x1xf32> to vector<544x256xf32>
    %13 = vector.broadcast %11 : vector<1x256xf32> to vector<544x256xf32>
    %14 = arith.mulf %12, %13 : vector<544x256xf32>
    %15 = arith.addf %9, %14 : vector<544x256xf32>
    %16 = vector.extract_strided_slice %3 {offsets = [32, 0], sizes = [544, 1], strides = [1, 1]} : vector<576x1xf32> to vector<544x1xf32>
    %17 = vector.extract_strided_slice %4 {offsets = [2, 0], sizes = [1, 256], strides = [1, 1]} : vector<3x256xf32> to vector<1x256xf32>
    %18 = vector.broadcast %16 : vector<544x1xf32> to vector<544x256xf32>
    %19 = vector.broadcast %17 : vector<1x256xf32> to vector<544x256xf32>
    %20 = arith.mulf %18, %19 : vector<544x256xf32>
    %21 = arith.addf %15, %20 : vector<544x256xf32>
    %c0_6 = arith.constant 0 : index
    %c0_7 = arith.constant 0 : index
    %22 = vector.load %arg3[%c0_6, %c0_7] : memref<1x256xf32, #tpu.memory_space<vmem>>, vector<1x256xf32>
    %23 = vector.broadcast %22 : vector<1x256xf32> to vector<544x256xf32>
    %24 = arith.addf %21, %23 : vector<544x256xf32>
    %cst_8 = arith.constant 0.000000e+00 : f32
    %25 = vector.broadcast %cst_8 : f32 to vector<544x256xf32>
    %26 = arith.maximumf %24, %25 : vector<544x256xf32>
    %c16 = arith.constant 16 : index
    %c0_9 = arith.constant 0 : index
    %27 = vector.load %arg11[%c16, %c0_9] : memref<576x256xf32, #tpu.memory_space<vmem>>, vector<544x256xf32>
    tpu.vector_store %arg11[%c16, %c0_9], %26 {strides = array<i32>} : memref<576x256xf32, #tpu.memory_space<vmem>>, vector<544x256xf32>,
    %c0_10 = arith.constant 0 : index
    %c0_11 = arith.constant 0 : index
    %28 = vector.load %arg11[%c0_10, %c0_11] : memref<576x256xf32, #tpu.memory_space<vmem>>, vector<544x256xf32>
    %29 = arith.truncf %28 : vector<544x256xf32> to vector<544x256xbf16>
    %c16_12 = arith.constant 16 : index
    %c0_13 = arith.constant 0 : index
    %30 = vector.load %arg11[%c16_12, %c0_13] : memref<576x256xf32, #tpu.memory_space<vmem>>, vector<544x256xf32>
    %31 = arith.truncf %30 : vector<544x256xf32> to vector<544x256xbf16>
    %c32 = arith.constant 32 : index
    %c0_14 = arith.constant 0 : index
    %32 = vector.load %arg11[%c32, %c0_14] : memref<576x256xf32, #tpu.memory_space<vmem>>, vector<544x256xf32>
    %33 = arith.truncf %32 : vector<544x256xf32> to vector<544x256xbf16>
    %c0_15 = arith.constant 0 : index
    %c0_16 = arith.constant 0 : index
    %c0_17 = arith.constant 0 : index
    %34 = vector.load %arg4[%c0_15, %c0_16, %c0_17] : memref<3x256x256xbf16, #tpu.memory_space<vmem>>, vector<1x256x256xbf16>
    %35 = vector.shape_cast %34 : vector<1x256x256xbf16> to vector<256x256xbf16>
    %cst_18 = arith.constant dense<0.000000e+00> : vector<544x256xf32>
    %36 = tpu.matmul %29, %35, %cst_18 {dimension_numbers = #tpu.dot_dimension_numbers<[1], [0], [0], [1], [0, 0, 1, 1], [], []>} : vector<544x256xbf16>, vector<256x256xbf16>, vector<544x256xf32> -> vector<544x256xf32>
    %c1 = arith.constant 1 : index
    %c0_19 = arith.constant 0 : index
    %c0_20 = arith.constant 0 : index
    %37 = vector.load %arg4[%c1, %c0_19, %c0_20] : memref<3x256x256xbf16, #tpu.memory_space<vmem>>, vector<1x256x256xbf16>
    %38 = vector.shape_cast %37 : vector<1x256x256xbf16> to vector<256x256xbf16>
    %cst_21 = arith.constant dense<0.000000e+00> : vector<544x256xf32>
    %39 = tpu.matmul %31, %38, %cst_21 {dimension_numbers = #tpu.dot_dimension_numbers<[1], [0], [0], [1], [0, 0, 1, 1], [], []>} : vector<544x256xbf16>, vector<256x256xbf16>, vector<544x256xf32> -> vector<544x256xf32>
    %40 = arith.addf %36, %39 : vector<544x256xf32>
    %c2 = arith.constant 2 : index
    %c0_22 = arith.constant 0 : index
    %c0_23 = arith.constant 0 : index
    %41 = vector.load %arg4[%c2, %c0_22, %c0_23] : memref<3x256x256xbf16, #tpu.memory_space<vmem>>, vector<1x256x256xbf16>
    %42 = vector.shape_cast %41 : vector<1x256x256xbf16> to vector<256x256xbf16>
    %cst_24 = arith.constant dense<0.000000e+00> : vector<544x256xf32>
    %43 = tpu.matmul %33, %42, %cst_24 {dimension_numbers = #tpu.dot_dimension_numbers<[1], [0], [0], [1], [0, 0, 1, 1], [], []>} : vector<544x256xbf16>, vector<256x256xbf16>, vector<544x256xf32> -> vector<544x256xf32>
    %44 = arith.addf %40, %43 : vector<544x256xf32>
    %c0_25 = arith.constant 0 : index
    %c0_26 = arith.constant 0 : index
    %45 = vector.load %arg5[%c0_25, %c0_26] : memref<1x256xf32, #tpu.memory_space<vmem>>, vector<1x256xf32>
    %46 = vector.broadcast %45 : vector<1x256xf32> to vector<544x256xf32>
    %47 = arith.addf %44, %46 : vector<544x256xf32>
    %cst_27 = arith.constant 0.000000e+00 : f32
    %48 = vector.broadcast %cst_27 : f32 to vector<544x256xf32>
    %49 = arith.maximumf %47, %48 : vector<544x256xf32>
    %c16_28 = arith.constant 16 : index
    %c0_29 = arith.constant 0 : index
    %50 = vector.load %arg11[%c16_28, %c0_29] : memref<576x256xf32, #tpu.memory_space<vmem>>, vector<544x256xf32>
    tpu.vector_store %arg11[%c16_28, %c0_29], %49 {strides = array<i32>} : memref<576x256xf32, #tpu.memory_space<vmem>>, vector<544x256xf32>,
    %c0_30 = arith.constant 0 : index
    %c0_31 = arith.constant 0 : index
    %51 = vector.load %arg11[%c0_30, %c0_31] : memref<576x256xf32, #tpu.memory_space<vmem>>, vector<544x256xf32>
    %52 = arith.truncf %51 : vector<544x256xf32> to vector<544x256xbf16>
    %c16_32 = arith.constant 16 : index
    %c0_33 = arith.constant 0 : index
    %53 = vector.load %arg11[%c16_32, %c0_33] : memref<576x256xf32, #tpu.memory_space<vmem>>, vector<544x256xf32>
    %54 = arith.truncf %53 : vector<544x256xf32> to vector<544x256xbf16>
    %c32_34 = arith.constant 32 : index
    %c0_35 = arith.constant 0 : index
    %55 = vector.load %arg11[%c32_34, %c0_35] : memref<576x256xf32, #tpu.memory_space<vmem>>, vector<544x256xf32>
    %56 = arith.truncf %55 : vector<544x256xf32> to vector<544x256xbf16>
    %c0_36 = arith.constant 0 : index
    %c0_37 = arith.constant 0 : index
    %c0_38 = arith.constant 0 : index
    %57 = vector.load %arg4[%c0_36, %c0_37, %c0_38] : memref<3x256x256xbf16, #tpu.memory_space<vmem>>, vector<1x256x256xbf16>
    %58 = vector.shape_cast %57 : vector<1x256x256xbf16> to vector<256x256xbf16>
    %cst_39 = arith.constant dense<0.000000e+00> : vector<544x256xf32>
    %59 = tpu.matmul %52, %58, %cst_39 {dimension_numbers = #tpu.dot_dimension_numbers<[1], [0], [0], [1], [0, 0, 1, 1], [], []>} : vector<544x256xbf16>, vector<256x256xbf16>, vector<544x256xf32> -> vector<544x256xf32>
    %c1_40 = arith.constant 1 : index
    %c0_41 = arith.constant 0 : index
    %c0_42 = arith.constant 0 : index
    %60 = vector.load %arg4[%c1_40, %c0_41, %c0_42] : memref<3x256x256xbf16, #tpu.memory_space<vmem>>, vector<1x256x256xbf16>
    %61 = vector.shape_cast %60 : vector<1x256x256xbf16> to vector<256x256xbf16>
    %cst_43 = arith.constant dense<0.000000e+00> : vector<544x256xf32>
    %62 = tpu.matmul %54, %61, %cst_43 {dimension_numbers = #tpu.dot_dimension_numbers<[1], [0], [0], [1], [0, 0, 1, 1], [], []>} : vector<544x256xbf16>, vector<256x256xbf16>, vector<544x256xf32> -> vector<544x256xf32>
    %63 = arith.addf %59, %62 : vector<544x256xf32>
    %c2_44 = arith.constant 2 : index
    %c0_45 = arith.constant 0 : index
    %c0_46 = arith.constant 0 : index
    %64 = vector.load %arg4[%c2_44, %c0_45, %c0_46] : memref<3x256x256xbf16, #tpu.memory_space<vmem>>, vector<1x256x256xbf16>
    %65 = vector.shape_cast %64 : vector<1x256x256xbf16> to vector<256x256xbf16>
    %cst_47 = arith.constant dense<0.000000e+00> : vector<544x256xf32>
    %66 = tpu.matmul %56, %65, %cst_47 {dimension_numbers = #tpu.dot_dimension_numbers<[1], [0], [0], [1], [0, 0, 1, 1], [], []>} : vector<544x256xbf16>, vector<256x256xbf16>, vector<544x256xf32> -> vector<544x256xf32>
    %67 = arith.addf %63, %66 : vector<544x256xf32>
    %c0_48 = arith.constant 0 : index
    %c0_49 = arith.constant 0 : index
    %68 = vector.load %arg5[%c0_48, %c0_49] : memref<1x256xf32, #tpu.memory_space<vmem>>, vector<1x256xf32>
    %69 = vector.broadcast %68 : vector<1x256xf32> to vector<544x256xf32>
    %70 = arith.addf %67, %69 : vector<544x256xf32>
    %cst_50 = arith.constant 0.000000e+00 : f32
    %71 = vector.broadcast %cst_50 : f32 to vector<544x256xf32>
    %72 = arith.maximumf %70, %71 : vector<544x256xf32>
    %c16_51 = arith.constant 16 : index
    %c0_52 = arith.constant 0 : index
    %73 = vector.load %arg11[%c16_51, %c0_52] : memref<576x256xf32, #tpu.memory_space<vmem>>, vector<544x256xf32>
    tpu.vector_store %arg11[%c16_51, %c0_52], %72 {strides = array<i32>} : memref<576x256xf32, #tpu.memory_space<vmem>>, vector<544x256xf32>,
    %c16_53 = arith.constant 16 : index
    %c0_54 = arith.constant 0 : index
    %74 = vector.load %arg11[%c16_53, %c0_54] : memref<576x256xf32, #tpu.memory_space<vmem>>, vector<512x256xf32>
    %75 = arith.truncf %74 : vector<512x256xf32> to vector<512x256xbf16>
    %c32_55 = arith.constant 32 : index
    %c0_56 = arith.constant 0 : index
    %76 = vector.load %arg11[%c32_55, %c0_56] : memref<576x256xf32, #tpu.memory_space<vmem>>, vector<512x256xf32>
    %77 = arith.truncf %76 : vector<512x256xf32> to vector<512x256xbf16>
    %c48 = arith.constant 48 : index
    %c0_57 = arith.constant 0 : index
    %78 = vector.load %arg11[%c48, %c0_57] : memref<576x256xf32, #tpu.memory_space<vmem>>, vector<512x256xf32>
    %79 = arith.truncf %78 : vector<512x256xf32> to vector<512x256xbf16>
    %c0_58 = arith.constant 0 : index
    %c0_59 = arith.constant 0 : index
    %c0_60 = arith.constant 0 : index
    %80 = vector.load %arg6[%c0_58, %c0_59, %c0_60] : memref<3x256x32xbf16, #tpu.memory_space<vmem>>, vector<1x256x32xbf16>
    %81 = vector.shape_cast %80 : vector<1x256x32xbf16> to vector<256x32xbf16>
    %cst_61 = arith.constant dense<0.000000e+00> : vector<512x32xf32>
    %82 = tpu.matmul %75, %81, %cst_61 {dimension_numbers = #tpu.dot_dimension_numbers<[1], [0], [0], [1], [0, 0, 1, 1], [], []>} : vector<512x256xbf16>, vector<256x32xbf16>, vector<512x32xf32> -> vector<512x32xf32>
    %c1_62 = arith.constant 1 : index
    %c0_63 = arith.constant 0 : index
    %c0_64 = arith.constant 0 : index
    %83 = vector.load %arg6[%c1_62, %c0_63, %c0_64] : memref<3x256x32xbf16, #tpu.memory_space<vmem>>, vector<1x256x32xbf16>
    %84 = vector.shape_cast %83 : vector<1x256x32xbf16> to vector<256x32xbf16>
    %cst_65 = arith.constant dense<0.000000e+00> : vector<512x32xf32>
    %85 = tpu.matmul %77, %84, %cst_65 {dimension_numbers = #tpu.dot_dimension_numbers<[1], [0], [0], [1], [0, 0, 1, 1], [], []>} : vector<512x256xbf16>, vector<256x32xbf16>, vector<512x32xf32> -> vector<512x32xf32>
    %86 = arith.addf %82, %85 : vector<512x32xf32>
    %c2_66 = arith.constant 2 : index
    %c0_67 = arith.constant 0 : index
    %c0_68 = arith.constant 0 : index
    %87 = vector.load %arg6[%c2_66, %c0_67, %c0_68] : memref<3x256x32xbf16, #tpu.memory_space<vmem>>, vector<1x256x32xbf16>
    %88 = vector.shape_cast %87 : vector<1x256x32xbf16> to vector<256x32xbf16>
    %cst_69 = arith.constant dense<0.000000e+00> : vector<512x32xf32>
    %89 = tpu.matmul %79, %88, %cst_69 {dimension_numbers = #tpu.dot_dimension_numbers<[1], [0], [0], [1], [0, 0, 1, 1], [], []>} : vector<512x256xbf16>, vector<256x32xbf16>, vector<512x32xf32> -> vector<512x32xf32>
    %90 = arith.addf %86, %89 : vector<512x32xf32>
    %c0_70 = arith.constant 0 : index
    %c0_71 = arith.constant 0 : index
    %91 = vector.load %arg7[%c0_70, %c0_71] : memref<1x32xf32, #tpu.memory_space<vmem>>, vector<1x32xf32>
    %92 = vector.broadcast %91 : vector<1x32xf32> to vector<512x32xf32>
    %93 = arith.addf %90, %92 : vector<512x32xf32>
    %cst_72 = arith.constant 0.000000e+00 : f32
    %94 = vector.broadcast %cst_72 : f32 to vector<512x32xf32>
    %95 = arith.maximumf %93, %94 : vector<512x32xf32>
    %96 = arith.truncf %95 : vector<512x32xf32> to vector<512x32xbf16>
    %cst_73 = arith.constant 0.000000e+00 : f32
    %97 = vector.broadcast %cst_73 : f32 to vector<16x128xf32>
    %98 = vector.extract_strided_slice %96 {offsets = [0, 0], sizes = [16, 32], strides = [1, 1]} : vector<512x32xbf16> to vector<16x32xbf16>
    %c0_74 = arith.constant 0 : index
    %c0_75 = arith.constant 0 : index
    %c0_76 = arith.constant 0 : index
    %99 = vector.load %arg8[%c0_74, %c0_75, %c0_76] : memref<32x32x128xbf16, #tpu.memory_space<vmem>>, vector<1x32x128xbf16>
    %100 = vector.shape_cast %99 : vector<1x32x128xbf16> to vector<32x128xbf16>
    %cst_77 = arith.constant dense<0.000000e+00> : vector<16x128xf32>
    %101 = tpu.matmul %98, %100, %cst_77 {dimension_numbers = #tpu.dot_dimension_numbers<[1], [0], [0], [1], [0, 0, 1, 1], [], []>} : vector<16x32xbf16>, vector<32x128xbf16>, vector<16x128xf32> -> vector<16x128xf32>
    %102 = arith.addf %97, %101 : vector<16x128xf32>
    %103 = vector.extract_strided_slice %96 {offsets = [16, 0], sizes = [16, 32], strides = [1, 1]} : vector<512x32xbf16> to vector<16x32xbf16>
    %c1_78 = arith.constant 1 : index
    %c0_79 = arith.constant 0 : index
    %c0_80 = arith.constant 0 : index
    %104 = vector.load %arg8[%c1_78, %c0_79, %c0_80] : memref<32x32x128xbf16, #tpu.memory_space<vmem>>, vector<1x32x128xbf16>
    %105 = vector.shape_cast %104 : vector<1x32x128xbf16> to vector<32x128xbf16>
    %cst_81 = arith.constant dense<0.000000e+00> : vector<16x128xf32>
    %106 = tpu.matmul %103, %105, %cst_81 {dimension_numbers = #tpu.dot_dimension_numbers<[1], [0], [0], [1], [0, 0, 1, 1], [], []>} : vector<16x32xbf16>, vector<32x128xbf16>, vector<16x128xf32> -> vector<16x128xf32>
    %107 = arith.addf %102, %106 : vector<16x128xf32>
    %108 = vector.extract_strided_slice %96 {offsets = [32, 0], sizes = [16, 32], strides = [1, 1]} : vector<512x32xbf16> to vector<16x32xbf16>
    %c2_82 = arith.constant 2 : index
    %c0_83 = arith.constant 0 : index
    %c0_84 = arith.constant 0 : index
    %109 = vector.load %arg8[%c2_82, %c0_83, %c0_84] : memref<32x32x128xbf16, #tpu.memory_space<vmem>>, vector<1x32x128xbf16>
    %110 = vector.shape_cast %109 : vector<1x32x128xbf16> to vector<32x128xbf16>
    %cst_85 = arith.constant dense<0.000000e+00> : vector<16x128xf32>
    %111 = tpu.matmul %108, %110, %cst_85 {dimension_numbers = #tpu.dot_dimension_numbers<[1], [0], [0], [1], [0, 0, 1, 1], [], []>} : vector<16x32xbf16>, vector<32x128xbf16>, vector<16x128xf32> -> vector<16x128xf32>
    %112 = arith.addf %107, %111 : vector<16x128xf32>
    %113 = vector.extract_strided_slice %96 {offsets = [48, 0], sizes = [16, 32], strides = [1, 1]} : vector<512x32xbf16> to vector<16x32xbf16>
    %c3 = arith.constant 3 : index
    %c0_86 = arith.constant 0 : index
    %c0_87 = arith.constant 0 : index
    %114 = vector.load %arg8[%c3, %c0_86, %c0_87] : memref<32x32x128xbf16, #tpu.memory_space<vmem>>, vector<1x32x128xbf16>
    %115 = vector.shape_cast %114 : vector<1x32x128xbf16> to vector<32x128xbf16>
    %cst_88 = arith.constant dense<0.000000e+00> : vector<16x128xf32>
    %116 = tpu.matmul %113, %115, %cst_88 {dimension_numbers = #tpu.dot_dimension_numbers<[1], [0], [0], [1], [0, 0, 1, 1], [], []>} : vector<16x32xbf16>, vector<32x128xbf16>, vector<16x128xf32> -> vector<16x128xf32>
    %117 = arith.addf %112, %116 : vector<16x128xf32>
    %118 = vector.extract_strided_slice %96 {offsets = [64, 0], sizes = [16, 32], strides = [1, 1]} : vector<512x32xbf16> to vector<16x32xbf16>
    %c4 = arith.constant 4 : index
    %c0_89 = arith.constant 0 : index
    %c0_90 = arith.constant 0 : index
    %119 = vector.load %arg8[%c4, %c0_89, %c0_90] : memref<32x32x128xbf16, #tpu.memory_space<vmem>>, vector<1x32x128xbf16>
    %120 = vector.shape_cast %119 : vector<1x32x128xbf16> to vector<32x128xbf16>
    %cst_91 = arith.constant dense<0.000000e+00> : vector<16x128xf32>
    %121 = tpu.matmul %118, %120, %cst_91 {dimension_numbers = #tpu.dot_dimension_numbers<[1], [0], [0], [1], [0, 0, 1, 1], [], []>} : vector<16x32xbf16>, vector<32x128xbf16>, vector<16x128xf32> -> vector<16x128xf32>
    %122 = arith.addf %117, %121 : vector<16x128xf32>
    %123 = vector.extract_strided_slice %96 {offsets = [80, 0], sizes = [16, 32], strides = [1, 1]} : vector<512x32xbf16> to vector<16x32xbf16>
    %c5 = arith.constant 5 : index
    %c0_92 = arith.constant 0 : index
    %c0_93 = arith.constant 0 : index
    %124 = vector.load %arg8[%c5, %c0_92, %c0_93] : memref<32x32x128xbf16, #tpu.memory_space<vmem>>, vector<1x32x128xbf16>
    %125 = vector.shape_cast %124 : vector<1x32x128xbf16> to vector<32x128xbf16>
    %cst_94 = arith.constant dense<0.000000e+00> : vector<16x128xf32>
    %126 = tpu.matmul %123, %125, %cst_94 {dimension_numbers = #tpu.dot_dimension_numbers<[1], [0], [0], [1], [0, 0, 1, 1], [], []>} : vector<16x32xbf16>, vector<32x128xbf16>, vector<16x128xf32> -> vector<16x128xf32>
    %127 = arith.addf %122, %126 : vector<16x128xf32>
    %128 = vector.extract_strided_slice %96 {offsets = [96, 0], sizes = [16, 32], strides = [1, 1]} : vector<512x32xbf16> to vector<16x32xbf16>
    %c6 = arith.constant 6 : index
    %c0_95 = arith.constant 0 : index
    %c0_96 = arith.constant 0 : index
    %129 = vector.load %arg8[%c6, %c0_95, %c0_96] : memref<32x32x128xbf16, #tpu.memory_space<vmem>>, vector<1x32x128xbf16>
    %130 = vector.shape_cast %129 : vector<1x32x128xbf16> to vector<32x128xbf16>
    %cst_97 = arith.constant dense<0.000000e+00> : vector<16x128xf32>
    %131 = tpu.matmul %128, %130, %cst_97 {dimension_numbers = #tpu.dot_dimension_numbers<[1], [0], [0], [1], [0, 0, 1, 1], [], []>} : vector<16x32xbf16>, vector<32x128xbf16>, vector<16x128xf32> -> vector<16x128xf32>
    %132 = arith.addf %127, %131 : vector<16x128xf32>
    %133 = vector.extract_strided_slice %96 {offsets = [112, 0], sizes = [16, 32], strides = [1, 1]} : vector<512x32xbf16> to vector<16x32xbf16>
    %c7 = arith.constant 7 : index
    %c0_98 = arith.constant 0 : index
    %c0_99 = arith.constant 0 : index
    %134 = vector.load %arg8[%c7, %c0_98, %c0_99] : memref<32x32x128xbf16, #tpu.memory_space<vmem>>, vector<1x32x128xbf16>
    %135 = vector.shape_cast %134 : vector<1x32x128xbf16> to vector<32x128xbf16>
    %cst_100 = arith.constant dense<0.000000e+00> : vector<16x128xf32>
    %136 = tpu.matmul %133, %135, %cst_100 {dimension_numbers = #tpu.dot_dimension_numbers<[1], [0], [0], [1], [0, 0, 1, 1], [], []>} : vector<16x32xbf16>, vector<32x128xbf16>, vector<16x128xf32> -> vector<16x128xf32>
    %137 = arith.addf %132, %136 : vector<16x128xf32>
    %138 = vector.extract_strided_slice %96 {offsets = [128, 0], sizes = [16, 32], strides = [1, 1]} : vector<512x32xbf16> to vector<16x32xbf16>
    %c8 = arith.constant 8 : index
    %c0_101 = arith.constant 0 : index
    %c0_102 = arith.constant 0 : index
    %139 = vector.load %arg8[%c8, %c0_101, %c0_102] : memref<32x32x128xbf16, #tpu.memory_space<vmem>>, vector<1x32x128xbf16>
    %140 = vector.shape_cast %139 : vector<1x32x128xbf16> to vector<32x128xbf16>
    %cst_103 = arith.constant dense<0.000000e+00> : vector<16x128xf32>
    %141 = tpu.matmul %138, %140, %cst_103 {dimension_numbers = #tpu.dot_dimension_numbers<[1], [0], [0], [1], [0, 0, 1, 1], [], []>} : vector<16x32xbf16>, vector<32x128xbf16>, vector<16x128xf32> -> vector<16x128xf32>
    %142 = arith.addf %137, %141 : vector<16x128xf32>
    %143 = vector.extract_strided_slice %96 {offsets = [144, 0], sizes = [16, 32], strides = [1, 1]} : vector<512x32xbf16> to vector<16x32xbf16>
    %c9 = arith.constant 9 : index
    %c0_104 = arith.constant 0 : index
    %c0_105 = arith.constant 0 : index
    %144 = vector.load %arg8[%c9, %c0_104, %c0_105] : memref<32x32x128xbf16, #tpu.memory_space<vmem>>, vector<1x32x128xbf16>
    %145 = vector.shape_cast %144 : vector<1x32x128xbf16> to vector<32x128xbf16>
    %cst_106 = arith.constant dense<0.000000e+00> : vector<16x128xf32>
    %146 = tpu.matmul %143, %145, %cst_106 {dimension_numbers = #tpu.dot_dimension_numbers<[1], [0], [0], [1], [0, 0, 1, 1], [], []>} : vector<16x32xbf16>, vector<32x128xbf16>, vector<16x128xf32> -> vector<16x128xf32>
    %147 = arith.addf %142, %146 : vector<16x128xf32>
    %148 = vector.extract_strided_slice %96 {offsets = [160, 0], sizes = [16, 32], strides = [1, 1]} : vector<512x32xbf16> to vector<16x32xbf16>
    %c10 = arith.constant 10 : index
    %c0_107 = arith.constant 0 : index
    %c0_108 = arith.constant 0 : index
    %149 = vector.load %arg8[%c10, %c0_107, %c0_108] : memref<32x32x128xbf16, #tpu.memory_space<vmem>>, vector<1x32x128xbf16>
    %150 = vector.shape_cast %149 : vector<1x32x128xbf16> to vector<32x128xbf16>
    %cst_109 = arith.constant dense<0.000000e+00> : vector<16x128xf32>
    %151 = tpu.matmul %148, %150, %cst_109 {dimension_numbers = #tpu.dot_dimension_numbers<[1], [0], [0], [1], [0, 0, 1, 1], [], []>} : vector<16x32xbf16>, vector<32x128xbf16>, vector<16x128xf32> -> vector<16x128xf32>
    %152 = arith.addf %147, %151 : vector<16x128xf32>
    %153 = vector.extract_strided_slice %96 {offsets = [176, 0], sizes = [16, 32], strides = [1, 1]} : vector<512x32xbf16> to vector<16x32xbf16>
    %c11 = arith.constant 11 : index
    %c0_110 = arith.constant 0 : index
    %c0_111 = arith.constant 0 : index
    %154 = vector.load %arg8[%c11, %c0_110, %c0_111] : memref<32x32x128xbf16, #tpu.memory_space<vmem>>, vector<1x32x128xbf16>
    %155 = vector.shape_cast %154 : vector<1x32x128xbf16> to vector<32x128xbf16>
    %cst_112 = arith.constant dense<0.000000e+00> : vector<16x128xf32>
    %156 = tpu.matmul %153, %155, %cst_112 {dimension_numbers = #tpu.dot_dimension_numbers<[1], [0], [0], [1], [0, 0, 1, 1], [], []>} : vector<16x32xbf16>, vector<32x128xbf16>, vector<16x128xf32> -> vector<16x128xf32>
    %157 = arith.addf %152, %156 : vector<16x128xf32>
    %158 = vector.extract_strided_slice %96 {offsets = [192, 0], sizes = [16, 32], strides = [1, 1]} : vector<512x32xbf16> to vector<16x32xbf16>
    %c12 = arith.constant 12 : index
    %c0_113 = arith.constant 0 : index
    %c0_114 = arith.constant 0 : index
    %159 = vector.load %arg8[%c12, %c0_113, %c0_114] : memref<32x32x128xbf16, #tpu.memory_space<vmem>>, vector<1x32x128xbf16>
    %160 = vector.shape_cast %159 : vector<1x32x128xbf16> to vector<32x128xbf16>
    %cst_115 = arith.constant dense<0.000000e+00> : vector<16x128xf32>
    %161 = tpu.matmul %158, %160, %cst_115 {dimension_numbers = #tpu.dot_dimension_numbers<[1], [0], [0], [1], [0, 0, 1, 1], [], []>} : vector<16x32xbf16>, vector<32x128xbf16>, vector<16x128xf32> -> vector<16x128xf32>
    %162 = arith.addf %157, %161 : vector<16x128xf32>
    %163 = vector.extract_strided_slice %96 {offsets = [208, 0], sizes = [16, 32], strides = [1, 1]} : vector<512x32xbf16> to vector<16x32xbf16>
    %c13 = arith.constant 13 : index
    %c0_116 = arith.constant 0 : index
    %c0_117 = arith.constant 0 : index
    %164 = vector.load %arg8[%c13, %c0_116, %c0_117] : memref<32x32x128xbf16, #tpu.memory_space<vmem>>, vector<1x32x128xbf16>
    %165 = vector.shape_cast %164 : vector<1x32x128xbf16> to vector<32x128xbf16>
    %cst_118 = arith.constant dense<0.000000e+00> : vector<16x128xf32>
    %166 = tpu.matmul %163, %165, %cst_118 {dimension_numbers = #tpu.dot_dimension_numbers<[1], [0], [0], [1], [0, 0, 1, 1], [], []>} : vector<16x32xbf16>, vector<32x128xbf16>, vector<16x128xf32> -> vector<16x128xf32>
    %167 = arith.addf %162, %166 : vector<16x128xf32>
    %168 = vector.extract_strided_slice %96 {offsets = [224, 0], sizes = [16, 32], strides = [1, 1]} : vector<512x32xbf16> to vector<16x32xbf16>
    %c14 = arith.constant 14 : index
    %c0_119 = arith.constant 0 : index
    %c0_120 = arith.constant 0 : index
    %169 = vector.load %arg8[%c14, %c0_119, %c0_120] : memref<32x32x128xbf16, #tpu.memory_space<vmem>>, vector<1x32x128xbf16>
    %170 = vector.shape_cast %169 : vector<1x32x128xbf16> to vector<32x128xbf16>
    %cst_121 = arith.constant dense<0.000000e+00> : vector<16x128xf32>
    %171 = tpu.matmul %168, %170, %cst_121 {dimension_numbers = #tpu.dot_dimension_numbers<[1], [0], [0], [1], [0, 0, 1, 1], [], []>} : vector<16x32xbf16>, vector<32x128xbf16>, vector<16x128xf32> -> vector<16x128xf32>
    %172 = arith.addf %167, %171 : vector<16x128xf32>
    %173 = vector.extract_strided_slice %96 {offsets = [240, 0], sizes = [16, 32], strides = [1, 1]} : vector<512x32xbf16> to vector<16x32xbf16>
    %c15 = arith.constant 15 : index
    %c0_122 = arith.constant 0 : index
    %c0_123 = arith.constant 0 : index
    %174 = vector.load %arg8[%c15, %c0_122, %c0_123] : memref<32x32x128xbf16, #tpu.memory_space<vmem>>, vector<1x32x128xbf16>
    %175 = vector.shape_cast %174 : vector<1x32x128xbf16> to vector<32x128xbf16>
    %cst_124 = arith.constant dense<0.000000e+00> : vector<16x128xf32>
    %176 = tpu.matmul %173, %175, %cst_124 {dimension_numbers = #tpu.dot_dimension_numbers<[1], [0], [0], [1], [0, 0, 1, 1], [], []>} : vector<16x32xbf16>, vector<32x128xbf16>, vector<16x128xf32> -> vector<16x128xf32>
    %177 = arith.addf %172, %176 : vector<16x128xf32>
    %178 = vector.extract_strided_slice %96 {offsets = [256, 0], sizes = [16, 32], strides = [1, 1]} : vector<512x32xbf16> to vector<16x32xbf16>
    %c16_125 = arith.constant 16 : index
    %c0_126 = arith.constant 0 : index
    %c0_127 = arith.constant 0 : index
    %179 = vector.load %arg8[%c16_125, %c0_126, %c0_127] : memref<32x32x128xbf16, #tpu.memory_space<vmem>>, vector<1x32x128xbf16>
    %180 = vector.shape_cast %179 : vector<1x32x128xbf16> to vector<32x128xbf16>
    %cst_128 = arith.constant dense<0.000000e+00> : vector<16x128xf32>
    %181 = tpu.matmul %178, %180, %cst_128 {dimension_numbers = #tpu.dot_dimension_numbers<[1], [0], [0], [1], [0, 0, 1, 1], [], []>} : vector<16x32xbf16>, vector<32x128xbf16>, vector<16x128xf32> -> vector<16x128xf32>
    %182 = arith.addf %177, %181 : vector<16x128xf32>
    %183 = vector.extract_strided_slice %96 {offsets = [272, 0], sizes = [16, 32], strides = [1, 1]} : vector<512x32xbf16> to vector<16x32xbf16>
    %c17 = arith.constant 17 : index
    %c0_129 = arith.constant 0 : index
    %c0_130 = arith.constant 0 : index
    %184 = vector.load %arg8[%c17, %c0_129, %c0_130] : memref<32x32x128xbf16, #tpu.memory_space<vmem>>, vector<1x32x128xbf16>
    %185 = vector.shape_cast %184 : vector<1x32x128xbf16> to vector<32x128xbf16>
    %cst_131 = arith.constant dense<0.000000e+00> : vector<16x128xf32>
    %186 = tpu.matmul %183, %185, %cst_131 {dimension_numbers = #tpu.dot_dimension_numbers<[1], [0], [0], [1], [0, 0, 1, 1], [], []>} : vector<16x32xbf16>, vector<32x128xbf16>, vector<16x128xf32> -> vector<16x128xf32>
    %187 = arith.addf %182, %186 : vector<16x128xf32>
    %188 = vector.extract_strided_slice %96 {offsets = [288, 0], sizes = [16, 32], strides = [1, 1]} : vector<512x32xbf16> to vector<16x32xbf16>
    %c18 = arith.constant 18 : index
    %c0_132 = arith.constant 0 : index
    %c0_133 = arith.constant 0 : index
    %189 = vector.load %arg8[%c18, %c0_132, %c0_133] : memref<32x32x128xbf16, #tpu.memory_space<vmem>>, vector<1x32x128xbf16>
    %190 = vector.shape_cast %189 : vector<1x32x128xbf16> to vector<32x128xbf16>
    %cst_134 = arith.constant dense<0.000000e+00> : vector<16x128xf32>
    %191 = tpu.matmul %188, %190, %cst_134 {dimension_numbers = #tpu.dot_dimension_numbers<[1], [0], [0], [1], [0, 0, 1, 1], [], []>} : vector<16x32xbf16>, vector<32x128xbf16>, vector<16x128xf32> -> vector<16x128xf32>
    %192 = arith.addf %187, %191 : vector<16x128xf32>
    %193 = vector.extract_strided_slice %96 {offsets = [304, 0], sizes = [16, 32], strides = [1, 1]} : vector<512x32xbf16> to vector<16x32xbf16>
    %c19 = arith.constant 19 : index
    %c0_135 = arith.constant 0 : index
    %c0_136 = arith.constant 0 : index
    %194 = vector.load %arg8[%c19, %c0_135, %c0_136] : memref<32x32x128xbf16, #tpu.memory_space<vmem>>, vector<1x32x128xbf16>
    %195 = vector.shape_cast %194 : vector<1x32x128xbf16> to vector<32x128xbf16>
    %cst_137 = arith.constant dense<0.000000e+00> : vector<16x128xf32>
    %196 = tpu.matmul %193, %195, %cst_137 {dimension_numbers = #tpu.dot_dimension_numbers<[1], [0], [0], [1], [0, 0, 1, 1], [], []>} : vector<16x32xbf16>, vector<32x128xbf16>, vector<16x128xf32> -> vector<16x128xf32>
    %197 = arith.addf %192, %196 : vector<16x128xf32>
    %198 = vector.extract_strided_slice %96 {offsets = [320, 0], sizes = [16, 32], strides = [1, 1]} : vector<512x32xbf16> to vector<16x32xbf16>
    %c20 = arith.constant 20 : index
    %c0_138 = arith.constant 0 : index
    %c0_139 = arith.constant 0 : index
    %199 = vector.load %arg8[%c20, %c0_138, %c0_139] : memref<32x32x128xbf16, #tpu.memory_space<vmem>>, vector<1x32x128xbf16>
    %200 = vector.shape_cast %199 : vector<1x32x128xbf16> to vector<32x128xbf16>
    %cst_140 = arith.constant dense<0.000000e+00> : vector<16x128xf32>
    %201 = tpu.matmul %198, %200, %cst_140 {dimension_numbers = #tpu.dot_dimension_numbers<[1], [0], [0], [1], [0, 0, 1, 1], [], []>} : vector<16x32xbf16>, vector<32x128xbf16>, vector<16x128xf32> -> vector<16x128xf32>
    %202 = arith.addf %197, %201 : vector<16x128xf32>
    %203 = vector.extract_strided_slice %96 {offsets = [336, 0], sizes = [16, 32], strides = [1, 1]} : vector<512x32xbf16> to vector<16x32xbf16>
    %c21 = arith.constant 21 : index
    %c0_141 = arith.constant 0 : index
    %c0_142 = arith.constant 0 : index
    %204 = vector.load %arg8[%c21, %c0_141, %c0_142] : memref<32x32x128xbf16, #tpu.memory_space<vmem>>, vector<1x32x128xbf16>
    %205 = vector.shape_cast %204 : vector<1x32x128xbf16> to vector<32x128xbf16>
    %cst_143 = arith.constant dense<0.000000e+00> : vector<16x128xf32>
    %206 = tpu.matmul %203, %205, %cst_143 {dimension_numbers = #tpu.dot_dimension_numbers<[1], [0], [0], [1], [0, 0, 1, 1], [], []>} : vector<16x32xbf16>, vector<32x128xbf16>, vector<16x128xf32> -> vector<16x128xf32>
    %207 = arith.addf %202, %206 : vector<16x128xf32>
    %208 = vector.extract_strided_slice %96 {offsets = [352, 0], sizes = [16, 32], strides = [1, 1]} : vector<512x32xbf16> to vector<16x32xbf16>
    %c22 = arith.constant 22 : index
    %c0_144 = arith.constant 0 : index
    %c0_145 = arith.constant 0 : index
    %209 = vector.load %arg8[%c22, %c0_144, %c0_145] : memref<32x32x128xbf16, #tpu.memory_space<vmem>>, vector<1x32x128xbf16>
    %210 = vector.shape_cast %209 : vector<1x32x128xbf16> to vector<32x128xbf16>
    %cst_146 = arith.constant dense<0.000000e+00> : vector<16x128xf32>
    %211 = tpu.matmul %208, %210, %cst_146 {dimension_numbers = #tpu.dot_dimension_numbers<[1], [0], [0], [1], [0, 0, 1, 1], [], []>} : vector<16x32xbf16>, vector<32x128xbf16>, vector<16x128xf32> -> vector<16x128xf32>
    %212 = arith.addf %207, %211 : vector<16x128xf32>
    %213 = vector.extract_strided_slice %96 {offsets = [368, 0], sizes = [16, 32], strides = [1, 1]} : vector<512x32xbf16> to vector<16x32xbf16>
    %c23 = arith.constant 23 : index
    %c0_147 = arith.constant 0 : index
    %c0_148 = arith.constant 0 : index
    %214 = vector.load %arg8[%c23, %c0_147, %c0_148] : memref<32x32x128xbf16, #tpu.memory_space<vmem>>, vector<1x32x128xbf16>
    %215 = vector.shape_cast %214 : vector<1x32x128xbf16> to vector<32x128xbf16>
    %cst_149 = arith.constant dense<0.000000e+00> : vector<16x128xf32>
    %216 = tpu.matmul %213, %215, %cst_149 {dimension_numbers = #tpu.dot_dimension_numbers<[1], [0], [0], [1], [0, 0, 1, 1], [], []>} : vector<16x32xbf16>, vector<32x128xbf16>, vector<16x128xf32> -> vector<16x128xf32>
    %217 = arith.addf %212, %216 : vector<16x128xf32>
    %218 = vector.extract_strided_slice %96 {offsets = [384, 0], sizes = [16, 32], strides = [1, 1]} : vector<512x32xbf16> to vector<16x32xbf16>
    %c24 = arith.constant 24 : index
    %c0_150 = arith.constant 0 : index
    %c0_151 = arith.constant 0 : index
    %219 = vector.load %arg8[%c24, %c0_150, %c0_151] : memref<32x32x128xbf16, #tpu.memory_space<vmem>>, vector<1x32x128xbf16>
    %220 = vector.shape_cast %219 : vector<1x32x128xbf16> to vector<32x128xbf16>
    %cst_152 = arith.constant dense<0.000000e+00> : vector<16x128xf32>
    %221 = tpu.matmul %218, %220, %cst_152 {dimension_numbers = #tpu.dot_dimension_numbers<[1], [0], [0], [1], [0, 0, 1, 1], [], []>} : vector<16x32xbf16>, vector<32x128xbf16>, vector<16x128xf32> -> vector<16x128xf32>
    %222 = arith.addf %217, %221 : vector<16x128xf32>
    %223 = vector.extract_strided_slice %96 {offsets = [400, 0], sizes = [16, 32], strides = [1, 1]} : vector<512x32xbf16> to vector<16x32xbf16>
    %c25 = arith.constant 25 : index
    %c0_153 = arith.constant 0 : index
    %c0_154 = arith.constant 0 : index
    %224 = vector.load %arg8[%c25, %c0_153, %c0_154] : memref<32x32x128xbf16, #tpu.memory_space<vmem>>, vector<1x32x128xbf16>
    %225 = vector.shape_cast %224 : vector<1x32x128xbf16> to vector<32x128xbf16>
    %cst_155 = arith.constant dense<0.000000e+00> : vector<16x128xf32>
    %226 = tpu.matmul %223, %225, %cst_155 {dimension_numbers = #tpu.dot_dimension_numbers<[1], [0], [0], [1], [0, 0, 1, 1], [], []>} : vector<16x32xbf16>, vector<32x128xbf16>, vector<16x128xf32> -> vector<16x128xf32>
    %227 = arith.addf %222, %226 : vector<16x128xf32>
    %228 = vector.extract_strided_slice %96 {offsets = [416, 0], sizes = [16, 32], strides = [1, 1]} : vector<512x32xbf16> to vector<16x32xbf16>
    %c26 = arith.constant 26 : index
    %c0_156 = arith.constant 0 : index
    %c0_157 = arith.constant 0 : index
    %229 = vector.load %arg8[%c26, %c0_156, %c0_157] : memref<32x32x128xbf16, #tpu.memory_space<vmem>>, vector<1x32x128xbf16>
    %230 = vector.shape_cast %229 : vector<1x32x128xbf16> to vector<32x128xbf16>
    %cst_158 = arith.constant dense<0.000000e+00> : vector<16x128xf32>
    %231 = tpu.matmul %228, %230, %cst_158 {dimension_numbers = #tpu.dot_dimension_numbers<[1], [0], [0], [1], [0, 0, 1, 1], [], []>} : vector<16x32xbf16>, vector<32x128xbf16>, vector<16x128xf32> -> vector<16x128xf32>
    %232 = arith.addf %227, %231 : vector<16x128xf32>
    %233 = vector.extract_strided_slice %96 {offsets = [432, 0], sizes = [16, 32], strides = [1, 1]} : vector<512x32xbf16> to vector<16x32xbf16>
    %c27 = arith.constant 27 : index
    %c0_159 = arith.constant 0 : index
    %c0_160 = arith.constant 0 : index
    %234 = vector.load %arg8[%c27, %c0_159, %c0_160] : memref<32x32x128xbf16, #tpu.memory_space<vmem>>, vector<1x32x128xbf16>
    %235 = vector.shape_cast %234 : vector<1x32x128xbf16> to vector<32x128xbf16>
    %cst_161 = arith.constant dense<0.000000e+00> : vector<16x128xf32>
    %236 = tpu.matmul %233, %235, %cst_161 {dimension_numbers = #tpu.dot_dimension_numbers<[1], [0], [0], [1], [0, 0, 1, 1], [], []>} : vector<16x32xbf16>, vector<32x128xbf16>, vector<16x128xf32> -> vector<16x128xf32>
    %237 = arith.addf %232, %236 : vector<16x128xf32>
    %238 = vector.extract_strided_slice %96 {offsets = [448, 0], sizes = [16, 32], strides = [1, 1]} : vector<512x32xbf16> to vector<16x32xbf16>
    %c28 = arith.constant 28 : index
    %c0_162 = arith.constant 0 : index
    %c0_163 = arith.constant 0 : index
    %239 = vector.load %arg8[%c28, %c0_162, %c0_163] : memref<32x32x128xbf16, #tpu.memory_space<vmem>>, vector<1x32x128xbf16>
    %240 = vector.shape_cast %239 : vector<1x32x128xbf16> to vector<32x128xbf16>
    %cst_164 = arith.constant dense<0.000000e+00> : vector<16x128xf32>
    %241 = tpu.matmul %238, %240, %cst_164 {dimension_numbers = #tpu.dot_dimension_numbers<[1], [0], [0], [1], [0, 0, 1, 1], [], []>} : vector<16x32xbf16>, vector<32x128xbf16>, vector<16x128xf32> -> vector<16x128xf32>
    %242 = arith.addf %237, %241 : vector<16x128xf32>
    %243 = vector.extract_strided_slice %96 {offsets = [464, 0], sizes = [16, 32], strides = [1, 1]} : vector<512x32xbf16> to vector<16x32xbf16>
    %c29 = arith.constant 29 : index
    %c0_165 = arith.constant 0 : index
    %c0_166 = arith.constant 0 : index
    %244 = vector.load %arg8[%c29, %c0_165, %c0_166] : memref<32x32x128xbf16, #tpu.memory_space<vmem>>, vector<1x32x128xbf16>
    %245 = vector.shape_cast %244 : vector<1x32x128xbf16> to vector<32x128xbf16>
    %cst_167 = arith.constant dense<0.000000e+00> : vector<16x128xf32>
    %246 = tpu.matmul %243, %245, %cst_167 {dimension_numbers = #tpu.dot_dimension_numbers<[1], [0], [0], [1], [0, 0, 1, 1], [], []>} : vector<16x32xbf16>, vector<32x128xbf16>, vector<16x128xf32> -> vector<16x128xf32>
    %247 = arith.addf %242, %246 : vector<16x128xf32>
    %248 = vector.extract_strided_slice %96 {offsets = [480, 0], sizes = [16, 32], strides = [1, 1]} : vector<512x32xbf16> to vector<16x32xbf16>
    %c30 = arith.constant 30 : index
    %c0_168 = arith.constant 0 : index
    %c0_169 = arith.constant 0 : index
    %249 = vector.load %arg8[%c30, %c0_168, %c0_169] : memref<32x32x128xbf16, #tpu.memory_space<vmem>>, vector<1x32x128xbf16>
    %250 = vector.shape_cast %249 : vector<1x32x128xbf16> to vector<32x128xbf16>
    %cst_170 = arith.constant dense<0.000000e+00> : vector<16x128xf32>
    %251 = tpu.matmul %248, %250, %cst_170 {dimension_numbers = #tpu.dot_dimension_numbers<[1], [0], [0], [1], [0, 0, 1, 1], [], []>} : vector<16x32xbf16>, vector<32x128xbf16>, vector<16x128xf32> -> vector<16x128xf32>
    %252 = arith.addf %247, %251 : vector<16x128xf32>
    %253 = vector.extract_strided_slice %96 {offsets = [496, 0], sizes = [16, 32], strides = [1, 1]} : vector<512x32xbf16> to vector<16x32xbf16>
    %c31 = arith.constant 31 : index
    %c0_171 = arith.constant 0 : index
    %c0_172 = arith.constant 0 : index
    %254 = vector.load %arg8[%c31, %c0_171, %c0_172] : memref<32x32x128xbf16, #tpu.memory_space<vmem>>, vector<1x32x128xbf16>
    %255 = vector.shape_cast %254 : vector<1x32x128xbf16> to vector<32x128xbf16>
    %cst_173 = arith.constant dense<0.000000e+00> : vector<16x128xf32>
    %256 = tpu.matmul %253, %255, %cst_173 {dimension_numbers = #tpu.dot_dimension_numbers<[1], [0], [0], [1], [0, 0, 1, 1], [], []>} : vector<16x32xbf16>, vector<32x128xbf16>, vector<16x128xf32> -> vector<16x128xf32>
    %257 = arith.addf %252, %256 : vector<16x128xf32>
    %c0_174 = arith.constant 0 : index
    %c0_175 = arith.constant 0 : index
    %258 = vector.load %arg9[%c0_174, %c0_175] : memref<1x128xf32, #tpu.memory_space<vmem>>, vector<1x128xf32>
    %259 = vector.broadcast %258 : vector<1x128xf32> to vector<16x128xf32>
    %260 = arith.addf %257, %259 : vector<16x128xf32>
    %cst_176 = arith.constant dense<0xFF800000> : vector<16xf32>
    %261 = vector.multi_reduction <maximumf>, %260, %cst_176 [1] : vector<16x128xf32> to vector<16xf32>
    %262 = vector.shape_cast %261 : vector<16xf32> to vector<16x1xf32>
    %263 = vector.broadcast %262 : vector<16x1xf32> to vector<16x128xf32>
    %264 = arith.subf %260, %263 : vector<16x128xf32>
    %265 = math.exp %264 : vector<16x128xf32>
    %cst_177 = arith.constant dense<0.000000e+00> : vector<16xf32>
    %266 = vector.multi_reduction <add>, %265, %cst_177 [1] : vector<16x128xf32> to vector<16xf32>
    %267 = vector.shape_cast %266 : vector<16xf32> to vector<16x1xf32>
    %268 = vector.broadcast %267 : vector<16x1xf32> to vector<16x128xf32>
    %269 = arith.divf %265, %268 : vector<16x128xf32>
    %c0_178 = arith.constant 0 : index
    %c0_179 = arith.constant 0 : index
    %270 = vector.load %arg10[%c0_178, %c0_179] : memref<16x128xf32, #tpu.memory_space<vmem>>, vector<16x128xf32>
    tpu.vector_store %arg10[%c0_178, %c0_179], %269 {strides = array<i32>} : memref<16x128xf32, #tpu.memory_space<vmem>>, vector<16x128xf32>,
    return
  }
  func.func @transform_0(%arg0: i32) -> (i32, i32) {
    %c0_i32 = arith.constant 0 : i32
    %c0_i32_0 = arith.constant 0 : i32
    return %arg0, %c0_i32 : i32, i32
  }
  func.func @transform_1(%arg0: i32) -> (i32, i32) {
    %c0_i32 = arith.constant 0 : i32
    %c0_i32_0 = arith.constant 0 : i32
    %c0_i32_1 = arith.constant 0 : i32
    return %c0_i32, %c0_i32_0 : i32, i32
  }
  func.func @transform_2(%arg0: i32) -> (i32, i32) {
    %c0_i32 = arith.constant 0 : i32
    %c0_i32_0 = arith.constant 0 : i32
    %c0_i32_1 = arith.constant 0 : i32
    return %c0_i32, %c0_i32_0 : i32, i32
  }
  func.func @transform_3(%arg0: i32) -> (i32, i32, i32) {
    %c0_i32 = arith.constant 0 : i32
    %c0_i32_0 = arith.constant 0 : i32
    %c0_i32_1 = arith.constant 0 : i32
    %c0_i32_2 = arith.constant 0 : i32
    return %c0_i32, %c0_i32_0, %c0_i32_1 : i32, i32, i32
  }
  func.func @transform_4(%arg0: i32) -> (i32, i32) {
    %c0_i32 = arith.constant 0 : i32
    %c0_i32_0 = arith.constant 0 : i32
    %c0_i32_1 = arith.constant 0 : i32
    return %c0_i32, %c0_i32_0 : i32, i32
  }
  func.func @transform_5(%arg0: i32) -> (i32, i32, i32) {
    %c0_i32 = arith.constant 0 : i32
    %c0_i32_0 = arith.constant 0 : i32
    %c0_i32_1 = arith.constant 0 : i32
    %c0_i32_2 = arith.constant 0 : i32
    return %c0_i32, %c0_i32_0, %c0_i32_1 : i32, i32, i32
  }
  func.func @transform_6(%arg0: i32) -> (i32, i32) {
    %c0_i32 = arith.constant 0 : i32
    %c0_i32_0 = arith.constant 0 : i32
    %c0_i32_1 = arith.constant 0 : i32
    return %c0_i32, %c0_i32_0 : i32, i32
  }
  func.func @transform_7(%arg0: i32) -> (i32, i32, i32) {
    %c0_i32 = arith.constant 0 : i32
    %c0_i32_0 = arith.constant 0 : i32
    %c0_i32_1 = arith.constant 0 : i32
    %c0_i32_2 = arith.constant 0 : i32
    return %c0_i32, %c0_i32_0, %c0_i32_1 : i32, i32, i32
  }
  func.func @transform_8(%arg0: i32) -> (i32, i32) {
    %c0_i32 = arith.constant 0 : i32
    %c0_i32_0 = arith.constant 0 : i32
    %c0_i32_1 = arith.constant 0 : i32
    return %c0_i32, %c0_i32_0 : i32, i32
  }
  func.func @transform_9(%arg0: i32) -> (i32, i32) {
    %c0_i32 = arith.constant 0 : i32
    %c0_i32_0 = arith.constant 0 : i32
    return %arg0, %c0_i32 : i32, i32
  }
}

</mosaic_0001>

<llo_original>
// kernel: discard_model_forward.1
$region0: #{discard_model_forward.1}
  #allocation0 [shape = 'u32[]', space=smem, size = 0x4, offset = 0x4, fixed_abs, tag = 'smem constant byte address 0x4 - core index']
  #allocation1 [shape = 'u32[144,128]{1,0:T(1,128)}', space=vmem, size = 0x12000, scoped, tag = 'internal scratch']
  #allocation2 [shape = 'f32[576,256]{1,0:T(8,128)}', space=vmem, size = 0x90000, scoped, tag = 'scratch operand']
  %s0 = inlined_call_operand.vmem [shape: f32[576,1], index: 0, kind: input, shape index: {}]
  %s1 = inlined_call_operand.vmem [shape: f32[3,256], index: 1, kind: input, shape index: {}]
  %s2 = inlined_call_operand.vmem [shape: f32[1,256], index: 2, kind: input, shape index: {}]
  %s3 = inlined_call_operand.vmem [shape: bf16[3,256,256], index: 3, kind: input, shape index: {}]
  %s4 = inlined_call_operand.vmem [shape: f32[1,256], index: 4, kind: input, shape index: {}]
  %s5 = inlined_call_operand.vmem [shape: bf16[3,256,32], index: 5, kind: input, shape index: {}]
  %s6 = inlined_call_operand.vmem [shape: f32[1,32], index: 6, kind: input, shape index: {}]
  %s7 = inlined_call_operand.hbm [shape: bf16[32,32,128], index: 7, kind: input, shape index: {}]
  %s8 = inlined_call_operand.vmem [shape: f32[1,128], index: 8, kind: input, shape index: {}]
  %s9 = inlined_call_operand.vmem [shape: f32[16,128], index: 9, kind: output, shape index: {}]
  %s10 = sld [smem:[#allocation0]]
  $region50: #{discard_model_forward.1} parent=0
    _
  %s12 = ssub.s32 1, %s10
  %s13 = scalar_select 0, %s12, %s10
  $region1: #{discard_model_forward.1} parent=0
    #allocation3 [shape = 'u8[262144]{0}', space=vmem, size = 0x40000, scoped, tag = 'input window, operand 7, single buffered']
    #allocation4 [shape = 's32[1]{0}', space=sflag, size = 0x4, scoped, tag = 'scoped memory for discard_model_forward.1']
    %14 = vsyncpa [#allocation4], 0
    // Predicated region
    $region2: #{discard_model_forward.1} parent=1 // pred_check
      _
    $region3: #{discard_model_forward.1} parent=1 // pred_check_branch
      %16 = sbr.rel (0) target = $region5
    $region4: #{discard_model_forward.1} parent=1 // pred_region
      _
    $region5: #{discard_model_forward.1} parent=1 // pred_fallthru
      _
    // Predicated region
    $region6: #{discard_model_forward.1} parent=1 // pred_check
      _
    $region7: #{discard_model_forward.1} parent=1 // pred_check_branch
      %18 = sbr.rel (0) target = $region9
    $region8: #{discard_model_forward.1} parent=1 // pred_region
      _
    $region9: #{discard_model_forward.1} parent=1 // pred_fallthru
      _
    // Predicated region
    $region10: #{discard_model_forward.1} parent=1 // pred_check
      _
    $region11: #{discard_model_forward.1} parent=1 // pred_check_branch
      %20 = sbr.rel (0) target = $region13
    $region12: #{discard_model_forward.1} parent=1 // pred_region
      _
    $region13: #{discard_model_forward.1} parent=1 // pred_fallthru
      _
    // Predicated region
    $region14: #{discard_model_forward.1} parent=1 // pred_check
      _
    $region15: #{discard_model_forward.1} parent=1 // pred_check_branch
      %22 = sbr.rel (0) target = $region17
    $region16: #{discard_model_forward.1} parent=1 // pred_region
      _
    $region17: #{discard_model_forward.1} parent=1 // pred_fallthru
      _
    // Predicated region
    $region18: #{discard_model_forward.1} parent=1 // pred_check
      _
    $region19: #{discard_model_forward.1} parent=1 // pred_check_branch
      %24 = sbr.rel (0) target = $region21
    $region20: #{discard_model_forward.1} parent=1 // pred_region
      _
    $region21: #{discard_model_forward.1} parent=1 // pred_fallthru
      _
    // Predicated region
    $region22: #{discard_model_forward.1} parent=1 // pred_check
      _
    $region23: #{discard_model_forward.1} parent=1 // pred_check_branch
      %26 = sbr.rel (0) target = $region25
    $region24: #{discard_model_forward.1} parent=1 // pred_region
      _
    $region25: #{discard_model_forward.1} parent=1 // pred_fallthru
      _
    // Predicated region
    $region26: #{discard_model_forward.1} parent=1 // pred_check
      _
    $region27: #{discard_model_forward.1} parent=1 // pred_check_branch
      %28 = sbr.rel (0) target = $region29
    $region28: #{discard_model_forward.1} parent=1 // pred_region
      _
    $region29: #{discard_model_forward.1} parent=1 // pred_fallthru
      _
    // Predicated region
    $region30: #{discard_model_forward.1} parent=1 // pred_check
      _
    $region31: #{discard_model_forward.1} parent=1 // pred_check_branch
      %30 = sbr.rel (0) target = $region33
    $region32: #{discard_model_forward.1} parent=1 // pred_region
      %s32 = ssub.s32 8192, 8192
      %33 = vsyncadd [#allocation4], %s32
      %s34 = sshll.u32 [#allocation3], 4
      %s35 = int_to_ptr.vmem [resolvable:$true] %s34
      %40 = dma.hbm_to_vmem [thread:$0]  %s7, 8192, %s35, [#allocation4], 64, 64, 4
    $region33: #{discard_model_forward.1} parent=1 // pred_fallthru
      _
    // Predicated region
    $region34: #{discard_model_forward.1} parent=1 // pred_check
      _
    $region35: #{discard_model_forward.1} parent=1 // pred_check_branch
      %42 = sbr.rel (0) target = $region37
    $region36: #{discard_model_forward.1} parent=1 // pred_region
      _
    $region37: #{discard_model_forward.1} parent=1 // pred_fallthru
      _
    // Predicated region
    $region38: #{discard_model_forward.1} parent=1 // pred_check
      _
    $region39: #{discard_model_forward.1} parent=1 // pred_check_branch
      %44 = sbr.rel (0) target = $region41
    $region40: #{discard_model_forward.1} parent=1 // pred_region
      %45 = dma.done [#allocation4], 8192
    $region41: #{discard_model_forward.1} parent=1 // pred_fallthru
      _
    %47 = vst [vmem:[#allocation2] sm:$0xff] 0.0
    %48 = vst [vmem:[#allocation2 + $0x8] sm:$0xff] 0.0
    %49 = vst [vmem:[#allocation2 + $0x10] sm:$0xff] 0.0
    %50 = vst [vmem:[#allocation2 + $0x18] sm:$0xff] 0.0
    %51 = vst [vmem:[#allocation2 + $0x460] sm:$0xff] 0.0
    %52 = vst [vmem:[#allocation2 + $0x468] sm:$0xff] 0.0
    %53 = vst [vmem:[#allocation2 + $0x470] sm:$0xff] 0.0
    %54 = vst [vmem:[#allocation2 + $0x478] sm:$0xff] 0.0
    %v55 = vld [vmem:[%s0] sm:$0xff]
    %v56 = vld [vmem:[%s0 + $0x8] sm:$0xff]
    %v57 = vld [vmem:[%s0 + $0x10] sm:$0xff]
    %v58 = vld [vmem:[%s0 + $0x18] sm:$0xff]
    %v59 = vld [vmem:[%s0 + $0x20] sm:$0xff]
    %v60 = vld [vmem:[%s0 + $0x28] sm:$0xff]
    %v61 = vld [vmem:[%s0 + $0x30] sm:$0xff]
    %v62 = vld [vmem:[%s0 + $0x38] sm:$0xff]
    %v63 = vld [vmem:[%s0 + $0x40] sm:$0xff]
    %v64 = vld [vmem:[%s0 + $0x48] sm:$0xff]
    %v65 = vld [vmem:[%s0 + $0x50] sm:$0xff]
    %v66 = vld [vmem:[%s0 + $0x58] sm:$0xff]
    %v67 = vld [vmem:[%s0 + $0x60] sm:$0xff]
    %v68 = vld [vmem:[%s0 + $0x68] sm:$0xff]
    %v69 = vld [vmem:[%s0 + $0x70] sm:$0xff]
    %v70 = vld [vmem:[%s0 + $0x78] sm:$0xff]
    %v71 = vld [vmem:[%s0 + $0x80] sm:$0xff]
    %v72 = vld [vmem:[%s0 + $0x88] sm:$0xff]
    %v73 = vld [vmem:[%s0 + $0x90] sm:$0xff]
    %v74 = vld [vmem:[%s0 + $0x98] sm:$0xff]
    %v75 = vld [vmem:[%s0 + $0xa0] sm:$0xff]
    %v76 = vld [vmem:[%s0 + $0xa8] sm:$0xff]
    %v77 = vld [vmem:[%s0 + $0xb0] sm:$0xff]
    %v78 = vld [vmem:[%s0 + $0xb8] sm:$0xff]
    %v79 = vld [vmem:[%s0 + $0xc0] sm:$0xff]
    %v80 = vld [vmem:[%s0 + $0xc8] sm:$0xff]
    %v81 = vld [vmem:[%s0 + $0xd0] sm:$0xff]
    %v82 = vld [vmem:[%s0 + $0xd8] sm:$0xff]
    %v83 = vld [vmem:[%s0 + $0xe0] sm:$0xff]
    %v84 = vld [vmem:[%s0 + $0xe8] sm:$0xff]
    %v85 = vld [vmem:[%s0 + $0xf0] sm:$0xff]
    %v86 = vld [vmem:[%s0 + $0xf8] sm:$0xff]
    %v87 = vld [vmem:[%s0 + $0x100] sm:$0xff]
    %v88 = vld [vmem:[%s0 + $0x108] sm:$0xff]
    %v89 = vld [vmem:[%s0 + $0x110] sm:$0xff]
    %v90 = vld [vmem:[%s0 + $0x118] sm:$0xff]
    %v91 = vld [vmem:[%s0 + $0x120] sm:$0xff]
    %v92 = vld [vmem:[%s0 + $0x128] sm:$0xff]
    %v93 = vld [vmem:[%s0 + $0x130] sm:$0xff]
    %v94 = vld [vmem:[%s0 + $0x138] sm:$0xff]
    %v95 = vld [vmem:[%s0 + $0x140] sm:$0xff]
    %v96 = vld [vmem:[%s0 + $0x148] sm:$0xff]
    %v97 = vld [vmem:[%s0 + $0x150] sm:$0xff]
    %v98 = vld [vmem:[%s0 + $0x158] sm:$0xff]
    %v99 = vld [vmem:[%s0 + $0x160] sm:$0xff]
    %v100 = vld [vmem:[%s0 + $0x168] sm:$0xff]
    %v101 = vld [vmem:[%s0 + $0x170] sm:$0xff]
    %v102 = vld [vmem:[%s0 + $0x178] sm:$0xff]
    %v103 = vld [vmem:[%s0 + $0x180] sm:$0xff]
    %v104 = vld [vmem:[%s0 + $0x188] sm:$0xff]
    %v105 = vld [vmem:[%s0 + $0x190] sm:$0xff]
    %v106 = vld [vmem:[%s0 + $0x198] sm:$0xff]
    %v107 = vld [vmem:[%s0 + $0x1a0] sm:$0xff]
    %v108 = vld [vmem:[%s0 + $0x1a8] sm:$0xff]
    %v109 = vld [vmem:[%s0 + $0x1b0] sm:$0xff]
    %v110 = vld [vmem:[%s0 + $0x1b8] sm:$0xff]
    %v111 = vld [vmem:[%s0 + $0x1c0] sm:$0xff]
    %v112 = vld [vmem:[%s0 + $0x1c8] sm:$0xff]
    %v113 = vld [vmem:[%s0 + $0x1d0] sm:$0xff]
    %v114 = vld [vmem:[%s0 + $0x1d8] sm:$0xff]
    %v115 = vld [vmem:[%s0 + $0x1e0] sm:$0xff]
    %v116 = vld [vmem:[%s0 + $0x1e8] sm:$0xff]
    %v117 = vld [vmem:[%s0 + $0x1f0] sm:$0xff]
    %v118 = vld [vmem:[%s0 + $0x1f8] sm:$0xff]
    %v119 = vld [vmem:[%s0 + $0x200] sm:$0xff]
    %v120 = vld [vmem:[%s0 + $0x208] sm:$0xff]
    %v121 = vld [vmem:[%s0 + $0x210] sm:$0xff]
    %v122 = vld [vmem:[%s0 + $0x218] sm:$0xff]
    %v123 = vld [vmem:[%s0 + $0x220] sm:$0xff]
    %v124 = vld [vmem:[%s0 + $0x228] sm:$0xff]
    %v125 = vld [vmem:[%s0 + $0x230] sm:$0xff]
    %v126 = vld [vmem:[%s0 + $0x238] sm:$0xff]
    %v127 = vld [vmem:[%s1] sm:$0x77]
    %129 = vset.pattern.permute.xlu0 0
    %130 = vperm.xlu0 %129, %v55
    %v131 = vpop.permute.xlu0 %130
    %134 = vset.pattern.permute.xlu0 0
    %135 = vperm.xlu0 %134, %v56
    %v136 = vpop.permute.xlu0 %135
    %139 = vset.pattern.permute.xlu0 0
    %140 = vperm.xlu0 %139, %v57
    %v141 = vpop.permute.xlu0 %140
    %144 = vset.pattern.permute.xlu0 0
    %145 = vperm.xlu0 %144, %v58
    %v146 = vpop.permute.xlu0 %145
    %149 = vset.pattern.permute.xlu0 0
    %150 = vperm.xlu0 %149, %v59
    %v151 = vpop.permute.xlu0 %150
    %154 = vset.pattern.permute.xlu0 0
    %155 = vperm.xlu0 %154, %v60
    %v156 = vpop.permute.xlu0 %155
    %159 = vset.pattern.permute.xlu0 0
    %160 = vperm.xlu0 %159, %v61
    %v161 = vpop.permute.xlu0 %160
    %164 = vset.pattern.permute.xlu0 0
    %165 = vperm.xlu0 %164, %v62
    %v166 = vpop.permute.xlu0 %165
    %169 = vset.pattern.permute.xlu0 0
    %170 = vperm.xlu0 %169, %v63
    %v171 = vpop.permute.xlu0 %170
    %174 = vset.pattern.permute.xlu0 0
    %175 = vperm.xlu0 %174, %v64
    %v176 = vpop.permute.xlu0 %175
    %179 = vset.pattern.permute.xlu0 0
    %180 = vperm.xlu0 %179, %v65
    %v181 = vpop.permute.xlu0 %180
    %184 = vset.pattern.permute.xlu0 0
    %185 = vperm.xlu0 %184, %v66
    %v186 = vpop.permute.xlu0 %185
    %189 = vset.pattern.permute.xlu0 0
    %190 = vperm.xlu0 %189, %v67
    %v191 = vpop.permute.xlu0 %190
    %194 = vset.pattern.permute.xlu0 0
    %195 = vperm.xlu0 %194, %v68
    %v196 = vpop.permute.xlu0 %195
    %199 = vset.pattern.permute.xlu0 0
    %200 = vperm.xlu0 %199, %v69
    %v201 = vpop.permute.xlu0 %200
    %204 = vset.pattern.permute.xlu0 0
    %205 = vperm.xlu0 %204, %v70
    %v206 = vpop.permute.xlu0 %205
    %209 = vset.pattern.permute.xlu0 0
    %210 = vperm.xlu0 %209, %v71
    %v211 = vpop.permute.xlu0 %210
    %214 = vset.pattern.permute.xlu0 0
    %215 = vperm.xlu0 %214, %v72
    %v216 = vpop.permute.xlu0 %215
    %219 = vset.pattern.permute.xlu0 0
    %220 = vperm.xlu0 %219, %v73
    %v221 = vpop.permute.xlu0 %220
    %224 = vset.pattern.permute.xlu0 0
    %225 = vperm.xlu0 %224, %v74
    %v226 = vpop.permute.xlu0 %225
    %229 = vset.pattern.permute.xlu0 0
    %230 = vperm.xlu0 %229, %v75
    %v231 = vpop.permute.xlu0 %230
    %234 = vset.pattern.permute.xlu0 0
    %235 = vperm.xlu0 %234, %v76
    %v236 = vpop.permute.xlu0 %235
    %239 = vset.pattern.permute.xlu0 0
    %240 = vperm.xlu0 %239, %v77
    %v241 = vpop.permute.xlu0 %240
    %244 = vset.pattern.permute.xlu0 0
    %245 = vperm.xlu0 %244, %v78
    %v246 = vpop.permute.xlu0 %245
    %249 = vset.pattern.permute.xlu0 0
    %250 = vperm.xlu0 %249, %v79
    %v251 = vpop.permute.xlu0 %250
    %254 = vset.pattern.permute.xlu0 0
    %255 = vperm.xlu0 %254, %v80
    %v256 = vpop.permute.xlu0 %255
    %259 = vset.pattern.permute.xlu0 0
    %260 = vperm.xlu0 %259, %v81
    %v261 = vpop.permute.xlu0 %260
    %264 = vset.pattern.permute.xlu0 0
    %265 = vperm.xlu0 %264, %v82
    %v266 = vpop.permute.xlu0 %265
    %269 = vset.pattern.permute.xlu0 0
    %270 = vperm.xlu0 %269, %v83
    %v271 = vpop.permute.xlu0 %270
    %274 = vset.pattern.permute.xlu0 0
    %275 = vperm.xlu0 %274, %v84
    %v276 = vpop.permute.xlu0 %275
    %279 = vset.pattern.permute.xlu0 0
    %280 = vperm.xlu0 %279, %v85
    %v281 = vpop.permute.xlu0 %280
    %284 = vset.pattern.permute.xlu0 0
    %285 = vperm.xlu0 %284, %v86
    %v286 = vpop.permute.xlu0 %285
    %289 = vset.pattern.permute.xlu0 0
    %290 = vperm.xlu0 %289, %v87
    %v291 = vpop.permute.xlu0 %290
    %294 = vset.pattern.permute.xlu0 0
    %295 = vperm.xlu0 %294, %v88
    %v296 = vpop.permute.xlu0 %295
    %299 = vset.pattern.permute.xlu0 0
    %300 = vperm.xlu0 %299, %v89
    %v301 = vpop.permute.xlu0 %300
    %304 = vset.pattern.permute.xlu0 0
    %305 = vperm.xlu0 %304, %v90
    %v306 = vpop.permute.xlu0 %305
    %309 = vset.pattern.permute.xlu0 0
    %310 = vperm.xlu0 %309, %v91
    %v311 = vpop.permute.xlu0 %310
    %314 = vset.pattern.permute.xlu0 0
    %315 = vperm.xlu0 %314, %v92
    %v316 = vpop.permute.xlu0 %315
    %319 = vset.pattern.permute.xlu0 0
    %320 = vperm.xlu0 %319, %v93
    %v321 = vpop.permute.xlu0 %320
    %324 = vset.pattern.permute.xlu0 0
    %325 = vperm.xlu0 %324, %v94
    %v326 = vpop.permute.xlu0 %325
    %329 = vset.pattern.permute.xlu0 0
    %330 = vperm.xlu0 %329, %v95
    %v331 = vpop.permute.xlu0 %330
    %334 = vset.pattern.permute.xlu0 0
    %335 = vperm.xlu0 %334, %v96
    %v336 = vpop.permute.xlu0 %335
    %339 = vset.pattern.permute.xlu0 0
    %340 = vperm.xlu0 %339, %v97
    %v341 = vpop.permute.xlu0 %340
    %344 = vset.pattern.permute.xlu0 0
    %345 = vperm.xlu0 %344, %v98
    %v346 = vpop.permute.xlu0 %345
    %349 = vset.pattern.permute.xlu0 0
    %350 = vperm.xlu0 %349, %v99
    %v351 = vpop.permute.xlu0 %350
    %354 = vset.pattern.permute.xlu0 0
    %355 = vperm.xlu0 %354, %v100
    %v356 = vpop.permute.xlu0 %355
    %359 = vset.pattern.permute.xlu0 0
    %360 = vperm.xlu0 %359, %v101
    %v361 = vpop.permute.xlu0 %360
    %364 = vset.pattern.permute.xlu0 0
    %365 = vperm.xlu0 %364, %v102
    %v366 = vpop.permute.xlu0 %365
    %369 = vset.pattern.permute.xlu0 0
    %370 = vperm.xlu0 %369, %v103
    %v371 = vpop.permute.xlu0 %370
    %374 = vset.pattern.permute.xlu0 0
    %375 = vperm.xlu0 %374, %v104
    %v376 = vpop.permute.xlu0 %375
    %379 = vset.pattern.permute.xlu0 0
    %380 = vperm.xlu0 %379, %v105
    %v381 = vpop.permute.xlu0 %380
    %384 = vset.pattern.permute.xlu0 0
    %385 = vperm.xlu0 %384, %v106
    %v386 = vpop.permute.xlu0 %385
    %389 = vset.pattern.permute.xlu0 0
    %390 = vperm.xlu0 %389, %v107
    %v391 = vpop.permute.xlu0 %390
    %394 = vset.pattern.permute.xlu0 0
    %395 = vperm.xlu0 %394, %v108
    %v396 = vpop.permute.xlu0 %395
    %399 = vset.pattern.permute.xlu0 0
    %400 = vperm.xlu0 %399, %v109
    %v401 = vpop.permute.xlu0 %400
    %404 = vset.pattern.permute.xlu0 0
    %405 = vperm.xlu0 %404, %v110
    %v406 = vpop.permute.xlu0 %405
    %409 = vset.pattern.permute.xlu0 0
    %410 = vperm.xlu0 %409, %v111
    %v411 = vpop.permute.xlu0 %410
    %414 = vset.pattern.permute.xlu0 0
    %415 = vperm.xlu0 %414, %v112
    %v416 = vpop.permute.xlu0 %415
    %419 = vset.pattern.permute.xlu0 0
    %420 = vperm.xlu0 %419, %v113
    %v421 = vpop.permute.xlu0 %420
    %424 = vset.pattern.permute.xlu0 0
    %425 = vperm.xlu0 %424, %v114
    %v426 = vpop.permute.xlu0 %425
    %429 = vset.pattern.permute.xlu0 0
    %430 = vperm.xlu0 %429, %v115
    %v431 = vpop.permute.xlu0 %430
    %434 = vset.pattern.permute.xlu0 0
    %435 = vperm.xlu0 %434, %v116
    %v436 = vpop.permute.xlu0 %435
    %439 = vset.pattern.permute.xlu0 0
    %440 = vperm.xlu0 %439, %v117
    %v441 = vpop.permute.xlu0 %440
    %444 = vset.pattern.permute.xlu0 0
    %445 = vperm.xlu0 %444, %v118
    %v446 = vpop.permute.xlu0 %445
    %449 = vset.pattern.permute.xlu0 0
    %450 = vperm.xlu0 %449, %v119
    %v451 = vpop.permute.xlu0 %450
    %454 = vset.pattern.permute.xlu0 0
    %455 = vperm.xlu0 %454, %v120
    %v456 = vpop.permute.xlu0 %455
    %459 = vset.pattern.permute.xlu0 0
    %460 = vperm.xlu0 %459, %v121
    %v461 = vpop.permute.xlu0 %460
    %464 = vset.pattern.permute.xlu0 0
    %465 = vperm.xlu0 %464, %v122
    %v466 = vpop.permute.xlu0 %465
    %v469 = vlaneseq
    %v470 = vshrl.u32 %v469, 7
    %v471 = vsub.s32 0, %v470
    %v472 = vrot.slane %v127, %v471
    %v473 = vlaneseq
    %v474 = vshrl.u32 %v473, 7
    %v475 = vsub.s32 4, %v474
    %v476 = vrot.slane %v127, %v475
    %v479 = vlaneseq
    %v480 = vshrl.u32 %v479, 7
    %v481 = vsub.s32 0, %v480
    %v482 = vrot.slane %v472, %v481
    %v483 = vlaneseq
    %v484 = vshrl.u32 %v483, 7
    %v485 = vsub.s32 0, %v484
    %v486 = vrot.slane %v476, %v485
    %v487 = vmul.f32 %v131, %v482
    %v488 = vmul.f32 %v131, %v486
    %v489 = vmul.f32 %v136, %v482
    %v490 = vmul.f32 %v136, %v486
    %v491 = vmul.f32 %v141, %v482
    %v492 = vmul.f32 %v141, %v486
    %v493 = vmul.f32 %v146, %v482
    %v494 = vmul.f32 %v146, %v486
    %v495 = vmul.f32 %v151, %v482
    %v496 = vmul.f32 %v151, %v486
    %v497 = vmul.f32 %v156, %v482
    %v498 = vmul.f32 %v156, %v486
    %v499 = vmul.f32 %v161, %v482
    %v500 = vmul.f32 %v161, %v486
    %v501 = vmul.f32 %v166, %v482
    %v502 = vmul.f32 %v166, %v486
    %v503 = vmul.f32 %v171, %v482
    %v504 = vmul.f32 %v171, %v486
    %v505 = vmul.f32 %v176, %v482
    %v506 = vmul.f32 %v176, %v486
    %v507 = vmul.f32 %v181, %v482
    %v508 = vmul.f32 %v181, %v486
    %v509 = vmul.f32 %v186, %v482
    %v510 = vmul.f32 %v186, %v486
    %v511 = vmul.f32 %v191, %v482
    %v512 = vmul.f32 %v191, %v486
    %v513 = vmul.f32 %v196, %v482
    %v514 = vmul.f32 %v196, %v486
    %v515 = vmul.f32 %v201, %v482
    %v516 = vmul.f32 %v201, %v486
    %v517 = vmul.f32 %v206, %v482
    %v518 = vmul.f32 %v206, %v486
    %v519 = vmul.f32 %v211, %v482
    %v520 = vmul.f32 %v211, %v486
    %v521 = vmul.f32 %v216, %v482
    %v522 = vmul.f32 %v216, %v486
    %v523 = vmul.f32 %v221, %v482
    %v524 = vmul.f32 %v221, %v486
    %v525 = vmul.f32 %v226, %v482
    %v526 = vmul.f32 %v226, %v486
    %v527 = vmul.f32 %v231, %v482
    %v528 = vmul.f32 %v231, %v486
    %v529 = vmul.f32 %v236, %v482
    %v530 = vmul.f32 %v236, %v486
    %v531 = vmul.f32 %v241, %v482
    %v532 = vmul.f32 %v241, %v486
    %v533 = vmul.f32 %v246, %v482
    %v534 = vmul.f32 %v246, %v486
    %v535 = vmul.f32 %v251, %v482
    %v536 = vmul.f32 %v251, %v486
    %v537 = vmul.f32 %v256, %v482
    %v538 = vmul.f32 %v256, %v486
    %v539 = vmul.f32 %v261, %v482
    %v540 = vmul.f32 %v261, %v486
    %v541 = vmul.f32 %v266, %v482
    %v542 = vmul.f32 %v266, %v486
    %v543 = vmul.f32 %v271, %v482
    %v544 = vmul.f32 %v271, %v486
    %v545 = vmul.f32 %v276, %v482
    %v546 = vmul.f32 %v276, %v486
    %v547 = vmul.f32 %v281, %v482
    %v548 = vmul.f32 %v281, %v486
    %v549 = vmul.f32 %v286, %v482
    %v550 = vmul.f32 %v286, %v486
    %v551 = vmul.f32 %v291, %v482
    %v552 = vmul.f32 %v291, %v486
    %v553 = vmul.f32 %v296, %v482
    %v554 = vmul.f32 %v296, %v486
    %v555 = vmul.f32 %v301, %v482
    %v556 = vmul.f32 %v301, %v486
    %v557 = vmul.f32 %v306, %v482
    %v558 = vmul.f32 %v306, %v486
    %v559 = vmul.f32 %v311, %v482
    %v560 = vmul.f32 %v311, %v486
    %v561 = vmul.f32 %v316, %v482
    %v562 = vmul.f32 %v316, %v486
    %v563 = vmul.f32 %v321, %v482
    %v564 = vmul.f32 %v321, %v486
    %v565 = vmul.f32 %v326, %v482
    %v566 = vmul.f32 %v326, %v486
    %v567 = vmul.f32 %v331, %v482
    %v568 = vmul.f32 %v331, %v486
    %v569 = vmul.f32 %v336, %v482
    %v570 = vmul.f32 %v336, %v486
    %v571 = vmul.f32 %v341, %v482
    %v572 = vmul.f32 %v341, %v486
    %v573 = vmul.f32 %v346, %v482
    %v574 = vmul.f32 %v346, %v486
    %v575 = vmul.f32 %v351, %v482
    %v576 = vmul.f32 %v351, %v486
    %v577 = vmul.f32 %v356, %v482
    %v578 = vmul.f32 %v356, %v486
    %v579 = vmul.f32 %v361, %v482
    %v580 = vmul.f32 %v361, %v486
    %v581 = vmul.f32 %v366, %v482
    %v582 = vmul.f32 %v366, %v486
    %v583 = vmul.f32 %v371, %v482
    %v584 = vmul.f32 %v371, %v486
    %v585 = vmul.f32 %v376, %v482
    %v586 = vmul.f32 %v376, %v486
    %v587 = vmul.f32 %v381, %v482
    %v588 = vmul.f32 %v381, %v486
    %v589 = vmul.f32 %v386, %v482
    %v590 = vmul.f32 %v386, %v486
    %v591 = vmul.f32 %v391, %v482
    %v592 = vmul.f32 %v391, %v486
    %v593 = vmul.f32 %v396, %v482
    %v594 = vmul.f32 %v396, %v486
    %v595 = vmul.f32 %v401, %v482
    %v596 = vmul.f32 %v401, %v486
    %v597 = vmul.f32 %v406, %v482
    %v598 = vmul.f32 %v406, %v486
    %v599 = vmul.f32 %v411, %v482
    %v600 = vmul.f32 %v411, %v486
    %v601 = vmul.f32 %v416, %v482
    %v602 = vmul.f32 %v416, %v486
    %v603 = vmul.f32 %v421, %v482
    %v604 = vmul.f32 %v421, %v486
    %v605 = vmul.f32 %v426, %v482
    %v606 = vmul.f32 %v426, %v486
    %v607 = vmul.f32 %v431, %v482
    %v608 = vmul.f32 %v431, %v486
    %v609 = vmul.f32 %v436, %v482
    %v610 = vmul.f32 %v436, %v486
    %v611 = vmul.f32 %v441, %v482
    %v612 = vmul.f32 %v441, %v486
    %v613 = vmul.f32 %v446, %v482
    %v614 = vmul.f32 %v446, %v486
    %v615 = vmul.f32 %v451, %v482
    %v616 = vmul.f32 %v451, %v486
    %v617 = vmul.f32 %v456, %v482
    %v618 = vmul.f32 %v456, %v486
    %v619 = vmul.f32 %v461, %v482
    %v620 = vmul.f32 %v461, %v486
    %v621 = vmul.f32 %v466, %v482
    %v622 = vmul.f32 %v466, %v486
    %624 = vset.pattern.permute.xlu0 0
    %625 = vperm.xlu0 %624, %v123
    %v626 = vpop.permute.xlu0 %625
    %629 = vset.pattern.permute.xlu0 0
    %630 = vperm.xlu0 %629, %v124
    %v631 = vpop.permute.xlu0 %630
    %v633 = vlaneseq
    %v634 = vshrl.u32 %v633, 7
    %v635 = vsub.s32 1, %v634
    %v636 = vrot.slane %v127, %v635
    %v637 = vlaneseq
    %v638 = vshrl.u32 %v637, 7
    %v639 = vsub.s32 5, %v638
    %v640 = vrot.slane %v127, %v639
    %v643 = vlaneseq
    %v644 = vshrl.u32 %v643, 7
    %v645 = vsub.s32 1, %v644
    %v646 = vrot.slane %v636, %v645
    %v647 = vlaneseq
    %v648 = vshrl.u32 %v647, 7
    %v649 = vsub.s32 1, %v648
    %v650 = vrot.slane %v640, %v649
    %v651 = vmul.f32 %v141, %v646
    %v652 = vmul.f32 %v141, %v650
    %v653 = vmul.f32 %v146, %v646
    %v654 = vmul.f32 %v146, %v650
    %v655 = vmul.f32 %v151, %v646
    %v656 = vmul.f32 %v151, %v650
    %v657 = vmul.f32 %v156, %v646
    %v658 = vmul.f32 %v156, %v650
    %v659 = vmul.f32 %v161, %v646
    %v660 = vmul.f32 %v161, %v650
    %v661 = vmul.f32 %v166, %v646
    %v662 = vmul.f32 %v166, %v650
    %v663 = vmul.f32 %v171, %v646
    %v664 = vmul.f32 %v171, %v650
    %v665 = vmul.f32 %v176, %v646
    %v666 = vmul.f32 %v176, %v650
    %v667 = vmul.f32 %v181, %v646
    %v668 = vmul.f32 %v181, %v650
    %v669 = vmul.f32 %v186, %v646
    %v670 = vmul.f32 %v186, %v650
    %v671 = vmul.f32 %v191, %v646
    %v672 = vmul.f32 %v191, %v650
    %v673 = vmul.f32 %v196, %v646
    %v674 = vmul.f32 %v196, %v650
    %v675 = vmul.f32 %v201, %v646
    %v676 = vmul.f32 %v201, %v650
    %v677 = vmul.f32 %v206, %v646
    %v678 = vmul.f32 %v206, %v650
    %v679 = vmul.f32 %v211, %v646
    %v680 = vmul.f32 %v211, %v650
    %v681 = vmul.f32 %v216, %v646
    %v682 = vmul.f32 %v216, %v650
    %v683 = vmul.f32 %v221, %v646
    %v684 = vmul.f32 %v221, %v650
    %v685 = vmul.f32 %v226, %v646
    %v686 = vmul.f32 %v226, %v650
    %v687 = vmul.f32 %v231, %v646
    %v688 = vmul.f32 %v231, %v650
    %v689 = vmul.f32 %v236, %v646
    %v690 = vmul.f32 %v236, %v650
    %v691 = vmul.f32 %v241, %v646
    %v692 = vmul.f32 %v241, %v650
    %v693 = vmul.f32 %v246, %v646
    %v694 = vmul.f32 %v246, %v650
    %v695 = vmul.f32 %v251, %v646
    %v696 = vmul.f32 %v251, %v650
    %v697 = vmul.f32 %v256, %v646
    %v698 = vmul.f32 %v256, %v650
    %v699 = vmul.f32 %v261, %v646
    %v700 = vmul.f32 %v261, %v650
    %v701 = vmul.f32 %v266, %v646
    %v702 = vmul.f32 %v266, %v650
    %v703 = vmul.f32 %v271, %v646
    %v704 = vmul.f32 %v271, %v650
    %v705 = vmul.f32 %v276, %v646
    %v706 = vmul.f32 %v276, %v650
    %v707 = vmul.f32 %v281, %v646
    %v708 = vmul.f32 %v281, %v650
    %v709 = vmul.f32 %v286, %v646
    %v710 = vmul.f32 %v286, %v650
    %v711 = vmul.f32 %v291, %v646
    %v712 = vmul.f32 %v291, %v650
    %v713 = vmul.f32 %v296, %v646
    %v714 = vmul.f32 %v296, %v650
    %v715 = vmul.f32 %v301, %v646
    %v716 = vmul.f32 %v301, %v650
    %v717 = vmul.f32 %v306, %v646
    %v718 = vmul.f32 %v306, %v650
    %v719 = vmul.f32 %v311, %v646
    %v720 = vmul.f32 %v311, %v650
    %v721 = vmul.f32 %v316, %v646
    %v722 = vmul.f32 %v316, %v650
    %v723 = vmul.f32 %v321, %v646
    %v724 = vmul.f32 %v321, %v650
    %v725 = vmul.f32 %v326, %v646
    %v726 = vmul.f32 %v326, %v650
    %v727 = vmul.f32 %v331, %v646
    %v728 = vmul.f32 %v331, %v650
    %v729 = vmul.f32 %v336, %v646
    %v730 = vmul.f32 %v336, %v650
    %v731 = vmul.f32 %v341, %v646
    %v732 = vmul.f32 %v341, %v650
    %v733 = vmul.f32 %v346, %v646
    %v734 = vmul.f32 %v346, %v650
    %v735 = vmul.f32 %v351, %v646
    %v736 = vmul.f32 %v351, %v650
    %v737 = vmul.f32 %v356, %v646
    %v738 = vmul.f32 %v356, %v650
    %v739 = vmul.f32 %v361, %v646
    %v740 = vmul.f32 %v361, %v650
    %v741 = vmul.f32 %v366, %v646
    %v742 = vmul.f32 %v366, %v650
    %v743 = vmul.f32 %v371, %v646
    %v744 = vmul.f32 %v371, %v650
    %v745 = vmul.f32 %v376, %v646
    %v746 = vmul.f32 %v376, %v650
    %v747 = vmul.f32 %v381, %v646
    %v748 = vmul.f32 %v381, %v650
    %v749 = vmul.f32 %v386, %v646
    %v750 = vmul.f32 %v386, %v650
    %v751 = vmul.f32 %v391, %v646
    %v752 = vmul.f32 %v391, %v650
    %v753 = vmul.f32 %v396, %v646
    %v754 = vmul.f32 %v396, %v650
    %v755 = vmul.f32 %v401, %v646
    %v756 = vmul.f32 %v401, %v650
    %v757 = vmul.f32 %v406, %v646
    %v758 = vmul.f32 %v406, %v650
    %v759 = vmul.f32 %v411, %v646
    %v760 = vmul.f32 %v411, %v650
    %v761 = vmul.f32 %v416, %v646
    %v762 = vmul.f32 %v416, %v650
    %v763 = vmul.f32 %v421, %v646
    %v764 = vmul.f32 %v421, %v650
    %v765 = vmul.f32 %v426, %v646
    %v766 = vmul.f32 %v426, %v650
    %v767 = vmul.f32 %v431, %v646
    %v768 = vmul.f32 %v431, %v650
    %v769 = vmul.f32 %v436, %v646
    %v770 = vmul.f32 %v436, %v650
    %v771 = vmul.f32 %v441, %v646
    %v772 = vmul.f32 %v441, %v650
    %v773 = vmul.f32 %v446, %v646
    %v774 = vmul.f32 %v446, %v650
    %v775 = vmul.f32 %v451, %v646
    %v776 = vmul.f32 %v451, %v650
    %v777 = vmul.f32 %v456, %v646
    %v778 = vmul.f32 %v456, %v650
    %v779 = vmul.f32 %v461, %v646
    %v780 = vmul.f32 %v461, %v650
    %v781 = vmul.f32 %v466, %v646
    %v782 = vmul.f32 %v466, %v650
    %v783 = vmul.f32 %v626, %v646
    %v784 = vmul.f32 %v626, %v650
    %v785 = vmul.f32 %v631, %v646
    %v786 = vmul.f32 %v631, %v650
    %v787 = vadd.f32 %v487, %v651
    %v788 = vadd.f32 %v488, %v652
    %v789 = vadd.f32 %v489, %v653
    %v790 = vadd.f32 %v490, %v654
    %v791 = vadd.f32 %v491, %v655
    %v792 = vadd.f32 %v492, %v656
    %v793 = vadd.f32 %v493, %v657
    %v794 = vadd.f32 %v494, %v658
    %v795 = vadd.f32 %v495, %v659
    %v796 = vadd.f32 %v496, %v660
    %v797 = vadd.f32 %v497, %v661
    %v798 = vadd.f32 %v498, %v662
    %v799 = vadd.f32 %v499, %v663
    %v800 = vadd.f32 %v500, %v664
    %v801 = vadd.f32 %v501, %v665
    %v802 = vadd.f32 %v502, %v666
    %v803 = vadd.f32 %v503, %v667
    %v804 = vadd.f32 %v504, %v668
    %v805 = vadd.f32 %v505, %v669
    %v806 = vadd.f32 %v506, %v670
    %v807 = vadd.f32 %v507, %v671
    %v808 = vadd.f32 %v508, %v672
    %v809 = vadd.f32 %v509, %v673
    %v810 = vadd.f32 %v510, %v674
    %v811 = vadd.f32 %v511, %v675
    %v812 = vadd.f32 %v512, %v676
    %v813 = vadd.f32 %v513, %v677
    %v814 = vadd.f32 %v514, %v678
    %v815 = vadd.f32 %v515, %v679
    %v816 = vadd.f32 %v516, %v680
    %v817 = vadd.f32 %v517, %v681
    %v818 = vadd.f32 %v518, %v682
    %v819 = vadd.f32 %v519, %v683
    %v820 = vadd.f32 %v520, %v684
    %v821 = vadd.f32 %v521, %v685
    %v822 = vadd.f32 %v522, %v686
    %v823 = vadd.f32 %v523, %v687
    %v824 = vadd.f32 %v524, %v688
    %v825 = vadd.f32 %v525, %v689
    %v826 = vadd.f32 %v526, %v690
    %v827 = vadd.f32 %v527, %v691
    %v828 = vadd.f32 %v528, %v692
    %v829 = vadd.f32 %v529, %v693
    %v830 = vadd.f32 %v530, %v694
    %v831 = vadd.f32 %v531, %v695
    %v832 = vadd.f32 %v532, %v696
    %v833 = vadd.f32 %v533, %v697
    %v834 = vadd.f32 %v534, %v698
    %v835 = vadd.f32 %v535, %v699
    %v836 = vadd.f32 %v536, %v700
    %v837 = vadd.f32 %v537, %v701
    %v838 = vadd.f32 %v538, %v702
    %v839 = vadd.f32 %v539, %v703
    %v840 = vadd.f32 %v540, %v704
    %v841 = vadd.f32 %v541, %v705
    %v842 = vadd.f32 %v542, %v706
    %v843 = vadd.f32 %v543, %v707
    %v844 = vadd.f32 %v544, %v708
    %v845 = vadd.f32 %v545, %v709
    %v846 = vadd.f32 %v546, %v710
    %v847 = vadd.f32 %v547, %v711
    %v848 = vadd.f32 %v548, %v712
    %v849 = vadd.f32 %v549, %v713
    %v850 = vadd.f32 %v550, %v714
    %v851 = vadd.f32 %v551, %v715
    %v852 = vadd.f32 %v552, %v716
    %v853 = vadd.f32 %v553, %v717
    %v854 = vadd.f32 %v554, %v718
    %v855 = vadd.f32 %v555, %v719
    %v856 = vadd.f32 %v556, %v720
    %v857 = vadd.f32 %v557, %v721
    %v858 = vadd.f32 %v558, %v722
    %v859 = vadd.f32 %v559, %v723
    %v860 = vadd.f32 %v560, %v724
    %v861 = vadd.f32 %v561, %v725
    %v862 = vadd.f32 %v562, %v726
    %v863 = vadd.f32 %v563, %v727
    %v864 = vadd.f32 %v564, %v728
    %v865 = vadd.f32 %v565, %v729
    %v866 = vadd.f32 %v566, %v730
    %v867 = vadd.f32 %v567, %v731
    %v868 = vadd.f32 %v568, %v732
    %v869 = vadd.f32 %v569, %v733
    %v870 = vadd.f32 %v570, %v734
    %v871 = vadd.f32 %v571, %v735
    %v872 = vadd.f32 %v572, %v736
    %v873 = vadd.f32 %v573, %v737
    %v874 = vadd.f32 %v574, %v738
    %v875 = vadd.f32 %v575, %v739
    %v876 = vadd.f32 %v576, %v740
    %v877 = vadd.f32 %v577, %v741
    %v878 = vadd.f32 %v578, %v742
    %v879 = vadd.f32 %v579, %v743
    %v880 = vadd.f32 %v580, %v744
    %v881 = vadd.f32 %v581, %v745
    %v882 = vadd.f32 %v582, %v746
    %v883 = vadd.f32 %v583, %v747
    %v884 = vadd.f32 %v584, %v748
    %v885 = vadd.f32 %v585, %v749
    %v886 = vadd.f32 %v586, %v750
    %v887 = vadd.f32 %v587, %v751
    %v888 = vadd.f32 %v588, %v752
    %v889 = vadd.f32 %v589, %v753
    %v890 = vadd.f32 %v590, %v754
    %v891 = vadd.f32 %v591, %v755
    %v892 = vadd.f32 %v592, %v756
    %v893 = vadd.f32 %v593, %v757
    %v894 = vadd.f32 %v594, %v758
    %v895 = vadd.f32 %v595, %v759
    %v896 = vadd.f32 %v596, %v760
    %v897 = vadd.f32 %v597, %v761
    %v898 = vadd.f32 %v598, %v762
    %v899 = vadd.f32 %v599, %v763
    %v900 = vadd.f32 %v600, %v764
    %v901 = vadd.f32 %v601, %v765
    %v902 = vadd.f32 %v602, %v766
    %v903 = vadd.f32 %v603, %v767
    %v904 = vadd.f32 %v604, %v768
    %v905 = vadd.f32 %v605, %v769
    %v906 = vadd.f32 %v606, %v770
    %v907 = vadd.f32 %v607, %v771
    %v908 = vadd.f32 %v608, %v772
    %v909 = vadd.f32 %v609, %v773
    %v910 = vadd.f32 %v610, %v774
    %v911 = vadd.f32 %v611, %v775
    %v912 = vadd.f32 %v612, %v776
    %v913 = vadd.f32 %v613, %v777
    %v914 = vadd.f32 %v614, %v778
    %v915 = vadd.f32 %v615, %v779
    %v916 = vadd.f32 %v616, %v780
    %v917 = vadd.f32 %v617, %v781
    %v918 = vadd.f32 %v618, %v782
    %v919 = vadd.f32 %v619, %v783
    %v920 = vadd.f32 %v620, %v784
    %v921 = vadd.f32 %v621, %v785
    %v922 = vadd.f32 %v622, %v786
    %924 = vset.pattern.permute.xlu0 0
    %925 = vperm.xlu0 %924, %v125
    %v926 = vpop.permute.xlu0 %925
    %929 = vset.pattern.permute.xlu0 0
    %930 = vperm.xlu0 %929, %v126
    %v931 = vpop.permute.xlu0 %930
    %v933 = vlaneseq
    %v934 = vshrl.u32 %v933, 7
    %v935 = vsub.s32 2, %v934
    %v936 = vrot.slane %v127, %v935
    %v937 = vlaneseq
    %v938 = vshrl.u32 %v937, 7
    %v939 = vsub.s32 6, %v938
    %v940 = vrot.slane %v127, %v939
    %v943 = vlaneseq
    %v944 = vshrl.u32 %v943, 7
    %v945 = vsub.s32 2, %v944
    %v946 = vrot.slane %v936, %v945
    %v947 = vlaneseq
    %v948 = vshrl.u32 %v947, 7
    %v949 = vsub.s32 2, %v948
    %v950 = vrot.slane %v940, %v949
    %v951 = vmul.f32 %v151, %v946
    %v952 = vmul.f32 %v151, %v950
    %v953 = vmul.f32 %v156, %v946
    %v954 = vmul.f32 %v156, %v950
    %v955 = vmul.f32 %v161, %v946
    %v956 = vmul.f32 %v161, %v950
    %v957 = vmul.f32 %v166, %v946
    %v958 = vmul.f32 %v166, %v950
    %v959 = vmul.f32 %v171, %v946
    %v960 = vmul.f32 %v171, %v950
    %v961 = vmul.f32 %v176, %v946
    %v962 = vmul.f32 %v176, %v950
    %v963 = vmul.f32 %v181, %v946
    %v964 = vmul.f32 %v181, %v950
    %v965 = vmul.f32 %v186, %v946
    %v966 = vmul.f32 %v186, %v950
    %v967 = vmul.f32 %v191, %v946
    %v968 = vmul.f32 %v191, %v950
    %v969 = vmul.f32 %v196, %v946
    %v970 = vmul.f32 %v196, %v950
    %v971 = vmul.f32 %v201, %v946
    %v972 = vmul.f32 %v201, %v950
    %v973 = vmul.f32 %v206, %v946
    %v974 = vmul.f32 %v206, %v950
    %v975 = vmul.f32 %v211, %v946
    %v976 = vmul.f32 %v211, %v950
    %v977 = vmul.f32 %v216, %v946
    %v978 = vmul.f32 %v216, %v950
    %v979 = vmul.f32 %v221, %v946
    %v980 = vmul.f32 %v221, %v950
    %v981 = vmul.f32 %v226, %v946
    %v982 = vmul.f32 %v226, %v950
    %v983 = vmul.f32 %v231, %v946
    %v984 = vmul.f32 %v231, %v950
    %v985 = vmul.f32 %v236, %v946
    %v986 = vmul.f32 %v236, %v950
    %v987 = vmul.f32 %v241, %v946
    %v988 = vmul.f32 %v241, %v950
    %v989 = vmul.f32 %v246, %v946
    %v990 = vmul.f32 %v246, %v950
    %v991 = vmul.f32 %v251, %v946
    %v992 = vmul.f32 %v251, %v950
    %v993 = vmul.f32 %v256, %v946
    %v994 = vmul.f32 %v256, %v950
    %v995 = vmul.f32 %v261, %v946
    %v996 = vmul.f32 %v261, %v950
    %v997 = vmul.f32 %v266, %v946
    %v998 = vmul.f32 %v266, %v950
    %v999 = vmul.f32 %v271, %v946
    %v1000 = vmul.f32 %v271, %v950
    %v1001 = vmul.f32 %v276, %v946
    %v1002 = vmul.f32 %v276, %v950
    %v1003 = vmul.f32 %v281, %v946
    %v1004 = vmul.f32 %v281, %v950
    %v1005 = vmul.f32 %v286, %v946
    %v1006 = vmul.f32 %v286, %v950
    %v1007 = vmul.f32 %v291, %v946
    %v1008 = vmul.f32 %v291, %v950
    %v1009 = vmul.f32 %v296, %v946
    %v1010 = vmul.f32 %v296, %v950
    %v1011 = vmul.f32 %v301, %v946
    %v1012 = vmul.f32 %v301, %v950
    %v1013 = vmul.f32 %v306, %v946
    %v1014 = vmul.f32 %v306, %v950
    %v1015 = vmul.f32 %v311, %v946
    %v1016 = vmul.f32 %v311, %v950
    %v1017 = vmul.f32 %v316, %v946
    %v1018 = vmul.f32 %v316, %v950
    %v1019 = vmul.f32 %v321, %v946
    %v1020 = vmul.f32 %v321, %v950
    %v1021 = vmul.f32 %v326, %v946
    %v1022 = vmul.f32 %v326, %v950
    %v1023 = vmul.f32 %v331, %v946
    %v1024 = vmul.f32 %v331, %v950
    %v1025 = vmul.f32 %v336, %v946
    %v1026 = vmul.f32 %v336, %v950
    %v1027 = vmul.f32 %v341, %v946
    %v1028 = vmul.f32 %v341, %v950
    %v1029 = vmul.f32 %v346, %v946
    %v1030 = vmul.f32 %v346, %v950
    %v1031 = vmul.f32 %v351, %v946
    %v1032 = vmul.f32 %v351, %v950
    %v1033 = vmul.f32 %v356, %v946
    %v1034 = vmul.f32 %v356, %v950
    %v1035 = vmul.f32 %v361, %v946
    %v1036 = vmul.f32 %v361, %v950
    %v1037 = vmul.f32 %v366, %v946
    %v1038 = vmul.f32 %v366, %v950
    %v1039 = vmul.f32 %v371, %v946
    %v1040 = vmul.f32 %v371, %v950
    %v1041 = vmul.f32 %v376, %v946
    %v1042 = vmul.f32 %v376, %v950
    %v1043 = vmul.f32 %v381, %v946
    %v1044 = vmul.f32 %v381, %v950
    %v1045 = vmul.f32 %v386, %v946
    %v1046 = vmul.f32 %v386, %v950
    %v1047 = vmul.f32 %v391, %v946
    %v1048 = vmul.f32 %v391, %v950
    %v1049 = vmul.f32 %v396, %v946
    %v1050 = vmul.f32 %v396, %v950
    %v1051 = vmul.f32 %v401, %v946
    %v1052 = vmul.f32 %v401, %v950
    %v1053 = vmul.f32 %v406, %v946
    %v1054 = vmul.f32 %v406, %v950
    %v1055 = vmul.f32 %v411, %v946
    %v1056 = vmul.f32 %v411, %v950
    %v1057 = vmul.f32 %v416, %v946
    %v1058 = vmul.f32 %v416, %v950
    %v1059 = vmul.f32 %v421, %v946
    %v1060 = vmul.f32 %v421, %v950
    %v1061 = vmul.f32 %v426, %v946
    %v1062 = vmul.f32 %v426, %v950
    %v1063 = vmul.f32 %v431, %v946
    %v1064 = vmul.f32 %v431, %v950
    %v1065 = vmul.f32 %v436, %v946
    %v1066 = vmul.f32 %v436, %v950
    %v1067 = vmul.f32 %v441, %v946
    %v1068 = vmul.f32 %v441, %v950
    %v1069 = vmul.f32 %v446, %v946
    %v1070 = vmul.f32 %v446, %v950
    %v1071 = vmul.f32 %v451, %v946
    %v1072 = vmul.f32 %v451, %v950
    %v1073 = vmul.f32 %v456, %v946
    %v1074 = vmul.f32 %v456, %v950
    %v1075 = vmul.f32 %v461, %v946
    %v1076 = vmul.f32 %v461, %v950
    %v1077 = vmul.f32 %v466, %v946
    %v1078 = vmul.f32 %v466, %v950
    %v1079 = vmul.f32 %v626, %v946
    %v1080 = vmul.f32 %v626, %v950
    %v1081 = vmul.f32 %v631, %v946
    %v1082 = vmul.f32 %v631, %v950
    %v1083 = vmul.f32 %v926, %v946
    %v1084 = vmul.f32 %v926, %v950
    %v1085 = vmul.f32 %v931, %v946
    %v1086 = vmul.f32 %v931, %v950
    %v1087 = vadd.f32 %v787, %v951
    %v1088 = vadd.f32 %v788, %v952
    %v1089 = vadd.f32 %v789, %v953
    %v1090 = vadd.f32 %v790, %v954
    %v1091 = vadd.f32 %v791, %v955
    %v1092 = vadd.f32 %v792, %v956
    %v1093 = vadd.f32 %v793, %v957
    %v1094 = vadd.f32 %v794, %v958
    %v1095 = vadd.f32 %v795, %v959
    %v1096 = vadd.f32 %v796, %v960
    %v1097 = vadd.f32 %v797, %v961
    %v1098 = vadd.f32 %v798, %v962
    %v1099 = vadd.f32 %v799, %v963
    %v1100 = vadd.f32 %v800, %v964
    %v1101 = vadd.f32 %v801, %v965
    %v1102 = vadd.f32 %v802, %v966
    %v1103 = vadd.f32 %v803, %v967
    %v1104 = vadd.f32 %v804, %v968
    %v1105 = vadd.f32 %v805, %v969
    %v1106 = vadd.f32 %v806, %v970
    %v1107 = vadd.f32 %v807, %v971
    %v1108 = vadd.f32 %v808, %v972
    %v1109 = vadd.f32 %v809, %v973
    %v1110 = vadd.f32 %v810, %v974
    %v1111 = vadd.f32 %v811, %v975
    %v1112 = vadd.f32 %v812, %v976
    %v1113 = vadd.f32 %v813, %v977
    %v1114 = vadd.f32 %v814, %v978
    %v1115 = vadd.f32 %v815, %v979
    %v1116 = vadd.f32 %v816, %v980
    %v1117 = vadd.f32 %v817, %v981
    %v1118 = vadd.f32 %v818, %v982
    %v1119 = vadd.f32 %v819, %v983
    %v1120 = vadd.f32 %v820, %v984
    %v1121 = vadd.f32 %v821, %v985
    %v1122 = vadd.f32 %v822, %v986
    %v1123 = vadd.f32 %v823, %v987
    %v1124 = vadd.f32 %v824, %v988
    %v1125 = vadd.f32 %v825, %v989
    %v1126 = vadd.f32 %v826, %v990
    %v1127 = vadd.f32 %v827, %v991
    %v1128 = vadd.f32 %v828, %v992
    %v1129 = vadd.f32 %v829, %v993
    %v1130 = vadd.f32 %v830, %v994
    %v1131 = vadd.f32 %v831, %v995
    %v1132 = vadd.f32 %v832, %v996
    %v1133 = vadd.f32 %v833, %v997
    %v1134 = vadd.f32 %v834, %v998
    %v1135 = vadd.f32 %v835, %v999
    %v1136 = vadd.f32 %v836, %v1000
    %v1137 = vadd.f32 %v837, %v1001
    %v1138 = vadd.f32 %v838, %v1002
    %v1139 = vadd.f32 %v839, %v1003
    %v1140 = vadd.f32 %v840, %v1004
    %v1141 = vadd.f32 %v841, %v1005
    %v1142 = vadd.f32 %v842, %v1006
    %v1143 = vadd.f32 %v843, %v1007
    %v1144 = vadd.f32 %v844, %v1008
    %v1145 = vadd.f32 %v845, %v1009
    %v1146 = vadd.f32 %v846, %v1010
    %v1147 = vadd.f32 %v847, %v1011
    %v1148 = vadd.f32 %v848, %v1012
    %v1149 = vadd.f32 %v849, %v1013
    %v1150 = vadd.f32 %v850, %v1014
    %v1151 = vadd.f32 %v851, %v1015
    %v1152 = vadd.f32 %v852, %v1016
    %v1153 = vadd.f32 %v853, %v1017
    %v1154 = vadd.f32 %v854, %v1018
    %v1155 = vadd.f32 %v855, %v1019
    %v1156 = vadd.f32 %v856, %v1020
    %v1157 = vadd.f32 %v857, %v1021
    %v1158 = vadd.f32 %v858, %v1022
    %v1159 = vadd.f32 %v859, %v1023
    %v1160 = vadd.f32 %v860, %v1024
    %v1161 = vadd.f32 %v861, %v1025
    %v1162 = vadd.f32 %v862, %v1026
    %v1163 = vadd.f32 %v863, %v1027
    %v1164 = vadd.f32 %v864, %v1028
    %v1165 = vadd.f32 %v865, %v1029
    %v1166 = vadd.f32 %v866, %v1030
    %v1167 = vadd.f32 %v867, %v1031
    %v1168 = vadd.f32 %v868, %v1032
    %v1169 = vadd.f32 %v869, %v1033
    %v1170 = vadd.f32 %v870, %v1034
    %v1171 = vadd.f32 %v871, %v1035
    %v1172 = vadd.f32 %v872, %v1036
    %v1173 = vadd.f32 %v873, %v1037
    %v1174 = vadd.f32 %v874, %v1038
    %v1175 = vadd.f32 %v875, %v1039
    %v1176 = vadd.f32 %v876, %v1040
    %v1177 = vadd.f32 %v877, %v1041
    %v1178 = vadd.f32 %v878, %v1042
    %v1179 = vadd.f32 %v879, %v1043
    %v1180 = vadd.f32 %v880, %v1044
    %v1181 = vadd.f32 %v881, %v1045
    %v1182 = vadd.f32 %v882, %v1046
    %v1183 = vadd.f32 %v883, %v1047
    %v1184 = vadd.f32 %v884, %v1048
    %v1185 = vadd.f32 %v885, %v1049
    %v1186 = vadd.f32 %v886, %v1050
    %v1187 = vadd.f32 %v887, %v1051
    %v1188 = vadd.f32 %v888, %v1052
    %v1189 = vadd.f32 %v889, %v1053
    %v1190 = vadd.f32 %v890, %v1054
    %v1191 = vadd.f32 %v891, %v1055
    %v1192 = vadd.f32 %v892, %v1056
    %v1193 = vadd.f32 %v893, %v1057
    %v1194 = vadd.f32 %v894, %v1058
    %v1195 = vadd.f32 %v895, %v1059
    %v1196 = vadd.f32 %v896, %v1060
    %v1197 = vadd.f32 %v897, %v1061
    %v1198 = vadd.f32 %v898, %v1062
    %v1199 = vadd.f32 %v899, %v1063
    %v1200 = vadd.f32 %v900, %v1064
    %v1201 = vadd.f32 %v901, %v1065
    %v1202 = vadd.f32 %v902, %v1066
    %v1203 = vadd.f32 %v903, %v1067
    %v1204 = vadd.f32 %v904, %v1068
    %v1205 = vadd.f32 %v905, %v1069
    %v1206 = vadd.f32 %v906, %v1070
    %v1207 = vadd.f32 %v907, %v1071
    %v1208 = vadd.f32 %v908, %v1072
    %v1209 = vadd.f32 %v909, %v1073
    %v1210 = vadd.f32 %v910, %v1074
    %v1211 = vadd.f32 %v911, %v1075
    %v1212 = vadd.f32 %v912, %v1076
    %v1213 = vadd.f32 %v913, %v1077
    %v1214 = vadd.f32 %v914, %v1078
    %v1215 = vadd.f32 %v915, %v1079
    %v1216 = vadd.f32 %v916, %v1080
    %v1217 = vadd.f32 %v917, %v1081
    %v1218 = vadd.f32 %v918, %v1082
    %v1219 = vadd.f32 %v919, %v1083
    %v1220 = vadd.f32 %v920, %v1084
    %v1221 = vadd.f32 %v921, %v1085
    %v1222 = vadd.f32 %v922, %v1086
    %v1223 = vld [vmem:[%s2] sm:$0x3]
    %v1225 = vlaneseq
    %v1226 = vshrl.u32 %v1225, 7
    %v1227 = vsub.s32 0, %v1226
    %v1228 = vrot.slane %v1223, %v1227
    %v1229 = vlaneseq
    %v1230 = vshrl.u32 %v1229, 7
    %v1231 = vsub.s32 1, %v1230
    %v1232 = vrot.slane %v1223, %v1231
    %v1235 = vadd.f32 %v1087, %v1228
    %v1236 = vadd.f32 %v1088, %v1232
    %v1237 = vadd.f32 %v1089, %v1228
    %v1238 = vadd.f32 %v1090, %v1232
    %v1239 = vadd.f32 %v1091, %v1228
    %v1240 = vadd.f32 %v1092, %v1232
    %v1241 = vadd.f32 %v1093, %v1228
    %v1242 = vadd.f32 %v1094, %v1232
    %v1243 = vadd.f32 %v1095, %v1228
    %v1244 = vadd.f32 %v1096, %v1232
    %v1245 = vadd.f32 %v1097, %v1228
    %v1246 = vadd.f32 %v1098, %v1232
    %v1247 = vadd.f32 %v1099, %v1228
    %v1248 = vadd.f32 %v1100, %v1232
    %v1249 = vadd.f32 %v1101, %v1228
    %v1250 = vadd.f32 %v1102, %v1232
    %v1251 = vadd.f32 %v1103, %v1228
    %v1252 = vadd.f32 %v1104, %v1232
    %v1253 = vadd.f32 %v1105, %v1228
    %v1254 = vadd.f32 %v1106, %v1232
    %v1255 = vadd.f32 %v1107, %v1228
    %v1256 = vadd.f32 %v1108, %v1232
    %v1257 = vadd.f32 %v1109, %v1228
    %v1258 = vadd.f32 %v1110, %v1232
    %v1259 = vadd.f32 %v1111, %v1228
    %v1260 = vadd.f32 %v1112, %v1232
    %v1261 = vadd.f32 %v1113, %v1228
    %v1262 = vadd.f32 %v1114, %v1232
    %v1263 = vadd.f32 %v1115, %v1228
    %v1264 = vadd.f32 %v1116, %v1232
    %v1265 = vadd.f32 %v1117, %v1228
    %v1266 = vadd.f32 %v1118, %v1232
    %v1267 = vadd.f32 %v1119, %v1228
    %v1268 = vadd.f32 %v1120, %v1232
    %v1269 = vadd.f32 %v1121, %v1228
    %v1270 = vadd.f32 %v1122, %v1232
    %v1271 = vadd.f32 %v1123, %v1228
    %v1272 = vadd.f32 %v1124, %v1232
    %v1273 = vadd.f32 %v1125, %v1228
    %v1274 = vadd.f32 %v1126, %v1232
    %v1275 = vadd.f32 %v1127, %v1228
    %v1276 = vadd.f32 %v1128, %v1232
    %v1277 = vadd.f32 %v1129, %v1228
    %v1278 = vadd.f32 %v1130, %v1232
    %v1279 = vadd.f32 %v1131, %v1228
    %v1280 = vadd.f32 %v1132, %v1232
    %v1281 = vadd.f32 %v1133, %v1228
    %v1282 = vadd.f32 %v1134, %v1232
    %v1283 = vadd.f32 %v1135, %v1228
    %v1284 = vadd.f32 %v1136, %v1232
    %v1285 = vadd.f32 %v1137, %v1228
    %v1286 = vadd.f32 %v1138, %v1232
    %v1287 = vadd.f32 %v1139, %v1228
    %v1288 = vadd.f32 %v1140, %v1232
    %v1289 = vadd.f32 %v1141, %v1228
    %v1290 = vadd.f32 %v1142, %v1232
    %v1291 = vadd.f32 %v1143, %v1228
    %v1292 = vadd.f32 %v1144, %v1232
    %v1293 = vadd.f32 %v1145, %v1228
    %v1294 = vadd.f32 %v1146, %v1232
    %v1295 = vadd.f32 %v1147, %v1228
    %v1296 = vadd.f32 %v1148, %v1232
    %v1297 = vadd.f32 %v1149, %v1228
    %v1298 = vadd.f32 %v1150, %v1232
    %v1299 = vadd.f32 %v1151, %v1228
    %v1300 = vadd.f32 %v1152, %v1232
    %v1301 = vadd.f32 %v1153, %v1228
    %v1302 = vadd.f32 %v1154, %v1232
    %v1303 = vadd.f32 %v1155, %v1228
    %v1304 = vadd.f32 %v1156, %v1232
    %v1305 = vadd.f32 %v1157, %v1228
    %v1306 = vadd.f32 %v1158, %v1232
    %v1307 = vadd.f32 %v1159, %v1228
    %v1308 = vadd.f32 %v1160, %v1232
    %v1309 = vadd.f32 %v1161, %v1228
    %v1310 = vadd.f32 %v1162, %v1232
    %v1311 = vadd.f32 %v1163, %v1228
    %v1312 = vadd.f32 %v1164, %v1232
    %v1313 = vadd.f32 %v1165, %v1228
    %v1314 = vadd.f32 %v1166, %v1232
    %v1315 = vadd.f32 %v1167, %v1228
    %v1316 = vadd.f32 %v1168, %v1232
    %v1317 = vadd.f32 %v1169, %v1228
    %v1318 = vadd.f32 %v1170, %v1232
    %v1319 = vadd.f32 %v1171, %v1228
    %v1320 = vadd.f32 %v1172, %v1232
    %v1321 = vadd.f32 %v1173, %v1228
    %v1322 = vadd.f32 %v1174, %v1232
    %v1323 = vadd.f32 %v1175, %v1228
    %v1324 = vadd.f32 %v1176, %v1232
    %v1325 = vadd.f32 %v1177, %v1228
    %v1326 = vadd.f32 %v1178, %v1232
    %v1327 = vadd.f32 %v1179, %v1228
    %v1328 = vadd.f32 %v1180, %v1232
    %v1329 = vadd.f32 %v1181, %v1228
    %v1330 = vadd.f32 %v1182, %v1232
    %v1331 = vadd.f32 %v1183, %v1228
    %v1332 = vadd.f32 %v1184, %v1232
    %v1333 = vadd.f32 %v1185, %v1228
    %v1334 = vadd.f32 %v1186, %v1232
    %v1335 = vadd.f32 %v1187, %v1228
    %v1336 = vadd.f32 %v1188, %v1232
    %v1337 = vadd.f32 %v1189, %v1228
    %v1338 = vadd.f32 %v1190, %v1232
    %v1339 = vadd.f32 %v1191, %v1228
    %v1340 = vadd.f32 %v1192, %v1232
    %v1341 = vadd.f32 %v1193, %v1228
    %v1342 = vadd.f32 %v1194, %v1232
    %v1343 = vadd.f32 %v1195, %v1228
    %v1344 = vadd.f32 %v1196, %v1232
    %v1345 = vadd.f32 %v1197, %v1228
    %v1346 = vadd.f32 %v1198, %v1232
    %v1347 = vadd.f32 %v1199, %v1228
    %v1348 = vadd.f32 %v1200, %v1232
    %v1349 = vadd.f32 %v1201, %v1228
    %v1350 = vadd.f32 %v1202, %v1232
    %v1351 = vadd.f32 %v1203, %v1228
    %v1352 = vadd.f32 %v1204, %v1232
    %v1353 = vadd.f32 %v1205, %v1228
    %v1354 = vadd.f32 %v1206, %v1232
    %v1355 = vadd.f32 %v1207, %v1228
    %v1356 = vadd.f32 %v1208, %v1232
    %v1357 = vadd.f32 %v1209, %v1228
    %v1358 = vadd.f32 %v1210, %v1232
    %v1359 = vadd.f32 %v1211, %v1228
    %v1360 = vadd.f32 %v1212, %v1232
    %v1361 = vadd.f32 %v1213, %v1228
    %v1362 = vadd.f32 %v1214, %v1232
    %v1363 = vadd.f32 %v1215, %v1228
    %v1364 = vadd.f32 %v1216, %v1232
    %v1365 = vadd.f32 %v1217, %v1228
    %v1366 = vadd.f32 %v1218, %v1232
    %v1367 = vadd.f32 %v1219, %v1228
    %v1368 = vadd.f32 %v1220, %v1232
    %v1369 = vadd.f32 %v1221, %v1228
    %v1370 = vadd.f32 %v1222, %v1232
    %v1371 = vmax.f32 %v1235, 0.0
    %v1372 = vmax.f32 %v1236, 0.0
    %v1373 = vmax.f32 %v1237, 0.0
    %v1374 = vmax.f32 %v1238, 0.0
    %v1375 = vmax.f32 %v1239, 0.0
    %v1376 = vmax.f32 %v1240, 0.0
    %v1377 = vmax.f32 %v1241, 0.0
    %v1378 = vmax.f32 %v1242, 0.0
    %v1379 = vmax.f32 %v1243, 0.0
    %v1380 = vmax.f32 %v1244, 0.0
    %v1381 = vmax.f32 %v1245, 0.0
    %v1382 = vmax.f32 %v1246, 0.0
    %v1383 = vmax.f32 %v1247, 0.0
    %v1384 = vmax.f32 %v1248, 0.0
    %v1385 = vmax.f32 %v1249, 0.0
    %v1386 = vmax.f32 %v1250, 0.0
    %v1387 = vmax.f32 %v1251, 0.0
    %v1388 = vmax.f32 %v1252, 0.0
    %v1389 = vmax.f32 %v1253, 0.0
    %v1390 = vmax.f32 %v1254, 0.0
    %v1391 = vmax.f32 %v1255, 0.0
    %v1392 = vmax.f32 %v1256, 0.0
    %v1393 = vmax.f32 %v1257, 0.0
    %v1394 = vmax.f32 %v1258, 0.0
    %v1395 = vmax.f32 %v1259, 0.0
    %v1396 = vmax.f32 %v1260, 0.0
    %v1397 = vmax.f32 %v1261, 0.0
    %v1398 = vmax.f32 %v1262, 0.0
    %v1399 = vmax.f32 %v1263, 0.0
    %v1400 = vmax.f32 %v1264, 0.0
    %v1401 = vmax.f32 %v1265, 0.0
    %v1402 = vmax.f32 %v1266, 0.0
    %v1403 = vmax.f32 %v1267, 0.0
    %v1404 = vmax.f32 %v1268, 0.0
    %v1405 = vmax.f32 %v1269, 0.0
    %v1406 = vmax.f32 %v1270, 0.0
    %v1407 = vmax.f32 %v1271, 0.0
    %v1408 = vmax.f32 %v1272, 0.0
    %v1409 = vmax.f32 %v1273, 0.0
    %v1410 = vmax.f32 %v1274, 0.0
    %v1411 = vmax.f32 %v1275, 0.0
    %v1412 = vmax.f32 %v1276, 0.0
    %v1413 = vmax.f32 %v1277, 0.0
    %v1414 = vmax.f32 %v1278, 0.0
    %v1415 = vmax.f32 %v1279, 0.0
    %v1416 = vmax.f32 %v1280, 0.0
    %v1417 = vmax.f32 %v1281, 0.0
    %v1418 = vmax.f32 %v1282, 0.0
    %v1419 = vmax.f32 %v1283, 0.0
    %v1420 = vmax.f32 %v1284, 0.0
    %v1421 = vmax.f32 %v1285, 0.0
    %v1422 = vmax.f32 %v1286, 0.0
    %v1423 = vmax.f32 %v1287, 0.0
    %v1424 = vmax.f32 %v1288, 0.0
    %v1425 = vmax.f32 %v1289, 0.0
    %v1426 = vmax.f32 %v1290, 0.0
    %v1427 = vmax.f32 %v1291, 0.0
    %v1428 = vmax.f32 %v1292, 0.0
    %v1429 = vmax.f32 %v1293, 0.0
    %v1430 = vmax.f32 %v1294, 0.0
    %v1431 = vmax.f32 %v1295, 0.0
    %v1432 = vmax.f32 %v1296, 0.0
    %v1433 = vmax.f32 %v1297, 0.0
    %v1434 = vmax.f32 %v1298, 0.0
    %v1435 = vmax.f32 %v1299, 0.0
    %v1436 = vmax.f32 %v1300, 0.0
    %v1437 = vmax.f32 %v1301, 0.0
    %v1438 = vmax.f32 %v1302, 0.0
    %v1439 = vmax.f32 %v1303, 0.0
    %v1440 = vmax.f32 %v1304, 0.0
    %v1441 = vmax.f32 %v1305, 0.0
    %v1442 = vmax.f32 %v1306, 0.0
    %v1443 = vmax.f32 %v1307, 0.0
    %v1444 = vmax.f32 %v1308, 0.0
    %v1445 = vmax.f32 %v1309, 0.0
    %v1446 = vmax.f32 %v1310, 0.0
    %v1447 = vmax.f32 %v1311, 0.0
    %v1448 = vmax.f32 %v1312, 0.0
    %v1449 = vmax.f32 %v1313, 0.0
    %v1450 = vmax.f32 %v1314, 0.0
    %v1451 = vmax.f32 %v1315, 0.0
    %v1452 = vmax.f32 %v1316, 0.0
    %v1453 = vmax.f32 %v1317, 0.0
    %v1454 = vmax.f32 %v1318, 0.0
    %v1455 = vmax.f32 %v1319, 0.0
    %v1456 = vmax.f32 %v1320, 0.0
    %v1457 = vmax.f32 %v1321, 0.0
    %v1458 = vmax.f32 %v1322, 0.0
    %v1459 = vmax.f32 %v1323, 0.0
    %v1460 = vmax.f32 %v1324, 0.0
    %v1461 = vmax.f32 %v1325, 0.0
    %v1462 = vmax.f32 %v1326, 0.0
    %v1463 = vmax.f32 %v1327, 0.0
    %v1464 = vmax.f32 %v1328, 0.0
    %v1465 = vmax.f32 %v1329, 0.0
    %v1466 = vmax.f32 %v1330, 0.0
    %v1467 = vmax.f32 %v1331, 0.0
    %v1468 = vmax.f32 %v1332, 0.0
    %v1469 = vmax.f32 %v1333, 0.0
    %v1470 = vmax.f32 %v1334, 0.0
    %v1471 = vmax.f32 %v1335, 0.0
    %v1472 = vmax.f32 %v1336, 0.0
    %v1473 = vmax.f32 %v1337, 0.0
    %v1474 = vmax.f32 %v1338, 0.0
    %v1475 = vmax.f32 %v1339, 0.0
    %v1476 = vmax.f32 %v1340, 0.0
    %v1477 = vmax.f32 %v1341, 0.0
    %v1478 = vmax.f32 %v1342, 0.0
    %v1479 = vmax.f32 %v1343, 0.0
    %v1480 = vmax.f32 %v1344, 0.0
    %v1481 = vmax.f32 %v1345, 0.0
    %v1482 = vmax.f32 %v1346, 0.0
    %v1483 = vmax.f32 %v1347, 0.0
    %v1484 = vmax.f32 %v1348, 0.0
    %v1485 = vmax.f32 %v1349, 0.0
    %v1486 = vmax.f32 %v1350, 0.0
    %v1487 = vmax.f32 %v1351, 0.0
    %v1488 = vmax.f32 %v1352, 0.0
    %v1489 = vmax.f32 %v1353, 0.0
    %v1490 = vmax.f32 %v1354, 0.0
    %v1491 = vmax.f32 %v1355, 0.0
    %v1492 = vmax.f32 %v1356, 0.0
    %v1493 = vmax.f32 %v1357, 0.0
    %v1494 = vmax.f32 %v1358, 0.0
    %v1495 = vmax.f32 %v1359, 0.0
    %v1496 = vmax.f32 %v1360, 0.0
    %v1497 = vmax.f32 %v1361, 0.0
    %v1498 = vmax.f32 %v1362, 0.0
    %v1499 = vmax.f32 %v1363, 0.0
    %v1500 = vmax.f32 %v1364, 0.0
    %v1501 = vmax.f32 %v1365, 0.0
    %v1502 = vmax.f32 %v1366, 0.0
    %v1503 = vmax.f32 %v1367, 0.0
    %v1504 = vmax.f32 %v1368, 0.0
    %v1505 = vmax.f32 %v1369, 0.0
    %v1506 = vmax.f32 %v1370, 0.0
    %1507 = vst [vmem:[#allocation2 + $0x20] sm:$0xff] %v1371
    %1508 = vst [vmem:[#allocation2 + $0x28] sm:$0xff] %v1372
    %1509 = vst [vmem:[#allocation2 + $0x30] sm:$0xff] %v1373
    %1510 = vst [vmem:[#allocation2 + $0x38] sm:$0xff] %v1374
    %1511 = vst [vmem:[#allocation2 + $0x40] sm:$0xff] %v1375
    %1512 = vst [vmem:[#allocation2 + $0x48] sm:$0xff] %v1376
    %1513 = vst [vmem:[#allocation2 + $0x50] sm:$0xff] %v1377
    %1514 = vst [vmem:[#allocation2 + $0x58] sm:$0xff] %v1378
    %1515 = vst [vmem:[#allocation2 + $0x60] sm:$0xff] %v1379
    %1516 = vst [vmem:[#allocation2 + $0x68] sm:$0xff] %v1380
    %1517 = vst [vmem:[#allocation2 + $0x70] sm:$0xff] %v1381
    %1518 = vst [vmem:[#allocation2 + $0x78] sm:$0xff] %v1382
    %1519 = vst [vmem:[#allocation2 + $0x80] sm:$0xff] %v1383
    %1520 = vst [vmem:[#allocation2 + $0x88] sm:$0xff] %v1384
    %1521 = vst [vmem:[#allocation2 + $0x90] sm:$0xff] %v1385
    %1522 = vst [vmem:[#allocation2 + $0x98] sm:$0xff] %v1386
    %1523 = vst [vmem:[#allocation2 + $0xa0] sm:$0xff] %v1387
    %1524 = vst [vmem:[#allocation2 + $0xa8] sm:$0xff] %v1388
    %1525 = vst [vmem:[#allocation2 + $0xb0] sm:$0xff] %v1389
    %1526 = vst [vmem:[#allocation2 + $0xb8] sm:$0xff] %v1390
    %1527 = vst [vmem:[#allocation2 + $0xc0] sm:$0xff] %v1391
    %1528 = vst [vmem:[#allocation2 + $0xc8] sm:$0xff] %v1392
    %1529 = vst [vmem:[#allocation2 + $0xd0] sm:$0xff] %v1393
    %1530 = vst [vmem:[#allocation2 + $0xd8] sm:$0xff] %v1394
    %1531 = vst [vmem:[#allocation2 + $0xe0] sm:$0xff] %v1395
    %1532 = vst [vmem:[#allocation2 + $0xe8] sm:$0xff] %v1396
    %1533 = vst [vmem:[#allocation2 + $0xf0] sm:$0xff] %v1397
    %1534 = vst [vmem:[#allocation2 + $0xf8] sm:$0xff] %v1398
    %1535 = vst [vmem:[#allocation2 + $0x100] sm:$0xff] %v1399
    %1536 = vst [vmem:[#allocation2 + $0x108] sm:$0xff] %v1400
    %1537 = vst [vmem:[#allocation2 + $0x110] sm:$0xff] %v1401
    %1538 = vst [vmem:[#allocation2 + $0x118] sm:$0xff] %v1402
    %1539 = vst [vmem:[#allocation2 + $0x120] sm:$0xff] %v1403
    %1540 = vst [vmem:[#allocation2 + $0x128] sm:$0xff] %v1404
    %1541 = vst [vmem:[#allocation2 + $0x130] sm:$0xff] %v1405
    %1542 = vst [vmem:[#allocation2 + $0x138] sm:$0xff] %v1406
    %1543 = vst [vmem:[#allocation2 + $0x140] sm:$0xff] %v1407
    %1544 = vst [vmem:[#allocation2 + $0x148] sm:$0xff] %v1408
    %1545 = vst [vmem:[#allocation2 + $0x150] sm:$0xff] %v1409
    %1546 = vst [vmem:[#allocation2 + $0x158] sm:$0xff] %v1410
    %1547 = vst [vmem:[#allocation2 + $0x160] sm:$0xff] %v1411
    %1548 = vst [vmem:[#allocation2 + $0x168] sm:$0xff] %v1412
    %1549 = vst [vmem:[#allocation2 + $0x170] sm:$0xff] %v1413
    %1550 = vst [vmem:[#allocation2 + $0x178] sm:$0xff] %v1414
    %1551 = vst [vmem:[#allocation2 + $0x180] sm:$0xff] %v1415
    %1552 = vst [vmem:[#allocation2 + $0x188] sm:$0xff] %v1416
    %1553 = vst [vmem:[#allocation2 + $0x190] sm:$0xff] %v1417
    %1554 = vst [vmem:[#allocation2 + $0x198] sm:$0xff] %v1418
    %1555 = vst [vmem:[#allocation2 + $0x1a0] sm:$0xff] %v1419
    %1556 = vst [vmem:[#allocation2 + $0x1a8] sm:$0xff] %v1420
    %1557 = vst [vmem:[#allocation2 + $0x1b0] sm:$0xff] %v1421
    %1558 = vst [vmem:[#allocation2 + $0x1b8] sm:$0xff] %v1422
    %1559 = vst [vmem:[#allocation2 + $0x1c0] sm:$0xff] %v1423
    %1560 = vst [vmem:[#allocation2 + $0x1c8] sm:$0xff] %v1424
    %1561 = vst [vmem:[#allocation2 + $0x1d0] sm:$0xff] %v1425
    %1562 = vst [vmem:[#allocation2 + $0x1d8] sm:$0xff] %v1426
    %1563 = vst [vmem:[#allocation2 + $0x1e0] sm:$0xff] %v1427
    %1564 = vst [vmem:[#allocation2 + $0x1e8] sm:$0xff] %v1428
    %1565 = vst [vmem:[#allocation2 + $0x1f0] sm:$0xff] %v1429
    %1566 = vst [vmem:[#allocation2 + $0x1f8] sm:$0xff] %v1430
    %1567 = vst [vmem:[#allocation2 + $0x200] sm:$0xff] %v1431
    %1568 = vst [vmem:[#allocation2 + $0x208] sm:$0xff] %v1432
    %1569 = vst [vmem:[#allocation2 + $0x210] sm:$0xff] %v1433
    %1570 = vst [vmem:[#allocation2 + $0x218] sm:$0xff] %v1434
    %1571 = vst [vmem:[#allocation2 + $0x220] sm:$0xff] %v1435
    %1572 = vst [vmem:[#allocation2 + $0x228] sm:$0xff] %v1436
    %1573 = vst [vmem:[#allocation2 + $0x230] sm:$0xff] %v1437
    %1574 = vst [vmem:[#allocation2 + $0x238] sm:$0xff] %v1438
    %1575 = vst [vmem:[#allocation2 + $0x240] sm:$0xff] %v1439
    %1576 = vst [vmem:[#allocation2 + $0x248] sm:$0xff] %v1440
    %1577 = vst [vmem:[#allocation2 + $0x250] sm:$0xff] %v1441
    %1578 = vst [vmem:[#allocation2 + $0x258] sm:$0xff] %v1442
    %1579 = vst [vmem:[#allocation2 + $0x260] sm:$0xff] %v1443
    %1580 = vst [vmem:[#allocation2 + $0x268] sm:$0xff] %v1444
    %1581 = vst [vmem:[#allocation2 + $0x270] sm:$0xff] %v1445
    %1582 = vst [vmem:[#allocation2 + $0x278] sm:$0xff] %v1446
    %1583 = vst [vmem:[#allocation2 + $0x280] sm:$0xff] %v1447
    %1584 = vst [vmem:[#allocation2 + $0x288] sm:$0xff] %v1448
    %1585 = vst [vmem:[#allocation2 + $0x290] sm:$0xff] %v1449
    %1586 = vst [vmem:[#allocation2 + $0x298] sm:$0xff] %v1450
    %1587 = vst [vmem:[#allocation2 + $0x2a0] sm:$0xff] %v1451
    %1588 = vst [vmem:[#allocation2 + $0x2a8] sm:$0xff] %v1452
    %1589 = vst [vmem:[#allocation2 + $0x2b0] sm:$0xff] %v1453
    %1590 = vst [vmem:[#allocation2 + $0x2b8] sm:$0xff] %v1454
    %1591 = vst [vmem:[#allocation2 + $0x2c0] sm:$0xff] %v1455
    %1592 = vst [vmem:[#allocation2 + $0x2c8] sm:$0xff] %v1456
    %1593 = vst [vmem:[#allocation2 + $0x2d0] sm:$0xff] %v1457
    %1594 = vst [vmem:[#allocation2 + $0x2d8] sm:$0xff] %v1458
    %1595 = vst [vmem:[#allocation2 + $0x2e0] sm:$0xff] %v1459
    %1596 = vst [vmem:[#allocation2 + $0x2e8] sm:$0xff] %v1460
    %1597 = vst [vmem:[#allocation2 + $0x2f0] sm:$0xff] %v1461
    %1598 = vst [vmem:[#allocation2 + $0x2f8] sm:$0xff] %v1462
    %1599 = vst [vmem:[#allocation2 + $0x300] sm:$0xff] %v1463
    %1600 = vst [vmem:[#allocation2 + $0x308] sm:$0xff] %v1464
    %1601 = vst [vmem:[#allocation2 + $0x310] sm:$0xff] %v1465
    %1602 = vst [vmem:[#allocation2 + $0x318] sm:$0xff] %v1466
    %1603 = vst [vmem:[#allocation2 + $0x320] sm:$0xff] %v1467
    %1604 = vst [vmem:[#allocation2 + $0x328] sm:$0xff] %v1468
    %1605 = vst [vmem:[#allocation2 + $0x330] sm:$0xff] %v1469
    %1606 = vst [vmem:[#allocation2 + $0x338] sm:$0xff] %v1470
    %1607 = vst [vmem:[#allocation2 + $0x340] sm:$0xff] %v1471
    %1608 = vst [vmem:[#allocation2 + $0x348] sm:$0xff] %v1472
    %1609 = vst [vmem:[#allocation2 + $0x350] sm:$0xff] %v1473
    %1610 = vst [vmem:[#allocation2 + $0x358] sm:$0xff] %v1474
    %1611 = vst [vmem:[#allocation2 + $0x360] sm:$0xff] %v1475
    %1612 = vst [vmem:[#allocation2 + $0x368] sm:$0xff] %v1476
    %1613 = vst [vmem:[#allocation2 + $0x370] sm:$0xff] %v1477
    %1614 = vst [vmem:[#allocation2 + $0x378] sm:$0xff] %v1478
    %1615 = vst [vmem:[#allocation2 + $0x380] sm:$0xff] %v1479
    %1616 = vst [vmem:[#allocation2 + $0x388] sm:$0xff] %v1480
    %1617 = vst [vmem:[#allocation2 + $0x390] sm:$0xff] %v1481
    %1618 = vst [vmem:[#allocation2 + $0x398] sm:$0xff] %v1482
    %1619 = vst [vmem:[#allocation2 + $0x3a0] sm:$0xff] %v1483
    %1620 = vst [vmem:[#allocation2 + $0x3a8] sm:$0xff] %v1484
    %1621 = vst [vmem:[#allocation2 + $0x3b0] sm:$0xff] %v1485
    %1622 = vst [vmem:[#allocation2 + $0x3b8] sm:$0xff] %v1486
    %1623 = vst [vmem:[#allocation2 + $0x3c0] sm:$0xff] %v1487
    %1624 = vst [vmem:[#allocation2 + $0x3c8] sm:$0xff] %v1488
    %1625 = vst [vmem:[#allocation2 + $0x3d0] sm:$0xff] %v1489
    %1626 = vst [vmem:[#allocation2 + $0x3d8] sm:$0xff] %v1490
    %1627 = vst [vmem:[#allocation2 + $0x3e0] sm:$0xff] %v1491
    %1628 = vst [vmem:[#allocation2 + $0x3e8] sm:$0xff] %v1492
    %1629 = vst [vmem:[#allocation2 + $0x3f0] sm:$0xff] %v1493
    %1630 = vst [vmem:[#allocation2 + $0x3f8] sm:$0xff] %v1494
    %1631 = vst [vmem:[#allocation2 + $0x400] sm:$0xff] %v1495
    %1632 = vst [vmem:[#allocation2 + $0x408] sm:$0xff] %v1496
    %1633 = vst [vmem:[#allocation2 + $0x410] sm:$0xff] %v1497
    %1634 = vst [vmem:[#allocation2 + $0x418] sm:$0xff] %v1498
    %1635 = vst [vmem:[#allocation2 + $0x420] sm:$0xff] %v1499
    %1636 = vst [vmem:[#allocation2 + $0x428] sm:$0xff] %v1500
    %1637 = vst [vmem:[#allocation2 + $0x430] sm:$0xff] %v1501
    %1638 = vst [vmem:[#allocation2 + $0x438] sm:$0xff] %v1502
    %1639 = vst [vmem:[#allocation2 + $0x440] sm:$0xff] %v1503
    %1640 = vst [vmem:[#allocation2 + $0x448] sm:$0xff] %v1504
    %1641 = vst [vmem:[#allocation2 + $0x450] sm:$0xff] %v1505
    %1642 = vst [vmem:[#allocation2 + $0x458] sm:$0xff] %v1506
    %v1643 = vld [vmem:[#allocation2] sm:$0xff]
    %v1644 = vld [vmem:[#allocation2 + $0x8] sm:$0xff]
    %v1645 = vld [vmem:[#allocation2 + $0x10] sm:$0xff]
    %v1646 = vld [vmem:[#allocation2 + $0x18] sm:$0xff]
    %v1647 = vld [vmem:[#allocation2 + $0x20] sm:$0xff]
    %v1648 = vld [vmem:[#allocation2 + $0x28] sm:$0xff]
    %v1649 = vld [vmem:[#allocation2 + $0x30] sm:$0xff]
    %v1650 = vld [vmem:[#allocation2 + $0x38] sm:$0xff]
    %v1651 = vld [vmem:[#allocation2 + $0x40] sm:$0xff]
    %v1652 = vld [vmem:[#allocation2 + $0x48] sm:$0xff]
    %v1653 = vld [vmem:[#allocation2 + $0x50] sm:$0xff]
    %v1654 = vld [vmem:[#allocation2 + $0x58] sm:$0xff]
    %v1655 = vld [vmem:[#allocation2 + $0x60] sm:$0xff]
    %v1656 = vld [vmem:[#allocation2 + $0x68] sm:$0xff]
    %v1657 = vld [vmem:[#allocation2 + $0x70] sm:$0xff]
    %v1658 = vld [vmem:[#allocation2 + $0x78] sm:$0xff]
    %v1659 = vld [vmem:[#allocation2 + $0x80] sm:$0xff]
    %v1660 = vld [vmem:[#allocation2 + $0x88] sm:$0xff]
    %v1661 = vld [vmem:[#allocation2 + $0x90] sm:$0xff]
    %v1662 = vld [vmem:[#allocation2 + $0x98] sm:$0xff]
    %v1663 = vld [vmem:[#allocation2 + $0xa0] sm:$0xff]
    %v1664 = vld [vmem:[#allocation2 + $0xa8] sm:$0xff]
    %v1665 = vld [vmem:[#allocation2 + $0xb0] sm:$0xff]
    %v1666 = vld [vmem:[#allocation2 + $0xb8] sm:$0xff]
    %v1667 = vld [vmem:[#allocation2 + $0xc0] sm:$0xff]
    %v1668 = vld [vmem:[#allocation2 + $0xc8] sm:$0xff]
    %v1669 = vld [vmem:[#allocation2 + $0xd0] sm:$0xff]
    %v1670 = vld [vmem:[#allocation2 + $0xd8] sm:$0xff]
    %v1671 = vld [vmem:[#allocation2 + $0xe0] sm:$0xff]
    %v1672 = vld [vmem:[#allocation2 + $0xe8] sm:$0xff]
    %v1673 = vld [vmem:[#allocation2 + $0xf0] sm:$0xff]
    %v1674 = vld [vmem:[#allocation2 + $0xf8] sm:$0xff]
    %v1675 = vld [vmem:[#allocation2 + $0x100] sm:$0xff]
    %v1676 = vld [vmem:[#allocation2 + $0x108] sm:$0xff]
    %v1677 = vld [vmem:[#allocation2 + $0x110] sm:$0xff]
    %v1678 = vld [vmem:[#allocation2 + $0x118] sm:$0xff]
    %v1679 = vld [vmem:[#allocation2 + $0x120] sm:$0xff]
    %v1680 = vld [vmem:[#allocation2 + $0x128] sm:$0xff]
    %v1681 = vld [vmem:[#allocation2 + $0x130] sm:$0xff]
    %v1682 = vld [vmem:[#allocation2 + $0x138] sm:$0xff]
    %v1683 = vld [vmem:[#allocation2 + $0x140] sm:$0xff]
    %v1684 = vld [vmem:[#allocation2 + $0x148] sm:$0xff]
    %v1685 = vld [vmem:[#allocation2 + $0x150] sm:$0xff]
    %v1686 = vld [vmem:[#allocation2 + $0x158] sm:$0xff]
    %v1687 = vld [vmem:[#allocation2 + $0x160] sm:$0xff]
    %v1688 = vld [vmem:[#allocation2 + $0x168] sm:$0xff]
    %v1689 = vld [vmem:[#allocation2 + $0x170] sm:$0xff]
    %v1690 = vld [vmem:[#allocation2 + $0x178] sm:$0xff]
    %v1691 = vld [vmem:[#allocation2 + $0x180] sm:$0xff]
    %v1692 = vld [vmem:[#allocation2 + $0x188] sm:$0xff]
    %v1693 = vld [vmem:[#allocation2 + $0x190] sm:$0xff]
    %v1694 = vld [vmem:[#allocation2 + $0x198] sm:$0xff]
    %v1695 = vld [vmem:[#allocation2 + $0x1a0] sm:$0xff]
    %v1696 = vld [vmem:[#allocation2 + $0x1a8] sm:$0xff]
    %v1697 = vld [vmem:[#allocation2 + $0x1b0] sm:$0xff]
    %v1698 = vld [vmem:[#allocation2 + $0x1b8] sm:$0xff]
    %v1699 = vld [vmem:[#allocation2 + $0x1c0] sm:$0xff]
    %v1700 = vld [vmem:[#allocation2 + $0x1c8] sm:$0xff]
    %v1701 = vld [vmem:[#allocation2 + $0x1d0] sm:$0xff]
    %v1702 = vld [vmem:[#allocation2 + $0x1d8] sm:$0xff]
    %v1703 = vld [vmem:[#allocation2 + $0x1e0] sm:$0xff]
    %v1704 = vld [vmem:[#allocation2 + $0x1e8] sm:$0xff]
    %v1705 = vld [vmem:[#allocation2 + $0x1f0] sm:$0xff]
    %v1706 = vld [vmem:[#allocation2 + $0x1f8] sm:$0xff]
    %v1707 = vld [vmem:[#allocation2 + $0x200] sm:$0xff]
    %v1708 = vld [vmem:[#allocation2 + $0x208] sm:$0xff]
    %v1709 = vld [vmem:[#allocation2 + $0x210] sm:$0xff]
    %v1710 = vld [vmem:[#allocation2 + $0x218] sm:$0xff]
    %v1711 = vld [vmem:[#allocation2 + $0x220] sm:$0xff]
    %v1712 = vld [vmem:[#allocation2 + $0x228] sm:$0xff]
    %v1713 = vld [vmem:[#allocation2 + $0x230] sm:$0xff]
    %v1714 = vld [vmem:[#allocation2 + $0x238] sm:$0xff]
    %v1715 = vld [vmem:[#allocation2 + $0x240] sm:$0xff]
    %v1716 = vld [vmem:[#allocation2 + $0x248] sm:$0xff]
    %v1717 = vld [vmem:[#allocation2 + $0x250] sm:$0xff]
    %v1718 = vld [vmem:[#allocation2 + $0x258] sm:$0xff]
    %v1719 = vld [vmem:[#allocation2 + $0x260] sm:$0xff]
    %v1720 = vld [vmem:[#allocation2 + $0x268] sm:$0xff]
    %v1721 = vld [vmem:[#allocation2 + $0x270] sm:$0xff]
    %v1722 = vld [vmem:[#allocation2 + $0x278] sm:$0xff]
    %v1723 = vld [vmem:[#allocation2 + $0x280] sm:$0xff]
    %v1724 = vld [vmem:[#allocation2 + $0x288] sm:$0xff]
    %v1725 = vld [vmem:[#allocation2 + $0x290] sm:$0xff]
    %v1726 = vld [vmem:[#allocation2 + $0x298] sm:$0xff]
    %v1727 = vld [vmem:[#allocation2 + $0x2a0] sm:$0xff]
    %v1728 = vld [vmem:[#allocation2 + $0x2a8] sm:$0xff]
    %v1729 = vld [vmem:[#allocation2 + $0x2b0] sm:$0xff]
    %v1730 = vld [vmem:[#allocation2 + $0x2b8] sm:$0xff]
    %v1731 = vld [vmem:[#allocation2 + $0x2c0] sm:$0xff]
    %v1732 = vld [vmem:[#allocation2 + $0x2c8] sm:$0xff]
    %v1733 = vld [vmem:[#allocation2 + $0x2d0] sm:$0xff]
    %v1734 = vld [vmem:[#allocation2 + $0x2d8] sm:$0xff]
    %v1735 = vld [vmem:[#allocation2 + $0x2e0] sm:$0xff]
    %v1736 = vld [vmem:[#allocation2 + $0x2e8] sm:$0xff]
    %v1737 = vld [vmem:[#allocation2 + $0x2f0] sm:$0xff]
    %v1738 = vld [vmem:[#allocation2 + $0x2f8] sm:$0xff]
    %v1739 = vld [vmem:[#allocation2 + $0x300] sm:$0xff]
    %v1740 = vld [vmem:[#allocation2 + $0x308] sm:$0xff]
    %v1741 = vld [vmem:[#allocation2 + $0x310] sm:$0xff]
    %v1742 = vld [vmem:[#allocation2 + $0x318] sm:$0xff]
    %v1743 = vld [vmem:[#allocation2 + $0x320] sm:$0xff]
    %v1744 = vld [vmem:[#allocation2 + $0x328] sm:$0xff]
    %v1745 = vld [vmem:[#allocation2 + $0x330] sm:$0xff]
    %v1746 = vld [vmem:[#allocation2 + $0x338] sm:$0xff]
    %v1747 = vld [vmem:[#allocation2 + $0x340] sm:$0xff]
    %v1748 = vld [vmem:[#allocation2 + $0x348] sm:$0xff]
    %v1749 = vld [vmem:[#allocation2 + $0x350] sm:$0xff]
    %v1750 = vld [vmem:[#allocation2 + $0x358] sm:$0xff]
    %v1751 = vld [vmem:[#allocation2 + $0x360] sm:$0xff]
    %v1752 = vld [vmem:[#allocation2 + $0x368] sm:$0xff]
    %v1753 = vld [vmem:[#allocation2 + $0x370] sm:$0xff]
    %v1754 = vld [vmem:[#allocation2 + $0x378] sm:$0xff]
    %v1755 = vld [vmem:[#allocation2 + $0x380] sm:$0xff]
    %v1756 = vld [vmem:[#allocation2 + $0x388] sm:$0xff]
    %v1757 = vld [vmem:[#allocation2 + $0x390] sm:$0xff]
    %v1758 = vld [vmem:[#allocation2 + $0x398] sm:$0xff]
    %v1759 = vld [vmem:[#allocation2 + $0x3a0] sm:$0xff]
    %v1760 = vld [vmem:[#allocation2 + $0x3a8] sm:$0xff]
    %v1761 = vld [vmem:[#allocation2 + $0x3b0] sm:$0xff]
    %v1762 = vld [vmem:[#allocation2 + $0x3b8] sm:$0xff]
    %v1763 = vld [vmem:[#allocation2 + $0x3c0] sm:$0xff]
    %v1764 = vld [vmem:[#allocation2 + $0x3c8] sm:$0xff]
    %v1765 = vld [vmem:[#allocation2 + $0x3d0] sm:$0xff]
    %v1766 = vld [vmem:[#allocation2 + $0x3d8] sm:$0xff]
    %v1767 = vld [vmem:[#allocation2 + $0x3e0] sm:$0xff]
    %v1768 = vld [vmem:[#allocation2 + $0x3e8] sm:$0xff]
    %v1769 = vld [vmem:[#allocation2 + $0x3f0] sm:$0xff]
    %v1770 = vld [vmem:[#allocation2 + $0x3f8] sm:$0xff]
    %v1771 = vld [vmem:[#allocation2 + $0x400] sm:$0xff]
    %v1772 = vld [vmem:[#allocation2 + $0x408] sm:$0xff]
    %v1773 = vld [vmem:[#allocation2 + $0x410] sm:$0xff]
    %v1774 = vld [vmem:[#allocation2 + $0x418] sm:$0xff]
    %v1775 = vld [vmem:[#allocation2 + $0x420] sm:$0xff]
    %v1776 = vld [vmem:[#allocation2 + $0x428] sm:$0xff]
    %v1777 = vld [vmem:[#allocation2 + $0x430] sm:$0xff]
    %v1778 = vld [vmem:[#allocation2 + $0x438] sm:$0xff]
    %v1779 = vpack.c.bf16 %v1645, %v1643
    %v1780 = vpack.c.bf16 %v1646, %v1644
    %v1781 = vpack.c.bf16 %v1649, %v1647
    %v1782 = vpack.c.bf16 %v1650, %v1648
    %v1783 = vpack.c.bf16 %v1653, %v1651
    %v1784 = vpack.c.bf16 %v1654, %v1652
    %v1785 = vpack.c.bf16 %v1657, %v1655
    %v1786 = vpack.c.bf16 %v1658, %v1656
    %v1787 = vpack.c.bf16 %v1661, %v1659
    %v1788 = vpack.c.bf16 %v1662, %v1660
    %v1789 = vpack.c.bf16 %v1665, %v1663
    %v1790 = vpack.c.bf16 %v1666, %v1664
    %v1791 = vpack.c.bf16 %v1669, %v1667
    %v1792 = vpack.c.bf16 %v1670, %v1668
    %v1793 = vpack.c.bf16 %v1673, %v1671
    %v1794 = vpack.c.bf16 %v1674, %v1672
    %v1795 = vpack.c.bf16 %v1677, %v1675
    %v1796 = vpack.c.bf16 %v1678, %v1676
    %v1797 = vpack.c.bf16 %v1681, %v1679
    %v1798 = vpack.c.bf16 %v1682, %v1680
    %v1799 = vpack.c.bf16 %v1685, %v1683
    %v1800 = vpack.c.bf16 %v1686, %v1684
    %v1801 = vpack.c.bf16 %v1689, %v1687
    %v1802 = vpack.c.bf16 %v1690, %v1688
    %v1803 = vpack.c.bf16 %v1693, %v1691
    %v1804 = vpack.c.bf16 %v1694, %v1692
    %v1805 = vpack.c.bf16 %v1697, %v1695
    %v1806 = vpack.c.bf16 %v1698, %v1696
    %v1807 = vpack.c.bf16 %v1701, %v1699
    %v1808 = vpack.c.bf16 %v1702, %v1700
    %v1809 = vpack.c.bf16 %v1705, %v1703
    %v1810 = vpack.c.bf16 %v1706, %v1704
    %v1811 = vpack.c.bf16 %v1709, %v1707
    %v1812 = vpack.c.bf16 %v1710, %v1708
    %v1813 = vpack.c.bf16 %v1713, %v1711
    %v1814 = vpack.c.bf16 %v1714, %v1712
    %v1815 = vpack.c.bf16 %v1717, %v1715
    %v1816 = vpack.c.bf16 %v1718, %v1716
    %v1817 = vpack.c.bf16 %v1721, %v1719
    %v1818 = vpack.c.bf16 %v1722, %v1720
    %v1819 = vpack.c.bf16 %v1725, %v1723
    %v1820 = vpack.c.bf16 %v1726, %v1724
    %v1821 = vpack.c.bf16 %v1729, %v1727
    %v1822 = vpack.c.bf16 %v1730, %v1728
    %v1823 = vpack.c.bf16 %v1733, %v1731
    %v1824 = vpack.c.bf16 %v1734, %v1732
    %v1825 = vpack.c.bf16 %v1737, %v1735
    %v1826 = vpack.c.bf16 %v1738, %v1736
    %v1827 = vpack.c.bf16 %v1741, %v1739
    %v1828 = vpack.c.bf16 %v1742, %v1740
    %v1829 = vpack.c.bf16 %v1745, %v1743
    %v1830 = vpack.c.bf16 %v1746, %v1744
    %v1831 = vpack.c.bf16 %v1749, %v1747
    %v1832 = vpack.c.bf16 %v1750, %v1748
    %v1833 = vpack.c.bf16 %v1753, %v1751
    %v1834 = vpack.c.bf16 %v1754, %v1752
    %v1835 = vpack.c.bf16 %v1757, %v1755
    %v1836 = vpack.c.bf16 %v1758, %v1756
    %v1837 = vpack.c.bf16 %v1761, %v1759
    %v1838 = vpack.c.bf16 %v1762, %v1760
    %v1839 = vpack.c.bf16 %v1765, %v1763
    %v1840 = vpack.c.bf16 %v1766, %v1764
    %v1841 = vpack.c.bf16 %v1769, %v1767
    %v1842 = vpack.c.bf16 %v1770, %v1768
    %v1843 = vpack.c.bf16 %v1773, %v1771
    %v1844 = vpack.c.bf16 %v1774, %v1772
    %v1845 = vpack.c.bf16 %v1777, %v1775
    %v1846 = vpack.c.bf16 %v1778, %v1776
    %v1847 = vld [vmem:[#allocation2 + $0x440] sm:$0xff]
    %v1848 = vld [vmem:[#allocation2 + $0x448] sm:$0xff]
    %v1849 = vld [vmem:[#allocation2 + $0x450] sm:$0xff]
    %v1850 = vld [vmem:[#allocation2 + $0x458] sm:$0xff]
    %v1851 = vpack.c.bf16 %v1849, %v1847
    %v1852 = vpack.c.bf16 %v1850, %v1848
    %v1853 = vld [vmem:[#allocation2 + $0x40] sm:$0xff]
    %v1854 = vld [vmem:[#allocation2 + $0x48] sm:$0xff]
    %v1855 = vld [vmem:[#allocation2 + $0x50] sm:$0xff]
    %v1856 = vld [vmem:[#allocation2 + $0x58] sm:$0xff]
    %v1857 = vld [vmem:[#allocation2 + $0x60] sm:$0xff]
    %v1858 = vld [vmem:[#allocation2 + $0x68] sm:$0xff]
    %v1859 = vld [vmem:[#allocation2 + $0x70] sm:$0xff]
    %v1860 = vld [vmem:[#allocation2 + $0x78] sm:$0xff]
    %v1861 = vld [vmem:[#allocation2 + $0x80] sm:$0xff]
    %v1862 = vld [vmem:[#allocation2 + $0x88] sm:$0xff]
    %v1863 = vld [vmem:[#allocation2 + $0x90] sm:$0xff]
    %v1864 = vld [vmem:[#allocation2 + $0x98] sm:$0xff]
    %v1865 = vld [vmem:[#allocation2 + $0xa0] sm:$0xff]
    %v1866 = vld [vmem:[#allocation2 + $0xa8] sm:$0xff]
    %v1867 = vld [vmem:[#allocation2 + $0xb0] sm:$0xff]
    %v1868 = vld [vmem:[#allocation2 + $0xb8] sm:$0xff]
    %v1869 = vld [vmem:[#allocation2 + $0xc0] sm:$0xff]
    %v1870 = vld [vmem:[#allocation2 + $0xc8] sm:$0xff]
    %v1871 = vld [vmem:[#allocation2 + $0xd0] sm:$0xff]
    %v1872 = vld [vmem:[#allocation2 + $0xd8] sm:$0xff]
    %v1873 = vld [vmem:[#allocation2 + $0xe0] sm:$0xff]
    %v1874 = vld [vmem:[#allocation2 + $0xe8] sm:$0xff]
    %v1875 = vld [vmem:[#allocation2 + $0xf0] sm:$0xff]
    %v1876 = vld [vmem:[#allocation2 + $0xf8] sm:$0xff]
    %v1877 = vld [vmem:[#allocation2 + $0x100] sm:$0xff]
    %v1878 = vld [vmem:[#allocation2 + $0x108] sm:$0xff]
    %v1879 = vld [vmem:[#allocation2 + $0x110] sm:$0xff]
    %v1880 = vld [vmem:[#allocation2 + $0x118] sm:$0xff]
    %v1881 = vld [vmem:[#allocation2 + $0x120] sm:$0xff]
    %v1882 = vld [vmem:[#allocation2 + $0x128] sm:$0xff]
    %v1883 = vld [vmem:[#allocation2 + $0x130] sm:$0xff]
    %v1884 = vld [vmem:[#allocation2 + $0x138] sm:$0xff]
    %v1885 = vld [vmem:[#allocation2 + $0x140] sm:$0xff]
    %v1886 = vld [vmem:[#allocation2 + $0x148] sm:$0xff]
    %v1887 = vld [vmem:[#allocation2 + $0x150] sm:$0xff]
    %v1888 = vld [vmem:[#allocation2 + $0x158] sm:$0xff]
    %v1889 = vld [vmem:[#allocation2 + $0x160] sm:$0xff]
    %v1890 = vld [vmem:[#allocation2 + $0x168] sm:$0xff]
    %v1891 = vld [vmem:[#allocation2 + $0x170] sm:$0xff]
    %v1892 = vld [vmem:[#allocation2 + $0x178] sm:$0xff]
    %v1893 = vld [vmem:[#allocation2 + $0x180] sm:$0xff]
    %v1894 = vld [vmem:[#allocation2 + $0x188] sm:$0xff]
    %v1895 = vld [vmem:[#allocation2 + $0x190] sm:$0xff]
    %v1896 = vld [vmem:[#allocation2 + $0x198] sm:$0xff]
    %v1897 = vld [vmem:[#allocation2 + $0x1a0] sm:$0xff]
    %v1898 = vld [vmem:[#allocation2 + $0x1a8] sm:$0xff]
    %v1899 = vld [vmem:[#allocation2 + $0x1b0] sm:$0xff]
    %v1900 = vld [vmem:[#allocation2 + $0x1b8] sm:$0xff]
    %v1901 = vld [vmem:[#allocation2 + $0x1c0] sm:$0xff]
    %v1902 = vld [vmem:[#allocation2 + $0x1c8] sm:$0xff]
    %v1903 = vld [vmem:[#allocation2 + $0x1d0] sm:$0xff]
    %v1904 = vld [vmem:[#allocation2 + $0x1d8] sm:$0xff]
    %v1905 = vld [vmem:[#allocation2 + $0x1e0] sm:$0xff]
    %v1906 = vld [vmem:[#allocation2 + $0x1e8] sm:$0xff]
    %v1907 = vld [vmem:[#allocation2 + $0x1f0] sm:$0xff]
    %v1908 = vld [vmem:[#allocation2 + $0x1f8] sm:$0xff]
    %v1909 = vld [vmem:[#allocation2 + $0x200] sm:$0xff]
    %v1910 = vld [vmem:[#allocation2 + $0x208] sm:$0xff]
    %v1911 = vld [vmem:[#allocation2 + $0x210] sm:$0xff]
    %v1912 = vld [vmem:[#allocation2 + $0x218] sm:$0xff]
    %v1913 = vld [vmem:[#allocation2 + $0x220] sm:$0xff]
    %v1914 = vld [vmem:[#allocation2 + $0x228] sm:$0xff]
    %v1915 = vld [vmem:[#allocation2 + $0x230] sm:$0xff]
    %v1916 = vld [vmem:[#allocation2 + $0x238] sm:$0xff]
    %v1917 = vld [vmem:[#allocation2 + $0x240] sm:$0xff]
    %v1918 = vld [vmem:[#allocation2 + $0x248] sm:$0xff]
    %v1919 = vld [vmem:[#allocation2 + $0x250] sm:$0xff]
    %v1920 = vld [vmem:[#allocation2 + $0x258] sm:$0xff]
    %v1921 = vld [vmem:[#allocation2 + $0x260] sm:$0xff]
    %v1922 = vld [vmem:[#allocation2 + $0x268] sm:$0xff]
    %v1923 = vld [vmem:[#allocation2 + $0x270] sm:$0xff]
    %v1924 = vld [vmem:[#allocation2 + $0x278] sm:$0xff]
    %v1925 = vld [vmem:[#allocation2 + $0x280] sm:$0xff]
    %v1926 = vld [vmem:[#allocation2 + $0x288] sm:$0xff]
    %v1927 = vld [vmem:[#allocation2 + $0x290] sm:$0xff]
    %v1928 = vld [vmem:[#allocation2 + $0x298] sm:$0xff]
    %v1929 = vld [vmem:[#allocation2 + $0x2a0] sm:$0xff]
    %v1930 = vld [vmem:[#allocation2 + $0x2a8] sm:$0xff]
    %v1931 = vld [vmem:[#allocation2 + $0x2b0] sm:$0xff]
    %v1932 = vld [vmem:[#allocation2 + $0x2b8] sm:$0xff]
    %v1933 = vld [vmem:[#allocation2 + $0x2c0] sm:$0xff]
    %v1934 = vld [vmem:[#allocation2 + $0x2c8] sm:$0xff]
    %v1935 = vld [vmem:[#allocation2 + $0x2d0] sm:$0xff]
    %v1936 = vld [vmem:[#allocation2 + $0x2d8] sm:$0xff]
    %v1937 = vld [vmem:[#allocation2 + $0x2e0] sm:$0xff]
    %v1938 = vld [vmem:[#allocation2 + $0x2e8] sm:$0xff]
    %v1939 = vld [vmem:[#allocation2 + $0x2f0] sm:$0xff]
    %v1940 = vld [vmem:[#allocation2 + $0x2f8] sm:$0xff]
    %v1941 = vld [vmem:[#allocation2 + $0x300] sm:$0xff]
    %v1942 = vld [vmem:[#allocation2 + $0x308] sm:$0xff]
    %v1943 = vld [vmem:[#allocation2 + $0x310] sm:$0xff]
    %v1944 = vld [vmem:[#allocation2 + $0x318] sm:$0xff]
    %v1945 = vld [vmem:[#allocation2 + $0x320] sm:$0xff]
    %v1946 = vld [vmem:[#allocation2 + $0x328] sm:$0xff]
    %v1947 = vld [vmem:[#allocation2 + $0x330] sm:$0xff]
    %v1948 = vld [vmem:[#allocation2 + $0x338] sm:$0xff]
    %v1949 = vld [vmem:[#allocation2 + $0x340] sm:$0xff]
    %v1950 = vld [vmem:[#allocation2 + $0x348] sm:$0xff]
    %v1951 = vld [vmem:[#allocation2 + $0x350] sm:$0xff]
    %v1952 = vld [vmem:[#allocation2 + $0x358] sm:$0xff]
    %v1953 = vld [vmem:[#allocation2 + $0x360] sm:$0xff]
    %v1954 = vld [vmem:[#allocation2 + $0x368] sm:$0xff]
    %v1955 = vld [vmem:[#allocation2 + $0x370] sm:$0xff]
    %v1956 = vld [vmem:[#allocation2 + $0x378] sm:$0xff]
    %v1957 = vld [vmem:[#allocation2 + $0x380] sm:$0xff]
    %v1958 = vld [vmem:[#allocation2 + $0x388] sm:$0xff]
    %v1959 = vld [vmem:[#allocation2 + $0x390] sm:$0xff]
    %v1960 = vld [vmem:[#allocation2 + $0x398] sm:$0xff]
    %v1961 = vld [vmem:[#allocation2 + $0x3a0] sm:$0xff]
    %v1962 = vld [vmem:[#allocation2 + $0x3a8] sm:$0xff]
    %v1963 = vld [vmem:[#allocation2 + $0x3b0] sm:$0xff]
    %v1964 = vld [vmem:[#allocation2 + $0x3b8] sm:$0xff]
    %v1965 = vld [vmem:[#allocation2 + $0x3c0] sm:$0xff]
    %v1966 = vld [vmem:[#allocation2 + $0x3c8] sm:$0xff]
    %v1967 = vld [vmem:[#allocation2 + $0x3d0] sm:$0xff]
    %v1968 = vld [vmem:[#allocation2 + $0x3d8] sm:$0xff]
    %v1969 = vld [vmem:[#allocation2 + $0x3e0] sm:$0xff]
    %v1970 = vld [vmem:[#allocation2 + $0x3e8] sm:$0xff]
    %v1971 = vld [vmem:[#allocation2 + $0x3f0] sm:$0xff]
    %v1972 = vld [vmem:[#allocation2 + $0x3f8] sm:$0xff]
    %v1973 = vld [vmem:[#allocation2 + $0x400] sm:$0xff]
    %v1974 = vld [vmem:[#allocation2 + $0x408] sm:$0xff]
    %v1975 = vld [vmem:[#allocation2 + $0x410] sm:$0xff]
    %v1976 = vld [vmem:[#allocation2 + $0x418] sm:$0xff]
    %v1977 = vld [vmem:[#allocation2 + $0x420] sm:$0xff]
    %v1978 = vld [vmem:[#allocation2 + $0x428] sm:$0xff]
    %v1979 = vld [vmem:[#allocation2 + $0x430] sm:$0xff]
    %v1980 = vld [vmem:[#allocation2 + $0x438] sm:$0xff]
    %v1981 = vld [vmem:[#allocation2 + $0x440] sm:$0xff]
    %v1982 = vld [vmem:[#allocation2 + $0x448] sm:$0xff]
    %v1983 = vld [vmem:[#allocation2 + $0x450] sm:$0xff]
    %v1984 = vld [vmem:[#allocation2 + $0x458] sm:$0xff]
    %v1985 = vld [vmem:[#allocation2 + $0x460] sm:$0xff]
    %v1986 = vld [vmem:[#allocation2 + $0x468] sm:$0xff]
    %v1987 = vld [vmem:[#allocation2 + $0x470] sm:$0xff]
    %v1988 = vld [vmem:[#allocation2 + $0x478] sm:$0xff]
    %v1989 = vpack.c.bf16 %v1855, %v1853
    %v1990 = vpack.c.bf16 %v1856, %v1854
    %v1991 = vpack.c.bf16 %v1859, %v1857
    %v1992 = vpack.c.bf16 %v1860, %v1858
    %v1993 = vpack.c.bf16 %v1863, %v1861
    %v1994 = vpack.c.bf16 %v1864, %v1862
    %v1995 = vpack.c.bf16 %v1867, %v1865
    %v1996 = vpack.c.bf16 %v1868, %v1866
    %v1997 = vpack.c.bf16 %v1871, %v1869
    %v1998 = vpack.c.bf16 %v1872, %v1870
    %v1999 = vpack.c.bf16 %v1875, %v1873
    %v2000 = vpack.c.bf16 %v1876, %v1874
    %v2001 = vpack.c.bf16 %v1879, %v1877
    %v2002 = vpack.c.bf16 %v1880, %v1878
    %v2003 = vpack.c.bf16 %v1883, %v1881
    %v2004 = vpack.c.bf16 %v1884, %v1882
    %v2005 = vpack.c.bf16 %v1887, %v1885
    %v2006 = vpack.c.bf16 %v1888, %v1886
    %v2007 = vpack.c.bf16 %v1891, %v1889
    %v2008 = vpack.c.bf16 %v1892, %v1890
    %v2009 = vpack.c.bf16 %v1895, %v1893
    %v2010 = vpack.c.bf16 %v1896, %v1894
    %v2011 = vpack.c.bf16 %v1899, %v1897
    %v2012 = vpack.c.bf16 %v1900, %v1898
    %v2013 = vpack.c.bf16 %v1903, %v1901
    %v2014 = vpack.c.bf16 %v1904, %v1902
    %v2015 = vpack.c.bf16 %v1907, %v1905
    %v2016 = vpack.c.bf16 %v1908, %v1906
    %v2017 = vpack.c.bf16 %v1911, %v1909
    %v2018 = vpack.c.bf16 %v1912, %v1910
    %v2019 = vpack.c.bf16 %v1915, %v1913
    %v2020 = vpack.c.bf16 %v1916, %v1914
    %v2021 = vpack.c.bf16 %v1919, %v1917
    %v2022 = vpack.c.bf16 %v1920, %v1918
    %v2023 = vpack.c.bf16 %v1923, %v1921
    %v2024 = vpack.c.bf16 %v1924, %v1922
    %v2025 = vpack.c.bf16 %v1927, %v1925
    %v2026 = vpack.c.bf16 %v1928, %v1926
    %v2027 = vpack.c.bf16 %v1931, %v1929
    %v2028 = vpack.c.bf16 %v1932, %v1930
    %v2029 = vpack.c.bf16 %v1935, %v1933
    %v2030 = vpack.c.bf16 %v1936, %v1934
    %v2031 = vpack.c.bf16 %v1939, %v1937
    %v2032 = vpack.c.bf16 %v1940, %v1938
    %v2033 = vpack.c.bf16 %v1943, %v1941
    %v2034 = vpack.c.bf16 %v1944, %v1942
    %v2035 = vpack.c.bf16 %v1947, %v1945
    %v2036 = vpack.c.bf16 %v1948, %v1946
    %v2037 = vpack.c.bf16 %v1951, %v1949
    %v2038 = vpack.c.bf16 %v1952, %v1950
    %v2039 = vpack.c.bf16 %v1955, %v1953
    %v2040 = vpack.c.bf16 %v1956, %v1954
    %v2041 = vpack.c.bf16 %v1959, %v1957
    %v2042 = vpack.c.bf16 %v1960, %v1958
    %v2043 = vpack.c.bf16 %v1963, %v1961
    %v2044 = vpack.c.bf16 %v1964, %v1962
    %v2045 = vpack.c.bf16 %v1967, %v1965
    %v2046 = vpack.c.bf16 %v1968, %v1966
    %v2047 = vpack.c.bf16 %v1971, %v1969
    %v2048 = vpack.c.bf16 %v1972, %v1970
    %v2049 = vpack.c.bf16 %v1975, %v1973
    %v2050 = vpack.c.bf16 %v1976, %v1974
    %v2051 = vpack.c.bf16 %v1979, %v1977
    %v2052 = vpack.c.bf16 %v1980, %v1978
    %v2053 = vpack.c.bf16 %v1983, %v1981
    %v2054 = vpack.c.bf16 %v1984, %v1982
    %v2055 = vpack.c.bf16 %v1987, %v1985
    %v2056 = vpack.c.bf16 %v1988, %v1986
    %v2057 = vld [vmem:[%s3] sm:$0xff]
    %v2058 = vld [vmem:[%s3 + $0x8] sm:$0xff]
    %v2059 = vld [vmem:[%s3 + $0x10] sm:$0xff]
    %v2060 = vld [vmem:[%s3 + $0x18] sm:$0xff]
    %v2061 = vld [vmem:[%s3 + $0x20] sm:$0xff]
    %v2062 = vld [vmem:[%s3 + $0x28] sm:$0xff]
    %v2063 = vld [vmem:[%s3 + $0x30] sm:$0xff]
    %v2064 = vld [vmem:[%s3 + $0x38] sm:$0xff]
    %v2065 = vld [vmem:[%s3 + $0x40] sm:$0xff]
    %v2066 = vld [vmem:[%s3 + $0x48] sm:$0xff]
    %v2067 = vld [vmem:[%s3 + $0x50] sm:$0xff]
    %v2068 = vld [vmem:[%s3 + $0x58] sm:$0xff]
    %v2069 = vld [vmem:[%s3 + $0x60] sm:$0xff]
    %v2070 = vld [vmem:[%s3 + $0x68] sm:$0xff]
    %v2071 = vld [vmem:[%s3 + $0x70] sm:$0xff]
    %v2072 = vld [vmem:[%s3 + $0x78] sm:$0xff]
    %v2073 = vld [vmem:[%s3 + $0x80] sm:$0xff]
    %v2074 = vld [vmem:[%s3 + $0x88] sm:$0xff]
    %v2075 = vld [vmem:[%s3 + $0x90] sm:$0xff]
    %v2076 = vld [vmem:[%s3 + $0x98] sm:$0xff]
    %v2077 = vld [vmem:[%s3 + $0xa0] sm:$0xff]
    %v2078 = vld [vmem:[%s3 + $0xa8] sm:$0xff]
    %v2079 = vld [vmem:[%s3 + $0xb0] sm:$0xff]
    %v2080 = vld [vmem:[%s3 + $0xb8] sm:$0xff]
    %v2081 = vld [vmem:[%s3 + $0xc0] sm:$0xff]
    %v2082 = vld [vmem:[%s3 + $0xc8] sm:$0xff]
    %v2083 = vld [vmem:[%s3 + $0xd0] sm:$0xff]
    %v2084 = vld [vmem:[%s3 + $0xd8] sm:$0xff]
    %v2085 = vld [vmem:[%s3 + $0xe0] sm:$0xff]
    %v2086 = vld [vmem:[%s3 + $0xe8] sm:$0xff]
    %v2087 = vld [vmem:[%s3 + $0xf0] sm:$0xff]
    %v2088 = vld [vmem:[%s3 + $0xf8] sm:$0xff]
    %s2089 = scalar_lea.vmem %s3, 256
    %v2090 = vld [vmem:[%s2089] sm:$0xff]
    %v2091 = vld [vmem:[%s2089 + $0x8] sm:$0xff]
    %v2092 = vld [vmem:[%s2089 + $0x10] sm:$0xff]
    %v2093 = vld [vmem:[%s2089 + $0x18] sm:$0xff]
    %v2094 = vld [vmem:[%s2089 + $0x20] sm:$0xff]
    %v2095 = vld [vmem:[%s2089 + $0x28] sm:$0xff]
    %v2096 = vld [vmem:[%s2089 + $0x30] sm:$0xff]
    %v2097 = vld [vmem:[%s2089 + $0x38] sm:$0xff]
    %v2098 = vld [vmem:[%s2089 + $0x40] sm:$0xff]
    %v2099 = vld [vmem:[%s2089 + $0x48] sm:$0xff]
    %v2100 = vld [vmem:[%s2089 + $0x50] sm:$0xff]
    %v2101 = vld [vmem:[%s2089 + $0x58] sm:$0xff]
    %v2102 = vld [vmem:[%s2089 + $0x60] sm:$0xff]
    %v2103 = vld [vmem:[%s2089 + $0x68] sm:$0xff]
    %v2104 = vld [vmem:[%s2089 + $0x70] sm:$0xff]
    %v2105 = vld [vmem:[%s2089 + $0x78] sm:$0xff]
    %v2106 = vld [vmem:[%s2089 + $0x80] sm:$0xff]
    %v2107 = vld [vmem:[%s2089 + $0x88] sm:$0xff]
    %v2108 = vld [vmem:[%s2089 + $0x90] sm:$0xff]
    %v2109 = vld [vmem:[%s2089 + $0x98] sm:$0xff]
    %v2110 = vld [vmem:[%s2089 + $0xa0] sm:$0xff]
    %v2111 = vld [vmem:[%s2089 + $0xa8] sm:$0xff]
    %v2112 = vld [vmem:[%s2089 + $0xb0] sm:$0xff]
    %v2113 = vld [vmem:[%s2089 + $0xb8] sm:$0xff]
    %v2114 = vld [vmem:[%s2089 + $0xc0] sm:$0xff]
    %v2115 = vld [vmem:[%s2089 + $0xc8] sm:$0xff]
    %v2116 = vld [vmem:[%s2089 + $0xd0] sm:$0xff]
    %v2117 = vld [vmem:[%s2089 + $0xd8] sm:$0xff]
    %v2118 = vld [vmem:[%s2089 + $0xe0] sm:$0xff]
    %v2119 = vld [vmem:[%s2089 + $0xe8] sm:$0xff]
    %v2120 = vld [vmem:[%s2089 + $0xf0] sm:$0xff]
    %v2121 = vld [vmem:[%s2089 + $0xf8] sm:$0xff]
    %v2154 = vunpack.c.l.b16 %v2090
    %v2155 = vunpack.c.h.b16 %v2090
    %v2156 = vunpack.c.l.b16 %v2091
    %v2157 = vunpack.c.h.b16 %v2091
    %v2158 = vunpack.c.l.b16 %v2092
    %v2159 = vunpack.c.h.b16 %v2092
    %v2160 = vunpack.c.l.b16 %v2093
    %v2161 = vunpack.c.h.b16 %v2093
    %v2162 = vunpack.c.l.b16 %v2094
    %v2163 = vunpack.c.h.b16 %v2094
    %v2164 = vunpack.c.l.b16 %v2095
    %v2165 = vunpack.c.h.b16 %v2095
    %v2166 = vunpack.c.l.b16 %v2096
    %v2167 = vunpack.c.h.b16 %v2096
    %v2168 = vunpack.c.l.b16 %v2097
    %v2169 = vunpack.c.h.b16 %v2097
    %v2170 = vunpack.c.l.b16 %v2098
    %v2171 = vunpack.c.h.b16 %v2098
    %v2172 = vunpack.c.l.b16 %v2099
    %v2173 = vunpack.c.h.b16 %v2099
    %v2174 = vunpack.c.l.b16 %v2100
    %v2175 = vunpack.c.h.b16 %v2100
    %v2176 = vunpack.c.l.b16 %v2101
    %v2177 = vunpack.c.h.b16 %v2101
    %v2178 = vunpack.c.l.b16 %v2102
    %v2179 = vunpack.c.h.b16 %v2102
    %v2180 = vunpack.c.l.b16 %v2103
    %v2181 = vunpack.c.h.b16 %v2103
    %v2182 = vunpack.c.l.b16 %v2104
    %v2183 = vunpack.c.h.b16 %v2104
    %v2184 = vunpack.c.l.b16 %v2105
    %v2185 = vunpack.c.h.b16 %v2105
    %v2186 = vunpack.c.l.b16 %v2106
    %v2187 = vunpack.c.h.b16 %v2106
    %v2188 = vunpack.c.l.b16 %v2107
    %v2189 = vunpack.c.h.b16 %v2107
    %v2190 = vunpack.c.l.b16 %v2108
    %v2191 = vunpack.c.h.b16 %v2108
    %v2192 = vunpack.c.l.b16 %v2109
    %v2193 = vunpack.c.h.b16 %v2109
    %v2194 = vunpack.c.l.b16 %v2110
    %v2195 = vunpack.c.h.b16 %v2110
    %v2196 = vunpack.c.l.b16 %v2111
    %v2197 = vunpack.c.h.b16 %v2111
    %v2198 = vunpack.c.l.b16 %v2112
    %v2199 = vunpack.c.h.b16 %v2112
    %v2200 = vunpack.c.l.b16 %v2113
    %v2201 = vunpack.c.h.b16 %v2113
    %v2202 = vunpack.c.l.b16 %v2114
    %v2203 = vunpack.c.h.b16 %v2114
    %v2204 = vunpack.c.l.b16 %v2115
    %v2205 = vunpack.c.h.b16 %v2115
    %v2206 = vunpack.c.l.b16 %v2116
    %v2207 = vunpack.c.h.b16 %v2116
    %v2208 = vunpack.c.l.b16 %v2117
    %v2209 = vunpack.c.h.b16 %v2117
    %v2210 = vunpack.c.l.b16 %v2118
    %v2211 = vunpack.c.h.b16 %v2118
    %v2212 = vunpack.c.l.b16 %v2119
    %v2213 = vunpack.c.h.b16 %v2119
    %v2214 = vunpack.c.l.b16 %v2120
    %v2215 = vunpack.c.h.b16 %v2120
    %v2216 = vunpack.c.l.b16 %v2121
    %v2217 = vunpack.c.h.b16 %v2121
    %v2218 = vpack.c.b16 %v2156, %v2154
    %v2219 = vpack.c.b16 %v2157, %v2155
    %v2220 = vpack.c.b16 %v2160, %v2158
    %v2221 = vpack.c.b16 %v2161, %v2159
    %v2222 = vpack.c.b16 %v2164, %v2162
    %v2223 = vpack.c.b16 %v2165, %v2163
    %v2224 = vpack.c.b16 %v2168, %v2166
    %v2225 = vpack.c.b16 %v2169, %v2167
    %v2226 = vpack.c.b16 %v2172, %v2170
    %v2227 = vpack.c.b16 %v2173, %v2171
    %v2228 = vpack.c.b16 %v2176, %v2174
    %v2229 = vpack.c.b16 %v2177, %v2175
    %v2230 = vpack.c.b16 %v2180, %v2178
    %v2231 = vpack.c.b16 %v2181, %v2179
    %v2232 = vpack.c.b16 %v2184, %v2182
    %v2233 = vpack.c.b16 %v2185, %v2183
    %v2234 = vpack.c.b16 %v2188, %v2186
    %v2235 = vpack.c.b16 %v2189, %v2187
    %v2236 = vpack.c.b16 %v2192, %v2190
    %v2237 = vpack.c.b16 %v2193, %v2191
    %v2238 = vpack.c.b16 %v2196, %v2194
    %v2239 = vpack.c.b16 %v2197, %v2195
    %v2240 = vpack.c.b16 %v2200, %v2198
    %v2241 = vpack.c.b16 %v2201, %v2199
    %v2242 = vpack.c.b16 %v2204, %v2202
    %v2243 = vpack.c.b16 %v2205, %v2203
    %v2244 = vpack.c.b16 %v2208, %v2206
    %v2245 = vpack.c.b16 %v2209, %v2207
    %v2246 = vpack.c.b16 %v2212, %v2210
    %v2247 = vpack.c.b16 %v2213, %v2211
    %v2248 = vpack.c.b16 %v2216, %v2214
    %v2249 = vpack.c.b16 %v2217, %v2215
    %2282 = vmatprep.subr.bf16.mxu0 %v2219
    %2283 = vmatpush1.bf16.msra.mxu0 %v2218
    %2284 = vmatprep.subr.bf16.mxu0 %v2221
    %2285 = vmatpush1.bf16.msra.mxu0 %v2220
    %2286 = vmatprep.subr.bf16.mxu0 %v2223
    %2287 = vmatpush1.bf16.msra.mxu0 %v2222
    %2288 = vmatprep.subr.bf16.mxu0 %v2225
    %2289 = vmatpush1.bf16.msra.mxu0 %v2224
    %2290 = vmatprep.subr.bf16.mxu0 %v2227
    %2291 = vmatpush1.bf16.msra.mxu0 %v2226
    %2292 = vmatprep.subr.bf16.mxu0 %v2229
    %2293 = vmatpush1.bf16.msra.mxu0 %v2228
    %2294 = vmatprep.subr.bf16.mxu0 %v2231
    %2295 = vmatpush1.bf16.msra.mxu0 %v2230
    %2296 = vmatprep.subr.bf16.mxu0 %v2233
    %2297 = vmatpush1.bf16.msra.mxu0 %v2232
    %2298 = vmatprep.subr.bf16.mxu0 %v2235
    %2299 = vmatpush1.bf16.msra.mxu0 %v2234
    %2300 = vmatprep.subr.bf16.mxu0 %v2237
    %2301 = vmatpush1.bf16.msra.mxu0 %v2236
    %2302 = vmatprep.subr.bf16.mxu0 %v2239
    %2303 = vmatpush1.bf16.msra.mxu0 %v2238
    %2304 = vmatprep.subr.bf16.mxu0 %v2241
    %2305 = vmatpush1.bf16.msra.mxu0 %v2240
    %2306 = vmatprep.subr.bf16.mxu0 %v2243
    %2307 = vmatpush1.bf16.msra.mxu0 %v2242
    %2308 = vmatprep.subr.bf16.mxu0 %v2245
    %2309 = vmatpush1.bf16.msra.mxu0 %v2244
    %2310 = vmatprep.subr.bf16.mxu0 %v2247
    %2311 = vmatpush1.bf16.msra.mxu0 %v2246
    %2312 = vmatprep.subr.bf16.mxu0 %v2249
    %2313 = vmatpush1.bf16.msra.mxu0 %v2248
    %2314 = vmatprep.mubr.bf16.mxu0 %v1782
    %2315 = vmatmul.mubr.bf16.gmra.mrb[0].mxu0 %v1781
    %v2316 = vpop.f32.mrb[0].mxu0
    %v2317 = vadd.f32 0.0, %v2316
    %v2318 = vpop.f32.mrb[0].mxu0
    %v2319 = vadd.f32 0.0, %v2318
    %v2320 = vpop.f32.mrb[0].mxu0
    %v2321 = vadd.f32 0.0, %v2320
    %v2322 = vpop.f32.mrb[0].mxu0
    %v2323 = vadd.f32 0.0, %v2322
    %2324 = vmatprep.mubr.bf16.mxu0 %v1784
    %2325 = vmatmul.mubr.bf16.gmra.mrb[0].mxu0 %v1783
    %v2326 = vpop.f32.mrb[0].mxu0
    %v2327 = vadd.f32 0.0, %v2326
    %v2328 = vpop.f32.mrb[0].mxu0
    %v2329 = vadd.f32 0.0, %v2328
    %v2330 = vpop.f32.mrb[0].mxu0
    %v2331 = vadd.f32 0.0, %v2330
    %v2332 = vpop.f32.mrb[0].mxu0
    %v2333 = vadd.f32 0.0, %v2332
    %2334 = vmatprep.mubr.bf16.mxu0 %v1786
    %2335 = vmatmul.mubr.bf16.gmra.mrb[0].mxu0 %v1785
    %v2336 = vpop.f32.mrb[0].mxu0
    %v2337 = vadd.f32 0.0, %v2336
    %v2338 = vpop.f32.mrb[0].mxu0
    %v2339 = vadd.f32 0.0, %v2338
    %v2340 = vpop.f32.mrb[0].mxu0
    %v2341 = vadd.f32 0.0, %v2340
    %v2342 = vpop.f32.mrb[0].mxu0
    %v2343 = vadd.f32 0.0, %v2342
    %2344 = vmatprep.mubr.bf16.mxu0 %v1788
    %2345 = vmatmul.mubr.bf16.gmra.mrb[0].mxu0 %v1787
    %v2346 = vpop.f32.mrb[0].mxu0
    %v2347 = vadd.f32 0.0, %v2346
    %v2348 = vpop.f32.mrb[0].mxu0
    %v2349 = vadd.f32 0.0, %v2348
    %v2350 = vpop.f32.mrb[0].mxu0
    %v2351 = vadd.f32 0.0, %v2350
    %v2352 = vpop.f32.mrb[0].mxu0
    %v2353 = vadd.f32 0.0, %v2352
    %2354 = vmatprep.mubr.bf16.mxu0 %v1790
    %2355 = vmatmul.mubr.bf16.gmra.mrb[0].mxu0 %v1789
    %v2356 = vpop.f32.mrb[0].mxu0
    %v2357 = vadd.f32 0.0, %v2356
    %v2358 = vpop.f32.mrb[0].mxu0
    %v2359 = vadd.f32 0.0, %v2358
    %v2360 = vpop.f32.mrb[0].mxu0
    %v2361 = vadd.f32 0.0, %v2360
    %v2362 = vpop.f32.mrb[0].mxu0
    %v2363 = vadd.f32 0.0, %v2362
    %2364 = vmatprep.mubr.bf16.mxu0 %v1792
    %2365 = vmatmul.mubr.bf16.gmra.mrb[0].mxu0 %v1791
    %v2366 = vpop.f32.mrb[0].mxu0
    %v2367 = vadd.f32 0.0, %v2366
    %v2368 = vpop.f32.mrb[0].mxu0
    %v2369 = vadd.f32 0.0, %v2368
    %v2370 = vpop.f32.mrb[0].mxu0
    %v2371 = vadd.f32 0.0, %v2370
    %v2372 = vpop.f32.mrb[0].mxu0
    %v2373 = vadd.f32 0.0, %v2372
    %2374 = vmatprep.mubr.bf16.mxu0 %v1794
    %2375 = vmatmul.mubr.bf16.gmra.mrb[0].mxu0 %v1793
    %v2376 = vpop.f32.mrb[0].mxu0
    %v2377 = vadd.f32 0.0, %v2376
    %v2378 = vpop.f32.mrb[0].mxu0
    %v2379 = vadd.f32 0.0, %v2378
    %v2380 = vpop.f32.mrb[0].mxu0
    %v2381 = vadd.f32 0.0, %v2380
    %v2382 = vpop.f32.mrb[0].mxu0
    %v2383 = vadd.f32 0.0, %v2382
    %2384 = vmatprep.mubr.bf16.mxu0 %v1796
    %2385 = vmatmul.mubr.bf16.gmra.mrb[0].mxu0 %v1795
    %v2386 = vpop.f32.mrb[0].mxu0
    %v2387 = vadd.f32 0.0, %v2386
    %v2388 = vpop.f32.mrb[0].mxu0
    %v2389 = vadd.f32 0.0, %v2388
    %v2390 = vpop.f32.mrb[0].mxu0
    %v2391 = vadd.f32 0.0, %v2390
    %v2392 = vpop.f32.mrb[0].mxu0
    %v2393 = vadd.f32 0.0, %v2392
    %2394 = vmatprep.mubr.bf16.mxu0 %v1798
    %2395 = vmatmul.mubr.bf16.gmra.mrb[0].mxu0 %v1797
    %v2396 = vpop.f32.mrb[0].mxu0
    %v2397 = vadd.f32 0.0, %v2396
    %v2398 = vpop.f32.mrb[0].mxu0
    %v2399 = vadd.f32 0.0, %v2398
    %v2400 = vpop.f32.mrb[0].mxu0
    %v2401 = vadd.f32 0.0, %v2400
    %v2402 = vpop.f32.mrb[0].mxu0
    %v2403 = vadd.f32 0.0, %v2402
    %2404 = vmatprep.mubr.bf16.mxu0 %v1800
    %2405 = vmatmul.mubr.bf16.gmra.mrb[0].mxu0 %v1799
    %v2406 = vpop.f32.mrb[0].mxu0
    %v2407 = vadd.f32 0.0, %v2406
    %v2408 = vpop.f32.mrb[0].mxu0
    %v2409 = vadd.f32 0.0, %v2408
    %v2410 = vpop.f32.mrb[0].mxu0
    %v2411 = vadd.f32 0.0, %v2410
    %v2412 = vpop.f32.mrb[0].mxu0
    %v2413 = vadd.f32 0.0, %v2412
    %2414 = vmatprep.mubr.bf16.mxu0 %v1802
    %2415 = vmatmul.mubr.bf16.gmra.mrb[0].mxu0 %v1801
    %v2416 = vpop.f32.mrb[0].mxu0
    %v2417 = vadd.f32 0.0, %v2416
    %v2418 = vpop.f32.mrb[0].mxu0
    %v2419 = vadd.f32 0.0, %v2418
    %v2420 = vpop.f32.mrb[0].mxu0
    %v2421 = vadd.f32 0.0, %v2420
    %v2422 = vpop.f32.mrb[0].mxu0
    %v2423 = vadd.f32 0.0, %v2422
    %2424 = vmatprep.mubr.bf16.mxu0 %v1804
    %2425 = vmatmul.mubr.bf16.gmra.mrb[0].mxu0 %v1803
    %v2426 = vpop.f32.mrb[0].mxu0
    %v2427 = vadd.f32 0.0, %v2426
    %v2428 = vpop.f32.mrb[0].mxu0
    %v2429 = vadd.f32 0.0, %v2428
    %v2430 = vpop.f32.mrb[0].mxu0
    %v2431 = vadd.f32 0.0, %v2430
    %v2432 = vpop.f32.mrb[0].mxu0
    %v2433 = vadd.f32 0.0, %v2432
    %2434 = vmatprep.mubr.bf16.mxu0 %v1806
    %2435 = vmatmul.mubr.bf16.gmra.mrb[0].mxu0 %v1805
    %v2436 = vpop.f32.mrb[0].mxu0
    %v2437 = vadd.f32 0.0, %v2436
    %v2438 = vpop.f32.mrb[0].mxu0
    %v2439 = vadd.f32 0.0, %v2438
    %v2440 = vpop.f32.mrb[0].mxu0
    %v2441 = vadd.f32 0.0, %v2440
    %v2442 = vpop.f32.mrb[0].mxu0
    %v2443 = vadd.f32 0.0, %v2442
    %2444 = vmatprep.mubr.bf16.mxu0 %v1808
    %2445 = vmatmul.mubr.bf16.gmra.mrb[0].mxu0 %v1807
    %v2446 = vpop.f32.mrb[0].mxu0
    %v2447 = vadd.f32 0.0, %v2446
    %v2448 = vpop.f32.mrb[0].mxu0
    %v2449 = vadd.f32 0.0, %v2448
    %v2450 = vpop.f32.mrb[0].mxu0
    %v2451 = vadd.f32 0.0, %v2450
    %v2452 = vpop.f32.mrb[0].mxu0
    %v2453 = vadd.f32 0.0, %v2452
    %2454 = vmatprep.mubr.bf16.mxu0 %v1810
    %2455 = vmatmul.mubr.bf16.gmra.mrb[0].mxu0 %v1809
    %v2456 = vpop.f32.mrb[0].mxu0
    %v2457 = vadd.f32 0.0, %v2456
    %v2458 = vpop.f32.mrb[0].mxu0
    %v2459 = vadd.f32 0.0, %v2458
    %v2460 = vpop.f32.mrb[0].mxu0
    %v2461 = vadd.f32 0.0, %v2460
    %v2462 = vpop.f32.mrb[0].mxu0
    %v2463 = vadd.f32 0.0, %v2462
    %2464 = vmatprep.mubr.bf16.mxu0 %v1812
    %2465 = vmatmul.mubr.bf16.gmra.mrb[0].mxu0 %v1811
    %v2466 = vpop.f32.mrb[0].mxu0
    %v2467 = vadd.f32 0.0, %v2466
    %v2468 = vpop.f32.mrb[0].mxu0
    %v2469 = vadd.f32 0.0, %v2468
    %v2470 = vpop.f32.mrb[0].mxu0
    %v2471 = vadd.f32 0.0, %v2470
    %v2472 = vpop.f32.mrb[0].mxu0
    %v2473 = vadd.f32 0.0, %v2472
    %2474 = vmatprep.mubr.bf16.mxu0 %v1814
    %2475 = vmatmul.mubr.bf16.gmra.mrb[0].mxu0 %v1813
    %v2476 = vpop.f32.mrb[0].mxu0
    %v2477 = vadd.f32 0.0, %v2476
    %v2478 = vpop.f32.mrb[0].mxu0
    %v2479 = vadd.f32 0.0, %v2478
    %v2480 = vpop.f32.mrb[0].mxu0
    %v2481 = vadd.f32 0.0, %v2480
    %v2482 = vpop.f32.mrb[0].mxu0
    %v2483 = vadd.f32 0.0, %v2482
    %2484 = vmatprep.mubr.bf16.mxu0 %v1816
    %2485 = vmatmul.mubr.bf16.gmra.mrb[0].mxu0 %v1815
    %v2486 = vpop.f32.mrb[0].mxu0
    %v2487 = vadd.f32 0.0, %v2486
    %v2488 = vpop.f32.mrb[0].mxu0
    %v2489 = vadd.f32 0.0, %v2488
    %v2490 = vpop.f32.mrb[0].mxu0
    %v2491 = vadd.f32 0.0, %v2490
    %v2492 = vpop.f32.mrb[0].mxu0
    %v2493 = vadd.f32 0.0, %v2492
    %2494 = vmatprep.mubr.bf16.mxu0 %v1818
    %2495 = vmatmul.mubr.bf16.gmra.mrb[0].mxu0 %v1817
    %v2496 = vpop.f32.mrb[0].mxu0
    %v2497 = vadd.f32 0.0, %v2496
    %v2498 = vpop.f32.mrb[0].mxu0
    %v2499 = vadd.f32 0.0, %v2498
    %v2500 = vpop.f32.mrb[0].mxu0
    %v2501 = vadd.f32 0.0, %v2500
    %v2502 = vpop.f32.mrb[0].mxu0
    %v2503 = vadd.f32 0.0, %v2502
    %2504 = vmatprep.mubr.bf16.mxu0 %v1820
    %2505 = vmatmul.mubr.bf16.gmra.mrb[0].mxu0 %v1819
    %v2506 = vpop.f32.mrb[0].mxu0
    %v2507 = vadd.f32 0.0, %v2506
    %v2508 = vpop.f32.mrb[0].mxu0
    %v2509 = vadd.f32 0.0, %v2508
    %v2510 = vpop.f32.mrb[0].mxu0
    %v2511 = vadd.f32 0.0, %v2510
    %v2512 = vpop.f32.mrb[0].mxu0
    %v2513 = vadd.f32 0.0, %v2512
    %2514 = vmatprep.mubr.bf16.mxu0 %v1822
    %2515 = vmatmul.mubr.bf16.gmra.mrb[0].mxu0 %v1821
    %v2516 = vpop.f32.mrb[0].mxu0
    %v2517 = vadd.f32 0.0, %v2516
    %v2518 = vpop.f32.mrb[0].mxu0
    %v2519 = vadd.f32 0.0, %v2518
    %v2520 = vpop.f32.mrb[0].mxu0
    %v2521 = vadd.f32 0.0, %v2520
    %v2522 = vpop.f32.mrb[0].mxu0
    %v2523 = vadd.f32 0.0, %v2522
    %2524 = vmatprep.mubr.bf16.mxu0 %v1824
    %2525 = vmatmul.mubr.bf16.gmra.mrb[0].mxu0 %v1823
    %v2526 = vpop.f32.mrb[0].mxu0
    %v2527 = vadd.f32 0.0, %v2526
    %v2528 = vpop.f32.mrb[0].mxu0
    %v2529 = vadd.f32 0.0, %v2528
    %v2530 = vpop.f32.mrb[0].mxu0
    %v2531 = vadd.f32 0.0, %v2530
    %v2532 = vpop.f32.mrb[0].mxu0
    %v2533 = vadd.f32 0.0, %v2532
    %2534 = vmatprep.mubr.bf16.mxu0 %v1826
    %2535 = vmatmul.mubr.bf16.gmra.mrb[0].mxu0 %v1825
    %v2536 = vpop.f32.mrb[0].mxu0
    %v2537 = vadd.f32 0.0, %v2536
    %v2538 = vpop.f32.mrb[0].mxu0
    %v2539 = vadd.f32 0.0, %v2538
    %v2540 = vpop.f32.mrb[0].mxu0
    %v2541 = vadd.f32 0.0, %v2540
    %v2542 = vpop.f32.mrb[0].mxu0
    %v2543 = vadd.f32 0.0, %v2542
    %2544 = vmatprep.mubr.bf16.mxu0 %v1828
    %2545 = vmatmul.mubr.bf16.gmra.mrb[0].mxu0 %v1827
    %v2546 = vpop.f32.mrb[0].mxu0
    %v2547 = vadd.f32 0.0, %v2546
    %v2548 = vpop.f32.mrb[0].mxu0
    %v2549 = vadd.f32 0.0, %v2548
    %v2550 = vpop.f32.mrb[0].mxu0
    %v2551 = vadd.f32 0.0, %v2550
    %v2552 = vpop.f32.mrb[0].mxu0
    %v2553 = vadd.f32 0.0, %v2552
    %2554 = vmatprep.mubr.bf16.mxu0 %v1830
    %2555 = vmatmul.mubr.bf16.gmra.mrb[0].mxu0 %v1829
    %v2556 = vpop.f32.mrb[0].mxu0
    %v2557 = vadd.f32 0.0, %v2556
    %v2558 = vpop.f32.mrb[0].mxu0
    %v2559 = vadd.f32 0.0, %v2558
    %v2560 = vpop.f32.mrb[0].mxu0
    %v2561 = vadd.f32 0.0, %v2560
    %v2562 = vpop.f32.mrb[0].mxu0
    %v2563 = vadd.f32 0.0, %v2562
    %2564 = vmatprep.mubr.bf16.mxu0 %v1832
    %2565 = vmatmul.mubr.bf16.gmra.mrb[0].mxu0 %v1831
    %v2566 = vpop.f32.mrb[0].mxu0
    %v2567 = vadd.f32 0.0, %v2566
    %v2568 = vpop.f32.mrb[0].mxu0
    %v2569 = vadd.f32 0.0, %v2568
    %v2570 = vpop.f32.mrb[0].mxu0
    %v2571 = vadd.f32 0.0, %v2570
    %v2572 = vpop.f32.mrb[0].mxu0
    %v2573 = vadd.f32 0.0, %v2572
    %2574 = vmatprep.mubr.bf16.mxu0 %v1834
    %2575 = vmatmul.mubr.bf16.gmra.mrb[0].mxu0 %v1833
    %v2576 = vpop.f32.mrb[0].mxu0
    %v2577 = vadd.f32 0.0, %v2576
    %v2578 = vpop.f32.mrb[0].mxu0
    %v2579 = vadd.f32 0.0, %v2578
    %v2580 = vpop.f32.mrb[0].mxu0
    %v2581 = vadd.f32 0.0, %v2580
    %v2582 = vpop.f32.mrb[0].mxu0
    %v2583 = vadd.f32 0.0, %v2582
    %2584 = vmatprep.mubr.bf16.mxu0 %v1836
    %2585 = vmatmul.mubr.bf16.gmra.mrb[0].mxu0 %v1835
    %v2586 = vpop.f32.mrb[0].mxu0
    %v2587 = vadd.f32 0.0, %v2586
    %v2588 = vpop.f32.mrb[0].mxu0
    %v2589 = vadd.f32 0.0, %v2588
    %v2590 = vpop.f32.mrb[0].mxu0
    %v2591 = vadd.f32 0.0, %v2590
    %v2592 = vpop.f32.mrb[0].mxu0
    %v2593 = vadd.f32 0.0, %v2592
    %2594 = vmatprep.mubr.bf16.mxu0 %v1838
    %2595 = vmatmul.mubr.bf16.gmra.mrb[0].mxu0 %v1837
    %v2596 = vpop.f32.mrb[0].mxu0
    %v2597 = vadd.f32 0.0, %v2596
    %v2598 = vpop.f32.mrb[0].mxu0
    %v2599 = vadd.f32 0.0, %v2598
    %v2600 = vpop.f32.mrb[0].mxu0
    %v2601 = vadd.f32 0.0, %v2600
    %v2602 = vpop.f32.mrb[0].mxu0
    %v2603 = vadd.f32 0.0, %v2602
    %2604 = vmatprep.mubr.bf16.mxu0 %v1840
    %2605 = vmatmul.mubr.bf16.gmra.mrb[0].mxu0 %v1839
    %v2606 = vpop.f32.mrb[0].mxu0
    %v2607 = vadd.f32 0.0, %v2606
    %v2608 = vpop.f32.mrb[0].mxu0
    %v2609 = vadd.f32 0.0, %v2608
    %v2610 = vpop.f32.mrb[0].mxu0
    %v2611 = vadd.f32 0.0, %v2610
    %v2612 = vpop.f32.mrb[0].mxu0
    %v2613 = vadd.f32 0.0, %v2612
    %2614 = vmatprep.mubr.bf16.mxu0 %v1842
    %2615 = vmatmul.mubr.bf16.gmra.mrb[0].mxu0 %v1841
    %v2616 = vpop.f32.mrb[0].mxu0
    %v2617 = vadd.f32 0.0, %v2616
    %v2618 = vpop.f32.mrb[0].mxu0
    %v2619 = vadd.f32 0.0, %v2618
    %v2620 = vpop.f32.mrb[0].mxu0
    %v2621 = vadd.f32 0.0, %v2620
    %v2622 = vpop.f32.mrb[0].mxu0
    %v2623 = vadd.f32 0.0, %v2622
    %2624 = vmatprep.mubr.bf16.mxu0 %v1844
    %2625 = vmatmul.mubr.bf16.gmra.mrb[0].mxu0 %v1843
    %v2626 = vpop.f32.mrb[0].mxu0
    %v2627 = vadd.f32 0.0, %v2626
    %v2628 = vpop.f32.mrb[0].mxu0
    %v2629 = vadd.f32 0.0, %v2628
    %v2630 = vpop.f32.mrb[0].mxu0
    %v2631 = vadd.f32 0.0, %v2630
    %v2632 = vpop.f32.mrb[0].mxu0
    %v2633 = vadd.f32 0.0, %v2632
    %2634 = vmatprep.mubr.bf16.mxu0 %v1846
    %2635 = vmatmul.mubr.bf16.gmra.mrb[0].mxu0 %v1845
    %v2636 = vpop.f32.mrb[0].mxu0
    %v2637 = vadd.f32 0.0, %v2636
    %v2638 = vpop.f32.mrb[0].mxu0
    %v2639 = vadd.f32 0.0, %v2638
    %v2640 = vpop.f32.mrb[0].mxu0
    %v2641 = vadd.f32 0.0, %v2640
    %v2642 = vpop.f32.mrb[0].mxu0
    %v2643 = vadd.f32 0.0, %v2642
    %2644 = vmatprep.mubr.bf16.mxu0 %v1852
    %2645 = vmatmul.mubr.bf16.gmra.mrb[0].mxu0 %v1851
    %v2646 = vpop.f32.mrb[0].mxu0
    %v2647 = vadd.f32 0.0, %v2646
    %v2648 = vpop.f32.mrb[0].mxu0
    %v2649 = vadd.f32 0.0, %v2648
    %v2650 = vpop.f32.mrb[0].mxu0
    %v2651 = vadd.f32 0.0, %v2650
    %v2652 = vpop.f32.mrb[0].mxu0
    %v2653 = vadd.f32 0.0, %v2652
    %2654 = vdwg.mxu0
    %v2687 = vunpack.c.l.b16 %v2057
    %v2688 = vunpack.c.h.b16 %v2057
    %v2689 = vunpack.c.l.b16 %v2058
    %v2690 = vunpack.c.h.b16 %v2058
    %v2691 = vunpack.c.l.b16 %v2059
    %v2692 = vunpack.c.h.b16 %v2059
    %v2693 = vunpack.c.l.b16 %v2060
    %v2694 = vunpack.c.h.b16 %v2060
    %v2695 = vunpack.c.l.b16 %v2061
    %v2696 = vunpack.c.h.b16 %v2061
    %v2697 = vunpack.c.l.b16 %v2062
    %v2698 = vunpack.c.h.b16 %v2062
    %v2699 = vunpack.c.l.b16 %v2063
    %v2700 = vunpack.c.h.b16 %v2063
    %v2701 = vunpack.c.l.b16 %v2064
    %v2702 = vunpack.c.h.b16 %v2064
    %v2703 = vunpack.c.l.b16 %v2065
    %v2704 = vunpack.c.h.b16 %v2065
    %v2705 = vunpack.c.l.b16 %v2066
    %v2706 = vunpack.c.h.b16 %v2066
    %v2707 = vunpack.c.l.b16 %v2067
    %v2708 = vunpack.c.h.b16 %v2067
    %v2709 = vunpack.c.l.b16 %v2068
    %v2710 = vunpack.c.h.b16 %v2068
    %v2711 = vunpack.c.l.b16 %v2069
    %v2712 = vunpack.c.h.b16 %v2069
    %v2713 = vunpack.c.l.b16 %v2070
    %v2714 = vunpack.c.h.b16 %v2070
    %v2715 = vunpack.c.l.b16 %v2071
    %v2716 = vunpack.c.h.b16 %v2071
    %v2717 = vunpack.c.l.b16 %v2072
    %v2718 = vunpack.c.h.b16 %v2072
    %v2719 = vunpack.c.l.b16 %v2073
    %v2720 = vunpack.c.h.b16 %v2073
    %v2721 = vunpack.c.l.b16 %v2074
    %v2722 = vunpack.c.h.b16 %v2074
    %v2723 = vunpack.c.l.b16 %v2075
    %v2724 = vunpack.c.h.b16 %v2075
    %v2725 = vunpack.c.l.b16 %v2076
    %v2726 = vunpack.c.h.b16 %v2076
    %v2727 = vunpack.c.l.b16 %v2077
    %v2728 = vunpack.c.h.b16 %v2077
    %v2729 = vunpack.c.l.b16 %v2078
    %v2730 = vunpack.c.h.b16 %v2078
    %v2731 = vunpack.c.l.b16 %v2079
    %v2732 = vunpack.c.h.b16 %v2079
    %v2733 = vunpack.c.l.b16 %v2080
    %v2734 = vunpack.c.h.b16 %v2080
    %v2735 = vunpack.c.l.b16 %v2081
    %v2736 = vunpack.c.h.b16 %v2081
    %v2737 = vunpack.c.l.b16 %v2082
    %v2738 = vunpack.c.h.b16 %v2082
    %v2739 = vunpack.c.l.b16 %v2083
    %v2740 = vunpack.c.h.b16 %v2083
    %v2741 = vunpack.c.l.b16 %v2084
    %v2742 = vunpack.c.h.b16 %v2084
    %v2743 = vunpack.c.l.b16 %v2085
    %v2744 = vunpack.c.h.b16 %v2085
    %v2745 = vunpack.c.l.b16 %v2086
    %v2746 = vunpack.c.h.b16 %v2086
    %v2747 = vunpack.c.l.b16 %v2087
    %v2748 = vunpack.c.h.b16 %v2087
    %v2749 = vunpack.c.l.b16 %v2088
    %v2750 = vunpack.c.h.b16 %v2088
    %v2751 = vpack.c.b16 %v2689, %v2687
    %v2752 = vpack.c.b16 %v2690, %v2688
    %v2753 = vpack.c.b16 %v2693, %v2691
    %v2754 = vpack.c.b16 %v2694, %v2692
    %v2755 = vpack.c.b16 %v2697, %v2695
    %v2756 = vpack.c.b16 %v2698, %v2696
    %v2757 = vpack.c.b16 %v2701, %v2699
    %v2758 = vpack.c.b16 %v2702, %v2700
    %v2759 = vpack.c.b16 %v2705, %v2703
    %v2760 = vpack.c.b16 %v2706, %v2704
    %v2761 = vpack.c.b16 %v2709, %v2707
    %v2762 = vpack.c.b16 %v2710, %v2708
    %v2763 = vpack.c.b16 %v2713, %v2711
    %v2764 = vpack.c.b16 %v2714, %v2712
    %v2765 = vpack.c.b16 %v2717, %v2715
    %v2766 = vpack.c.b16 %v2718, %v2716
    %v2767 = vpack.c.b16 %v2721, %v2719
    %v2768 = vpack.c.b16 %v2722, %v2720
    %v2769 = vpack.c.b16 %v2725, %v2723
    %v2770 = vpack.c.b16 %v2726, %v2724
    %v2771 = vpack.c.b16 %v2729, %v2727
    %v2772 = vpack.c.b16 %v2730, %v2728
    %v2773 = vpack.c.b16 %v2733, %v2731
    %v2774 = vpack.c.b16 %v2734, %v2732
    %v2775 = vpack.c.b16 %v2737, %v2735
    %v2776 = vpack.c.b16 %v2738, %v2736
    %v2777 = vpack.c.b16 %v2741, %v2739
    %v2778 = vpack.c.b16 %v2742, %v2740
    %v2779 = vpack.c.b16 %v2745, %v2743
    %v2780 = vpack.c.b16 %v2746, %v2744
    %v2781 = vpack.c.b16 %v2749, %v2747
    %v2782 = vpack.c.b16 %v2750, %v2748
    %2815 = vmatprep.subr.bf16.mxu0 %v2752
    %2816 = vmatpush1.bf16.msra.mxu0 %v2751
    %2817 = vmatprep.subr.bf16.mxu0 %v2754
    %2818 = vmatpush1.bf16.msra.mxu0 %v2753
    %2819 = vmatprep.subr.bf16.mxu0 %v2756
    %2820 = vmatpush1.bf16.msra.mxu0 %v2755
    %2821 = vmatprep.subr.bf16.mxu0 %v2758
    %2822 = vmatpush1.bf16.msra.mxu0 %v2757
    %2823 = vmatprep.subr.bf16.mxu0 %v2760
    %2824 = vmatpush1.bf16.msra.mxu0 %v2759
    %2825 = vmatprep.subr.bf16.mxu0 %v2762
    %2826 = vmatpush1.bf16.msra.mxu0 %v2761
    %2827 = vmatprep.subr.bf16.mxu0 %v2764
    %2828 = vmatpush1.bf16.msra.mxu0 %v2763
    %2829 = vmatprep.subr.bf16.mxu0 %v2766
    %2830 = vmatpush1.bf16.msra.mxu0 %v2765
    %2831 = vmatprep.subr.bf16.mxu0 %v2768
    %2832 = vmatpush1.bf16.msra.mxu0 %v2767
    %2833 = vmatprep.subr.bf16.mxu0 %v2770
    %2834 = vmatpush1.bf16.msra.mxu0 %v2769
    %2835 = vmatprep.subr.bf16.mxu0 %v2772
    %2836 = vmatpush1.bf16.msra.mxu0 %v2771
    %2837 = vmatprep.subr.bf16.mxu0 %v2774
    %2838 = vmatpush1.bf16.msra.mxu0 %v2773
    %2839 = vmatprep.subr.bf16.mxu0 %v2776
    %2840 = vmatpush1.bf16.msra.mxu0 %v2775
    %2841 = vmatprep.subr.bf16.mxu0 %v2778
    %2842 = vmatpush1.bf16.msra.mxu0 %v2777
    %2843 = vmatprep.subr.bf16.mxu0 %v2780
    %2844 = vmatpush1.bf16.msra.mxu0 %v2779
    %2845 = vmatprep.subr.bf16.mxu0 %v2782
    %2846 = vmatpush1.bf16.msra.mxu0 %v2781
    %2847 = vmatprep.mubr.bf16.mxu0 %v1780
    %2848 = vmatmul.mubr.bf16.gmra.mrb[0].mxu0 %v1779
    %v2849 = vpop.f32.mrb[0].mxu0
    %v2850 = vadd.f32 %v2317, %v2849
    %v2851 = vpop.f32.mrb[0].mxu0
    %v2852 = vadd.f32 %v2319, %v2851
    %v2853 = vpop.f32.mrb[0].mxu0
    %v2854 = vadd.f32 %v2321, %v2853
    %v2855 = vpop.f32.mrb[0].mxu0
    %v2856 = vadd.f32 %v2323, %v2855
    %2857 = vmatprep.mubr.bf16.mxu0 %v1782
    %2858 = vmatmul.mubr.bf16.gmra.mrb[0].mxu0 %v1781
    %v2859 = vpop.f32.mrb[0].mxu0
    %v2860 = vadd.f32 %v2327, %v2859
    %v2861 = vpop.f32.mrb[0].mxu0
    %v2862 = vadd.f32 %v2329, %v2861
    %v2863 = vpop.f32.mrb[0].mxu0
    %v2864 = vadd.f32 %v2331, %v2863
    %v2865 = vpop.f32.mrb[0].mxu0
    %v2866 = vadd.f32 %v2333, %v2865
    %2867 = vmatprep.mubr.bf16.mxu0 %v1784
    %2868 = vmatmul.mubr.bf16.gmra.mrb[0].mxu0 %v1783
    %v2869 = vpop.f32.mrb[0].mxu0
    %v2870 = vadd.f32 %v2337, %v2869
    %v2871 = vpop.f32.mrb[0].mxu0
    %v2872 = vadd.f32 %v2339, %v2871
    %v2873 = vpop.f32.mrb[0].mxu0
    %v2874 = vadd.f32 %v2341, %v2873
    %v2875 = vpop.f32.mrb[0].mxu0
    %v2876 = vadd.f32 %v2343, %v2875
    %2877 = vmatprep.mubr.bf16.mxu0 %v1786
    %2878 = vmatmul.mubr.bf16.gmra.mrb[0].mxu0 %v1785
    %v2879 = vpop.f32.mrb[0].mxu0
    %v2880 = vadd.f32 %v2347, %v2879
    %v2881 = vpop.f32.mrb[0].mxu0
    %v2882 = vadd.f32 %v2349, %v2881
    %v2883 = vpop.f32.mrb[0].mxu0
    %v2884 = vadd.f32 %v2351, %v2883
    %v2885 = vpop.f32.mrb[0].mxu0
    %v2886 = vadd.f32 %v2353, %v2885
    %2887 = vmatprep.mubr.bf16.mxu0 %v1788
    %2888 = vmatmul.mubr.bf16.gmra.mrb[0].mxu0 %v1787
    %v2889 = vpop.f32.mrb[0].mxu0
    %v2890 = vadd.f32 %v2357, %v2889
    %v2891 = vpop.f32.mrb[0].mxu0
    %v2892 = vadd.f32 %v2359, %v2891
    %v2893 = vpop.f32.mrb[0].mxu0
    %v2894 = vadd.f32 %v2361, %v2893
    %v2895 = vpop.f32.mrb[0].mxu0
    %v2896 = vadd.f32 %v2363, %v2895
    %2897 = vmatprep.mubr.bf16.mxu0 %v1790
    %2898 = vmatmul.mubr.bf16.gmra.mrb[0].mxu0 %v1789
    %v2899 = vpop.f32.mrb[0].mxu0
    %v2900 = vadd.f32 %v2367, %v2899
    %v2901 = vpop.f32.mrb[0].mxu0
    %v2902 = vadd.f32 %v2369, %v2901
    %v2903 = vpop.f32.mrb[0].mxu0
    %v2904 = vadd.f32 %v2371, %v2903
    %v2905 = vpop.f32.mrb[0].mxu0
    %v2906 = vadd.f32 %v2373, %v2905
    %2907 = vmatprep.mubr.bf16.mxu0 %v1792
    %2908 = vmatmul.mubr.bf16.gmra.mrb[0].mxu0 %v1791
    %v2909 = vpop.f32.mrb[0].mxu0
    %v2910 = vadd.f32 %v2377, %v2909
    %v2911 = vpop.f32.mrb[0].mxu0
    %v2912 = vadd.f32 %v2379, %v2911
    %v2913 = vpop.f32.mrb[0].mxu0
    %v2914 = vadd.f32 %v2381, %v2913
    %v2915 = vpop.f32.mrb[0].mxu0
    %v2916 = vadd.f32 %v2383, %v2915
    %2917 = vmatprep.mubr.bf16.mxu0 %v1794
    %2918 = vmatmul.mubr.bf16.gmra.mrb[0].mxu0 %v1793
    %v2919 = vpop.f32.mrb[0].mxu0
    %v2920 = vadd.f32 %v2387, %v2919
    %v2921 = vpop.f32.mrb[0].mxu0
    %v2922 = vadd.f32 %v2389, %v2921
    %v2923 = vpop.f32.mrb[0].mxu0
    %v2924 = vadd.f32 %v2391, %v2923
    %v2925 = vpop.f32.mrb[0].mxu0
    %v2926 = vadd.f32 %v2393, %v2925
    %2927 = vmatprep.mubr.bf16.mxu0 %v1796
    %2928 = vmatmul.mubr.bf16.gmra.mrb[0].mxu0 %v1795
    %v2929 = vpop.f32.mrb[0].mxu0
    %v2930 = vadd.f32 %v2397, %v2929
    %v2931 = vpop.f32.mrb[0].mxu0
    %v2932 = vadd.f32 %v2399, %v2931
    %v2933 = vpop.f32.mrb[0].mxu0
    %v2934 = vadd.f32 %v2401, %v2933
    %v2935 = vpop.f32.mrb[0].mxu0
    %v2936 = vadd.f32 %v2403, %v2935
    %2937 = vmatprep.mubr.bf16.mxu0 %v1798
    %2938 = vmatmul.mubr.bf16.gmra.mrb[0].mxu0 %v1797
    %v2939 = vpop.f32.mrb[0].mxu0
    %v2940 = vadd.f32 %v2407, %v2939
    %v2941 = vpop.f32.mrb[0].mxu0
    %v2942 = vadd.f32 %v2409, %v2941
    %v2943 = vpop.f32.mrb[0].mxu0
    %v2944 = vadd.f32 %v2411, %v2943
    %v2945 = vpop.f32.mrb[0].mxu0
    %v2946 = vadd.f32 %v2413, %v2945
    %2947 = vmatprep.mubr.bf16.mxu0 %v1800
    %2948 = vmatmul.mubr.bf16.gmra.mrb[0].mxu0 %v1799
    %v2949 = vpop.f32.mrb[0].mxu0
    %v2950 = vadd.f32 %v2417, %v2949
    %v2951 = vpop.f32.mrb[0].mxu0
    %v2952 = vadd.f32 %v2419, %v2951
    %v2953 = vpop.f32.mrb[0].mxu0
    %v2954 = vadd.f32 %v2421, %v2953
    %v2955 = vpop.f32.mrb[0].mxu0
    %v2956 = vadd.f32 %v2423, %v2955
    %2957 = vmatprep.mubr.bf16.mxu0 %v1802
    %2958 = vmatmul.mubr.bf16.gmra.mrb[0].mxu0 %v1801
    %v2959 = vpop.f32.mrb[0].mxu0
    %v2960 = vadd.f32 %v2427, %v2959
    %v2961 = vpop.f32.mrb[0].mxu0
    %v2962 = vadd.f32 %v2429, %v2961
    %v2963 = vpop.f32.mrb[0].mxu0
    %v2964 = vadd.f32 %v2431, %v2963
    %v2965 = vpop.f32.mrb[0].mxu0
    %v2966 = vadd.f32 %v2433, %v2965
    %2967 = vmatprep.mubr.bf16.mxu0 %v1804
    %2968 = vmatmul.mubr.bf16.gmra.mrb[0].mxu0 %v1803
    %v2969 = vpop.f32.mrb[0].mxu0
    %v2970 = vadd.f32 %v2437, %v2969
    %v2971 = vpop.f32.mrb[0].mxu0
    %v2972 = vadd.f32 %v2439, %v2971
    %v2973 = vpop.f32.mrb[0].mxu0
    %v2974 = vadd.f32 %v2441, %v2973
    %v2975 = vpop.f32.mrb[0].mxu0
    %v2976 = vadd.f32 %v2443, %v2975
    %2977 = vmatprep.mubr.bf16.mxu0 %v1806
    %2978 = vmatmul.mubr.bf16.gmra.mrb[0].mxu0 %v1805
    %v2979 = vpop.f32.mrb[0].mxu0
    %v2980 = vadd.f32 %v2447, %v2979
    %v2981 = vpop.f32.mrb[0].mxu0
    %v2982 = vadd.f32 %v2449, %v2981
    %v2983 = vpop.f32.mrb[0].mxu0
    %v2984 = vadd.f32 %v2451, %v2983
    %v2985 = vpop.f32.mrb[0].mxu0
    %v2986 = vadd.f32 %v2453, %v2985
    %2987 = vmatprep.mubr.bf16.mxu0 %v1808
    %2988 = vmatmul.mubr.bf16.gmra.mrb[0].mxu0 %v1807
    %v2989 = vpop.f32.mrb[0].mxu0
    %v2990 = vadd.f32 %v2457, %v2989
    %v2991 = vpop.f32.mrb[0].mxu0
    %v2992 = vadd.f32 %v2459, %v2991
    %v2993 = vpop.f32.mrb[0].mxu0
    %v2994 = vadd.f32 %v2461, %v2993
    %v2995 = vpop.f32.mrb[0].mxu0
    %v2996 = vadd.f32 %v2463, %v2995
    %2997 = vmatprep.mubr.bf16.mxu0 %v1810
    %2998 = vmatmul.mubr.bf16.gmra.mrb[0].mxu0 %v1809
    %v2999 = vpop.f32.mrb[0].mxu0
    %v3000 = vadd.f32 %v2467, %v2999
    %v3001 = vpop.f32.mrb[0].mxu0
    %v3002 = vadd.f32 %v2469, %v3001
    %v3003 = vpop.f32.mrb[0].mxu0
    %v3004 = vadd.f32 %v2471, %v3003
    %v3005 = vpop.f32.mrb[0].mxu0
    %v3006 = vadd.f32 %v2473, %v3005
    %3007 = vmatprep.mubr.bf16.mxu0 %v1812
    %3008 = vmatmul.mubr.bf16.gmra.mrb[0].mxu0 %v1811
    %v3009 = vpop.f32.mrb[0].mxu0
    %v3010 = vadd.f32 %v2477, %v3009
    %v3011 = vpop.f32.mrb[0].mxu0
    %v3012 = vadd.f32 %v2479, %v3011
    %v3013 = vpop.f32.mrb[0].mxu0
    %v3014 = vadd.f32 %v2481, %v3013
    %v3015 = vpop.f32.mrb[0].mxu0
    %v3016 = vadd.f32 %v2483, %v3015
    %3017 = vmatprep.mubr.bf16.mxu0 %v1814
    %3018 = vmatmul.mubr.bf16.gmra.mrb[0].mxu0 %v1813
    %v3019 = vpop.f32.mrb[0].mxu0
    %v3020 = vadd.f32 %v2487, %v3019
    %v3021 = vpop.f32.mrb[0].mxu0
    %v3022 = vadd.f32 %v2489, %v3021
    %v3023 = vpop.f32.mrb[0].mxu0
    %v3024 = vadd.f32 %v2491, %v3023
    %v3025 = vpop.f32.mrb[0].mxu0
    %v3026 = vadd.f32 %v2493, %v3025
    %3027 = vmatprep.mubr.bf16.mxu0 %v1816
    %3028 = vmatmul.mubr.bf16.gmra.mrb[0].mxu0 %v1815
    %v3029 = vpop.f32.mrb[0].mxu0
    %v3030 = vadd.f32 %v2497, %v3029
    %v3031 = vpop.f32.mrb[0].mxu0
    %v3032 = vadd.f32 %v2499, %v3031
    %v3033 = vpop.f32.mrb[0].mxu0
    %v3034 = vadd.f32 %v2501, %v3033
    %v3035 = vpop.f32.mrb[0].mxu0
    %v3036 = vadd.f32 %v2503, %v3035
    %3037 = vmatprep.mubr.bf16.mxu0 %v1818
    %3038 = vmatmul.mubr.bf16.gmra.mrb[0].mxu0 %v1817
    %v3039 = vpop.f32.mrb[0].mxu0
    %v3040 = vadd.f32 %v2507, %v3039
    %v3041 = vpop.f32.mrb[0].mxu0
    %v3042 = vadd.f32 %v2509, %v3041
    %v3043 = vpop.f32.mrb[0].mxu0
    %v3044 = vadd.f32 %v2511, %v3043
    %v3045 = vpop.f32.mrb[0].mxu0
    %v3046 = vadd.f32 %v2513, %v3045
    %3047 = vmatprep.mubr.bf16.mxu0 %v1820
    %3048 = vmatmul.mubr.bf16.gmra.mrb[0].mxu0 %v1819
    %v3049 = vpop.f32.mrb[0].mxu0
    %v3050 = vadd.f32 %v2517, %v3049
    %v3051 = vpop.f32.mrb[0].mxu0
    %v3052 = vadd.f32 %v2519, %v3051
    %v3053 = vpop.f32.mrb[0].mxu0
    %v3054 = vadd.f32 %v2521, %v3053
    %v3055 = vpop.f32.mrb[0].mxu0
    %v3056 = vadd.f32 %v2523, %v3055
    %3057 = vmatprep.mubr.bf16.mxu0 %v1822
    %3058 = vmatmul.mubr.bf16.gmra.mrb[0].mxu0 %v1821
    %v3059 = vpop.f32.mrb[0].mxu0
    %v3060 = vadd.f32 %v2527, %v3059
    %v3061 = vpop.f32.mrb[0].mxu0
    %v3062 = vadd.f32 %v2529, %v3061
    %v3063 = vpop.f32.mrb[0].mxu0
    %v3064 = vadd.f32 %v2531, %v3063
    %v3065 = vpop.f32.mrb[0].mxu0
    %v3066 = vadd.f32 %v2533, %v3065
    %3067 = vmatprep.mubr.bf16.mxu0 %v1824
    %3068 = vmatmul.mubr.bf16.gmra.mrb[0].mxu0 %v1823
    %v3069 = vpop.f32.mrb[0].mxu0
    %v3070 = vadd.f32 %v2537, %v3069
    %v3071 = vpop.f32.mrb[0].mxu0
    %v3072 = vadd.f32 %v2539, %v3071
    %v3073 = vpop.f32.mrb[0].mxu0
    %v3074 = vadd.f32 %v2541, %v3073
    %v3075 = vpop.f32.mrb[0].mxu0
    %v3076 = vadd.f32 %v2543, %v3075
    %3077 = vmatprep.mubr.bf16.mxu0 %v1826
    %3078 = vmatmul.mubr.bf16.gmra.mrb[0].mxu0 %v1825
    %v3079 = vpop.f32.mrb[0].mxu0
    %v3080 = vadd.f32 %v2547, %v3079
    %v3081 = vpop.f32.mrb[0].mxu0
    %v3082 = vadd.f32 %v2549, %v3081
    %v3083 = vpop.f32.mrb[0].mxu0
    %v3084 = vadd.f32 %v2551, %v3083
    %v3085 = vpop.f32.mrb[0].mxu0
    %v3086 = vadd.f32 %v2553, %v3085
    %3087 = vmatprep.mubr.bf16.mxu0 %v1828
    %3088 = vmatmul.mubr.bf16.gmra.mrb[0].mxu0 %v1827
    %v3089 = vpop.f32.mrb[0].mxu0
    %v3090 = vadd.f32 %v2557, %v3089
    %v3091 = vpop.f32.mrb[0].mxu0
    %v3092 = vadd.f32 %v2559, %v3091
    %v3093 = vpop.f32.mrb[0].mxu0
    %v3094 = vadd.f32 %v2561, %v3093
    %v3095 = vpop.f32.mrb[0].mxu0
    %v3096 = vadd.f32 %v2563, %v3095
    %3097 = vmatprep.mubr.bf16.mxu0 %v1830
    %3098 = vmatmul.mubr.bf16.gmra.mrb[0].mxu0 %v1829
    %v3099 = vpop.f32.mrb[0].mxu0
    %v3100 = vadd.f32 %v2567, %v3099
    %v3101 = vpop.f32.mrb[0].mxu0
    %v3102 = vadd.f32 %v2569, %v3101
    %v3103 = vpop.f32.mrb[0].mxu0
    %v3104 = vadd.f32 %v2571, %v3103
    %v3105 = vpop.f32.mrb[0].mxu0
    %v3106 = vadd.f32 %v2573, %v3105
    %3107 = vmatprep.mubr.bf16.mxu0 %v1832
    %3108 = vmatmul.mubr.bf16.gmra.mrb[0].mxu0 %v1831
    %v3109 = vpop.f32.mrb[0].mxu0
    %v3110 = vadd.f32 %v2577, %v3109
    %v3111 = vpop.f32.mrb[0].mxu0
    %v3112 = vadd.f32 %v2579, %v3111
    %v3113 = vpop.f32.mrb[0].mxu0
    %v3114 = vadd.f32 %v2581, %v3113
    %v3115 = vpop.f32.mrb[0].mxu0
    %v3116 = vadd.f32 %v2583, %v3115
    %3117 = vmatprep.mubr.bf16.mxu0 %v1834
    %3118 = vmatmul.mubr.bf16.gmra.mrb[0].mxu0 %v1833
    %v3119 = vpop.f32.mrb[0].mxu0
    %v3120 = vadd.f32 %v2587, %v3119
    %v3121 = vpop.f32.mrb[0].mxu0
    %v3122 = vadd.f32 %v2589, %v3121
    %v3123 = vpop.f32.mrb[0].mxu0
    %v3124 = vadd.f32 %v2591, %v3123
    %v3125 = vpop.f32.mrb[0].mxu0
    %v3126 = vadd.f32 %v2593, %v3125
    %3127 = vmatprep.mubr.bf16.mxu0 %v1836
    %3128 = vmatmul.mubr.bf16.gmra.mrb[0].mxu0 %v1835
    %v3129 = vpop.f32.mrb[0].mxu0
    %v3130 = vadd.f32 %v2597, %v3129
    %v3131 = vpop.f32.mrb[0].mxu0
    %v3132 = vadd.f32 %v2599, %v3131
    %v3133 = vpop.f32.mrb[0].mxu0
    %v3134 = vadd.f32 %v2601, %v3133
    %v3135 = vpop.f32.mrb[0].mxu0
    %v3136 = vadd.f32 %v2603, %v3135
    %3137 = vmatprep.mubr.bf16.mxu0 %v1838
    %3138 = vmatmul.mubr.bf16.gmra.mrb[0].mxu0 %v1837
    %v3139 = vpop.f32.mrb[0].mxu0
    %v3140 = vadd.f32 %v2607, %v3139
    %v3141 = vpop.f32.mrb[0].mxu0
    %v3142 = vadd.f32 %v2609, %v3141
    %v3143 = vpop.f32.mrb[0].mxu0
    %v3144 = vadd.f32 %v2611, %v3143
    %v3145 = vpop.f32.mrb[0].mxu0
    %v3146 = vadd.f32 %v2613, %v3145
    %3147 = vmatprep.mubr.bf16.mxu0 %v1840
    %3148 = vmatmul.mubr.bf16.gmra.mrb[0].mxu0 %v1839
    %v3149 = vpop.f32.mrb[0].mxu0
    %v3150 = vadd.f32 %v2617, %v3149
    %v3151 = vpop.f32.mrb[0].mxu0
    %v3152 = vadd.f32 %v2619, %v3151
    %v3153 = vpop.f32.mrb[0].mxu0
    %v3154 = vadd.f32 %v2621, %v3153
    %v3155 = vpop.f32.mrb[0].mxu0
    %v3156 = vadd.f32 %v2623, %v3155
    %3157 = vmatprep.mubr.bf16.mxu0 %v1842
    %3158 = vmatmul.mubr.bf16.gmra.mrb[0].mxu0 %v1841
    %v3159 = vpop.f32.mrb[0].mxu0
    %v3160 = vadd.f32 %v2627, %v3159
    %v3161 = vpop.f32.mrb[0].mxu0
    %v3162 = vadd.f32 %v2629, %v3161
    %v3163 = vpop.f32.mrb[0].mxu0
    %v3164 = vadd.f32 %v2631, %v3163
    %v3165 = vpop.f32.mrb[0].mxu0
    %v3166 = vadd.f32 %v2633, %v3165
    %3167 = vmatprep.mubr.bf16.mxu0 %v1844
    %3168 = vmatmul.mubr.bf16.gmra.mrb[0].mxu0 %v1843
    %v3169 = vpop.f32.mrb[0].mxu0
    %v3170 = vadd.f32 %v2637, %v3169
    %v3171 = vpop.f32.mrb[0].mxu0
    %v3172 = vadd.f32 %v2639, %v3171
    %v3173 = vpop.f32.mrb[0].mxu0
    %v3174 = vadd.f32 %v2641, %v3173
    %v3175 = vpop.f32.mrb[0].mxu0
    %v3176 = vadd.f32 %v2643, %v3175
    %3177 = vmatprep.mubr.bf16.mxu0 %v1846
    %3178 = vmatmul.mubr.bf16.gmra.mrb[0].mxu0 %v1845
    %v3179 = vpop.f32.mrb[0].mxu0
    %v3180 = vadd.f32 %v2647, %v3179
    %v3181 = vpop.f32.mrb[0].mxu0
    %v3182 = vadd.f32 %v2649, %v3181
    %v3183 = vpop.f32.mrb[0].mxu0
    %v3184 = vadd.f32 %v2651, %v3183
    %v3185 = vpop.f32.mrb[0].mxu0
    %v3186 = vadd.f32 %v2653, %v3185
    %3187 = vdwg.mxu0
    %s3188 = scalar_lea.vmem %s3, 512
    %v3189 = vld [vmem:[%s3188] sm:$0xff]
    %v3190 = vld [vmem:[%s3188 + $0x8] sm:$0xff]
    %v3191 = vld [vmem:[%s3188 + $0x10] sm:$0xff]
    %v3192 = vld [vmem:[%s3188 + $0x18] sm:$0xff]
    %v3193 = vld [vmem:[%s3188 + $0x20] sm:$0xff]
    %v3194 = vld [vmem:[%s3188 + $0x28] sm:$0xff]
    %v3195 = vld [vmem:[%s3188 + $0x30] sm:$0xff]
    %v3196 = vld [vmem:[%s3188 + $0x38] sm:$0xff]
    %v3197 = vld [vmem:[%s3188 + $0x40] sm:$0xff]
    %v3198 = vld [vmem:[%s3188 + $0x48] sm:$0xff]
    %v3199 = vld [vmem:[%s3188 + $0x50] sm:$0xff]
    %v3200 = vld [vmem:[%s3188 + $0x58] sm:$0xff]
    %v3201 = vld [vmem:[%s3188 + $0x60] sm:$0xff]
    %v3202 = vld [vmem:[%s3188 + $0x68] sm:$0xff]
    %v3203 = vld [vmem:[%s3188 + $0x70] sm:$0xff]
    %v3204 = vld [vmem:[%s3188 + $0x78] sm:$0xff]
    %v3205 = vld [vmem:[%s3188 + $0x80] sm:$0xff]
    %v3206 = vld [vmem:[%s3188 + $0x88] sm:$0xff]
    %v3207 = vld [vmem:[%s3188 + $0x90] sm:$0xff]
    %v3208 = vld [vmem:[%s3188 + $0x98] sm:$0xff]
    %v3209 = vld [vmem:[%s3188 + $0xa0] sm:$0xff]
    %v3210 = vld [vmem:[%s3188 + $0xa8] sm:$0xff]
    %v3211 = vld [vmem:[%s3188 + $0xb0] sm:$0xff]
    %v3212 = vld [vmem:[%s3188 + $0xb8] sm:$0xff]
    %v3213 = vld [vmem:[%s3188 + $0xc0] sm:$0xff]
    %v3214 = vld [vmem:[%s3188 + $0xc8] sm:$0xff]
    %v3215 = vld [vmem:[%s3188 + $0xd0] sm:$0xff]
    %v3216 = vld [vmem:[%s3188 + $0xd8] sm:$0xff]
    %v3217 = vld [vmem:[%s3188 + $0xe0] sm:$0xff]
    %v3218 = vld [vmem:[%s3188 + $0xe8] sm:$0xff]
    %v3219 = vld [vmem:[%s3188 + $0xf0] sm:$0xff]
    %v3220 = vld [vmem:[%s3188 + $0xf8] sm:$0xff]
    %v3253 = vunpack.c.l.b16 %v3189
    %v3254 = vunpack.c.h.b16 %v3189
    %v3255 = vunpack.c.l.b16 %v3190
    %v3256 = vunpack.c.h.b16 %v3190
    %v3257 = vunpack.c.l.b16 %v3191
    %v3258 = vunpack.c.h.b16 %v3191
    %v3259 = vunpack.c.l.b16 %v3192
    %v3260 = vunpack.c.h.b16 %v3192
    %v3261 = vunpack.c.l.b16 %v3193
    %v3262 = vunpack.c.h.b16 %v3193
    %v3263 = vunpack.c.l.b16 %v3194
    %v3264 = vunpack.c.h.b16 %v3194
    %v3265 = vunpack.c.l.b16 %v3195
    %v3266 = vunpack.c.h.b16 %v3195
    %v3267 = vunpack.c.l.b16 %v3196
    %v3268 = vunpack.c.h.b16 %v3196
    %v3269 = vunpack.c.l.b16 %v3197
    %v3270 = vunpack.c.h.b16 %v3197
    %v3271 = vunpack.c.l.b16 %v3198
    %v3272 = vunpack.c.h.b16 %v3198
    %v3273 = vunpack.c.l.b16 %v3199
    %v3274 = vunpack.c.h.b16 %v3199
    %v3275 = vunpack.c.l.b16 %v3200
    %v3276 = vunpack.c.h.b16 %v3200
    %v3277 = vunpack.c.l.b16 %v3201
    %v3278 = vunpack.c.h.b16 %v3201
    %v3279 = vunpack.c.l.b16 %v3202
    %v3280 = vunpack.c.h.b16 %v3202
    %v3281 = vunpack.c.l.b16 %v3203
    %v3282 = vunpack.c.h.b16 %v3203
    %v3283 = vunpack.c.l.b16 %v3204
    %v3284 = vunpack.c.h.b16 %v3204
    %v3285 = vunpack.c.l.b16 %v3205
    %v3286 = vunpack.c.h.b16 %v3205
    %v3287 = vunpack.c.l.b16 %v3206
    %v3288 = vunpack.c.h.b16 %v3206
    %v3289 = vunpack.c.l.b16 %v3207
    %v3290 = vunpack.c.h.b16 %v3207
    %v3291 = vunpack.c.l.b16 %v3208
    %v3292 = vunpack.c.h.b16 %v3208
    %v3293 = vunpack.c.l.b16 %v3209
    %v3294 = vunpack.c.h.b16 %v3209
    %v3295 = vunpack.c.l.b16 %v3210
    %v3296 = vunpack.c.h.b16 %v3210
    %v3297 = vunpack.c.l.b16 %v3211
    %v3298 = vunpack.c.h.b16 %v3211
    %v3299 = vunpack.c.l.b16 %v3212
    %v3300 = vunpack.c.h.b16 %v3212
    %v3301 = vunpack.c.l.b16 %v3213
    %v3302 = vunpack.c.h.b16 %v3213
    %v3303 = vunpack.c.l.b16 %v3214
    %v3304 = vunpack.c.h.b16 %v3214
    %v3305 = vunpack.c.l.b16 %v3215
    %v3306 = vunpack.c.h.b16 %v3215
    %v3307 = vunpack.c.l.b16 %v3216
    %v3308 = vunpack.c.h.b16 %v3216
    %v3309 = vunpack.c.l.b16 %v3217
    %v3310 = vunpack.c.h.b16 %v3217
    %v3311 = vunpack.c.l.b16 %v3218
    %v3312 = vunpack.c.h.b16 %v3218
    %v3313 = vunpack.c.l.b16 %v3219
    %v3314 = vunpack.c.h.b16 %v3219
    %v3315 = vunpack.c.l.b16 %v3220
    %v3316 = vunpack.c.h.b16 %v3220
    %v3317 = vpack.c.b16 %v3255, %v3253
    %v3318 = vpack.c.b16 %v3256, %v3254
    %v3319 = vpack.c.b16 %v3259, %v3257
    %v3320 = vpack.c.b16 %v3260, %v3258
    %v3321 = vpack.c.b16 %v3263, %v3261
    %v3322 = vpack.c.b16 %v3264, %v3262
    %v3323 = vpack.c.b16 %v3267, %v3265
    %v3324 = vpack.c.b16 %v3268, %v3266
    %v3325 = vpack.c.b16 %v3271, %v3269
    %v3326 = vpack.c.b16 %v3272, %v3270
    %v3327 = vpack.c.b16 %v3275, %v3273
    %v3328 = vpack.c.b16 %v3276, %v3274
    %v3329 = vpack.c.b16 %v3279, %v3277
    %v3330 = vpack.c.b16 %v3280, %v3278
    %v3331 = vpack.c.b16 %v3283, %v3281
    %v3332 = vpack.c.b16 %v3284, %v3282
    %v3333 = vpack.c.b16 %v3287, %v3285
    %v3334 = vpack.c.b16 %v3288, %v3286
    %v3335 = vpack.c.b16 %v3291, %v3289
    %v3336 = vpack.c.b16 %v3292, %v3290
    %v3337 = vpack.c.b16 %v3295, %v3293
    %v3338 = vpack.c.b16 %v3296, %v3294
    %v3339 = vpack.c.b16 %v3299, %v3297
    %v3340 = vpack.c.b16 %v3300, %v3298
    %v3341 = vpack.c.b16 %v3303, %v3301
    %v3342 = vpack.c.b16 %v3304, %v3302
    %v3343 = vpack.c.b16 %v3307, %v3305
    %v3344 = vpack.c.b16 %v3308, %v3306
    %v3345 = vpack.c.b16 %v3311, %v3309
    %v3346 = vpack.c.b16 %v3312, %v3310
    %v3347 = vpack.c.b16 %v3315, %v3313
    %v3348 = vpack.c.b16 %v3316, %v3314
    %3381 = vmatprep.subr.bf16.mxu0 %v3318
    %3382 = vmatpush1.bf16.msra.mxu0 %v3317
    %3383 = vmatprep.subr.bf16.mxu0 %v3320
    %3384 = vmatpush1.bf16.msra.mxu0 %v3319
    %3385 = vmatprep.subr.bf16.mxu0 %v3322
    %3386 = vmatpush1.bf16.msra.mxu0 %v3321
    %3387 = vmatprep.subr.bf16.mxu0 %v3324
    %3388 = vmatpush1.bf16.msra.mxu0 %v3323
    %3389 = vmatprep.subr.bf16.mxu0 %v3326
    %3390 = vmatpush1.bf16.msra.mxu0 %v3325
    %3391 = vmatprep.subr.bf16.mxu0 %v3328
    %3392 = vmatpush1.bf16.msra.mxu0 %v3327
    %3393 = vmatprep.subr.bf16.mxu0 %v3330
    %3394 = vmatpush1.bf16.msra.mxu0 %v3329
    %3395 = vmatprep.subr.bf16.mxu0 %v3332
    %3396 = vmatpush1.bf16.msra.mxu0 %v3331
    %3397 = vmatprep.subr.bf16.mxu0 %v3334
    %3398 = vmatpush1.bf16.msra.mxu0 %v3333
    %3399 = vmatprep.subr.bf16.mxu0 %v3336
    %3400 = vmatpush1.bf16.msra.mxu0 %v3335
    %3401 = vmatprep.subr.bf16.mxu0 %v3338
    %3402 = vmatpush1.bf16.msra.mxu0 %v3337
    %3403 = vmatprep.subr.bf16.mxu0 %v3340
    %3404 = vmatpush1.bf16.msra.mxu0 %v3339
    %3405 = vmatprep.subr.bf16.mxu0 %v3342
    %3406 = vmatpush1.bf16.msra.mxu0 %v3341
    %3407 = vmatprep.subr.bf16.mxu0 %v3344
    %3408 = vmatpush1.bf16.msra.mxu0 %v3343
    %3409 = vmatprep.subr.bf16.mxu0 %v3346
    %3410 = vmatpush1.bf16.msra.mxu0 %v3345
    %3411 = vmatprep.subr.bf16.mxu0 %v3348
    %3412 = vmatpush1.bf16.msra.mxu0 %v3347
    %3413 = vmatprep.mubr.bf16.mxu0 %v1990
    %3414 = vmatmul.mubr.bf16.gmra.mrb[0].mxu0 %v1989
    %v3415 = vpop.f32.mrb[0].mxu0
    %v3416 = vadd.f32 0.0, %v3415
    %v3417 = vpop.f32.mrb[0].mxu0
    %v3418 = vadd.f32 0.0, %v3417
    %v3419 = vpop.f32.mrb[0].mxu0
    %v3420 = vadd.f32 0.0, %v3419
    %v3421 = vpop.f32.mrb[0].mxu0
    %v3422 = vadd.f32 0.0, %v3421
    %3423 = vmatprep.mubr.bf16.mxu0 %v1992
    %3424 = vmatmul.mubr.bf16.gmra.mrb[0].mxu0 %v1991
    %v3425 = vpop.f32.mrb[0].mxu0
    %v3426 = vadd.f32 0.0, %v3425
    %v3427 = vpop.f32.mrb[0].mxu0
    %v3428 = vadd.f32 0.0, %v3427
    %v3429 = vpop.f32.mrb[0].mxu0
    %v3430 = vadd.f32 0.0, %v3429
    %v3431 = vpop.f32.mrb[0].mxu0
    %v3432 = vadd.f32 0.0, %v3431
    %3433 = vmatprep.mubr.bf16.mxu0 %v1994
    %3434 = vmatmul.mubr.bf16.gmra.mrb[0].mxu0 %v1993
    %v3435 = vpop.f32.mrb[0].mxu0
    %v3436 = vadd.f32 0.0, %v3435
    %v3437 = vpop.f32.mrb[0].mxu0
    %v3438 = vadd.f32 0.0, %v3437
    %v3439 = vpop.f32.mrb[0].mxu0
    %v3440 = vadd.f32 0.0, %v3439
    %v3441 = vpop.f32.mrb[0].mxu0
    %v3442 = vadd.f32 0.0, %v3441
    %3443 = vmatprep.mubr.bf16.mxu0 %v1996
    %3444 = vmatmul.mubr.bf16.gmra.mrb[0].mxu0 %v1995
    %v3445 = vpop.f32.mrb[0].mxu0
    %v3446 = vadd.f32 0.0, %v3445
    %v3447 = vpop.f32.mrb[0].mxu0
    %v3448 = vadd.f32 0.0, %v3447
    %v3449 = vpop.f32.mrb[0].mxu0
    %v3450 = vadd.f32 0.0, %v3449
    %v3451 = vpop.f32.mrb[0].mxu0
    %v3452 = vadd.f32 0.0, %v3451
    %3453 = vmatprep.mubr.bf16.mxu0 %v1998
    %3454 = vmatmul.mubr.bf16.gmra.mrb[0].mxu0 %v1997
    %v3455 = vpop.f32.mrb[0].mxu0
    %v3456 = vadd.f32 0.0, %v3455
    %v3457 = vpop.f32.mrb[0].mxu0
    %v3458 = vadd.f32 0.0, %v3457
    %v3459 = vpop.f32.mrb[0].mxu0
    %v3460 = vadd.f32 0.0, %v3459
    %v3461 = vpop.f32.mrb[0].mxu0
    %v3462 = vadd.f32 0.0, %v3461
    %3463 = vmatprep.mubr.bf16.mxu0 %v2000
    %3464 = vmatmul.mubr.bf16.gmra.mrb[0].mxu0 %v1999
    %v3465 = vpop.f32.mrb[0].mxu0
    %v3466 = vadd.f32 0.0, %v3465
    %v3467 = vpop.f32.mrb[0].mxu0
    %v3468 = vadd.f32 0.0, %v3467
    %v3469 = vpop.f32.mrb[0].mxu0
    %v3470 = vadd.f32 0.0, %v3469
    %v3471 = vpop.f32.mrb[0].mxu0
    %v3472 = vadd.f32 0.0, %v3471
    %3473 = vmatprep.mubr.bf16.mxu0 %v2002
    %3474 = vmatmul.mubr.bf16.gmra.mrb[0].mxu0 %v2001
    %v3475 = vpop.f32.mrb[0].mxu0
    %v3476 = vadd.f32 0.0, %v3475
    %v3477 = vpop.f32.mrb[0].mxu0
    %v3478 = vadd.f32 0.0, %v3477
    %v3479 = vpop.f32.mrb[0].mxu0
    %v3480 = vadd.f32 0.0, %v3479
    %v3481 = vpop.f32.mrb[0].mxu0
    %v3482 = vadd.f32 0.0, %v3481
    %3483 = vmatprep.mubr.bf16.mxu0 %v2004
    %3484 = vmatmul.mubr.bf16.gmra.mrb[0].mxu0 %v2003
    %v3485 = vpop.f32.mrb[0].mxu0
    %v3486 = vadd.f32 0.0, %v3485
    %v3487 = vpop.f32.mrb[0].mxu0
    %v3488 = vadd.f32 0.0, %v3487
    %v3489 = vpop.f32.mrb[0].mxu0
    %v3490 = vadd.f32 0.0, %v3489
    %v3491 = vpop.f32.mrb[0].mxu0
    %v3492 = vadd.f32 0.0, %v3491
    %3493 = vmatprep.mubr.bf16.mxu0 %v2006
    %3494 = vmatmul.mubr.bf16.gmra.mrb[0].mxu0 %v2005
    %v3495 = vpop.f32.mrb[0].mxu0
    %v3496 = vadd.f32 0.0, %v3495
    %v3497 = vpop.f32.mrb[0].mxu0
    %v3498 = vadd.f32 0.0, %v3497
    %v3499 = vpop.f32.mrb[0].mxu0
    %v3500 = vadd.f32 0.0, %v3499
    %v3501 = vpop.f32.mrb[0].mxu0
    %v3502 = vadd.f32 0.0, %v3501
    %3503 = vmatprep.mubr.bf16.mxu0 %v2008
    %3504 = vmatmul.mubr.bf16.gmra.mrb[0].mxu0 %v2007
    %v3505 = vpop.f32.mrb[0].mxu0
    %v3506 = vadd.f32 0.0, %v3505
    %v3507 = vpop.f32.mrb[0].mxu0
    %v3508 = vadd.f32 0.0, %v3507
    %v3509 = vpop.f32.mrb[0].mxu0
    %v3510 = vadd.f32 0.0, %v3509
    %v3511 = vpop.f32.mrb[0].mxu0
    %v3512 = vadd.f32 0.0, %v3511
    %3513 = vmatprep.mubr.bf16.mxu0 %v2010
    %3514 = vmatmul.mubr.bf16.gmra.mrb[0].mxu0 %v2009
    %v3515 = vpop.f32.mrb[0].mxu0
    %v3516 = vadd.f32 0.0, %v3515
    %v3517 = vpop.f32.mrb[0].mxu0
    %v3518 = vadd.f32 0.0, %v3517
    %v3519 = vpop.f32.mrb[0].mxu0
    %v3520 = vadd.f32 0.0, %v3519
    %v3521 = vpop.f32.mrb[0].mxu0
    %v3522 = vadd.f32 0.0, %v3521
    %3523 = vmatprep.mubr.bf16.mxu0 %v2012
    %3524 = vmatmul.mubr.bf16.gmra.mrb[0].mxu0 %v2011
    %v3525 = vpop.f32.mrb[0].mxu0
    %v3526 = vadd.f32 0.0, %v3525
    %v3527 = vpop.f32.mrb[0].mxu0
    %v3528 = vadd.f32 0.0, %v3527
    %v3529 = vpop.f32.mrb[0].mxu0
    %v3530 = vadd.f32 0.0, %v3529
    %v3531 = vpop.f32.mrb[0].mxu0
    %v3532 = vadd.f32 0.0, %v3531
    %3533 = vmatprep.mubr.bf16.mxu0 %v2014
    %3534 = vmatmul.mubr.bf16.gmra.mrb[0].mxu0 %v2013
    %v3535 = vpop.f32.mrb[0].mxu0
    %v3536 = vadd.f32 0.0, %v3535
    %v3537 = vpop.f32.mrb[0].mxu0
    %v3538 = vadd.f32 0.0, %v3537
    %v3539 = vpop.f32.mrb[0].mxu0
    %v3540 = vadd.f32 0.0, %v3539
    %v3541 = vpop.f32.mrb[0].mxu0
    %v3542 = vadd.f32 0.0, %v3541
    %3543 = vmatprep.mubr.bf16.mxu0 %v2016
    %3544 = vmatmul.mubr.bf16.gmra.mrb[0].mxu0 %v2015
    %v3545 = vpop.f32.mrb[0].mxu0
    %v3546 = vadd.f32 0.0, %v3545
    %v3547 = vpop.f32.mrb[0].mxu0
    %v3548 = vadd.f32 0.0, %v3547
    %v3549 = vpop.f32.mrb[0].mxu0
    %v3550 = vadd.f32 0.0, %v3549
    %v3551 = vpop.f32.mrb[0].mxu0
    %v3552 = vadd.f32 0.0, %v3551
    %3553 = vmatprep.mubr.bf16.mxu0 %v2018
    %3554 = vmatmul.mubr.bf16.gmra.mrb[0].mxu0 %v2017
    %v3555 = vpop.f32.mrb[0].mxu0
    %v3556 = vadd.f32 0.0, %v3555
    %v3557 = vpop.f32.mrb[0].mxu0
    %v3558 = vadd.f32 0.0, %v3557
    %v3559 = vpop.f32.mrb[0].mxu0
    %v3560 = vadd.f32 0.0, %v3559
    %v3561 = vpop.f32.mrb[0].mxu0
    %v3562 = vadd.f32 0.0, %v3561
    %3563 = vmatprep.mubr.bf16.mxu0 %v2020
    %3564 = vmatmul.mubr.bf16.gmra.mrb[0].mxu0 %v2019
    %v3565 = vpop.f32.mrb[0].mxu0
    %v3566 = vadd.f32 0.0, %v3565
    %v3567 = vpop.f32.mrb[0].mxu0
    %v3568 = vadd.f32 0.0, %v3567
    %v3569 = vpop.f32.mrb[0].mxu0
    %v3570 = vadd.f32 0.0, %v3569
    %v3571 = vpop.f32.mrb[0].mxu0
    %v3572 = vadd.f32 0.0, %v3571
    %3573 = vmatprep.mubr.bf16.mxu0 %v2022
    %3574 = vmatmul.mubr.bf16.gmra.mrb[0].mxu0 %v2021
    %v3575 = vpop.f32.mrb[0].mxu0
    %v3576 = vadd.f32 0.0, %v3575
    %v3577 = vpop.f32.mrb[0].mxu0
    %v3578 = vadd.f32 0.0, %v3577
    %v3579 = vpop.f32.mrb[0].mxu0
    %v3580 = vadd.f32 0.0, %v3579
    %v3581 = vpop.f32.mrb[0].mxu0
    %v3582 = vadd.f32 0.0, %v3581
    %3583 = vmatprep.mubr.bf16.mxu0 %v2024
    %3584 = vmatmul.mubr.bf16.gmra.mrb[0].mxu0 %v2023
    %v3585 = vpop.f32.mrb[0].mxu0
    %v3586 = vadd.f32 0.0, %v3585
    %v3587 = vpop.f32.mrb[0].mxu0
    %v3588 = vadd.f32 0.0, %v3587
    %v3589 = vpop.f32.mrb[0].mxu0
    %v3590 = vadd.f32 0.0, %v3589
    %v3591 = vpop.f32.mrb[0].mxu0
    %v3592 = vadd.f32 0.0, %v3591
    %3593 = vmatprep.mubr.bf16.mxu0 %v2026
    %3594 = vmatmul.mubr.bf16.gmra.mrb[0].mxu0 %v2025
    %v3595 = vpop.f32.mrb[0].mxu0
    %v3596 = vadd.f32 0.0, %v3595
    %v3597 = vpop.f32.mrb[0].mxu0
    %v3598 = vadd.f32 0.0, %v3597
    %v3599 = vpop.f32.mrb[0].mxu0
    %v3600 = vadd.f32 0.0, %v3599
    %v3601 = vpop.f32.mrb[0].mxu0
    %v3602 = vadd.f32 0.0, %v3601
    %3603 = vmatprep.mubr.bf16.mxu0 %v2028
    %3604 = vmatmul.mubr.bf16.gmra.mrb[0].mxu0 %v2027
    %v3605 = vpop.f32.mrb[0].mxu0
    %v3606 = vadd.f32 0.0, %v3605
    %v3607 = vpop.f32.mrb[0].mxu0
    %v3608 = vadd.f32 0.0, %v3607
    %v3609 = vpop.f32.mrb[0].mxu0
    %v3610 = vadd.f32 0.0, %v3609
    %v3611 = vpop.f32.mrb[0].mxu0
    %v3612 = vadd.f32 0.0, %v3611
    %3613 = vmatprep.mubr.bf16.mxu0 %v2030
    %3614 = vmatmul.mubr.bf16.gmra.mrb[0].mxu0 %v2029
    %v3615 = vpop.f32.mrb[0].mxu0
    %v3616 = vadd.f32 0.0, %v3615
    %v3617 = vpop.f32.mrb[0].mxu0
    %v3618 = vadd.f32 0.0, %v3617
    %v3619 = vpop.f32.mrb[0].mxu0
    %v3620 = vadd.f32 0.0, %v3619
    %v3621 = vpop.f32.mrb[0].mxu0
    %v3622 = vadd.f32 0.0, %v3621
    %3623 = vmatprep.mubr.bf16.mxu0 %v2032
    %3624 = vmatmul.mubr.bf16.gmra.mrb[0].mxu0 %v2031
    %v3625 = vpop.f32.mrb[0].mxu0
    %v3626 = vadd.f32 0.0, %v3625
    %v3627 = vpop.f32.mrb[0].mxu0
    %v3628 = vadd.f32 0.0, %v3627
    %v3629 = vpop.f32.mrb[0].mxu0
    %v3630 = vadd.f32 0.0, %v3629
    %v3631 = vpop.f32.mrb[0].mxu0
    %v3632 = vadd.f32 0.0, %v3631
    %3633 = vmatprep.mubr.bf16.mxu0 %v2034
    %3634 = vmatmul.mubr.bf16.gmra.mrb[0].mxu0 %v2033
    %v3635 = vpop.f32.mrb[0].mxu0
    %v3636 = vadd.f32 0.0, %v3635
    %v3637 = vpop.f32.mrb[0].mxu0
    %v3638 = vadd.f32 0.0, %v3637
    %v3639 = vpop.f32.mrb[0].mxu0
    %v3640 = vadd.f32 0.0, %v3639
    %v3641 = vpop.f32.mrb[0].mxu0
    %v3642 = vadd.f32 0.0, %v3641
    %3643 = vmatprep.mubr.bf16.mxu0 %v2036
    %3644 = vmatmul.mubr.bf16.gmra.mrb[0].mxu0 %v2035
    %v3645 = vpop.f32.mrb[0].mxu0
    %v3646 = vadd.f32 0.0, %v3645
    %v3647 = vpop.f32.mrb[0].mxu0
    %v3648 = vadd.f32 0.0, %v3647
    %v3649 = vpop.f32.mrb[0].mxu0
    %v3650 = vadd.f32 0.0, %v3649
    %v3651 = vpop.f32.mrb[0].mxu0
    %v3652 = vadd.f32 0.0, %v3651
    %3653 = vmatprep.mubr.bf16.mxu0 %v2038
    %3654 = vmatmul.mubr.bf16.gmra.mrb[0].mxu0 %v2037
    %v3655 = vpop.f32.mrb[0].mxu0
    %v3656 = vadd.f32 0.0, %v3655
    %v3657 = vpop.f32.mrb[0].mxu0
    %v3658 = vadd.f32 0.0, %v3657
    %v3659 = vpop.f32.mrb[0].mxu0
    %v3660 = vadd.f32 0.0, %v3659
    %v3661 = vpop.f32.mrb[0].mxu0
    %v3662 = vadd.f32 0.0, %v3661
    %3663 = vmatprep.mubr.bf16.mxu0 %v2040
    %3664 = vmatmul.mubr.bf16.gmra.mrb[0].mxu0 %v2039
    %v3665 = vpop.f32.mrb[0].mxu0
    %v3666 = vadd.f32 0.0, %v3665
    %v3667 = vpop.f32.mrb[0].mxu0
    %v3668 = vadd.f32 0.0, %v3667
    %v3669 = vpop.f32.mrb[0].mxu0
    %v3670 = vadd.f32 0.0, %v3669
    %v3671 = vpop.f32.mrb[0].mxu0
    %v3672 = vadd.f32 0.0, %v3671
    %3673 = vmatprep.mubr.bf16.mxu0 %v2042
    %3674 = vmatmul.mubr.bf16.gmra.mrb[0].mxu0 %v2041
    %v3675 = vpop.f32.mrb[0].mxu0
    %v3676 = vadd.f32 0.0, %v3675
    %v3677 = vpop.f32.mrb[0].mxu0
    %v3678 = vadd.f32 0.0, %v3677
    %v3679 = vpop.f32.mrb[0].mxu0
    %v3680 = vadd.f32 0.0, %v3679
    %v3681 = vpop.f32.mrb[0].mxu0
    %v3682 = vadd.f32 0.0, %v3681
    %3683 = vmatprep.mubr.bf16.mxu0 %v2044
    %3684 = vmatmul.mubr.bf16.gmra.mrb[0].mxu0 %v2043
    %v3685 = vpop.f32.mrb[0].mxu0
    %v3686 = vadd.f32 0.0, %v3685
    %v3687 = vpop.f32.mrb[0].mxu0
    %v3688 = vadd.f32 0.0, %v3687
    %v3689 = vpop.f32.mrb[0].mxu0
    %v3690 = vadd.f32 0.0, %v3689
    %v3691 = vpop.f32.mrb[0].mxu0
    %v3692 = vadd.f32 0.0, %v3691
    %3693 = vmatprep.mubr.bf16.mxu0 %v2046
    %3694 = vmatmul.mubr.bf16.gmra.mrb[0].mxu0 %v2045
    %v3695 = vpop.f32.mrb[0].mxu0
    %v3696 = vadd.f32 0.0, %v3695
    %v3697 = vpop.f32.mrb[0].mxu0
    %v3698 = vadd.f32 0.0, %v3697
    %v3699 = vpop.f32.mrb[0].mxu0
    %v3700 = vadd.f32 0.0, %v3699
    %v3701 = vpop.f32.mrb[0].mxu0
    %v3702 = vadd.f32 0.0, %v3701
    %3703 = vmatprep.mubr.bf16.mxu0 %v2048
    %3704 = vmatmul.mubr.bf16.gmra.mrb[0].mxu0 %v2047
    %v3705 = vpop.f32.mrb[0].mxu0
    %v3706 = vadd.f32 0.0, %v3705
    %v3707 = vpop.f32.mrb[0].mxu0
    %v3708 = vadd.f32 0.0, %v3707
    %v3709 = vpop.f32.mrb[0].mxu0
    %v3710 = vadd.f32 0.0, %v3709
    %v3711 = vpop.f32.mrb[0].mxu0
    %v3712 = vadd.f32 0.0, %v3711
    %3713 = vmatprep.mubr.bf16.mxu0 %v2050
    %3714 = vmatmul.mubr.bf16.gmra.mrb[0].mxu0 %v2049
    %v3715 = vpop.f32.mrb[0].mxu0
    %v3716 = vadd.f32 0.0, %v3715
    %v3717 = vpop.f32.mrb[0].mxu0
    %v3718 = vadd.f32 0.0, %v3717
    %v3719 = vpop.f32.mrb[0].mxu0
    %v3720 = vadd.f32 0.0, %v3719
    %v3721 = vpop.f32.mrb[0].mxu0
    %v3722 = vadd.f32 0.0, %v3721
    %3723 = vmatprep.mubr.bf16.mxu0 %v2052
    %3724 = vmatmul.mubr.bf16.gmra.mrb[0].mxu0 %v2051
    %v3725 = vpop.f32.mrb[0].mxu0
    %v3726 = vadd.f32 0.0, %v3725
    %v3727 = vpop.f32.mrb[0].mxu0
    %v3728 = vadd.f32 0.0, %v3727
    %v3729 = vpop.f32.mrb[0].mxu0
    %v3730 = vadd.f32 0.0, %v3729
    %v3731 = vpop.f32.mrb[0].mxu0
    %v3732 = vadd.f32 0.0, %v3731
    %3733 = vmatprep.mubr.bf16.mxu0 %v2054
    %3734 = vmatmul.mubr.bf16.gmra.mrb[0].mxu0 %v2053
    %v3735 = vpop.f32.mrb[0].mxu0
    %v3736 = vadd.f32 0.0, %v3735
    %v3737 = vpop.f32.mrb[0].mxu0
    %v3738 = vadd.f32 0.0, %v3737
    %v3739 = vpop.f32.mrb[0].mxu0
    %v3740 = vadd.f32 0.0, %v3739
    %v3741 = vpop.f32.mrb[0].mxu0
    %v3742 = vadd.f32 0.0, %v3741
    %3743 = vmatprep.mubr.bf16.mxu0 %v2056
    %3744 = vmatmul.mubr.bf16.gmra.mrb[0].mxu0 %v2055
    %v3745 = vpop.f32.mrb[0].mxu0
    %v3746 = vadd.f32 0.0, %v3745
    %v3747 = vpop.f32.mrb[0].mxu0
    %v3748 = vadd.f32 0.0, %v3747
    %v3749 = vpop.f32.mrb[0].mxu0
    %v3750 = vadd.f32 0.0, %v3749
    %v3751 = vpop.f32.mrb[0].mxu0
    %v3752 = vadd.f32 0.0, %v3751
    %3753 = vdwg.mxu0
    %v3754 = vadd.f32 %v2850, %v3416
    %v3755 = vadd.f32 %v2852, %v3418
    %v3756 = vadd.f32 %v2854, %v3420
    %v3757 = vadd.f32 %v2856, %v3422
    %v3758 = vadd.f32 %v2860, %v3426
    %v3759 = vadd.f32 %v2862, %v3428
    %v3760 = vadd.f32 %v2864, %v3430
    %v3761 = vadd.f32 %v2866, %v3432
    %v3762 = vadd.f32 %v2870, %v3436
    %v3763 = vadd.f32 %v2872, %v3438
    %v3764 = vadd.f32 %v2874, %v3440
    %v3765 = vadd.f32 %v2876, %v3442
    %v3766 = vadd.f32 %v2880, %v3446
    %v3767 = vadd.f32 %v2882, %v3448
    %v3768 = vadd.f32 %v2884, %v3450
    %v3769 = vadd.f32 %v2886, %v3452
    %v3770 = vadd.f32 %v2890, %v3456
    %v3771 = vadd.f32 %v2892, %v3458
    %v3772 = vadd.f32 %v2894, %v3460
    %v3773 = vadd.f32 %v2896, %v3462
    %v3774 = vadd.f32 %v2900, %v3466
    %v3775 = vadd.f32 %v2902, %v3468
    %v3776 = vadd.f32 %v2904, %v3470
    %v3777 = vadd.f32 %v2906, %v3472
    %v3778 = vadd.f32 %v2910, %v3476
    %v3779 = vadd.f32 %v2912, %v3478
    %v3780 = vadd.f32 %v2914, %v3480
    %v3781 = vadd.f32 %v2916, %v3482
    %v3782 = vadd.f32 %v2920, %v3486
    %v3783 = vadd.f32 %v2922, %v3488
    %v3784 = vadd.f32 %v2924, %v3490
    %v3785 = vadd.f32 %v2926, %v3492
    %v3786 = vadd.f32 %v2930, %v3496
    %v3787 = vadd.f32 %v2932, %v3498
    %v3788 = vadd.f32 %v2934, %v3500
    %v3789 = vadd.f32 %v2936, %v3502
    %v3790 = vadd.f32 %v2940, %v3506
    %v3791 = vadd.f32 %v2942, %v3508
    %v3792 = vadd.f32 %v2944, %v3510
    %v3793 = vadd.f32 %v2946, %v3512
    %v3794 = vadd.f32 %v2950, %v3516
    %v3795 = vadd.f32 %v2952, %v3518
    %v3796 = vadd.f32 %v2954, %v3520
    %v3797 = vadd.f32 %v2956, %v3522
    %v3798 = vadd.f32 %v2960, %v3526
    %v3799 = vadd.f32 %v2962, %v3528
    %v3800 = vadd.f32 %v2964, %v3530
    %v3801 = vadd.f32 %v2966, %v3532
    %v3802 = vadd.f32 %v2970, %v3536
    %v3803 = vadd.f32 %v2972, %v3538
    %v3804 = vadd.f32 %v2974, %v3540
    %v3805 = vadd.f32 %v2976, %v3542
    %v3806 = vadd.f32 %v2980, %v3546
    %v3807 = vadd.f32 %v2982, %v3548
    %v3808 = vadd.f32 %v2984, %v3550
    %v3809 = vadd.f32 %v2986, %v3552
    %v3810 = vadd.f32 %v2990, %v3556
    %v3811 = vadd.f32 %v2992, %v3558
    %v3812 = vadd.f32 %v2994, %v3560
    %v3813 = vadd.f32 %v2996, %v3562
    %v3814 = vadd.f32 %v3000, %v3566
    %v3815 = vadd.f32 %v3002, %v3568
    %v3816 = vadd.f32 %v3004, %v3570
    %v3817 = vadd.f32 %v3006, %v3572
    %v3818 = vadd.f32 %v3010, %v3576
    %v3819 = vadd.f32 %v3012, %v3578
    %v3820 = vadd.f32 %v3014, %v3580
    %v3821 = vadd.f32 %v3016, %v3582
    %v3822 = vadd.f32 %v3020, %v3586
    %v3823 = vadd.f32 %v3022, %v3588
    %v3824 = vadd.f32 %v3024, %v3590
    %v3825 = vadd.f32 %v3026, %v3592
    %v3826 = vadd.f32 %v3030, %v3596
    %v3827 = vadd.f32 %v3032, %v3598
    %v3828 = vadd.f32 %v3034, %v3600
    %v3829 = vadd.f32 %v3036, %v3602
    %v3830 = vadd.f32 %v3040, %v3606
    %v3831 = vadd.f32 %v3042, %v3608
    %v3832 = vadd.f32 %v3044, %v3610
    %v3833 = vadd.f32 %v3046, %v3612
    %v3834 = vadd.f32 %v3050, %v3616
    %v3835 = vadd.f32 %v3052, %v3618
    %v3836 = vadd.f32 %v3054, %v3620
    %v3837 = vadd.f32 %v3056, %v3622
    %v3838 = vadd.f32 %v3060, %v3626
    %v3839 = vadd.f32 %v3062, %v3628
    %v3840 = vadd.f32 %v3064, %v3630
    %v3841 = vadd.f32 %v3066, %v3632
    %v3842 = vadd.f32 %v3070, %v3636
    %v3843 = vadd.f32 %v3072, %v3638
    %v3844 = vadd.f32 %v3074, %v3640
    %v3845 = vadd.f32 %v3076, %v3642
    %v3846 = vadd.f32 %v3080, %v3646
    %v3847 = vadd.f32 %v3082, %v3648
    %v3848 = vadd.f32 %v3084, %v3650
    %v3849 = vadd.f32 %v3086, %v3652
    %v3850 = vadd.f32 %v3090, %v3656
    %v3851 = vadd.f32 %v3092, %v3658
    %v3852 = vadd.f32 %v3094, %v3660
    %v3853 = vadd.f32 %v3096, %v3662
    %v3854 = vadd.f32 %v3100, %v3666
    %v3855 = vadd.f32 %v3102, %v3668
    %v3856 = vadd.f32 %v3104, %v3670
    %v3857 = vadd.f32 %v3106, %v3672
    %v3858 = vadd.f32 %v3110, %v3676
    %v3859 = vadd.f32 %v3112, %v3678
    %v3860 = vadd.f32 %v3114, %v3680
    %v3861 = vadd.f32 %v3116, %v3682
    %v3862 = vadd.f32 %v3120, %v3686
    %v3863 = vadd.f32 %v3122, %v3688
    %v3864 = vadd.f32 %v3124, %v3690
    %v3865 = vadd.f32 %v3126, %v3692
    %v3866 = vadd.f32 %v3130, %v3696
    %v3867 = vadd.f32 %v3132, %v3698
    %v3868 = vadd.f32 %v3134, %v3700
    %v3869 = vadd.f32 %v3136, %v3702
    %v3870 = vadd.f32 %v3140, %v3706
    %v3871 = vadd.f32 %v3142, %v3708
    %v3872 = vadd.f32 %v3144, %v3710
    %v3873 = vadd.f32 %v3146, %v3712
    %v3874 = vadd.f32 %v3150, %v3716
    %v3875 = vadd.f32 %v3152, %v3718
    %v3876 = vadd.f32 %v3154, %v3720
    %v3877 = vadd.f32 %v3156, %v3722
    %v3878 = vadd.f32 %v3160, %v3726
    %v3879 = vadd.f32 %v3162, %v3728
    %v3880 = vadd.f32 %v3164, %v3730
    %v3881 = vadd.f32 %v3166, %v3732
    %v3882 = vadd.f32 %v3170, %v3736
    %v3883 = vadd.f32 %v3172, %v3738
    %v3884 = vadd.f32 %v3174, %v3740
    %v3885 = vadd.f32 %v3176, %v3742
    %v3886 = vadd.f32 %v3180, %v3746
    %v3887 = vadd.f32 %v3182, %v3748
    %v3888 = vadd.f32 %v3184, %v3750
    %v3889 = vadd.f32 %v3186, %v3752
    %v3890 = vld [vmem:[%s4] sm:$0x3]
    %v3892 = vlaneseq
    %v3893 = vshrl.u32 %v3892, 7
    %v3894 = vsub.s32 0, %v3893
    %v3895 = vrot.slane %v3890, %v3894
    %v3896 = vlaneseq
    %v3897 = vshrl.u32 %v3896, 7
    %v3898 = vsub.s32 1, %v3897
    %v3899 = vrot.slane %v3890, %v3898
    %v3902 = vadd.f32 %v3754, %v3895
    %v3903 = vadd.f32 %v3755, %v3899
    %v3904 = vadd.f32 %v3756, %v3895
    %v3905 = vadd.f32 %v3757, %v3899
    %v3906 = vadd.f32 %v3758, %v3895
    %v3907 = vadd.f32 %v3759, %v3899
    %v3908 = vadd.f32 %v3760, %v3895
    %v3909 = vadd.f32 %v3761, %v3899
    %v3910 = vadd.f32 %v3762, %v3895
    %v3911 = vadd.f32 %v3763, %v3899
    %v3912 = vadd.f32 %v3764, %v3895
    %v3913 = vadd.f32 %v3765, %v3899
    %v3914 = vadd.f32 %v3766, %v3895
    %v3915 = vadd.f32 %v3767, %v3899
    %v3916 = vadd.f32 %v3768, %v3895
    %v3917 = vadd.f32 %v3769, %v3899
    %v3918 = vadd.f32 %v3770, %v3895
    %v3919 = vadd.f32 %v3771, %v3899
    %v3920 = vadd.f32 %v3772, %v3895
    %v3921 = vadd.f32 %v3773, %v3899
    %v3922 = vadd.f32 %v3774, %v3895
    %v3923 = vadd.f32 %v3775, %v3899
    %v3924 = vadd.f32 %v3776, %v3895
    %v3925 = vadd.f32 %v3777, %v3899
    %v3926 = vadd.f32 %v3778, %v3895
    %v3927 = vadd.f32 %v3779, %v3899
    %v3928 = vadd.f32 %v3780, %v3895
    %v3929 = vadd.f32 %v3781, %v3899
    %v3930 = vadd.f32 %v3782, %v3895
    %v3931 = vadd.f32 %v3783, %v3899
    %v3932 = vadd.f32 %v3784, %v3895
    %v3933 = vadd.f32 %v3785, %v3899
    %v3934 = vadd.f32 %v3786, %v3895
    %v3935 = vadd.f32 %v3787, %v3899
    %v3936 = vadd.f32 %v3788, %v3895
    %v3937 = vadd.f32 %v3789, %v3899
    %v3938 = vadd.f32 %v3790, %v3895
    %v3939 = vadd.f32 %v3791, %v3899
    %v3940 = vadd.f32 %v3792, %v3895
    %v3941 = vadd.f32 %v3793, %v3899
    %v3942 = vadd.f32 %v3794, %v3895
    %v3943 = vadd.f32 %v3795, %v3899
    %v3944 = vadd.f32 %v3796, %v3895
    %v3945 = vadd.f32 %v3797, %v3899
    %v3946 = vadd.f32 %v3798, %v3895
    %v3947 = vadd.f32 %v3799, %v3899
    %v3948 = vadd.f32 %v3800, %v3895
    %v3949 = vadd.f32 %v3801, %v3899
    %v3950 = vadd.f32 %v3802, %v3895
    %v3951 = vadd.f32 %v3803, %v3899
    %v3952 = vadd.f32 %v3804, %v3895
    %v3953 = vadd.f32 %v3805, %v3899
    %v3954 = vadd.f32 %v3806, %v3895
    %v3955 = vadd.f32 %v3807, %v3899
    %v3956 = vadd.f32 %v3808, %v3895
    %v3957 = vadd.f32 %v3809, %v3899
    %v3958 = vadd.f32 %v3810, %v3895
    %v3959 = vadd.f32 %v3811, %v3899
    %v3960 = vadd.f32 %v3812, %v3895
    %v3961 = vadd.f32 %v3813, %v3899
    %v3962 = vadd.f32 %v3814, %v3895
    %v3963 = vadd.f32 %v3815, %v3899
    %v3964 = vadd.f32 %v3816, %v3895
    %v3965 = vadd.f32 %v3817, %v3899
    %v3966 = vadd.f32 %v3818, %v3895
    %v3967 = vadd.f32 %v3819, %v3899
    %v3968 = vadd.f32 %v3820, %v3895
    %v3969 = vadd.f32 %v3821, %v3899
    %v3970 = vadd.f32 %v3822, %v3895
    %v3971 = vadd.f32 %v3823, %v3899
    %v3972 = vadd.f32 %v3824, %v3895
    %v3973 = vadd.f32 %v3825, %v3899
    %v3974 = vadd.f32 %v3826, %v3895
    %v3975 = vadd.f32 %v3827, %v3899
    %v3976 = vadd.f32 %v3828, %v3895
    %v3977 = vadd.f32 %v3829, %v3899
    %v3978 = vadd.f32 %v3830, %v3895
    %v3979 = vadd.f32 %v3831, %v3899
    %v3980 = vadd.f32 %v3832, %v3895
    %v3981 = vadd.f32 %v3833, %v3899
    %v3982 = vadd.f32 %v3834, %v3895
    %v3983 = vadd.f32 %v3835, %v3899
    %v3984 = vadd.f32 %v3836, %v3895
    %v3985 = vadd.f32 %v3837, %v3899
    %v3986 = vadd.f32 %v3838, %v3895
    %v3987 = vadd.f32 %v3839, %v3899
    %v3988 = vadd.f32 %v3840, %v3895
    %v3989 = vadd.f32 %v3841, %v3899
    %v3990 = vadd.f32 %v3842, %v3895
    %v3991 = vadd.f32 %v3843, %v3899
    %v3992 = vadd.f32 %v3844, %v3895
    %v3993 = vadd.f32 %v3845, %v3899
    %v3994 = vadd.f32 %v3846, %v3895
    %v3995 = vadd.f32 %v3847, %v3899
    %v3996 = vadd.f32 %v3848, %v3895
    %v3997 = vadd.f32 %v3849, %v3899
    %v3998 = vadd.f32 %v3850, %v3895
    %v3999 = vadd.f32 %v3851, %v3899
    %v4000 = vadd.f32 %v3852, %v3895
    %v4001 = vadd.f32 %v3853, %v3899
    %v4002 = vadd.f32 %v3854, %v3895
    %v4003 = vadd.f32 %v3855, %v3899
    %v4004 = vadd.f32 %v3856, %v3895
    %v4005 = vadd.f32 %v3857, %v3899
    %v4006 = vadd.f32 %v3858, %v3895
    %v4007 = vadd.f32 %v3859, %v3899
    %v4008 = vadd.f32 %v3860, %v3895
    %v4009 = vadd.f32 %v3861, %v3899
    %v4010 = vadd.f32 %v3862, %v3895
    %v4011 = vadd.f32 %v3863, %v3899
    %v4012 = vadd.f32 %v3864, %v3895
    %v4013 = vadd.f32 %v3865, %v3899
    %v4014 = vadd.f32 %v3866, %v3895
    %v4015 = vadd.f32 %v3867, %v3899
    %v4016 = vadd.f32 %v3868, %v3895
    %v4017 = vadd.f32 %v3869, %v3899
    %v4018 = vadd.f32 %v3870, %v3895
    %v4019 = vadd.f32 %v3871, %v3899
    %v4020 = vadd.f32 %v3872, %v3895
    %v4021 = vadd.f32 %v3873, %v3899
    %v4022 = vadd.f32 %v3874, %v3895
    %v4023 = vadd.f32 %v3875, %v3899
    %v4024 = vadd.f32 %v3876, %v3895
    %v4025 = vadd.f32 %v3877, %v3899
    %v4026 = vadd.f32 %v3878, %v3895
    %v4027 = vadd.f32 %v3879, %v3899
    %v4028 = vadd.f32 %v3880, %v3895
    %v4029 = vadd.f32 %v3881, %v3899
    %v4030 = vadd.f32 %v3882, %v3895
    %v4031 = vadd.f32 %v3883, %v3899
    %v4032 = vadd.f32 %v3884, %v3895
    %v4033 = vadd.f32 %v3885, %v3899
    %v4034 = vadd.f32 %v3886, %v3895
    %v4035 = vadd.f32 %v3887, %v3899
    %v4036 = vadd.f32 %v3888, %v3895
    %v4037 = vadd.f32 %v3889, %v3899
    %v4038 = vmax.f32 %v3902, 0.0
    %v4039 = vmax.f32 %v3903, 0.0
    %v4040 = vmax.f32 %v3904, 0.0
    %v4041 = vmax.f32 %v3905, 0.0
    %v4042 = vmax.f32 %v3906, 0.0
    %v4043 = vmax.f32 %v3907, 0.0
    %v4044 = vmax.f32 %v3908, 0.0
    %v4045 = vmax.f32 %v3909, 0.0
    %v4046 = vmax.f32 %v3910, 0.0
    %v4047 = vmax.f32 %v3911, 0.0
    %v4048 = vmax.f32 %v3912, 0.0
    %v4049 = vmax.f32 %v3913, 0.0
    %v4050 = vmax.f32 %v3914, 0.0
    %v4051 = vmax.f32 %v3915, 0.0
    %v4052 = vmax.f32 %v3916, 0.0
    %v4053 = vmax.f32 %v3917, 0.0
    %v4054 = vmax.f32 %v3918, 0.0
    %v4055 = vmax.f32 %v3919, 0.0
    %v4056 = vmax.f32 %v3920, 0.0
    %v4057 = vmax.f32 %v3921, 0.0
    %v4058 = vmax.f32 %v3922, 0.0
    %v4059 = vmax.f32 %v3923, 0.0
    %v4060 = vmax.f32 %v3924, 0.0
    %v4061 = vmax.f32 %v3925, 0.0
    %v4062 = vmax.f32 %v3926, 0.0
    %v4063 = vmax.f32 %v3927, 0.0
    %v4064 = vmax.f32 %v3928, 0.0
    %v4065 = vmax.f32 %v3929, 0.0
    %v4066 = vmax.f32 %v3930, 0.0
    %v4067 = vmax.f32 %v3931, 0.0
    %v4068 = vmax.f32 %v3932, 0.0
    %v4069 = vmax.f32 %v3933, 0.0
    %v4070 = vmax.f32 %v3934, 0.0
    %v4071 = vmax.f32 %v3935, 0.0
    %v4072 = vmax.f32 %v3936, 0.0
    %v4073 = vmax.f32 %v3937, 0.0
    %v4074 = vmax.f32 %v3938, 0.0
    %v4075 = vmax.f32 %v3939, 0.0
    %v4076 = vmax.f32 %v3940, 0.0
    %v4077 = vmax.f32 %v3941, 0.0
    %v4078 = vmax.f32 %v3942, 0.0
    %v4079 = vmax.f32 %v3943, 0.0
    %v4080 = vmax.f32 %v3944, 0.0
    %v4081 = vmax.f32 %v3945, 0.0
    %v4082 = vmax.f32 %v3946, 0.0
    %v4083 = vmax.f32 %v3947, 0.0
    %v4084 = vmax.f32 %v3948, 0.0
    %v4085 = vmax.f32 %v3949, 0.0
    %v4086 = vmax.f32 %v3950, 0.0
    %v4087 = vmax.f32 %v3951, 0.0
    %v4088 = vmax.f32 %v3952, 0.0
    %v4089 = vmax.f32 %v3953, 0.0
    %v4090 = vmax.f32 %v3954, 0.0
    %v4091 = vmax.f32 %v3955, 0.0
    %v4092 = vmax.f32 %v3956, 0.0
    %v4093 = vmax.f32 %v3957, 0.0
    %v4094 = vmax.f32 %v3958, 0.0
    %v4095 = vmax.f32 %v3959, 0.0
    %v4096 = vmax.f32 %v3960, 0.0
    %v4097 = vmax.f32 %v3961, 0.0
    %v4098 = vmax.f32 %v3962, 0.0
    %v4099 = vmax.f32 %v3963, 0.0
    %v4100 = vmax.f32 %v3964, 0.0
    %v4101 = vmax.f32 %v3965, 0.0
    %v4102 = vmax.f32 %v3966, 0.0
    %v4103 = vmax.f32 %v3967, 0.0
    %v4104 = vmax.f32 %v3968, 0.0
    %v4105 = vmax.f32 %v3969, 0.0
    %v4106 = vmax.f32 %v3970, 0.0
    %v4107 = vmax.f32 %v3971, 0.0
    %v4108 = vmax.f32 %v3972, 0.0
    %v4109 = vmax.f32 %v3973, 0.0
    %v4110 = vmax.f32 %v3974, 0.0
    %v4111 = vmax.f32 %v3975, 0.0
    %v4112 = vmax.f32 %v3976, 0.0
    %v4113 = vmax.f32 %v3977, 0.0
    %v4114 = vmax.f32 %v3978, 0.0
    %v4115 = vmax.f32 %v3979, 0.0
    %v4116 = vmax.f32 %v3980, 0.0
    %v4117 = vmax.f32 %v3981, 0.0
    %v4118 = vmax.f32 %v3982, 0.0
    %v4119 = vmax.f32 %v3983, 0.0
    %v4120 = vmax.f32 %v3984, 0.0
    %v4121 = vmax.f32 %v3985, 0.0
    %v4122 = vmax.f32 %v3986, 0.0
    %v4123 = vmax.f32 %v3987, 0.0
    %v4124 = vmax.f32 %v3988, 0.0
    %v4125 = vmax.f32 %v3989, 0.0
    %v4126 = vmax.f32 %v3990, 0.0
    %v4127 = vmax.f32 %v3991, 0.0
    %v4128 = vmax.f32 %v3992, 0.0
    %v4129 = vmax.f32 %v3993, 0.0
    %v4130 = vmax.f32 %v3994, 0.0
    %v4131 = vmax.f32 %v3995, 0.0
    %v4132 = vmax.f32 %v3996, 0.0
    %v4133 = vmax.f32 %v3997, 0.0
    %v4134 = vmax.f32 %v3998, 0.0
    %v4135 = vmax.f32 %v3999, 0.0
    %v4136 = vmax.f32 %v4000, 0.0
    %v4137 = vmax.f32 %v4001, 0.0
    %v4138 = vmax.f32 %v4002, 0.0
    %v4139 = vmax.f32 %v4003, 0.0
    %v4140 = vmax.f32 %v4004, 0.0
    %v4141 = vmax.f32 %v4005, 0.0
    %v4142 = vmax.f32 %v4006, 0.0
    %v4143 = vmax.f32 %v4007, 0.0
    %v4144 = vmax.f32 %v4008, 0.0
    %v4145 = vmax.f32 %v4009, 0.0
    %v4146 = vmax.f32 %v4010, 0.0
    %v4147 = vmax.f32 %v4011, 0.0
    %v4148 = vmax.f32 %v4012, 0.0
    %v4149 = vmax.f32 %v4013, 0.0
    %v4150 = vmax.f32 %v4014, 0.0
    %v4151 = vmax.f32 %v4015, 0.0
    %v4152 = vmax.f32 %v4016, 0.0
    %v4153 = vmax.f32 %v4017, 0.0
    %v4154 = vmax.f32 %v4018, 0.0
    %v4155 = vmax.f32 %v4019, 0.0
    %v4156 = vmax.f32 %v4020, 0.0
    %v4157 = vmax.f32 %v4021, 0.0
    %v4158 = vmax.f32 %v4022, 0.0
    %v4159 = vmax.f32 %v4023, 0.0
    %v4160 = vmax.f32 %v4024, 0.0
    %v4161 = vmax.f32 %v4025, 0.0
    %v4162 = vmax.f32 %v4026, 0.0
    %v4163 = vmax.f32 %v4027, 0.0
    %v4164 = vmax.f32 %v4028, 0.0
    %v4165 = vmax.f32 %v4029, 0.0
    %v4166 = vmax.f32 %v4030, 0.0
    %v4167 = vmax.f32 %v4031, 0.0
    %v4168 = vmax.f32 %v4032, 0.0
    %v4169 = vmax.f32 %v4033, 0.0
    %v4170 = vmax.f32 %v4034, 0.0
    %v4171 = vmax.f32 %v4035, 0.0
    %v4172 = vmax.f32 %v4036, 0.0
    %v4173 = vmax.f32 %v4037, 0.0
    %4174 = vst [vmem:[#allocation2 + $0x20] sm:$0xff] %v4038
    %4175 = vst [vmem:[#allocation2 + $0x28] sm:$0xff] %v4039
    %4176 = vst [vmem:[#allocation2 + $0x30] sm:$0xff] %v4040
    %4177 = vst [vmem:[#allocation2 + $0x38] sm:$0xff] %v4041
    %4178 = vst [vmem:[#allocation2 + $0x40] sm:$0xff] %v4042
    %4179 = vst [vmem:[#allocation2 + $0x48] sm:$0xff] %v4043
    %4180 = vst [vmem:[#allocation2 + $0x50] sm:$0xff] %v4044
    %4181 = vst [vmem:[#allocation2 + $0x58] sm:$0xff] %v4045
    %4182 = vst [vmem:[#allocation2 + $0x60] sm:$0xff] %v4046
    %4183 = vst [vmem:[#allocation2 + $0x68] sm:$0xff] %v4047
    %4184 = vst [vmem:[#allocation2 + $0x70] sm:$0xff] %v4048
    %4185 = vst [vmem:[#allocation2 + $0x78] sm:$0xff] %v4049
    %4186 = vst [vmem:[#allocation2 + $0x80] sm:$0xff] %v4050
    %4187 = vst [vmem:[#allocation2 + $0x88] sm:$0xff] %v4051
    %4188 = vst [vmem:[#allocation2 + $0x90] sm:$0xff] %v4052
    %4189 = vst [vmem:[#allocation2 + $0x98] sm:$0xff] %v4053
    %4190 = vst [vmem:[#allocation2 + $0xa0] sm:$0xff] %v4054
    %4191 = vst [vmem:[#allocation2 + $0xa8] sm:$0xff] %v4055
    %4192 = vst [vmem:[#allocation2 + $0xb0] sm:$0xff] %v4056
    %4193 = vst [vmem:[#allocation2 + $0xb8] sm:$0xff] %v4057
    %4194 = vst [vmem:[#allocation2 + $0xc0] sm:$0xff] %v4058
    %4195 = vst [vmem:[#allocation2 + $0xc8] sm:$0xff] %v4059
    %4196 = vst [vmem:[#allocation2 + $0xd0] sm:$0xff] %v4060
    %4197 = vst [vmem:[#allocation2 + $0xd8] sm:$0xff] %v4061
    %4198 = vst [vmem:[#allocation2 + $0xe0] sm:$0xff] %v4062
    %4199 = vst [vmem:[#allocation2 + $0xe8] sm:$0xff] %v4063
    %4200 = vst [vmem:[#allocation2 + $0xf0] sm:$0xff] %v4064
    %4201 = vst [vmem:[#allocation2 + $0xf8] sm:$0xff] %v4065
    %4202 = vst [vmem:[#allocation2 + $0x100] sm:$0xff] %v4066
    %4203 = vst [vmem:[#allocation2 + $0x108] sm:$0xff] %v4067
    %4204 = vst [vmem:[#allocation2 + $0x110] sm:$0xff] %v4068
    %4205 = vst [vmem:[#allocation2 + $0x118] sm:$0xff] %v4069
    %4206 = vst [vmem:[#allocation2 + $0x120] sm:$0xff] %v4070
    %4207 = vst [vmem:[#allocation2 + $0x128] sm:$0xff] %v4071
    %4208 = vst [vmem:[#allocation2 + $0x130] sm:$0xff] %v4072
    %4209 = vst [vmem:[#allocation2 + $0x138] sm:$0xff] %v4073
    %4210 = vst [vmem:[#allocation2 + $0x140] sm:$0xff] %v4074
    %4211 = vst [vmem:[#allocation2 + $0x148] sm:$0xff] %v4075
    %4212 = vst [vmem:[#allocation2 + $0x150] sm:$0xff] %v4076
    %4213 = vst [vmem:[#allocation2 + $0x158] sm:$0xff] %v4077
    %4214 = vst [vmem:[#allocation2 + $0x160] sm:$0xff] %v4078
    %4215 = vst [vmem:[#allocation2 + $0x168] sm:$0xff] %v4079
    %4216 = vst [vmem:[#allocation2 + $0x170] sm:$0xff] %v4080
    %4217 = vst [vmem:[#allocation2 + $0x178] sm:$0xff] %v4081
    %4218 = vst [vmem:[#allocation2 + $0x180] sm:$0xff] %v4082
    %4219 = vst [vmem:[#allocation2 + $0x188] sm:$0xff] %v4083
    %4220 = vst [vmem:[#allocation2 + $0x190] sm:$0xff] %v4084
    %4221 = vst [vmem:[#allocation2 + $0x198] sm:$0xff] %v4085
    %4222 = vst [vmem:[#allocation2 + $0x1a0] sm:$0xff] %v4086
    %4223 = vst [vmem:[#allocation2 + $0x1a8] sm:$0xff] %v4087
    %4224 = vst [vmem:[#allocation2 + $0x1b0] sm:$0xff] %v4088
    %4225 = vst [vmem:[#allocation2 + $0x1b8] sm:$0xff] %v4089
    %4226 = vst [vmem:[#allocation2 + $0x1c0] sm:$0xff] %v4090
    %4227 = vst [vmem:[#allocation2 + $0x1c8] sm:$0xff] %v4091
    %4228 = vst [vmem:[#allocation2 + $0x1d0] sm:$0xff] %v4092
    %4229 = vst [vmem:[#allocation2 + $0x1d8] sm:$0xff] %v4093
    %4230 = vst [vmem:[#allocation2 + $0x1e0] sm:$0xff] %v4094
    %4231 = vst [vmem:[#allocation2 + $0x1e8] sm:$0xff] %v4095
    %4232 = vst [vmem:[#allocation2 + $0x1f0] sm:$0xff] %v4096
    %4233 = vst [vmem:[#allocation2 + $0x1f8] sm:$0xff] %v4097
    %4234 = vst [vmem:[#allocation2 + $0x200] sm:$0xff] %v4098
    %4235 = vst [vmem:[#allocation2 + $0x208] sm:$0xff] %v4099
    %4236 = vst [vmem:[#allocation2 + $0x210] sm:$0xff] %v4100
    %4237 = vst [vmem:[#allocation2 + $0x218] sm:$0xff] %v4101
    %4238 = vst [vmem:[#allocation2 + $0x220] sm:$0xff] %v4102
    %4239 = vst [vmem:[#allocation2 + $0x228] sm:$0xff] %v4103
    %4240 = vst [vmem:[#allocation2 + $0x230] sm:$0xff] %v4104
    %4241 = vst [vmem:[#allocation2 + $0x238] sm:$0xff] %v4105
    %4242 = vst [vmem:[#allocation2 + $0x240] sm:$0xff] %v4106
    %4243 = vst [vmem:[#allocation2 + $0x248] sm:$0xff] %v4107
    %4244 = vst [vmem:[#allocation2 + $0x250] sm:$0xff] %v4108
    %4245 = vst [vmem:[#allocation2 + $0x258] sm:$0xff] %v4109
    %4246 = vst [vmem:[#allocation2 + $0x260] sm:$0xff] %v4110
    %4247 = vst [vmem:[#allocation2 + $0x268] sm:$0xff] %v4111
    %4248 = vst [vmem:[#allocation2 + $0x270] sm:$0xff] %v4112
    %4249 = vst [vmem:[#allocation2 + $0x278] sm:$0xff] %v4113
    %4250 = vst [vmem:[#allocation2 + $0x280] sm:$0xff] %v4114
    %4251 = vst [vmem:[#allocation2 + $0x288] sm:$0xff] %v4115
    %4252 = vst [vmem:[#allocation2 + $0x290] sm:$0xff] %v4116
    %4253 = vst [vmem:[#allocation2 + $0x298] sm:$0xff] %v4117
    %4254 = vst [vmem:[#allocation2 + $0x2a0] sm:$0xff] %v4118
    %4255 = vst [vmem:[#allocation2 + $0x2a8] sm:$0xff] %v4119
    %4256 = vst [vmem:[#allocation2 + $0x2b0] sm:$0xff] %v4120
    %4257 = vst [vmem:[#allocation2 + $0x2b8] sm:$0xff] %v4121
    %4258 = vst [vmem:[#allocation2 + $0x2c0] sm:$0xff] %v4122
    %4259 = vst [vmem:[#allocation2 + $0x2c8] sm:$0xff] %v4123
    %4260 = vst [vmem:[#allocation2 + $0x2d0] sm:$0xff] %v4124
    %4261 = vst [vmem:[#allocation2 + $0x2d8] sm:$0xff] %v4125
    %4262 = vst [vmem:[#allocation2 + $0x2e0] sm:$0xff] %v4126
    %4263 = vst [vmem:[#allocation2 + $0x2e8] sm:$0xff] %v4127
    %4264 = vst [vmem:[#allocation2 + $0x2f0] sm:$0xff] %v4128
    %4265 = vst [vmem:[#allocation2 + $0x2f8] sm:$0xff] %v4129
    %4266 = vst [vmem:[#allocation2 + $0x300] sm:$0xff] %v4130
    %4267 = vst [vmem:[#allocation2 + $0x308] sm:$0xff] %v4131
    %4268 = vst [vmem:[#allocation2 + $0x310] sm:$0xff] %v4132
    %4269 = vst [vmem:[#allocation2 + $0x318] sm:$0xff] %v4133
    %4270 = vst [vmem:[#allocation2 + $0x320] sm:$0xff] %v4134
    %4271 = vst [vmem:[#allocation2 + $0x328] sm:$0xff] %v4135
    %4272 = vst [vmem:[#allocation2 + $0x330] sm:$0xff] %v4136
    %4273 = vst [vmem:[#allocation2 + $0x338] sm:$0xff] %v4137
    %4274 = vst [vmem:[#allocation2 + $0x340] sm:$0xff] %v4138
    %4275 = vst [vmem:[#allocation2 + $0x348] sm:$0xff] %v4139
    %4276 = vst [vmem:[#allocation2 + $0x350] sm:$0xff] %v4140
    %4277 = vst [vmem:[#allocation2 + $0x358] sm:$0xff] %v4141
    %4278 = vst [vmem:[#allocation2 + $0x360] sm:$0xff] %v4142
    %4279 = vst [vmem:[#allocation2 + $0x368] sm:$0xff] %v4143
    %4280 = vst [vmem:[#allocation2 + $0x370] sm:$0xff] %v4144
    %4281 = vst [vmem:[#allocation2 + $0x378] sm:$0xff] %v4145
    %4282 = vst [vmem:[#allocation2 + $0x380] sm:$0xff] %v4146
    %4283 = vst [vmem:[#allocation2 + $0x388] sm:$0xff] %v4147
    %4284 = vst [vmem:[#allocation2 + $0x390] sm:$0xff] %v4148
    %4285 = vst [vmem:[#allocation2 + $0x398] sm:$0xff] %v4149
    %4286 = vst [vmem:[#allocation2 + $0x3a0] sm:$0xff] %v4150
    %4287 = vst [vmem:[#allocation2 + $0x3a8] sm:$0xff] %v4151
    %4288 = vst [vmem:[#allocation2 + $0x3b0] sm:$0xff] %v4152
    %4289 = vst [vmem:[#allocation2 + $0x3b8] sm:$0xff] %v4153
    %4290 = vst [vmem:[#allocation2 + $0x3c0] sm:$0xff] %v4154
    %4291 = vst [vmem:[#allocation2 + $0x3c8] sm:$0xff] %v4155
    %4292 = vst [vmem:[#allocation2 + $0x3d0] sm:$0xff] %v4156
    %4293 = vst [vmem:[#allocation2 + $0x3d8] sm:$0xff] %v4157
    %4294 = vst [vmem:[#allocation2 + $0x3e0] sm:$0xff] %v4158
    %4295 = vst [vmem:[#allocation2 + $0x3e8] sm:$0xff] %v4159
    %4296 = vst [vmem:[#allocation2 + $0x3f0] sm:$0xff] %v4160
    %4297 = vst [vmem:[#allocation2 + $0x3f8] sm:$0xff] %v4161
    %4298 = vst [vmem:[#allocation2 + $0x400] sm:$0xff] %v4162
    %4299 = vst [vmem:[#allocation2 + $0x408] sm:$0xff] %v4163
    %4300 = vst [vmem:[#allocation2 + $0x410] sm:$0xff] %v4164
    %4301 = vst [vmem:[#allocation2 + $0x418] sm:$0xff] %v4165
    %4302 = vst [vmem:[#allocation2 + $0x420] sm:$0xff] %v4166
    %4303 = vst [vmem:[#allocation2 + $0x428] sm:$0xff] %v4167
    %4304 = vst [vmem:[#allocation2 + $0x430] sm:$0xff] %v4168
    %4305 = vst [vmem:[#allocation2 + $0x438] sm:$0xff] %v4169
    %4306 = vst [vmem:[#allocation2 + $0x440] sm:$0xff] %v4170
    %4307 = vst [vmem:[#allocation2 + $0x448] sm:$0xff] %v4171
    %4308 = vst [vmem:[#allocation2 + $0x450] sm:$0xff] %v4172
    %4309 = vst [vmem:[#allocation2 + $0x458] sm:$0xff] %v4173
    %v4310 = vld [vmem:[#allocation2] sm:$0xff]
    %v4311 = vld [vmem:[#allocation2 + $0x8] sm:$0xff]
    %v4312 = vld [vmem:[#allocation2 + $0x10] sm:$0xff]
    %v4313 = vld [vmem:[#allocation2 + $0x18] sm:$0xff]
    %v4314 = vld [vmem:[#allocation2 + $0x20] sm:$0xff]
    %v4315 = vld [vmem:[#allocation2 + $0x28] sm:$0xff]
    %v4316 = vld [vmem:[#allocation2 + $0x30] sm:$0xff]
    %v4317 = vld [vmem:[#allocation2 + $0x38] sm:$0xff]
    %v4318 = vld [vmem:[#allocation2 + $0x40] sm:$0xff]
    %v4319 = vld [vmem:[#allocation2 + $0x48] sm:$0xff]
    %v4320 = vld [vmem:[#allocation2 + $0x50] sm:$0xff]
    %v4321 = vld [vmem:[#allocation2 + $0x58] sm:$0xff]
    %v4322 = vld [vmem:[#allocation2 + $0x60] sm:$0xff]
    %v4323 = vld [vmem:[#allocation2 + $0x68] sm:$0xff]
    %v4324 = vld [vmem:[#allocation2 + $0x70] sm:$0xff]
    %v4325 = vld [vmem:[#allocation2 + $0x78] sm:$0xff]
    %v4326 = vld [vmem:[#allocation2 + $0x80] sm:$0xff]
    %v4327 = vld [vmem:[#allocation2 + $0x88] sm:$0xff]
    %v4328 = vld [vmem:[#allocation2 + $0x90] sm:$0xff]
    %v4329 = vld [vmem:[#allocation2 + $0x98] sm:$0xff]
    %v4330 = vld [vmem:[#allocation2 + $0xa0] sm:$0xff]
    %v4331 = vld [vmem:[#allocation2 + $0xa8] sm:$0xff]
    %v4332 = vld [vmem:[#allocation2 + $0xb0] sm:$0xff]
    %v4333 = vld [vmem:[#allocation2 + $0xb8] sm:$0xff]
    %v4334 = vld [vmem:[#allocation2 + $0xc0] sm:$0xff]
    %v4335 = vld [vmem:[#allocation2 + $0xc8] sm:$0xff]
    %v4336 = vld [vmem:[#allocation2 + $0xd0] sm:$0xff]
    %v4337 = vld [vmem:[#allocation2 + $0xd8] sm:$0xff]
    %v4338 = vld [vmem:[#allocation2 + $0xe0] sm:$0xff]
    %v4339 = vld [vmem:[#allocation2 + $0xe8] sm:$0xff]
    %v4340 = vld [vmem:[#allocation2 + $0xf0] sm:$0xff]
    %v4341 = vld [vmem:[#allocation2 + $0xf8] sm:$0xff]
    %v4342 = vld [vmem:[#allocation2 + $0x100] sm:$0xff]
    %v4343 = vld [vmem:[#allocation2 + $0x108] sm:$0xff]
    %v4344 = vld [vmem:[#allocation2 + $0x110] sm:$0xff]
    %v4345 = vld [vmem:[#allocation2 + $0x118] sm:$0xff]
    %v4346 = vld [vmem:[#allocation2 + $0x120] sm:$0xff]
    %v4347 = vld [vmem:[#allocation2 + $0x128] sm:$0xff]
    %v4348 = vld [vmem:[#allocation2 + $0x130] sm:$0xff]
    %v4349 = vld [vmem:[#allocation2 + $0x138] sm:$0xff]
    %v4350 = vld [vmem:[#allocation2 + $0x140] sm:$0xff]
    %v4351 = vld [vmem:[#allocation2 + $0x148] sm:$0xff]
    %v4352 = vld [vmem:[#allocation2 + $0x150] sm:$0xff]
    %v4353 = vld [vmem:[#allocation2 + $0x158] sm:$0xff]
    %v4354 = vld [vmem:[#allocation2 + $0x160] sm:$0xff]
    %v4355 = vld [vmem:[#allocation2 + $0x168] sm:$0xff]
    %v4356 = vld [vmem:[#allocation2 + $0x170] sm:$0xff]
    %v4357 = vld [vmem:[#allocation2 + $0x178] sm:$0xff]
    %v4358 = vld [vmem:[#allocation2 + $0x180] sm:$0xff]
    %v4359 = vld [vmem:[#allocation2 + $0x188] sm:$0xff]
    %v4360 = vld [vmem:[#allocation2 + $0x190] sm:$0xff]
    %v4361 = vld [vmem:[#allocation2 + $0x198] sm:$0xff]
    %v4362 = vld [vmem:[#allocation2 + $0x1a0] sm:$0xff]
    %v4363 = vld [vmem:[#allocation2 + $0x1a8] sm:$0xff]
    %v4364 = vld [vmem:[#allocation2 + $0x1b0] sm:$0xff]
    %v4365 = vld [vmem:[#allocation2 + $0x1b8] sm:$0xff]
    %v4366 = vld [vmem:[#allocation2 + $0x1c0] sm:$0xff]
    %v4367 = vld [vmem:[#allocation2 + $0x1c8] sm:$0xff]
    %v4368 = vld [vmem:[#allocation2 + $0x1d0] sm:$0xff]
    %v4369 = vld [vmem:[#allocation2 + $0x1d8] sm:$0xff]
    %v4370 = vld [vmem:[#allocation2 + $0x1e0] sm:$0xff]
    %v4371 = vld [vmem:[#allocation2 + $0x1e8] sm:$0xff]
    %v4372 = vld [vmem:[#allocation2 + $0x1f0] sm:$0xff]
    %v4373 = vld [vmem:[#allocation2 + $0x1f8] sm:$0xff]
    %v4374 = vld [vmem:[#allocation2 + $0x200] sm:$0xff]
    %v4375 = vld [vmem:[#allocation2 + $0x208] sm:$0xff]
    %v4376 = vld [vmem:[#allocation2 + $0x210] sm:$0xff]
    %v4377 = vld [vmem:[#allocation2 + $0x218] sm:$0xff]
    %v4378 = vld [vmem:[#allocation2 + $0x220] sm:$0xff]
    %v4379 = vld [vmem:[#allocation2 + $0x228] sm:$0xff]
    %v4380 = vld [vmem:[#allocation2 + $0x230] sm:$0xff]
    %v4381 = vld [vmem:[#allocation2 + $0x238] sm:$0xff]
    %v4382 = vld [vmem:[#allocation2 + $0x240] sm:$0xff]
    %v4383 = vld [vmem:[#allocation2 + $0x248] sm:$0xff]
    %v4384 = vld [vmem:[#allocation2 + $0x250] sm:$0xff]
    %v4385 = vld [vmem:[#allocation2 + $0x258] sm:$0xff]
    %v4386 = vld [vmem:[#allocation2 + $0x260] sm:$0xff]
    %v4387 = vld [vmem:[#allocation2 + $0x268] sm:$0xff]
    %v4388 = vld [vmem:[#allocation2 + $0x270] sm:$0xff]
    %v4389 = vld [vmem:[#allocation2 + $0x278] sm:$0xff]
    %v4390 = vld [vmem:[#allocation2 + $0x280] sm:$0xff]
    %v4391 = vld [vmem:[#allocation2 + $0x288] sm:$0xff]
    %v4392 = vld [vmem:[#allocation2 + $0x290] sm:$0xff]
    %v4393 = vld [vmem:[#allocation2 + $0x298] sm:$0xff]
    %v4394 = vld [vmem:[#allocation2 + $0x2a0] sm:$0xff]
    %v4395 = vld [vmem:[#allocation2 + $0x2a8] sm:$0xff]
    %v4396 = vld [vmem:[#allocation2 + $0x2b0] sm:$0xff]
    %v4397 = vld [vmem:[#allocation2 + $0x2b8] sm:$0xff]
    %v4398 = vld [vmem:[#allocation2 + $0x2c0] sm:$0xff]
    %v4399 = vld [vmem:[#allocation2 + $0x2c8] sm:$0xff]
    %v4400 = vld [vmem:[#allocation2 + $0x2d0] sm:$0xff]
    %v4401 = vld [vmem:[#allocation2 + $0x2d8] sm:$0xff]
    %v4402 = vld [vmem:[#allocation2 + $0x2e0] sm:$0xff]
    %v4403 = vld [vmem:[#allocation2 + $0x2e8] sm:$0xff]
    %v4404 = vld [vmem:[#allocation2 + $0x2f0] sm:$0xff]
    %v4405 = vld [vmem:[#allocation2 + $0x2f8] sm:$0xff]
    %v4406 = vld [vmem:[#allocation2 + $0x300] sm:$0xff]
    %v4407 = vld [vmem:[#allocation2 + $0x308] sm:$0xff]
    %v4408 = vld [vmem:[#allocation2 + $0x310] sm:$0xff]
    %v4409 = vld [vmem:[#allocation2 + $0x318] sm:$0xff]
    %v4410 = vld [vmem:[#allocation2 + $0x320] sm:$0xff]
    %v4411 = vld [vmem:[#allocation2 + $0x328] sm:$0xff]
    %v4412 = vld [vmem:[#allocation2 + $0x330] sm:$0xff]
    %v4413 = vld [vmem:[#allocation2 + $0x338] sm:$0xff]
    %v4414 = vld [vmem:[#allocation2 + $0x340] sm:$0xff]
    %v4415 = vld [vmem:[#allocation2 + $0x348] sm:$0xff]
    %v4416 = vld [vmem:[#allocation2 + $0x350] sm:$0xff]
    %v4417 = vld [vmem:[#allocation2 + $0x358] sm:$0xff]
    %v4418 = vld [vmem:[#allocation2 + $0x360] sm:$0xff]
    %v4419 = vld [vmem:[#allocation2 + $0x368] sm:$0xff]
    %v4420 = vld [vmem:[#allocation2 + $0x370] sm:$0xff]
    %v4421 = vld [vmem:[#allocation2 + $0x378] sm:$0xff]
    %v4422 = vld [vmem:[#allocation2 + $0x380] sm:$0xff]
    %v4423 = vld [vmem:[#allocation2 + $0x388] sm:$0xff]
    %v4424 = vld [vmem:[#allocation2 + $0x390] sm:$0xff]
    %v4425 = vld [vmem:[#allocation2 + $0x398] sm:$0xff]
    %v4426 = vld [vmem:[#allocation2 + $0x3a0] sm:$0xff]
    %v4427 = vld [vmem:[#allocation2 + $0x3a8] sm:$0xff]
    %v4428 = vld [vmem:[#allocation2 + $0x3b0] sm:$0xff]
    %v4429 = vld [vmem:[#allocation2 + $0x3b8] sm:$0xff]
    %v4430 = vld [vmem:[#allocation2 + $0x3c0] sm:$0xff]
    %v4431 = vld [vmem:[#allocation2 + $0x3c8] sm:$0xff]
    %v4432 = vld [vmem:[#allocation2 + $0x3d0] sm:$0xff]
    %v4433 = vld [vmem:[#allocation2 + $0x3d8] sm:$0xff]
    %v4434 = vld [vmem:[#allocation2 + $0x3e0] sm:$0xff]
    %v4435 = vld [vmem:[#allocation2 + $0x3e8] sm:$0xff]
    %v4436 = vld [vmem:[#allocation2 + $0x3f0] sm:$0xff]
    %v4437 = vld [vmem:[#allocation2 + $0x3f8] sm:$0xff]
    %v4438 = vld [vmem:[#allocation2 + $0x400] sm:$0xff]
    %v4439 = vld [vmem:[#allocation2 + $0x408] sm:$0xff]
    %v4440 = vld [vmem:[#allocation2 + $0x410] sm:$0xff]
    %v4441 = vld [vmem:[#allocation2 + $0x418] sm:$0xff]
    %v4442 = vld [vmem:[#allocation2 + $0x420] sm:$0xff]
    %v4443 = vld [vmem:[#allocation2 + $0x428] sm:$0xff]
    %v4444 = vld [vmem:[#allocation2 + $0x430] sm:$0xff]
    %v4445 = vld [vmem:[#allocation2 + $0x438] sm:$0xff]
    %v4446 = vpack.c.bf16 %v4312, %v4310
    %v4447 = vpack.c.bf16 %v4313, %v4311
    %v4448 = vpack.c.bf16 %v4316, %v4314
    %v4449 = vpack.c.bf16 %v4317, %v4315
    %v4450 = vpack.c.bf16 %v4320, %v4318
    %v4451 = vpack.c.bf16 %v4321, %v4319
    %v4452 = vpack.c.bf16 %v4324, %v4322
    %v4453 = vpack.c.bf16 %v4325, %v4323
    %v4454 = vpack.c.bf16 %v4328, %v4326
    %v4455 = vpack.c.bf16 %v4329, %v4327
    %v4456 = vpack.c.bf16 %v4332, %v4330
    %v4457 = vpack.c.bf16 %v4333, %v4331
    %v4458 = vpack.c.bf16 %v4336, %v4334
    %v4459 = vpack.c.bf16 %v4337, %v4335
    %v4460 = vpack.c.bf16 %v4340, %v4338
    %v4461 = vpack.c.bf16 %v4341, %v4339
    %v4462 = vpack.c.bf16 %v4344, %v4342
    %v4463 = vpack.c.bf16 %v4345, %v4343
    %v4464 = vpack.c.bf16 %v4348, %v4346
    %v4465 = vpack.c.bf16 %v4349, %v4347
    %v4466 = vpack.c.bf16 %v4352, %v4350
    %v4467 = vpack.c.bf16 %v4353, %v4351
    %v4468 = vpack.c.bf16 %v4356, %v4354
    %v4469 = vpack.c.bf16 %v4357, %v4355
    %v4470 = vpack.c.bf16 %v4360, %v4358
    %v4471 = vpack.c.bf16 %v4361, %v4359
    %v4472 = vpack.c.bf16 %v4364, %v4362
    %v4473 = vpack.c.bf16 %v4365, %v4363
    %v4474 = vpack.c.bf16 %v4368, %v4366
    %v4475 = vpack.c.bf16 %v4369, %v4367
    %v4476 = vpack.c.bf16 %v4372, %v4370
    %v4477 = vpack.c.bf16 %v4373, %v4371
    %v4478 = vpack.c.bf16 %v4376, %v4374
    %v4479 = vpack.c.bf16 %v4377, %v4375
    %v4480 = vpack.c.bf16 %v4380, %v4378
    %v4481 = vpack.c.bf16 %v4381, %v4379
    %v4482 = vpack.c.bf16 %v4384, %v4382
    %v4483 = vpack.c.bf16 %v4385, %v4383
    %v4484 = vpack.c.bf16 %v4388, %v4386
    %v4485 = vpack.c.bf16 %v4389, %v4387
    %v4486 = vpack.c.bf16 %v4392, %v4390
    %v4487 = vpack.c.bf16 %v4393, %v4391
    %v4488 = vpack.c.bf16 %v4396, %v4394
    %v4489 = vpack.c.bf16 %v4397, %v4395
    %v4490 = vpack.c.bf16 %v4400, %v4398
    %v4491 = vpack.c.bf16 %v4401, %v4399
    %v4492 = vpack.c.bf16 %v4404, %v4402
    %v4493 = vpack.c.bf16 %v4405, %v4403
    %v4494 = vpack.c.bf16 %v4408, %v4406
    %v4495 = vpack.c.bf16 %v4409, %v4407
    %v4496 = vpack.c.bf16 %v4412, %v4410
    %v4497 = vpack.c.bf16 %v4413, %v4411
    %v4498 = vpack.c.bf16 %v4416, %v4414
    %v4499 = vpack.c.bf16 %v4417, %v4415
    %v4500 = vpack.c.bf16 %v4420, %v4418
    %v4501 = vpack.c.bf16 %v4421, %v4419
    %v4502 = vpack.c.bf16 %v4424, %v4422
    %v4503 = vpack.c.bf16 %v4425, %v4423
    %v4504 = vpack.c.bf16 %v4428, %v4426
    %v4505 = vpack.c.bf16 %v4429, %v4427
    %v4506 = vpack.c.bf16 %v4432, %v4430
    %v4507 = vpack.c.bf16 %v4433, %v4431
    %v4508 = vpack.c.bf16 %v4436, %v4434
    %v4509 = vpack.c.bf16 %v4437, %v4435
    %v4510 = vpack.c.bf16 %v4440, %v4438
    %v4511 = vpack.c.bf16 %v4441, %v4439
    %v4512 = vpack.c.bf16 %v4444, %v4442
    %v4513 = vpack.c.bf16 %v4445, %v4443
    %v4514 = vld [vmem:[#allocation2 + $0x440] sm:$0xff]
    %v4515 = vld [vmem:[#allocation2 + $0x448] sm:$0xff]
    %v4516 = vld [vmem:[#allocation2 + $0x450] sm:$0xff]
    %v4517 = vld [vmem:[#allocation2 + $0x458] sm:$0xff]
    %v4518 = vpack.c.bf16 %v4516, %v4514
    %v4519 = vpack.c.bf16 %v4517, %v4515
    %v4520 = vld [vmem:[#allocation2 + $0x40] sm:$0xff]
    %v4521 = vld [vmem:[#allocation2 + $0x48] sm:$0xff]
    %v4522 = vld [vmem:[#allocation2 + $0x50] sm:$0xff]
    %v4523 = vld [vmem:[#allocation2 + $0x58] sm:$0xff]
    %v4524 = vld [vmem:[#allocation2 + $0x60] sm:$0xff]
    %v4525 = vld [vmem:[#allocation2 + $0x68] sm:$0xff]
    %v4526 = vld [vmem:[#allocation2 + $0x70] sm:$0xff]
    %v4527 = vld [vmem:[#allocation2 + $0x78] sm:$0xff]
    %v4528 = vld [vmem:[#allocation2 + $0x80] sm:$0xff]
    %v4529 = vld [vmem:[#allocation2 + $0x88] sm:$0xff]
    %v4530 = vld [vmem:[#allocation2 + $0x90] sm:$0xff]
    %v4531 = vld [vmem:[#allocation2 + $0x98] sm:$0xff]
    %v4532 = vld [vmem:[#allocation2 + $0xa0] sm:$0xff]
    %v4533 = vld [vmem:[#allocation2 + $0xa8] sm:$0xff]
    %v4534 = vld [vmem:[#allocation2 + $0xb0] sm:$0xff]
    %v4535 = vld [vmem:[#allocation2 + $0xb8] sm:$0xff]
    %v4536 = vld [vmem:[#allocation2 + $0xc0] sm:$0xff]
    %v4537 = vld [vmem:[#allocation2 + $0xc8] sm:$0xff]
    %v4538 = vld [vmem:[#allocation2 + $0xd0] sm:$0xff]
    %v4539 = vld [vmem:[#allocation2 + $0xd8] sm:$0xff]
    %v4540 = vld [vmem:[#allocation2 + $0xe0] sm:$0xff]
    %v4541 = vld [vmem:[#allocation2 + $0xe8] sm:$0xff]
    %v4542 = vld [vmem:[#allocation2 + $0xf0] sm:$0xff]
    %v4543 = vld [vmem:[#allocation2 + $0xf8] sm:$0xff]
    %v4544 = vld [vmem:[#allocation2 + $0x100] sm:$0xff]
    %v4545 = vld [vmem:[#allocation2 + $0x108] sm:$0xff]
    %v4546 = vld [vmem:[#allocation2 + $0x110] sm:$0xff]
    %v4547 = vld [vmem:[#allocation2 + $0x118] sm:$0xff]
    %v4548 = vld [vmem:[#allocation2 + $0x120] sm:$0xff]
    %v4549 = vld [vmem:[#allocation2 + $0x128] sm:$0xff]
    %v4550 = vld [vmem:[#allocation2 + $0x130] sm:$0xff]
    %v4551 = vld [vmem:[#allocation2 + $0x138] sm:$0xff]
    %v4552 = vld [vmem:[#allocation2 + $0x140] sm:$0xff]
    %v4553 = vld [vmem:[#allocation2 + $0x148] sm:$0xff]
    %v4554 = vld [vmem:[#allocation2 + $0x150] sm:$0xff]
    %v4555 = vld [vmem:[#allocation2 + $0x158] sm:$0xff]
    %v4556 = vld [vmem:[#allocation2 + $0x160] sm:$0xff]
    %v4557 = vld [vmem:[#allocation2 + $0x168] sm:$0xff]
    %v4558 = vld [vmem:[#allocation2 + $0x170] sm:$0xff]
    %v4559 = vld [vmem:[#allocation2 + $0x178] sm:$0xff]
    %v4560 = vld [vmem:[#allocation2 + $0x180] sm:$0xff]
    %v4561 = vld [vmem:[#allocation2 + $0x188] sm:$0xff]
    %v4562 = vld [vmem:[#allocation2 + $0x190] sm:$0xff]
    %v4563 = vld [vmem:[#allocation2 + $0x198] sm:$0xff]
    %v4564 = vld [vmem:[#allocation2 + $0x1a0] sm:$0xff]
    %v4565 = vld [vmem:[#allocation2 + $0x1a8] sm:$0xff]
    %v4566 = vld [vmem:[#allocation2 + $0x1b0] sm:$0xff]
    %v4567 = vld [vmem:[#allocation2 + $0x1b8] sm:$0xff]
    %v4568 = vld [vmem:[#allocation2 + $0x1c0] sm:$0xff]
    %v4569 = vld [vmem:[#allocation2 + $0x1c8] sm:$0xff]
    %v4570 = vld [vmem:[#allocation2 + $0x1d0] sm:$0xff]
    %v4571 = vld [vmem:[#allocation2 + $0x1d8] sm:$0xff]
    %v4572 = vld [vmem:[#allocation2 + $0x1e0] sm:$0xff]
    %v4573 = vld [vmem:[#allocation2 + $0x1e8] sm:$0xff]
    %v4574 = vld [vmem:[#allocation2 + $0x1f0] sm:$0xff]
    %v4575 = vld [vmem:[#allocation2 + $0x1f8] sm:$0xff]
    %v4576 = vld [vmem:[#allocation2 + $0x200] sm:$0xff]
    %v4577 = vld [vmem:[#allocation2 + $0x208] sm:$0xff]
    %v4578 = vld [vmem:[#allocation2 + $0x210] sm:$0xff]
    %v4579 = vld [vmem:[#allocation2 + $0x218] sm:$0xff]
    %v4580 = vld [vmem:[#allocation2 + $0x220] sm:$0xff]
    %v4581 = vld [vmem:[#allocation2 + $0x228] sm:$0xff]
    %v4582 = vld [vmem:[#allocation2 + $0x230] sm:$0xff]
    %v4583 = vld [vmem:[#allocation2 + $0x238] sm:$0xff]
    %v4584 = vld [vmem:[#allocation2 + $0x240] sm:$0xff]
    %v4585 = vld [vmem:[#allocation2 + $0x248] sm:$0xff]
    %v4586 = vld [vmem:[#allocation2 + $0x250] sm:$0xff]
    %v4587 = vld [vmem:[#allocation2 + $0x258] sm:$0xff]
    %v4588 = vld [vmem:[#allocation2 + $0x260] sm:$0xff]
    %v4589 = vld [vmem:[#allocation2 + $0x268] sm:$0xff]
    %v4590 = vld [vmem:[#allocation2 + $0x270] sm:$0xff]
    %v4591 = vld [vmem:[#allocation2 + $0x278] sm:$0xff]
    %v4592 = vld [vmem:[#allocation2 + $0x280] sm:$0xff]
    %v4593 = vld [vmem:[#allocation2 + $0x288] sm:$0xff]
    %v4594 = vld [vmem:[#allocation2 + $0x290] sm:$0xff]
    %v4595 = vld [vmem:[#allocation2 + $0x298] sm:$0xff]
    %v4596 = vld [vmem:[#allocation2 + $0x2a0] sm:$0xff]
    %v4597 = vld [vmem:[#allocation2 + $0x2a8] sm:$0xff]
    %v4598 = vld [vmem:[#allocation2 + $0x2b0] sm:$0xff]
    %v4599 = vld [vmem:[#allocation2 + $0x2b8] sm:$0xff]
    %v4600 = vld [vmem:[#allocation2 + $0x2c0] sm:$0xff]
    %v4601 = vld [vmem:[#allocation2 + $0x2c8] sm:$0xff]
    %v4602 = vld [vmem:[#allocation2 + $0x2d0] sm:$0xff]
    %v4603 = vld [vmem:[#allocation2 + $0x2d8] sm:$0xff]
    %v4604 = vld [vmem:[#allocation2 + $0x2e0] sm:$0xff]
    %v4605 = vld [vmem:[#allocation2 + $0x2e8] sm:$0xff]
    %v4606 = vld [vmem:[#allocation2 + $0x2f0] sm:$0xff]
    %v4607 = vld [vmem:[#allocation2 + $0x2f8] sm:$0xff]
    %v4608 = vld [vmem:[#allocation2 + $0x300] sm:$0xff]
    %v4609 = vld [vmem:[#allocation2 + $0x308] sm:$0xff]
    %v4610 = vld [vmem:[#allocation2 + $0x310] sm:$0xff]
    %v4611 = vld [vmem:[#allocation2 + $0x318] sm:$0xff]
    %v4612 = vld [vmem:[#allocation2 + $0x320] sm:$0xff]
    %v4613 = vld [vmem:[#allocation2 + $0x328] sm:$0xff]
    %v4614 = vld [vmem:[#allocation2 + $0x330] sm:$0xff]
    %v4615 = vld [vmem:[#allocation2 + $0x338] sm:$0xff]
    %v4616 = vld [vmem:[#allocation2 + $0x340] sm:$0xff]
    %v4617 = vld [vmem:[#allocation2 + $0x348] sm:$0xff]
    %v4618 = vld [vmem:[#allocation2 + $0x350] sm:$0xff]
    %v4619 = vld [vmem:[#allocation2 + $0x358] sm:$0xff]
    %v4620 = vld [vmem:[#allocation2 + $0x360] sm:$0xff]
    %v4621 = vld [vmem:[#allocation2 + $0x368] sm:$0xff]
    %v4622 = vld [vmem:[#allocation2 + $0x370] sm:$0xff]
    %v4623 = vld [vmem:[#allocation2 + $0x378] sm:$0xff]
    %v4624 = vld [vmem:[#allocation2 + $0x380] sm:$0xff]
    %v4625 = vld [vmem:[#allocation2 + $0x388] sm:$0xff]
    %v4626 = vld [vmem:[#allocation2 + $0x390] sm:$0xff]
    %v4627 = vld [vmem:[#allocation2 + $0x398] sm:$0xff]
    %v4628 = vld [vmem:[#allocation2 + $0x3a0] sm:$0xff]
    %v4629 = vld [vmem:[#allocation2 + $0x3a8] sm:$0xff]
    %v4630 = vld [vmem:[#allocation2 + $0x3b0] sm:$0xff]
    %v4631 = vld [vmem:[#allocation2 + $0x3b8] sm:$0xff]
    %v4632 = vld [vmem:[#allocation2 + $0x3c0] sm:$0xff]
    %v4633 = vld [vmem:[#allocation2 + $0x3c8] sm:$0xff]
    %v4634 = vld [vmem:[#allocation2 + $0x3d0] sm:$0xff]
    %v4635 = vld [vmem:[#allocation2 + $0x3d8] sm:$0xff]
    %v4636 = vld [vmem:[#allocation2 + $0x3e0] sm:$0xff]
    %v4637 = vld [vmem:[#allocation2 + $0x3e8] sm:$0xff]
    %v4638 = vld [vmem:[#allocation2 + $0x3f0] sm:$0xff]
    %v4639 = vld [vmem:[#allocation2 + $0x3f8] sm:$0xff]
    %v4640 = vld [vmem:[#allocation2 + $0x400] sm:$0xff]
    %v4641 = vld [vmem:[#allocation2 + $0x408] sm:$0xff]
    %v4642 = vld [vmem:[#allocation2 + $0x410] sm:$0xff]
    %v4643 = vld [vmem:[#allocation2 + $0x418] sm:$0xff]
    %v4644 = vld [vmem:[#allocation2 + $0x420] sm:$0xff]
    %v4645 = vld [vmem:[#allocation2 + $0x428] sm:$0xff]
    %v4646 = vld [vmem:[#allocation2 + $0x430] sm:$0xff]
    %v4647 = vld [vmem:[#allocation2 + $0x438] sm:$0xff]
    %v4648 = vld [vmem:[#allocation2 + $0x440] sm:$0xff]
    %v4649 = vld [vmem:[#allocation2 + $0x448] sm:$0xff]
    %v4650 = vld [vmem:[#allocation2 + $0x450] sm:$0xff]
    %v4651 = vld [vmem:[#allocation2 + $0x458] sm:$0xff]
    %v4652 = vld [vmem:[#allocation2 + $0x460] sm:$0xff]
    %v4653 = vld [vmem:[#allocation2 + $0x468] sm:$0xff]
    %v4654 = vld [vmem:[#allocation2 + $0x470] sm:$0xff]
    %v4655 = vld [vmem:[#allocation2 + $0x478] sm:$0xff]
    %v4656 = vpack.c.bf16 %v4522, %v4520
    %v4657 = vpack.c.bf16 %v4523, %v4521
    %v4658 = vpack.c.bf16 %v4526, %v4524
    %v4659 = vpack.c.bf16 %v4527, %v4525
    %v4660 = vpack.c.bf16 %v4530, %v4528
    %v4661 = vpack.c.bf16 %v4531, %v4529
    %v4662 = vpack.c.bf16 %v4534, %v4532
    %v4663 = vpack.c.bf16 %v4535, %v4533
    %v4664 = vpack.c.bf16 %v4538, %v4536
    %v4665 = vpack.c.bf16 %v4539, %v4537
    %v4666 = vpack.c.bf16 %v4542, %v4540
    %v4667 = vpack.c.bf16 %v4543, %v4541
    %v4668 = vpack.c.bf16 %v4546, %v4544
    %v4669 = vpack.c.bf16 %v4547, %v4545
    %v4670 = vpack.c.bf16 %v4550, %v4548
    %v4671 = vpack.c.bf16 %v4551, %v4549
    %v4672 = vpack.c.bf16 %v4554, %v4552
    %v4673 = vpack.c.bf16 %v4555, %v4553
    %v4674 = vpack.c.bf16 %v4558, %v4556
    %v4675 = vpack.c.bf16 %v4559, %v4557
    %v4676 = vpack.c.bf16 %v4562, %v4560
    %v4677 = vpack.c.bf16 %v4563, %v4561
    %v4678 = vpack.c.bf16 %v4566, %v4564
    %v4679 = vpack.c.bf16 %v4567, %v4565
    %v4680 = vpack.c.bf16 %v4570, %v4568
    %v4681 = vpack.c.bf16 %v4571, %v4569
    %v4682 = vpack.c.bf16 %v4574, %v4572
    %v4683 = vpack.c.bf16 %v4575, %v4573
    %v4684 = vpack.c.bf16 %v4578, %v4576
    %v4685 = vpack.c.bf16 %v4579, %v4577
    %v4686 = vpack.c.bf16 %v4582, %v4580
    %v4687 = vpack.c.bf16 %v4583, %v4581
    %v4688 = vpack.c.bf16 %v4586, %v4584
    %v4689 = vpack.c.bf16 %v4587, %v4585
    %v4690 = vpack.c.bf16 %v4590, %v4588
    %v4691 = vpack.c.bf16 %v4591, %v4589
    %v4692 = vpack.c.bf16 %v4594, %v4592
    %v4693 = vpack.c.bf16 %v4595, %v4593
    %v4694 = vpack.c.bf16 %v4598, %v4596
    %v4695 = vpack.c.bf16 %v4599, %v4597
    %v4696 = vpack.c.bf16 %v4602, %v4600
    %v4697 = vpack.c.bf16 %v4603, %v4601
    %v4698 = vpack.c.bf16 %v4606, %v4604
    %v4699 = vpack.c.bf16 %v4607, %v4605
    %v4700 = vpack.c.bf16 %v4610, %v4608
    %v4701 = vpack.c.bf16 %v4611, %v4609
    %v4702 = vpack.c.bf16 %v4614, %v4612
    %v4703 = vpack.c.bf16 %v4615, %v4613
    %v4704 = vpack.c.bf16 %v4618, %v4616
    %v4705 = vpack.c.bf16 %v4619, %v4617
    %v4706 = vpack.c.bf16 %v4622, %v4620
    %v4707 = vpack.c.bf16 %v4623, %v4621
    %v4708 = vpack.c.bf16 %v4626, %v4624
    %v4709 = vpack.c.bf16 %v4627, %v4625
    %v4710 = vpack.c.bf16 %v4630, %v4628
    %v4711 = vpack.c.bf16 %v4631, %v4629
    %v4712 = vpack.c.bf16 %v4634, %v4632
    %v4713 = vpack.c.bf16 %v4635, %v4633
    %v4714 = vpack.c.bf16 %v4638, %v4636
    %v4715 = vpack.c.bf16 %v4639, %v4637
    %v4716 = vpack.c.bf16 %v4642, %v4640
    %v4717 = vpack.c.bf16 %v4643, %v4641
    %v4718 = vpack.c.bf16 %v4646, %v4644
    %v4719 = vpack.c.bf16 %v4647, %v4645
    %v4720 = vpack.c.bf16 %v4650, %v4648
    %v4721 = vpack.c.bf16 %v4651, %v4649
    %v4722 = vpack.c.bf16 %v4654, %v4652
    %v4723 = vpack.c.bf16 %v4655, %v4653
    %v4724 = vld [vmem:[%s3] sm:$0xff]
    %v4725 = vld [vmem:[%s3 + $0x8] sm:$0xff]
    %v4726 = vld [vmem:[%s3 + $0x10] sm:$0xff]
    %v4727 = vld [vmem:[%s3 + $0x18] sm:$0xff]
    %v4728 = vld [vmem:[%s3 + $0x20] sm:$0xff]
    %v4729 = vld [vmem:[%s3 + $0x28] sm:$0xff]
    %v4730 = vld [vmem:[%s3 + $0x30] sm:$0xff]
    %v4731 = vld [vmem:[%s3 + $0x38] sm:$0xff]
    %v4732 = vld [vmem:[%s3 + $0x40] sm:$0xff]
    %v4733 = vld [vmem:[%s3 + $0x48] sm:$0xff]
    %v4734 = vld [vmem:[%s3 + $0x50] sm:$0xff]
    %v4735 = vld [vmem:[%s3 + $0x58] sm:$0xff]
    %v4736 = vld [vmem:[%s3 + $0x60] sm:$0xff]
    %v4737 = vld [vmem:[%s3 + $0x68] sm:$0xff]
    %v4738 = vld [vmem:[%s3 + $0x70] sm:$0xff]
    %v4739 = vld [vmem:[%s3 + $0x78] sm:$0xff]
    %v4740 = vld [vmem:[%s3 + $0x80] sm:$0xff]
    %v4741 = vld [vmem:[%s3 + $0x88] sm:$0xff]
    %v4742 = vld [vmem:[%s3 + $0x90] sm:$0xff]
    %v4743 = vld [vmem:[%s3 + $0x98] sm:$0xff]
    %v4744 = vld [vmem:[%s3 + $0xa0] sm:$0xff]
    %v4745 = vld [vmem:[%s3 + $0xa8] sm:$0xff]
    %v4746 = vld [vmem:[%s3 + $0xb0] sm:$0xff]
    %v4747 = vld [vmem:[%s3 + $0xb8] sm:$0xff]
    %v4748 = vld [vmem:[%s3 + $0xc0] sm:$0xff]
    %v4749 = vld [vmem:[%s3 + $0xc8] sm:$0xff]
    %v4750 = vld [vmem:[%s3 + $0xd0] sm:$0xff]
    %v4751 = vld [vmem:[%s3 + $0xd8] sm:$0xff]
    %v4752 = vld [vmem:[%s3 + $0xe0] sm:$0xff]
    %v4753 = vld [vmem:[%s3 + $0xe8] sm:$0xff]
    %v4754 = vld [vmem:[%s3 + $0xf0] sm:$0xff]
    %v4755 = vld [vmem:[%s3 + $0xf8] sm:$0xff]
    %v4756 = vld [vmem:[%s2089] sm:$0xff]
    %v4757 = vld [vmem:[%s2089 + $0x8] sm:$0xff]
    %v4758 = vld [vmem:[%s2089 + $0x10] sm:$0xff]
    %v4759 = vld [vmem:[%s2089 + $0x18] sm:$0xff]
    %v4760 = vld [vmem:[%s2089 + $0x20] sm:$0xff]
    %v4761 = vld [vmem:[%s2089 + $0x28] sm:$0xff]
    %v4762 = vld [vmem:[%s2089 + $0x30] sm:$0xff]
    %v4763 = vld [vmem:[%s2089 + $0x38] sm:$0xff]
    %v4764 = vld [vmem:[%s2089 + $0x40] sm:$0xff]
    %v4765 = vld [vmem:[%s2089 + $0x48] sm:$0xff]
    %v4766 = vld [vmem:[%s2089 + $0x50] sm:$0xff]
    %v4767 = vld [vmem:[%s2089 + $0x58] sm:$0xff]
    %v4768 = vld [vmem:[%s2089 + $0x60] sm:$0xff]
    %v4769 = vld [vmem:[%s2089 + $0x68] sm:$0xff]
    %v4770 = vld [vmem:[%s2089 + $0x70] sm:$0xff]
    %v4771 = vld [vmem:[%s2089 + $0x78] sm:$0xff]
    %v4772 = vld [vmem:[%s2089 + $0x80] sm:$0xff]
    %v4773 = vld [vmem:[%s2089 + $0x88] sm:$0xff]
    %v4774 = vld [vmem:[%s2089 + $0x90] sm:$0xff]
    %v4775 = vld [vmem:[%s2089 + $0x98] sm:$0xff]
    %v4776 = vld [vmem:[%s2089 + $0xa0] sm:$0xff]
    %v4777 = vld [vmem:[%s2089 + $0xa8] sm:$0xff]
    %v4778 = vld [vmem:[%s2089 + $0xb0] sm:$0xff]
    %v4779 = vld [vmem:[%s2089 + $0xb8] sm:$0xff]
    %v4780 = vld [vmem:[%s2089 + $0xc0] sm:$0xff]
    %v4781 = vld [vmem:[%s2089 + $0xc8] sm:$0xff]
    %v4782 = vld [vmem:[%s2089 + $0xd0] sm:$0xff]
    %v4783 = vld [vmem:[%s2089 + $0xd8] sm:$0xff]
    %v4784 = vld [vmem:[%s2089 + $0xe0] sm:$0xff]
    %v4785 = vld [vmem:[%s2089 + $0xe8] sm:$0xff]
    %v4786 = vld [vmem:[%s2089 + $0xf0] sm:$0xff]
    %v4787 = vld [vmem:[%s2089 + $0xf8] sm:$0xff]
    %v4820 = vunpack.c.l.b16 %v4756
    %v4821 = vunpack.c.h.b16 %v4756
    %v4822 = vunpack.c.l.b16 %v4757
    %v4823 = vunpack.c.h.b16 %v4757
    %v4824 = vunpack.c.l.b16 %v4758
    %v4825 = vunpack.c.h.b16 %v4758
    %v4826 = vunpack.c.l.b16 %v4759
    %v4827 = vunpack.c.h.b16 %v4759
    %v4828 = vunpack.c.l.b16 %v4760
    %v4829 = vunpack.c.h.b16 %v4760
    %v4830 = vunpack.c.l.b16 %v4761
    %v4831 = vunpack.c.h.b16 %v4761
    %v4832 = vunpack.c.l.b16 %v4762
    %v4833 = vunpack.c.h.b16 %v4762
    %v4834 = vunpack.c.l.b16 %v4763
    %v4835 = vunpack.c.h.b16 %v4763
    %v4836 = vunpack.c.l.b16 %v4764
    %v4837 = vunpack.c.h.b16 %v4764
    %v4838 = vunpack.c.l.b16 %v4765
    %v4839 = vunpack.c.h.b16 %v4765
    %v4840 = vunpack.c.l.b16 %v4766
    %v4841 = vunpack.c.h.b16 %v4766
    %v4842 = vunpack.c.l.b16 %v4767
    %v4843 = vunpack.c.h.b16 %v4767
    %v4844 = vunpack.c.l.b16 %v4768
    %v4845 = vunpack.c.h.b16 %v4768
    %v4846 = vunpack.c.l.b16 %v4769
    %v4847 = vunpack.c.h.b16 %v4769
    %v4848 = vunpack.c.l.b16 %v4770
    %v4849 = vunpack.c.h.b16 %v4770
    %v4850 = vunpack.c.l.b16 %v4771
    %v4851 = vunpack.c.h.b16 %v4771
    %v4852 = vunpack.c.l.b16 %v4772
    %v4853 = vunpack.c.h.b16 %v4772
    %v4854 = vunpack.c.l.b16 %v4773
    %v4855 = vunpack.c.h.b16 %v4773
    %v4856 = vunpack.c.l.b16 %v4774
    %v4857 = vunpack.c.h.b16 %v4774
    %v4858 = vunpack.c.l.b16 %v4775
    %v4859 = vunpack.c.h.b16 %v4775
    %v4860 = vunpack.c.l.b16 %v4776
    %v4861 = vunpack.c.h.b16 %v4776
    %v4862 = vunpack.c.l.b16 %v4777
    %v4863 = vunpack.c.h.b16 %v4777
    %v4864 = vunpack.c.l.b16 %v4778
    %v4865 = vunpack.c.h.b16 %v4778
    %v4866 = vunpack.c.l.b16 %v4779
    %v4867 = vunpack.c.h.b16 %v4779
    %v4868 = vunpack.c.l.b16 %v4780
    %v4869 = vunpack.c.h.b16 %v4780
    %v4870 = vunpack.c.l.b16 %v4781
    %v4871 = vunpack.c.h.b16 %v4781
    %v4872 = vunpack.c.l.b16 %v4782
    %v4873 = vunpack.c.h.b16 %v4782
    %v4874 = vunpack.c.l.b16 %v4783
    %v4875 = vunpack.c.h.b16 %v4783
    %v4876 = vunpack.c.l.b16 %v4784
    %v4877 = vunpack.c.h.b16 %v4784
    %v4878 = vunpack.c.l.b16 %v4785
    %v4879 = vunpack.c.h.b16 %v4785
    %v4880 = vunpack.c.l.b16 %v4786
    %v4881 = vunpack.c.h.b16 %v4786
    %v4882 = vunpack.c.l.b16 %v4787
    %v4883 = vunpack.c.h.b16 %v4787
    %v4884 = vpack.c.b16 %v4822, %v4820
    %v4885 = vpack.c.b16 %v4823, %v4821
    %v4886 = vpack.c.b16 %v4826, %v4824
    %v4887 = vpack.c.b16 %v4827, %v4825
    %v4888 = vpack.c.b16 %v4830, %v4828
    %v4889 = vpack.c.b16 %v4831, %v4829
    %v4890 = vpack.c.b16 %v4834, %v4832
    %v4891 = vpack.c.b16 %v4835, %v4833
    %v4892 = vpack.c.b16 %v4838, %v4836
    %v4893 = vpack.c.b16 %v4839, %v4837
    %v4894 = vpack.c.b16 %v4842, %v4840
    %v4895 = vpack.c.b16 %v4843, %v4841
    %v4896 = vpack.c.b16 %v4846, %v4844
    %v4897 = vpack.c.b16 %v4847, %v4845
    %v4898 = vpack.c.b16 %v4850, %v4848
    %v4899 = vpack.c.b16 %v4851, %v4849
    %v4900 = vpack.c.b16 %v4854, %v4852
    %v4901 = vpack.c.b16 %v4855, %v4853
    %v4902 = vpack.c.b16 %v4858, %v4856
    %v4903 = vpack.c.b16 %v4859, %v4857
    %v4904 = vpack.c.b16 %v4862, %v4860
    %v4905 = vpack.c.b16 %v4863, %v4861
    %v4906 = vpack.c.b16 %v4866, %v4864
    %v4907 = vpack.c.b16 %v4867, %v4865
    %v4908 = vpack.c.b16 %v4870, %v4868
    %v4909 = vpack.c.b16 %v4871, %v4869
    %v4910 = vpack.c.b16 %v4874, %v4872
    %v4911 = vpack.c.b16 %v4875, %v4873
    %v4912 = vpack.c.b16 %v4878, %v4876
    %v4913 = vpack.c.b16 %v4879, %v4877
    %v4914 = vpack.c.b16 %v4882, %v4880
    %v4915 = vpack.c.b16 %v4883, %v4881
    %4948 = vmatprep.subr.bf16.mxu0 %v4885
    %4949 = vmatpush1.bf16.msra.mxu0 %v4884
    %4950 = vmatprep.subr.bf16.mxu0 %v4887
    %4951 = vmatpush1.bf16.msra.mxu0 %v4886
    %4952 = vmatprep.subr.bf16.mxu0 %v4889
    %4953 = vmatpush1.bf16.msra.mxu0 %v4888
    %4954 = vmatprep.subr.bf16.mxu0 %v4891
    %4955 = vmatpush1.bf16.msra.mxu0 %v4890
    %4956 = vmatprep.subr.bf16.mxu0 %v4893
    %4957 = vmatpush1.bf16.msra.mxu0 %v4892
    %4958 = vmatprep.subr.bf16.mxu0 %v4895
    %4959 = vmatpush1.bf16.msra.mxu0 %v4894
    %4960 = vmatprep.subr.bf16.mxu0 %v4897
    %4961 = vmatpush1.bf16.msra.mxu0 %v4896
    %4962 = vmatprep.subr.bf16.mxu0 %v4899
    %4963 = vmatpush1.bf16.msra.mxu0 %v4898
    %4964 = vmatprep.subr.bf16.mxu0 %v4901
    %4965 = vmatpush1.bf16.msra.mxu0 %v4900
    %4966 = vmatprep.subr.bf16.mxu0 %v4903
    %4967 = vmatpush1.bf16.msra.mxu0 %v4902
    %4968 = vmatprep.subr.bf16.mxu0 %v4905
    %4969 = vmatpush1.bf16.msra.mxu0 %v4904
    %4970 = vmatprep.subr.bf16.mxu0 %v4907
    %4971 = vmatpush1.bf16.msra.mxu0 %v4906
    %4972 = vmatprep.subr.bf16.mxu0 %v4909
    %4973 = vmatpush1.bf16.msra.mxu0 %v4908
    %4974 = vmatprep.subr.bf16.mxu0 %v4911
    %4975 = vmatpush1.bf16.msra.mxu0 %v4910
    %4976 = vmatprep.subr.bf16.mxu0 %v4913
    %4977 = vmatpush1.bf16.msra.mxu0 %v4912
    %4978 = vmatprep.subr.bf16.mxu0 %v4915
    %4979 = vmatpush1.bf16.msra.mxu0 %v4914
    %4980 = vmatprep.mubr.bf16.mxu0 %v4449
    %4981 = vmatmul.mubr.bf16.gmra.mrb[0].mxu0 %v4448
    %v4982 = vpop.f32.mrb[0].mxu0
    %v4983 = vadd.f32 0.0, %v4982
    %v4984 = vpop.f32.mrb[0].mxu0
    %v4985 = vadd.f32 0.0, %v4984
    %v4986 = vpop.f32.mrb[0].mxu0
    %v4987 = vadd.f32 0.0, %v4986
    %v4988 = vpop.f32.mrb[0].mxu0
    %v4989 = vadd.f32 0.0, %v4988
    %4990 = vmatprep.mubr.bf16.mxu0 %v4451
    %4991 = vmatmul.mubr.bf16.gmra.mrb[0].mxu0 %v4450
    %v4992 = vpop.f32.mrb[0].mxu0
    %v4993 = vadd.f32 0.0, %v4992
    %v4994 = vpop.f32.mrb[0].mxu0
    %v4995 = vadd.f32 0.0, %v4994
    %v4996 = vpop.f32.mrb[0].mxu0
    %v4997 = vadd.f32 0.0, %v4996
    %v4998 = vpop.f32.mrb[0].mxu0
    %v4999 = vadd.f32 0.0, %v4998
    %5000 = vmatprep.mubr.bf16.mxu0 %v4453
    %5001 = vmatmul.mubr.bf16.gmra.mrb[0].mxu0 %v4452
    %v5002 = vpop.f32.mrb[0].mxu0
    %v5003 = vadd.f32 0.0, %v5002
    %v5004 = vpop.f32.mrb[0].mxu0
    %v5005 = vadd.f32 0.0, %v5004
    %v5006 = vpop.f32.mrb[0].mxu0
    %v5007 = vadd.f32 0.0, %v5006
    %v5008 = vpop.f32.mrb[0].mxu0
    %v5009 = vadd.f32 0.0, %v5008
    %5010 = vmatprep.mubr.bf16.mxu0 %v4455
    %5011 = vmatmul.mubr.bf16.gmra.mrb[0].mxu0 %v4454
    %v5012 = vpop.f32.mrb[0].mxu0
    %v5013 = vadd.f32 0.0, %v5012
    %v5014 = vpop.f32.mrb[0].mxu0
    %v5015 = vadd.f32 0.0, %v5014
    %v5016 = vpop.f32.mrb[0].mxu0
    %v5017 = vadd.f32 0.0, %v5016
    %v5018 = vpop.f32.mrb[0].mxu0
    %v5019 = vadd.f32 0.0, %v5018
    %5020 = vmatprep.mubr.bf16.mxu0 %v4457
    %5021 = vmatmul.mubr.bf16.gmra.mrb[0].mxu0 %v4456
    %v5022 = vpop.f32.mrb[0].mxu0
    %v5023 = vadd.f32 0.0, %v5022
    %v5024 = vpop.f32.mrb[0].mxu0
    %v5025 = vadd.f32 0.0, %v5024
    %v5026 = vpop.f32.mrb[0].mxu0
    %v5027 = vadd.f32 0.0, %v5026
    %v5028 = vpop.f32.mrb[0].mxu0
    %v5029 = vadd.f32 0.0, %v5028
    %5030 = vmatprep.mubr.bf16.mxu0 %v4459
    %5031 = vmatmul.mubr.bf16.gmra.mrb[0].mxu0 %v4458
    %v5032 = vpop.f32.mrb[0].mxu0
    %v5033 = vadd.f32 0.0, %v5032
    %v5034 = vpop.f32.mrb[0].mxu0
    %v5035 = vadd.f32 0.0, %v5034
    %v5036 = vpop.f32.mrb[0].mxu0
    %v5037 = vadd.f32 0.0, %v5036
    %v5038 = vpop.f32.mrb[0].mxu0
    %v5039 = vadd.f32 0.0, %v5038
    %5040 = vmatprep.mubr.bf16.mxu0 %v4461
    %5041 = vmatmul.mubr.bf16.gmra.mrb[0].mxu0 %v4460
    %v5042 = vpop.f32.mrb[0].mxu0
    %v5043 = vadd.f32 0.0, %v5042
    %v5044 = vpop.f32.mrb[0].mxu0
    %v5045 = vadd.f32 0.0, %v5044
    %v5046 = vpop.f32.mrb[0].mxu0
    %v5047 = vadd.f32 0.0, %v5046
    %v5048 = vpop.f32.mrb[0].mxu0
    %v5049 = vadd.f32 0.0, %v5048
    %5050 = vmatprep.mubr.bf16.mxu0 %v4463
    %5051 = vmatmul.mubr.bf16.gmra.mrb[0].mxu0 %v4462
    %v5052 = vpop.f32.mrb[0].mxu0
    %v5053 = vadd.f32 0.0, %v5052
    %v5054 = vpop.f32.mrb[0].mxu0
    %v5055 = vadd.f32 0.0, %v5054
    %v5056 = vpop.f32.mrb[0].mxu0
    %v5057 = vadd.f32 0.0, %v5056
    %v5058 = vpop.f32.mrb[0].mxu0
    %v5059 = vadd.f32 0.0, %v5058
    %5060 = vmatprep.mubr.bf16.mxu0 %v4465
    %5061 = vmatmul.mubr.bf16.gmra.mrb[0].mxu0 %v4464
    %v5062 = vpop.f32.mrb[0].mxu0
    %v5063 = vadd.f32 0.0, %v5062
    %v5064 = vpop.f32.mrb[0].mxu0
    %v5065 = vadd.f32 0.0, %v5064
    %v5066 = vpop.f32.mrb[0].mxu0
    %v5067 = vadd.f32 0.0, %v5066
    %v5068 = vpop.f32.mrb[0].mxu0
    %v5069 = vadd.f32 0.0, %v5068
    %5070 = vmatprep.mubr.bf16.mxu0 %v4467
    %5071 = vmatmul.mubr.bf16.gmra.mrb[0].mxu0 %v4466
    %v5072 = vpop.f32.mrb[0].mxu0
    %v5073 = vadd.f32 0.0, %v5072
    %v5074 = vpop.f32.mrb[0].mxu0
    %v5075 = vadd.f32 0.0, %v5074
    %v5076 = vpop.f32.mrb[0].mxu0
    %v5077 = vadd.f32 0.0, %v5076
    %v5078 = vpop.f32.mrb[0].mxu0
    %v5079 = vadd.f32 0.0, %v5078
    %5080 = vmatprep.mubr.bf16.mxu0 %v4469
    %5081 = vmatmul.mubr.bf16.gmra.mrb[0].mxu0 %v4468
    %v5082 = vpop.f32.mrb[0].mxu0
    %v5083 = vadd.f32 0.0, %v5082
    %v5084 = vpop.f32.mrb[0].mxu0
    %v5085 = vadd.f32 0.0, %v5084
    %v5086 = vpop.f32.mrb[0].mxu0
    %v5087 = vadd.f32 0.0, %v5086
    %v5088 = vpop.f32.mrb[0].mxu0
    %v5089 = vadd.f32 0.0, %v5088
    %5090 = vmatprep.mubr.bf16.mxu0 %v4471
    %5091 = vmatmul.mubr.bf16.gmra.mrb[0].mxu0 %v4470
    %v5092 = vpop.f32.mrb[0].mxu0
    %v5093 = vadd.f32 0.0, %v5092
    %v5094 = vpop.f32.mrb[0].mxu0
    %v5095 = vadd.f32 0.0, %v5094
    %v5096 = vpop.f32.mrb[0].mxu0
    %v5097 = vadd.f32 0.0, %v5096
    %v5098 = vpop.f32.mrb[0].mxu0
    %v5099 = vadd.f32 0.0, %v5098
    %5100 = vmatprep.mubr.bf16.mxu0 %v4473
    %5101 = vmatmul.mubr.bf16.gmra.mrb[0].mxu0 %v4472
    %v5102 = vpop.f32.mrb[0].mxu0
    %v5103 = vadd.f32 0.0, %v5102
    %v5104 = vpop.f32.mrb[0].mxu0
    %v5105 = vadd.f32 0.0, %v5104
    %v5106 = vpop.f32.mrb[0].mxu0
    %v5107 = vadd.f32 0.0, %v5106
    %v5108 = vpop.f32.mrb[0].mxu0
    %v5109 = vadd.f32 0.0, %v5108
    %5110 = vmatprep.mubr.bf16.mxu0 %v4475
    %5111 = vmatmul.mubr.bf16.gmra.mrb[0].mxu0 %v4474
    %v5112 = vpop.f32.mrb[0].mxu0
    %v5113 = vadd.f32 0.0, %v5112
    %v5114 = vpop.f32.mrb[0].mxu0
    %v5115 = vadd.f32 0.0, %v5114
    %v5116 = vpop.f32.mrb[0].mxu0
    %v5117 = vadd.f32 0.0, %v5116
    %v5118 = vpop.f32.mrb[0].mxu0
    %v5119 = vadd.f32 0.0, %v5118
    %5120 = vmatprep.mubr.bf16.mxu0 %v4477
    %5121 = vmatmul.mubr.bf16.gmra.mrb[0].mxu0 %v4476
    %v5122 = vpop.f32.mrb[0].mxu0
    %v5123 = vadd.f32 0.0, %v5122
    %v5124 = vpop.f32.mrb[0].mxu0
    %v5125 = vadd.f32 0.0, %v5124
    %v5126 = vpop.f32.mrb[0].mxu0
    %v5127 = vadd.f32 0.0, %v5126
    %v5128 = vpop.f32.mrb[0].mxu0
    %v5129 = vadd.f32 0.0, %v5128
    %5130 = vmatprep.mubr.bf16.mxu0 %v4479
    %5131 = vmatmul.mubr.bf16.gmra.mrb[0].mxu0 %v4478
    %v5132 = vpop.f32.mrb[0].mxu0
    %v5133 = vadd.f32 0.0, %v5132
    %v5134 = vpop.f32.mrb[0].mxu0
    %v5135 = vadd.f32 0.0, %v5134
    %v5136 = vpop.f32.mrb[0].mxu0
    %v5137 = vadd.f32 0.0, %v5136
    %v5138 = vpop.f32.mrb[0].mxu0
    %v5139 = vadd.f32 0.0, %v5138
    %5140 = vmatprep.mubr.bf16.mxu0 %v4481
    %5141 = vmatmul.mubr.bf16.gmra.mrb[0].mxu0 %v4480
    %v5142 = vpop.f32.mrb[0].mxu0
    %v5143 = vadd.f32 0.0, %v5142
    %v5144 = vpop.f32.mrb[0].mxu0
    %v5145 = vadd.f32 0.0, %v5144
    %v5146 = vpop.f32.mrb[0].mxu0
    %v5147 = vadd.f32 0.0, %v5146
    %v5148 = vpop.f32.mrb[0].mxu0
    %v5149 = vadd.f32 0.0, %v5148
    %5150 = vmatprep.mubr.bf16.mxu0 %v4483
    %5151 = vmatmul.mubr.bf16.gmra.mrb[0].mxu0 %v4482
    %v5152 = vpop.f32.mrb[0].mxu0
    %v5153 = vadd.f32 0.0, %v5152
    %v5154 = vpop.f32.mrb[0].mxu0
    %v5155 = vadd.f32 0.0, %v5154
    %v5156 = vpop.f32.mrb[0].mxu0
    %v5157 = vadd.f32 0.0, %v5156
    %v5158 = vpop.f32.mrb[0].mxu0
    %v5159 = vadd.f32 0.0, %v5158
    %5160 = vmatprep.mubr.bf16.mxu0 %v4485
    %5161 = vmatmul.mubr.bf16.gmra.mrb[0].mxu0 %v4484
    %v5162 = vpop.f32.mrb[0].mxu0
    %v5163 = vadd.f32 0.0, %v5162
    %v5164 = vpop.f32.mrb[0].mxu0
    %v5165 = vadd.f32 0.0, %v5164
    %v5166 = vpop.f32.mrb[0].mxu0
    %v5167 = vadd.f32 0.0, %v5166
    %v5168 = vpop.f32.mrb[0].mxu0
    %v5169 = vadd.f32 0.0, %v5168
    %5170 = vmatprep.mubr.bf16.mxu0 %v4487
    %5171 = vmatmul.mubr.bf16.gmra.mrb[0].mxu0 %v4486
    %v5172 = vpop.f32.mrb[0].mxu0
    %v5173 = vadd.f32 0.0, %v5172
    %v5174 = vpop.f32.mrb[0].mxu0
    %v5175 = vadd.f32 0.0, %v5174
    %v5176 = vpop.f32.mrb[0].mxu0
    %v5177 = vadd.f32 0.0, %v5176
    %v5178 = vpop.f32.mrb[0].mxu0
    %v5179 = vadd.f32 0.0, %v5178
    %5180 = vmatprep.mubr.bf16.mxu0 %v4489
    %5181 = vmatmul.mubr.bf16.gmra.mrb[0].mxu0 %v4488
    %v5182 = vpop.f32.mrb[0].mxu0
    %v5183 = vadd.f32 0.0, %v5182
    %v5184 = vpop.f32.mrb[0].mxu0
    %v5185 = vadd.f32 0.0, %v5184
    %v5186 = vpop.f32.mrb[0].mxu0
    %v5187 = vadd.f32 0.0, %v5186
    %v5188 = vpop.f32.mrb[0].mxu0
    %v5189 = vadd.f32 0.0, %v5188
    %5190 = vmatprep.mubr.bf16.mxu0 %v4491
    %5191 = vmatmul.mubr.bf16.gmra.mrb[0].mxu0 %v4490
    %v5192 = vpop.f32.mrb[0].mxu0
    %v5193 = vadd.f32 0.0, %v5192
    %v5194 = vpop.f32.mrb[0].mxu0
    %v5195 = vadd.f32 0.0, %v5194
    %v5196 = vpop.f32.mrb[0].mxu0
    %v5197 = vadd.f32 0.0, %v5196
    %v5198 = vpop.f32.mrb[0].mxu0
    %v5199 = vadd.f32 0.0, %v5198
    %5200 = vmatprep.mubr.bf16.mxu0 %v4493
    %5201 = vmatmul.mubr.bf16.gmra.mrb[0].mxu0 %v4492
    %v5202 = vpop.f32.mrb[0].mxu0
    %v5203 = vadd.f32 0.0, %v5202
    %v5204 = vpop.f32.mrb[0].mxu0
    %v5205 = vadd.f32 0.0, %v5204
    %v5206 = vpop.f32.mrb[0].mxu0
    %v5207 = vadd.f32 0.0, %v5206
    %v5208 = vpop.f32.mrb[0].mxu0
    %v5209 = vadd.f32 0.0, %v5208
    %5210 = vmatprep.mubr.bf16.mxu0 %v4495
    %5211 = vmatmul.mubr.bf16.gmra.mrb[0].mxu0 %v4494
    %v5212 = vpop.f32.mrb[0].mxu0
    %v5213 = vadd.f32 0.0, %v5212
    %v5214 = vpop.f32.mrb[0].mxu0
    %v5215 = vadd.f32 0.0, %v5214
    %v5216 = vpop.f32.mrb[0].mxu0
    %v5217 = vadd.f32 0.0, %v5216
    %v5218 = vpop.f32.mrb[0].mxu0
    %v5219 = vadd.f32 0.0, %v5218
    %5220 = vmatprep.mubr.bf16.mxu0 %v4497
    %5221 = vmatmul.mubr.bf16.gmra.mrb[0].mxu0 %v4496
    %v5222 = vpop.f32.mrb[0].mxu0
    %v5223 = vadd.f32 0.0, %v5222
    %v5224 = vpop.f32.mrb[0].mxu0
    %v5225 = vadd.f32 0.0, %v5224
    %v5226 = vpop.f32.mrb[0].mxu0
    %v5227 = vadd.f32 0.0, %v5226
    %v5228 = vpop.f32.mrb[0].mxu0
    %v5229 = vadd.f32 0.0, %v5228
    %5230 = vmatprep.mubr.bf16.mxu0 %v4499
    %5231 = vmatmul.mubr.bf16.gmra.mrb[0].mxu0 %v4498
    %v5232 = vpop.f32.mrb[0].mxu0
    %v5233 = vadd.f32 0.0, %v5232
    %v5234 = vpop.f32.mrb[0].mxu0
    %v5235 = vadd.f32 0.0, %v5234
    %v5236 = vpop.f32.mrb[0].mxu0
    %v5237 = vadd.f32 0.0, %v5236
    %v5238 = vpop.f32.mrb[0].mxu0
    %v5239 = vadd.f32 0.0, %v5238
    %5240 = vmatprep.mubr.bf16.mxu0 %v4501
    %5241 = vmatmul.mubr.bf16.gmra.mrb[0].mxu0 %v4500
    %v5242 = vpop.f32.mrb[0].mxu0
    %v5243 = vadd.f32 0.0, %v5242
    %v5244 = vpop.f32.mrb[0].mxu0
    %v5245 = vadd.f32 0.0, %v5244
    %v5246 = vpop.f32.mrb[0].mxu0
    %v5247 = vadd.f32 0.0, %v5246
    %v5248 = vpop.f32.mrb[0].mxu0
    %v5249 = vadd.f32 0.0, %v5248
    %5250 = vmatprep.mubr.bf16.mxu0 %v4503
    %5251 = vmatmul.mubr.bf16.gmra.mrb[0].mxu0 %v4502
    %v5252 = vpop.f32.mrb[0].mxu0
    %v5253 = vadd.f32 0.0, %v5252
    %v5254 = vpop.f32.mrb[0].mxu0
    %v5255 = vadd.f32 0.0, %v5254
    %v5256 = vpop.f32.mrb[0].mxu0
    %v5257 = vadd.f32 0.0, %v5256
    %v5258 = vpop.f32.mrb[0].mxu0
    %v5259 = vadd.f32 0.0, %v5258
    %5260 = vmatprep.mubr.bf16.mxu0 %v4505
    %5261 = vmatmul.mubr.bf16.gmra.mrb[0].mxu0 %v4504
    %v5262 = vpop.f32.mrb[0].mxu0
    %v5263 = vadd.f32 0.0, %v5262
    %v5264 = vpop.f32.mrb[0].mxu0
    %v5265 = vadd.f32 0.0, %v5264
    %v5266 = vpop.f32.mrb[0].mxu0
    %v5267 = vadd.f32 0.0, %v5266
    %v5268 = vpop.f32.mrb[0].mxu0
    %v5269 = vadd.f32 0.0, %v5268
    %5270 = vmatprep.mubr.bf16.mxu0 %v4507
    %5271 = vmatmul.mubr.bf16.gmra.mrb[0].mxu0 %v4506
    %v5272 = vpop.f32.mrb[0].mxu0
    %v5273 = vadd.f32 0.0, %v5272
    %v5274 = vpop.f32.mrb[0].mxu0
    %v5275 = vadd.f32 0.0, %v5274
    %v5276 = vpop.f32.mrb[0].mxu0
    %v5277 = vadd.f32 0.0, %v5276
    %v5278 = vpop.f32.mrb[0].mxu0
    %v5279 = vadd.f32 0.0, %v5278
    %5280 = vmatprep.mubr.bf16.mxu0 %v4509
    %5281 = vmatmul.mubr.bf16.gmra.mrb[0].mxu0 %v4508
    %v5282 = vpop.f32.mrb[0].mxu0
    %v5283 = vadd.f32 0.0, %v5282
    %v5284 = vpop.f32.mrb[0].mxu0
    %v5285 = vadd.f32 0.0, %v5284
    %v5286 = vpop.f32.mrb[0].mxu0
    %v5287 = vadd.f32 0.0, %v5286
    %v5288 = vpop.f32.mrb[0].mxu0
    %v5289 = vadd.f32 0.0, %v5288
    %5290 = vmatprep.mubr.bf16.mxu0 %v4511
    %5291 = vmatmul.mubr.bf16.gmra.mrb[0].mxu0 %v4510
    %v5292 = vpop.f32.mrb[0].mxu0
    %v5293 = vadd.f32 0.0, %v5292
    %v5294 = vpop.f32.mrb[0].mxu0
    %v5295 = vadd.f32 0.0, %v5294
    %v5296 = vpop.f32.mrb[0].mxu0
    %v5297 = vadd.f32 0.0, %v5296
    %v5298 = vpop.f32.mrb[0].mxu0
    %v5299 = vadd.f32 0.0, %v5298
    %5300 = vmatprep.mubr.bf16.mxu0 %v4513
    %5301 = vmatmul.mubr.bf16.gmra.mrb[0].mxu0 %v4512
    %v5302 = vpop.f32.mrb[0].mxu0
    %v5303 = vadd.f32 0.0, %v5302
    %v5304 = vpop.f32.mrb[0].mxu0
    %v5305 = vadd.f32 0.0, %v5304
    %v5306 = vpop.f32.mrb[0].mxu0
    %v5307 = vadd.f32 0.0, %v5306
    %v5308 = vpop.f32.mrb[0].mxu0
    %v5309 = vadd.f32 0.0, %v5308
    %5310 = vmatprep.mubr.bf16.mxu0 %v4519
    %5311 = vmatmul.mubr.bf16.gmra.mrb[0].mxu0 %v4518
    %v5312 = vpop.f32.mrb[0].mxu0
    %v5313 = vadd.f32 0.0, %v5312
    %v5314 = vpop.f32.mrb[0].mxu0
    %v5315 = vadd.f32 0.0, %v5314
    %v5316 = vpop.f32.mrb[0].mxu0
    %v5317 = vadd.f32 0.0, %v5316
    %v5318 = vpop.f32.mrb[0].mxu0
    %v5319 = vadd.f32 0.0, %v5318
    %5320 = vdwg.mxu0
    %v5353 = vunpack.c.l.b16 %v4724
    %v5354 = vunpack.c.h.b16 %v4724
    %v5355 = vunpack.c.l.b16 %v4725
    %v5356 = vunpack.c.h.b16 %v4725
    %v5357 = vunpack.c.l.b16 %v4726
    %v5358 = vunpack.c.h.b16 %v4726
    %v5359 = vunpack.c.l.b16 %v4727
    %v5360 = vunpack.c.h.b16 %v4727
    %v5361 = vunpack.c.l.b16 %v4728
    %v5362 = vunpack.c.h.b16 %v4728
    %v5363 = vunpack.c.l.b16 %v4729
    %v5364 = vunpack.c.h.b16 %v4729
    %v5365 = vunpack.c.l.b16 %v4730
    %v5366 = vunpack.c.h.b16 %v4730
    %v5367 = vunpack.c.l.b16 %v4731
    %v5368 = vunpack.c.h.b16 %v4731
    %v5369 = vunpack.c.l.b16 %v4732
    %v5370 = vunpack.c.h.b16 %v4732
    %v5371 = vunpack.c.l.b16 %v4733
    %v5372 = vunpack.c.h.b16 %v4733
    %v5373 = vunpack.c.l.b16 %v4734
    %v5374 = vunpack.c.h.b16 %v4734
    %v5375 = vunpack.c.l.b16 %v4735
    %v5376 = vunpack.c.h.b16 %v4735
    %v5377 = vunpack.c.l.b16 %v4736
    %v5378 = vunpack.c.h.b16 %v4736
    %v5379 = vunpack.c.l.b16 %v4737
    %v5380 = vunpack.c.h.b16 %v4737
    %v5381 = vunpack.c.l.b16 %v4738
    %v5382 = vunpack.c.h.b16 %v4738
    %v5383 = vunpack.c.l.b16 %v4739
    %v5384 = vunpack.c.h.b16 %v4739
    %v5385 = vunpack.c.l.b16 %v4740
    %v5386 = vunpack.c.h.b16 %v4740
    %v5387 = vunpack.c.l.b16 %v4741
    %v5388 = vunpack.c.h.b16 %v4741
    %v5389 = vunpack.c.l.b16 %v4742
    %v5390 = vunpack.c.h.b16 %v4742
    %v5391 = vunpack.c.l.b16 %v4743
    %v5392 = vunpack.c.h.b16 %v4743
    %v5393 = vunpack.c.l.b16 %v4744
    %v5394 = vunpack.c.h.b16 %v4744
    %v5395 = vunpack.c.l.b16 %v4745
    %v5396 = vunpack.c.h.b16 %v4745
    %v5397 = vunpack.c.l.b16 %v4746
    %v5398 = vunpack.c.h.b16 %v4746
    %v5399 = vunpack.c.l.b16 %v4747
    %v5400 = vunpack.c.h.b16 %v4747
    %v5401 = vunpack.c.l.b16 %v4748
    %v5402 = vunpack.c.h.b16 %v4748
    %v5403 = vunpack.c.l.b16 %v4749
    %v5404 = vunpack.c.h.b16 %v4749
    %v5405 = vunpack.c.l.b16 %v4750
    %v5406 = vunpack.c.h.b16 %v4750
    %v5407 = vunpack.c.l.b16 %v4751
    %v5408 = vunpack.c.h.b16 %v4751
    %v5409 = vunpack.c.l.b16 %v4752
    %v5410 = vunpack.c.h.b16 %v4752
    %v5411 = vunpack.c.l.b16 %v4753
    %v5412 = vunpack.c.h.b16 %v4753
    %v5413 = vunpack.c.l.b16 %v4754
    %v5414 = vunpack.c.h.b16 %v4754
    %v5415 = vunpack.c.l.b16 %v4755
    %v5416 = vunpack.c.h.b16 %v4755
    %v5417 = vpack.c.b16 %v5355, %v5353
    %v5418 = vpack.c.b16 %v5356, %v5354
    %v5419 = vpack.c.b16 %v5359, %v5357
    %v5420 = vpack.c.b16 %v5360, %v5358
    %v5421 = vpack.c.b16 %v5363, %v5361
    %v5422 = vpack.c.b16 %v5364, %v5362
    %v5423 = vpack.c.b16 %v5367, %v5365
    %v5424 = vpack.c.b16 %v5368, %v5366
    %v5425 = vpack.c.b16 %v5371, %v5369
    %v5426 = vpack.c.b16 %v5372, %v5370
    %v5427 = vpack.c.b16 %v5375, %v5373
    %v5428 = vpack.c.b16 %v5376, %v5374
    %v5429 = vpack.c.b16 %v5379, %v5377
    %v5430 = vpack.c.b16 %v5380, %v5378
    %v5431 = vpack.c.b16 %v5383, %v5381
    %v5432 = vpack.c.b16 %v5384, %v5382
    %v5433 = vpack.c.b16 %v5387, %v5385
    %v5434 = vpack.c.b16 %v5388, %v5386
    %v5435 = vpack.c.b16 %v5391, %v5389
    %v5436 = vpack.c.b16 %v5392, %v5390
    %v5437 = vpack.c.b16 %v5395, %v5393
    %v5438 = vpack.c.b16 %v5396, %v5394
    %v5439 = vpack.c.b16 %v5399, %v5397
    %v5440 = vpack.c.b16 %v5400, %v5398
    %v5441 = vpack.c.b16 %v5403, %v5401
    %v5442 = vpack.c.b16 %v5404, %v5402
    %v5443 = vpack.c.b16 %v5407, %v5405
    %v5444 = vpack.c.b16 %v5408, %v5406
    %v5445 = vpack.c.b16 %v5411, %v5409
    %v5446 = vpack.c.b16 %v5412, %v5410
    %v5447 = vpack.c.b16 %v5415, %v5413
    %v5448 = vpack.c.b16 %v5416, %v5414
    %5481 = vmatprep.subr.bf16.mxu0 %v5418
    %5482 = vmatpush1.bf16.msra.mxu0 %v5417
    %5483 = vmatprep.subr.bf16.mxu0 %v5420
    %5484 = vmatpush1.bf16.msra.mxu0 %v5419
    %5485 = vmatprep.subr.bf16.mxu0 %v5422
    %5486 = vmatpush1.bf16.msra.mxu0 %v5421
    %5487 = vmatprep.subr.bf16.mxu0 %v5424
    %5488 = vmatpush1.bf16.msra.mxu0 %v5423
    %5489 = vmatprep.subr.bf16.mxu0 %v5426
    %5490 = vmatpush1.bf16.msra.mxu0 %v5425
    %5491 = vmatprep.subr.bf16.mxu0 %v5428
    %5492 = vmatpush1.bf16.msra.mxu0 %v5427
    %5493 = vmatprep.subr.bf16.mxu0 %v5430
    %5494 = vmatpush1.bf16.msra.mxu0 %v5429
    %5495 = vmatprep.subr.bf16.mxu0 %v5432
    %5496 = vmatpush1.bf16.msra.mxu0 %v5431
    %5497 = vmatprep.subr.bf16.mxu0 %v5434
    %5498 = vmatpush1.bf16.msra.mxu0 %v5433
    %5499 = vmatprep.subr.bf16.mxu0 %v5436
    %5500 = vmatpush1.bf16.msra.mxu0 %v5435
    %5501 = vmatprep.subr.bf16.mxu0 %v5438
    %5502 = vmatpush1.bf16.msra.mxu0 %v5437
    %5503 = vmatprep.subr.bf16.mxu0 %v5440
    %5504 = vmatpush1.bf16.msra.mxu0 %v5439
    %5505 = vmatprep.subr.bf16.mxu0 %v5442
    %5506 = vmatpush1.bf16.msra.mxu0 %v5441
    %5507 = vmatprep.subr.bf16.mxu0 %v5444
    %5508 = vmatpush1.bf16.msra.mxu0 %v5443
    %5509 = vmatprep.subr.bf16.mxu0 %v5446
    %5510 = vmatpush1.bf16.msra.mxu0 %v5445
    %5511 = vmatprep.subr.bf16.mxu0 %v5448
    %5512 = vmatpush1.bf16.msra.mxu0 %v5447
    %5513 = vmatprep.mubr.bf16.mxu0 %v4447
    %5514 = vmatmul.mubr.bf16.gmra.mrb[0].mxu0 %v4446
    %v5515 = vpop.f32.mrb[0].mxu0
    %v5516 = vadd.f32 %v4983, %v5515
    %v5517 = vpop.f32.mrb[0].mxu0
    %v5518 = vadd.f32 %v4985, %v5517
    %v5519 = vpop.f32.mrb[0].mxu0
    %v5520 = vadd.f32 %v4987, %v5519
    %v5521 = vpop.f32.mrb[0].mxu0
    %v5522 = vadd.f32 %v4989, %v5521
    %5523 = vmatprep.mubr.bf16.mxu0 %v4449
    %5524 = vmatmul.mubr.bf16.gmra.mrb[0].mxu0 %v4448
    %v5525 = vpop.f32.mrb[0].mxu0
    %v5526 = vadd.f32 %v4993, %v5525
    %v5527 = vpop.f32.mrb[0].mxu0
    %v5528 = vadd.f32 %v4995, %v5527
    %v5529 = vpop.f32.mrb[0].mxu0
    %v5530 = vadd.f32 %v4997, %v5529
    %v5531 = vpop.f32.mrb[0].mxu0
    %v5532 = vadd.f32 %v4999, %v5531
    %5533 = vmatprep.mubr.bf16.mxu0 %v4451
    %5534 = vmatmul.mubr.bf16.gmra.mrb[0].mxu0 %v4450
    %v5535 = vpop.f32.mrb[0].mxu0
    %v5536 = vadd.f32 %v5003, %v5535
    %v5537 = vpop.f32.mrb[0].mxu0
    %v5538 = vadd.f32 %v5005, %v5537
    %v5539 = vpop.f32.mrb[0].mxu0
    %v5540 = vadd.f32 %v5007, %v5539
    %v5541 = vpop.f32.mrb[0].mxu0
    %v5542 = vadd.f32 %v5009, %v5541
    %5543 = vmatprep.mubr.bf16.mxu0 %v4453
    %5544 = vmatmul.mubr.bf16.gmra.mrb[0].mxu0 %v4452
    %v5545 = vpop.f32.mrb[0].mxu0
    %v5546 = vadd.f32 %v5013, %v5545
    %v5547 = vpop.f32.mrb[0].mxu0
    %v5548 = vadd.f32 %v5015, %v5547
    %v5549 = vpop.f32.mrb[0].mxu0
    %v5550 = vadd.f32 %v5017, %v5549
    %v5551 = vpop.f32.mrb[0].mxu0
    %v5552 = vadd.f32 %v5019, %v5551
    %5553 = vmatprep.mubr.bf16.mxu0 %v4455
    %5554 = vmatmul.mubr.bf16.gmra.mrb[0].mxu0 %v4454
    %v5555 = vpop.f32.mrb[0].mxu0
    %v5556 = vadd.f32 %v5023, %v5555
    %v5557 = vpop.f32.mrb[0].mxu0
    %v5558 = vadd.f32 %v5025, %v5557
    %v5559 = vpop.f32.mrb[0].mxu0
    %v5560 = vadd.f32 %v5027, %v5559
    %v5561 = vpop.f32.mrb[0].mxu0
    %v5562 = vadd.f32 %v5029, %v5561
    %5563 = vmatprep.mubr.bf16.mxu0 %v4457
    %5564 = vmatmul.mubr.bf16.gmra.mrb[0].mxu0 %v4456
    %v5565 = vpop.f32.mrb[0].mxu0
    %v5566 = vadd.f32 %v5033, %v5565
    %v5567 = vpop.f32.mrb[0].mxu0
    %v5568 = vadd.f32 %v5035, %v5567
    %v5569 = vpop.f32.mrb[0].mxu0
    %v5570 = vadd.f32 %v5037, %v5569
    %v5571 = vpop.f32.mrb[0].mxu0
    %v5572 = vadd.f32 %v5039, %v5571
    %5573 = vmatprep.mubr.bf16.mxu0 %v4459
    %5574 = vmatmul.mubr.bf16.gmra.mrb[0].mxu0 %v4458
    %v5575 = vpop.f32.mrb[0].mxu0
    %v5576 = vadd.f32 %v5043, %v5575
    %v5577 = vpop.f32.mrb[0].mxu0
    %v5578 = vadd.f32 %v5045, %v5577
    %v5579 = vpop.f32.mrb[0].mxu0
    %v5580 = vadd.f32 %v5047, %v5579
    %v5581 = vpop.f32.mrb[0].mxu0
    %v5582 = vadd.f32 %v5049, %v5581
    %5583 = vmatprep.mubr.bf16.mxu0 %v4461
    %5584 = vmatmul.mubr.bf16.gmra.mrb[0].mxu0 %v4460
    %v5585 = vpop.f32.mrb[0].mxu0
    %v5586 = vadd.f32 %v5053, %v5585
    %v5587 = vpop.f32.mrb[0].mxu0
    %v5588 = vadd.f32 %v5055, %v5587
    %v5589 = vpop.f32.mrb[0].mxu0
    %v5590 = vadd.f32 %v5057, %v5589
    %v5591 = vpop.f32.mrb[0].mxu0
    %v5592 = vadd.f32 %v5059, %v5591
    %5593 = vmatprep.mubr.bf16.mxu0 %v4463
    %5594 = vmatmul.mubr.bf16.gmra.mrb[0].mxu0 %v4462
    %v5595 = vpop.f32.mrb[0].mxu0
    %v5596 = vadd.f32 %v5063, %v5595
    %v5597 = vpop.f32.mrb[0].mxu0
    %v5598 = vadd.f32 %v5065, %v5597
    %v5599 = vpop.f32.mrb[0].mxu0
    %v5600 = vadd.f32 %v5067, %v5599
    %v5601 = vpop.f32.mrb[0].mxu0
    %v5602 = vadd.f32 %v5069, %v5601
    %5603 = vmatprep.mubr.bf16.mxu0 %v4465
    %5604 = vmatmul.mubr.bf16.gmra.mrb[0].mxu0 %v4464
    %v5605 = vpop.f32.mrb[0].mxu0
    %v5606 = vadd.f32 %v5073, %v5605
    %v5607 = vpop.f32.mrb[0].mxu0
    %v5608 = vadd.f32 %v5075, %v5607
    %v5609 = vpop.f32.mrb[0].mxu0
    %v5610 = vadd.f32 %v5077, %v5609
    %v5611 = vpop.f32.mrb[0].mxu0
    %v5612 = vadd.f32 %v5079, %v5611
    %5613 = vmatprep.mubr.bf16.mxu0 %v4467
    %5614 = vmatmul.mubr.bf16.gmra.mrb[0].mxu0 %v4466
    %v5615 = vpop.f32.mrb[0].mxu0
    %v5616 = vadd.f32 %v5083, %v5615
    %v5617 = vpop.f32.mrb[0].mxu0
    %v5618 = vadd.f32 %v5085, %v5617
    %v5619 = vpop.f32.mrb[0].mxu0
    %v5620 = vadd.f32 %v5087, %v5619
    %v5621 = vpop.f32.mrb[0].mxu0
    %v5622 = vadd.f32 %v5089, %v5621
    %5623 = vmatprep.mubr.bf16.mxu0 %v4469
    %5624 = vmatmul.mubr.bf16.gmra.mrb[0].mxu0 %v4468
    %v5625 = vpop.f32.mrb[0].mxu0
    %v5626 = vadd.f32 %v5093, %v5625
    %v5627 = vpop.f32.mrb[0].mxu0
    %v5628 = vadd.f32 %v5095, %v5627
    %v5629 = vpop.f32.mrb[0].mxu0
    %v5630 = vadd.f32 %v5097, %v5629
    %v5631 = vpop.f32.mrb[0].mxu0
    %v5632 = vadd.f32 %v5099, %v5631
    %5633 = vmatprep.mubr.bf16.mxu0 %v4471
    %5634 = vmatmul.mubr.bf16.gmra.mrb[0].mxu0 %v4470
    %v5635 = vpop.f32.mrb[0].mxu0
    %v5636 = vadd.f32 %v5103, %v5635
    %v5637 = vpop.f32.mrb[0].mxu0
    %v5638 = vadd.f32 %v5105, %v5637
    %v5639 = vpop.f32.mrb[0].mxu0
    %v5640 = vadd.f32 %v5107, %v5639
    %v5641 = vpop.f32.mrb[0].mxu0
    %v5642 = vadd.f32 %v5109, %v5641
    %5643 = vmatprep.mubr.bf16.mxu0 %v4473
    %5644 = vmatmul.mubr.bf16.gmra.mrb[0].mxu0 %v4472
    %v5645 = vpop.f32.mrb[0].mxu0
    %v5646 = vadd.f32 %v5113, %v5645
    %v5647 = vpop.f32.mrb[0].mxu0
    %v5648 = vadd.f32 %v5115, %v5647
    %v5649 = vpop.f32.mrb[0].mxu0
    %v5650 = vadd.f32 %v5117, %v5649
    %v5651 = vpop.f32.mrb[0].mxu0
    %v5652 = vadd.f32 %v5119, %v5651
    %5653 = vmatprep.mubr.bf16.mxu0 %v4475
    %5654 = vmatmul.mubr.bf16.gmra.mrb[0].mxu0 %v4474
    %v5655 = vpop.f32.mrb[0].mxu0
    %v5656 = vadd.f32 %v5123, %v5655
    %v5657 = vpop.f32.mrb[0].mxu0
    %v5658 = vadd.f32 %v5125, %v5657
    %v5659 = vpop.f32.mrb[0].mxu0
    %v5660 = vadd.f32 %v5127, %v5659
    %v5661 = vpop.f32.mrb[0].mxu0
    %v5662 = vadd.f32 %v5129, %v5661
    %5663 = vmatprep.mubr.bf16.mxu0 %v4477
    %5664 = vmatmul.mubr.bf16.gmra.mrb[0].mxu0 %v4476
    %v5665 = vpop.f32.mrb[0].mxu0
    %v5666 = vadd.f32 %v5133, %v5665
    %v5667 = vpop.f32.mrb[0].mxu0
    %v5668 = vadd.f32 %v5135, %v5667
    %v5669 = vpop.f32.mrb[0].mxu0
    %v5670 = vadd.f32 %v5137, %v5669
    %v5671 = vpop.f32.mrb[0].mxu0
    %v5672 = vadd.f32 %v5139, %v5671
    %5673 = vmatprep.mubr.bf16.mxu0 %v4479
    %5674 = vmatmul.mubr.bf16.gmra.mrb[0].mxu0 %v4478
    %v5675 = vpop.f32.mrb[0].mxu0
    %v5676 = vadd.f32 %v5143, %v5675
    %v5677 = vpop.f32.mrb[0].mxu0
    %v5678 = vadd.f32 %v5145, %v5677
    %v5679 = vpop.f32.mrb[0].mxu0
    %v5680 = vadd.f32 %v5147, %v5679
    %v5681 = vpop.f32.mrb[0].mxu0
    %v5682 = vadd.f32 %v5149, %v5681
    %5683 = vmatprep.mubr.bf16.mxu0 %v4481
    %5684 = vmatmul.mubr.bf16.gmra.mrb[0].mxu0 %v4480
    %v5685 = vpop.f32.mrb[0].mxu0
    %v5686 = vadd.f32 %v5153, %v5685
    %v5687 = vpop.f32.mrb[0].mxu0
    %v5688 = vadd.f32 %v5155, %v5687
    %v5689 = vpop.f32.mrb[0].mxu0
    %v5690 = vadd.f32 %v5157, %v5689
    %v5691 = vpop.f32.mrb[0].mxu0
    %v5692 = vadd.f32 %v5159, %v5691
    %5693 = vmatprep.mubr.bf16.mxu0 %v4483
    %5694 = vmatmul.mubr.bf16.gmra.mrb[0].mxu0 %v4482
    %v5695 = vpop.f32.mrb[0].mxu0
    %v5696 = vadd.f32 %v5163, %v5695
    %v5697 = vpop.f32.mrb[0].mxu0
    %v5698 = vadd.f32 %v5165, %v5697
    %v5699 = vpop.f32.mrb[0].mxu0
    %v5700 = vadd.f32 %v5167, %v5699
    %v5701 = vpop.f32.mrb[0].mxu0
    %v5702 = vadd.f32 %v5169, %v5701
    %5703 = vmatprep.mubr.bf16.mxu0 %v4485
    %5704 = vmatmul.mubr.bf16.gmra.mrb[0].mxu0 %v4484
    %v5705 = vpop.f32.mrb[0].mxu0
    %v5706 = vadd.f32 %v5173, %v5705
    %v5707 = vpop.f32.mrb[0].mxu0
    %v5708 = vadd.f32 %v5175, %v5707
    %v5709 = vpop.f32.mrb[0].mxu0
    %v5710 = vadd.f32 %v5177, %v5709
    %v5711 = vpop.f32.mrb[0].mxu0
    %v5712 = vadd.f32 %v5179, %v5711
    %5713 = vmatprep.mubr.bf16.mxu0 %v4487
    %5714 = vmatmul.mubr.bf16.gmra.mrb[0].mxu0 %v4486
    %v5715 = vpop.f32.mrb[0].mxu0
    %v5716 = vadd.f32 %v5183, %v5715
    %v5717 = vpop.f32.mrb[0].mxu0
    %v5718 = vadd.f32 %v5185, %v5717
    %v5719 = vpop.f32.mrb[0].mxu0
    %v5720 = vadd.f32 %v5187, %v5719
    %v5721 = vpop.f32.mrb[0].mxu0
    %v5722 = vadd.f32 %v5189, %v5721
    %5723 = vmatprep.mubr.bf16.mxu0 %v4489
    %5724 = vmatmul.mubr.bf16.gmra.mrb[0].mxu0 %v4488
    %v5725 = vpop.f32.mrb[0].mxu0
    %v5726 = vadd.f32 %v5193, %v5725
    %v5727 = vpop.f32.mrb[0].mxu0
    %v5728 = vadd.f32 %v5195, %v5727
    %v5729 = vpop.f32.mrb[0].mxu0
    %v5730 = vadd.f32 %v5197, %v5729
    %v5731 = vpop.f32.mrb[0].mxu0
    %v5732 = vadd.f32 %v5199, %v5731
    %5733 = vmatprep.mubr.bf16.mxu0 %v4491
    %5734 = vmatmul.mubr.bf16.gmra.mrb[0].mxu0 %v4490
    %v5735 = vpop.f32.mrb[0].mxu0
    %v5736 = vadd.f32 %v5203, %v5735
    %v5737 = vpop.f32.mrb[0].mxu0
    %v5738 = vadd.f32 %v5205, %v5737
    %v5739 = vpop.f32.mrb[0].mxu0
    %v5740 = vadd.f32 %v5207, %v5739
    %v5741 = vpop.f32.mrb[0].mxu0
    %v5742 = vadd.f32 %v5209, %v5741
    %5743 = vmatprep.mubr.bf16.mxu0 %v4493
    %5744 = vmatmul.mubr.bf16.gmra.mrb[0].mxu0 %v4492
    %v5745 = vpop.f32.mrb[0].mxu0
    %v5746 = vadd.f32 %v5213, %v5745
    %v5747 = vpop.f32.mrb[0].mxu0
    %v5748 = vadd.f32 %v5215, %v5747
    %v5749 = vpop.f32.mrb[0].mxu0
    %v5750 = vadd.f32 %v5217, %v5749
    %v5751 = vpop.f32.mrb[0].mxu0
    %v5752 = vadd.f32 %v5219, %v5751
    %5753 = vmatprep.mubr.bf16.mxu0 %v4495
    %5754 = vmatmul.mubr.bf16.gmra.mrb[0].mxu0 %v4494
    %v5755 = vpop.f32.mrb[0].mxu0
    %v5756 = vadd.f32 %v5223, %v5755
    %v5757 = vpop.f32.mrb[0].mxu0
    %v5758 = vadd.f32 %v5225, %v5757
    %v5759 = vpop.f32.mrb[0].mxu0
    %v5760 = vadd.f32 %v5227, %v5759
    %v5761 = vpop.f32.mrb[0].mxu0
    %v5762 = vadd.f32 %v5229, %v5761
    %5763 = vmatprep.mubr.bf16.mxu0 %v4497
    %5764 = vmatmul.mubr.bf16.gmra.mrb[0].mxu0 %v4496
    %v5765 = vpop.f32.mrb[0].mxu0
    %v5766 = vadd.f32 %v5233, %v5765
    %v5767 = vpop.f32.mrb[0].mxu0
    %v5768 = vadd.f32 %v5235, %v5767
    %v5769 = vpop.f32.mrb[0].mxu0
    %v5770 = vadd.f32 %v5237, %v5769
    %v5771 = vpop.f32.mrb[0].mxu0
    %v5772 = vadd.f32 %v5239, %v5771
    %5773 = vmatprep.mubr.bf16.mxu0 %v4499
    %5774 = vmatmul.mubr.bf16.gmra.mrb[0].mxu0 %v4498
    %v5775 = vpop.f32.mrb[0].mxu0
    %v5776 = vadd.f32 %v5243, %v5775
    %v5777 = vpop.f32.mrb[0].mxu0
    %v5778 = vadd.f32 %v5245, %v5777
    %v5779 = vpop.f32.mrb[0].mxu0
    %v5780 = vadd.f32 %v5247, %v5779
    %v5781 = vpop.f32.mrb[0].mxu0
    %v5782 = vadd.f32 %v5249, %v5781
    %5783 = vmatprep.mubr.bf16.mxu0 %v4501
    %5784 = vmatmul.mubr.bf16.gmra.mrb[0].mxu0 %v4500
    %v5785 = vpop.f32.mrb[0].mxu0
    %v5786 = vadd.f32 %v5253, %v5785
    %v5787 = vpop.f32.mrb[0].mxu0
    %v5788 = vadd.f32 %v5255, %v5787
    %v5789 = vpop.f32.mrb[0].mxu0
    %v5790 = vadd.f32 %v5257, %v5789
    %v5791 = vpop.f32.mrb[0].mxu0
    %v5792 = vadd.f32 %v5259, %v5791
    %5793 = vmatprep.mubr.bf16.mxu0 %v4503
    %5794 = vmatmul.mubr.bf16.gmra.mrb[0].mxu0 %v4502
    %v5795 = vpop.f32.mrb[0].mxu0
    %v5796 = vadd.f32 %v5263, %v5795
    %v5797 = vpop.f32.mrb[0].mxu0
    %v5798 = vadd.f32 %v5265, %v5797
    %v5799 = vpop.f32.mrb[0].mxu0
    %v5800 = vadd.f32 %v5267, %v5799
    %v5801 = vpop.f32.mrb[0].mxu0
    %v5802 = vadd.f32 %v5269, %v5801
    %5803 = vmatprep.mubr.bf16.mxu0 %v4505
    %5804 = vmatmul.mubr.bf16.gmra.mrb[0].mxu0 %v4504
    %v5805 = vpop.f32.mrb[0].mxu0
    %v5806 = vadd.f32 %v5273, %v5805
    %v5807 = vpop.f32.mrb[0].mxu0
    %v5808 = vadd.f32 %v5275, %v5807
    %v5809 = vpop.f32.mrb[0].mxu0
    %v5810 = vadd.f32 %v5277, %v5809
    %v5811 = vpop.f32.mrb[0].mxu0
    %v5812 = vadd.f32 %v5279, %v5811
    %5813 = vmatprep.mubr.bf16.mxu0 %v4507
    %5814 = vmatmul.mubr.bf16.gmra.mrb[0].mxu0 %v4506
    %v5815 = vpop.f32.mrb[0].mxu0
    %v5816 = vadd.f32 %v5283, %v5815
    %v5817 = vpop.f32.mrb[0].mxu0
    %v5818 = vadd.f32 %v5285, %v5817
    %v5819 = vpop.f32.mrb[0].mxu0
    %v5820 = vadd.f32 %v5287, %v5819
    %v5821 = vpop.f32.mrb[0].mxu0
    %v5822 = vadd.f32 %v5289, %v5821
    %5823 = vmatprep.mubr.bf16.mxu0 %v4509
    %5824 = vmatmul.mubr.bf16.gmra.mrb[0].mxu0 %v4508
    %v5825 = vpop.f32.mrb[0].mxu0
    %v5826 = vadd.f32 %v5293, %v5825
    %v5827 = vpop.f32.mrb[0].mxu0
    %v5828 = vadd.f32 %v5295, %v5827
    %v5829 = vpop.f32.mrb[0].mxu0
    %v5830 = vadd.f32 %v5297, %v5829
    %v5831 = vpop.f32.mrb[0].mxu0
    %v5832 = vadd.f32 %v5299, %v5831
    %5833 = vmatprep.mubr.bf16.mxu0 %v4511
    %5834 = vmatmul.mubr.bf16.gmra.mrb[0].mxu0 %v4510
    %v5835 = vpop.f32.mrb[0].mxu0
    %v5836 = vadd.f32 %v5303, %v5835
    %v5837 = vpop.f32.mrb[0].mxu0
    %v5838 = vadd.f32 %v5305, %v5837
    %v5839 = vpop.f32.mrb[0].mxu0
    %v5840 = vadd.f32 %v5307, %v5839
    %v5841 = vpop.f32.mrb[0].mxu0
    %v5842 = vadd.f32 %v5309, %v5841
    %5843 = vmatprep.mubr.bf16.mxu0 %v4513
    %5844 = vmatmul.mubr.bf16.gmra.mrb[0].mxu0 %v4512
    %v5845 = vpop.f32.mrb[0].mxu0
    %v5846 = vadd.f32 %v5313, %v5845
    %v5847 = vpop.f32.mrb[0].mxu0
    %v5848 = vadd.f32 %v5315, %v5847
    %v5849 = vpop.f32.mrb[0].mxu0
    %v5850 = vadd.f32 %v5317, %v5849
    %v5851 = vpop.f32.mrb[0].mxu0
    %v5852 = vadd.f32 %v5319, %v5851
    %5853 = vdwg.mxu0
    %v5854 = vld [vmem:[%s3188] sm:$0xff]
    %v5855 = vld [vmem:[%s3188 + $0x8] sm:$0xff]
    %v5856 = vld [vmem:[%s3188 + $0x10] sm:$0xff]
    %v5857 = vld [vmem:[%s3188 + $0x18] sm:$0xff]
    %v5858 = vld [vmem:[%s3188 + $0x20] sm:$0xff]
    %v5859 = vld [vmem:[%s3188 + $0x28] sm:$0xff]
    %v5860 = vld [vmem:[%s3188 + $0x30] sm:$0xff]
    %v5861 = vld [vmem:[%s3188 + $0x38] sm:$0xff]
    %v5862 = vld [vmem:[%s3188 + $0x40] sm:$0xff]
    %v5863 = vld [vmem:[%s3188 + $0x48] sm:$0xff]
    %v5864 = vld [vmem:[%s3188 + $0x50] sm:$0xff]
    %v5865 = vld [vmem:[%s3188 + $0x58] sm:$0xff]
    %v5866 = vld [vmem:[%s3188 + $0x60] sm:$0xff]
    %v5867 = vld [vmem:[%s3188 + $0x68] sm:$0xff]
    %v5868 = vld [vmem:[%s3188 + $0x70] sm:$0xff]
    %v5869 = vld [vmem:[%s3188 + $0x78] sm:$0xff]
    %v5870 = vld [vmem:[%s3188 + $0x80] sm:$0xff]
    %v5871 = vld [vmem:[%s3188 + $0x88] sm:$0xff]
    %v5872 = vld [vmem:[%s3188 + $0x90] sm:$0xff]
    %v5873 = vld [vmem:[%s3188 + $0x98] sm:$0xff]
    %v5874 = vld [vmem:[%s3188 + $0xa0] sm:$0xff]
    %v5875 = vld [vmem:[%s3188 + $0xa8] sm:$0xff]
    %v5876 = vld [vmem:[%s3188 + $0xb0] sm:$0xff]
    %v5877 = vld [vmem:[%s3188 + $0xb8] sm:$0xff]
    %v5878 = vld [vmem:[%s3188 + $0xc0] sm:$0xff]
    %v5879 = vld [vmem:[%s3188 + $0xc8] sm:$0xff]
    %v5880 = vld [vmem:[%s3188 + $0xd0] sm:$0xff]
    %v5881 = vld [vmem:[%s3188 + $0xd8] sm:$0xff]
    %v5882 = vld [vmem:[%s3188 + $0xe0] sm:$0xff]
    %v5883 = vld [vmem:[%s3188 + $0xe8] sm:$0xff]
    %v5884 = vld [vmem:[%s3188 + $0xf0] sm:$0xff]
    %v5885 = vld [vmem:[%s3188 + $0xf8] sm:$0xff]
    %v5918 = vunpack.c.l.b16 %v5854
    %v5919 = vunpack.c.h.b16 %v5854
    %v5920 = vunpack.c.l.b16 %v5855
    %v5921 = vunpack.c.h.b16 %v5855
    %v5922 = vunpack.c.l.b16 %v5856
    %v5923 = vunpack.c.h.b16 %v5856
    %v5924 = vunpack.c.l.b16 %v5857
    %v5925 = vunpack.c.h.b16 %v5857
    %v5926 = vunpack.c.l.b16 %v5858
    %v5927 = vunpack.c.h.b16 %v5858
    %v5928 = vunpack.c.l.b16 %v5859
    %v5929 = vunpack.c.h.b16 %v5859
    %v5930 = vunpack.c.l.b16 %v5860
    %v5931 = vunpack.c.h.b16 %v5860
    %v5932 = vunpack.c.l.b16 %v5861
    %v5933 = vunpack.c.h.b16 %v5861
    %v5934 = vunpack.c.l.b16 %v5862
    %v5935 = vunpack.c.h.b16 %v5862
    %v5936 = vunpack.c.l.b16 %v5863
    %v5937 = vunpack.c.h.b16 %v5863
    %v5938 = vunpack.c.l.b16 %v5864
    %v5939 = vunpack.c.h.b16 %v5864
    %v5940 = vunpack.c.l.b16 %v5865
    %v5941 = vunpack.c.h.b16 %v5865
    %v5942 = vunpack.c.l.b16 %v5866
    %v5943 = vunpack.c.h.b16 %v5866
    %v5944 = vunpack.c.l.b16 %v5867
    %v5945 = vunpack.c.h.b16 %v5867
    %v5946 = vunpack.c.l.b16 %v5868
    %v5947 = vunpack.c.h.b16 %v5868
    %v5948 = vunpack.c.l.b16 %v5869
    %v5949 = vunpack.c.h.b16 %v5869
    %v5950 = vunpack.c.l.b16 %v5870
    %v5951 = vunpack.c.h.b16 %v5870
    %v5952 = vunpack.c.l.b16 %v5871
    %v5953 = vunpack.c.h.b16 %v5871
    %v5954 = vunpack.c.l.b16 %v5872
    %v5955 = vunpack.c.h.b16 %v5872
    %v5956 = vunpack.c.l.b16 %v5873
    %v5957 = vunpack.c.h.b16 %v5873
    %v5958 = vunpack.c.l.b16 %v5874
    %v5959 = vunpack.c.h.b16 %v5874
    %v5960 = vunpack.c.l.b16 %v5875
    %v5961 = vunpack.c.h.b16 %v5875
    %v5962 = vunpack.c.l.b16 %v5876
    %v5963 = vunpack.c.h.b16 %v5876
    %v5964 = vunpack.c.l.b16 %v5877
    %v5965 = vunpack.c.h.b16 %v5877
    %v5966 = vunpack.c.l.b16 %v5878
    %v5967 = vunpack.c.h.b16 %v5878
    %v5968 = vunpack.c.l.b16 %v5879
    %v5969 = vunpack.c.h.b16 %v5879
    %v5970 = vunpack.c.l.b16 %v5880
    %v5971 = vunpack.c.h.b16 %v5880
    %v5972 = vunpack.c.l.b16 %v5881
    %v5973 = vunpack.c.h.b16 %v5881
    %v5974 = vunpack.c.l.b16 %v5882
    %v5975 = vunpack.c.h.b16 %v5882
    %v5976 = vunpack.c.l.b16 %v5883
    %v5977 = vunpack.c.h.b16 %v5883
    %v5978 = vunpack.c.l.b16 %v5884
    %v5979 = vunpack.c.h.b16 %v5884
    %v5980 = vunpack.c.l.b16 %v5885
    %v5981 = vunpack.c.h.b16 %v5885
    %v5982 = vpack.c.b16 %v5920, %v5918
    %v5983 = vpack.c.b16 %v5921, %v5919
    %v5984 = vpack.c.b16 %v5924, %v5922
    %v5985 = vpack.c.b16 %v5925, %v5923
    %v5986 = vpack.c.b16 %v5928, %v5926
    %v5987 = vpack.c.b16 %v5929, %v5927
    %v5988 = vpack.c.b16 %v5932, %v5930
    %v5989 = vpack.c.b16 %v5933, %v5931
    %v5990 = vpack.c.b16 %v5936, %v5934
    %v5991 = vpack.c.b16 %v5937, %v5935
    %v5992 = vpack.c.b16 %v5940, %v5938
    %v5993 = vpack.c.b16 %v5941, %v5939
    %v5994 = vpack.c.b16 %v5944, %v5942
    %v5995 = vpack.c.b16 %v5945, %v5943
    %v5996 = vpack.c.b16 %v5948, %v5946
    %v5997 = vpack.c.b16 %v5949, %v5947
    %v5998 = vpack.c.b16 %v5952, %v5950
    %v5999 = vpack.c.b16 %v5953, %v5951
    %v6000 = vpack.c.b16 %v5956, %v5954
    %v6001 = vpack.c.b16 %v5957, %v5955
    %v6002 = vpack.c.b16 %v5960, %v5958
    %v6003 = vpack.c.b16 %v5961, %v5959
    %v6004 = vpack.c.b16 %v5964, %v5962
    %v6005 = vpack.c.b16 %v5965, %v5963
    %v6006 = vpack.c.b16 %v5968, %v5966
    %v6007 = vpack.c.b16 %v5969, %v5967
    %v6008 = vpack.c.b16 %v5972, %v5970
    %v6009 = vpack.c.b16 %v5973, %v5971
    %v6010 = vpack.c.b16 %v5976, %v5974
    %v6011 = vpack.c.b16 %v5977, %v5975
    %v6012 = vpack.c.b16 %v5980, %v5978
    %v6013 = vpack.c.b16 %v5981, %v5979
    %6046 = vmatprep.subr.bf16.mxu0 %v5983
    %6047 = vmatpush1.bf16.msra.mxu0 %v5982
    %6048 = vmatprep.subr.bf16.mxu0 %v5985
    %6049 = vmatpush1.bf16.msra.mxu0 %v5984
    %6050 = vmatprep.subr.bf16.mxu0 %v5987
    %6051 = vmatpush1.bf16.msra.mxu0 %v5986
    %6052 = vmatprep.subr.bf16.mxu0 %v5989
    %6053 = vmatpush1.bf16.msra.mxu0 %v5988
    %6054 = vmatprep.subr.bf16.mxu0 %v5991
    %6055 = vmatpush1.bf16.msra.mxu0 %v5990
    %6056 = vmatprep.subr.bf16.mxu0 %v5993
    %6057 = vmatpush1.bf16.msra.mxu0 %v5992
    %6058 = vmatprep.subr.bf16.mxu0 %v5995
    %6059 = vmatpush1.bf16.msra.mxu0 %v5994
    %6060 = vmatprep.subr.bf16.mxu0 %v5997
    %6061 = vmatpush1.bf16.msra.mxu0 %v5996
    %6062 = vmatprep.subr.bf16.mxu0 %v5999
    %6063 = vmatpush1.bf16.msra.mxu0 %v5998
    %6064 = vmatprep.subr.bf16.mxu0 %v6001
    %6065 = vmatpush1.bf16.msra.mxu0 %v6000
    %6066 = vmatprep.subr.bf16.mxu0 %v6003
    %6067 = vmatpush1.bf16.msra.mxu0 %v6002
    %6068 = vmatprep.subr.bf16.mxu0 %v6005
    %6069 = vmatpush1.bf16.msra.mxu0 %v6004
    %6070 = vmatprep.subr.bf16.mxu0 %v6007
    %6071 = vmatpush1.bf16.msra.mxu0 %v6006
    %6072 = vmatprep.subr.bf16.mxu0 %v6009
    %6073 = vmatpush1.bf16.msra.mxu0 %v6008
    %6074 = vmatprep.subr.bf16.mxu0 %v6011
    %6075 = vmatpush1.bf16.msra.mxu0 %v6010
    %6076 = vmatprep.subr.bf16.mxu0 %v6013
    %6077 = vmatpush1.bf16.msra.mxu0 %v6012
    %6078 = vmatprep.mubr.bf16.mxu0 %v4657
    %6079 = vmatmul.mubr.bf16.gmra.mrb[0].mxu0 %v4656
    %v6080 = vpop.f32.mrb[0].mxu0
    %v6081 = vadd.f32 0.0, %v6080
    %v6082 = vpop.f32.mrb[0].mxu0
    %v6083 = vadd.f32 0.0, %v6082
    %v6084 = vpop.f32.mrb[0].mxu0
    %v6085 = vadd.f32 0.0, %v6084
    %v6086 = vpop.f32.mrb[0].mxu0
    %v6087 = vadd.f32 0.0, %v6086
    %6088 = vmatprep.mubr.bf16.mxu0 %v4659
    %6089 = vmatmul.mubr.bf16.gmra.mrb[0].mxu0 %v4658
    %v6090 = vpop.f32.mrb[0].mxu0
    %v6091 = vadd.f32 0.0, %v6090
    %v6092 = vpop.f32.mrb[0].mxu0
    %v6093 = vadd.f32 0.0, %v6092
    %v6094 = vpop.f32.mrb[0].mxu0
    %v6095 = vadd.f32 0.0, %v6094
    %v6096 = vpop.f32.mrb[0].mxu0
    %v6097 = vadd.f32 0.0, %v6096
    %6098 = vmatprep.mubr.bf16.mxu0 %v4661
    %6099 = vmatmul.mubr.bf16.gmra.mrb[0].mxu0 %v4660
    %v6100 = vpop.f32.mrb[0].mxu0
    %v6101 = vadd.f32 0.0, %v6100
    %v6102 = vpop.f32.mrb[0].mxu0
    %v6103 = vadd.f32 0.0, %v6102
    %v6104 = vpop.f32.mrb[0].mxu0
    %v6105 = vadd.f32 0.0, %v6104
    %v6106 = vpop.f32.mrb[0].mxu0
    %v6107 = vadd.f32 0.0, %v6106
    %6108 = vmatprep.mubr.bf16.mxu0 %v4663
    %6109 = vmatmul.mubr.bf16.gmra.mrb[0].mxu0 %v4662
    %v6110 = vpop.f32.mrb[0].mxu0
    %v6111 = vadd.f32 0.0, %v6110
    %v6112 = vpop.f32.mrb[0].mxu0
    %v6113 = vadd.f32 0.0, %v6112
    %v6114 = vpop.f32.mrb[0].mxu0
    %v6115 = vadd.f32 0.0, %v6114
    %v6116 = vpop.f32.mrb[0].mxu0
    %v6117 = vadd.f32 0.0, %v6116
    %6118 = vmatprep.mubr.bf16.mxu0 %v4665
    %6119 = vmatmul.mubr.bf16.gmra.mrb[0].mxu0 %v4664
    %v6120 = vpop.f32.mrb[0].mxu0
    %v6121 = vadd.f32 0.0, %v6120
    %v6122 = vpop.f32.mrb[0].mxu0
    %v6123 = vadd.f32 0.0, %v6122
    %v6124 = vpop.f32.mrb[0].mxu0
    %v6125 = vadd.f32 0.0, %v6124
    %v6126 = vpop.f32.mrb[0].mxu0
    %v6127 = vadd.f32 0.0, %v6126
    %6128 = vmatprep.mubr.bf16.mxu0 %v4667
    %6129 = vmatmul.mubr.bf16.gmra.mrb[0].mxu0 %v4666
    %v6130 = vpop.f32.mrb[0].mxu0
    %v6131 = vadd.f32 0.0, %v6130
    %v6132 = vpop.f32.mrb[0].mxu0
    %v6133 = vadd.f32 0.0, %v6132
    %v6134 = vpop.f32.mrb[0].mxu0
    %v6135 = vadd.f32 0.0, %v6134
    %v6136 = vpop.f32.mrb[0].mxu0
    %v6137 = vadd.f32 0.0, %v6136
    %6138 = vmatprep.mubr.bf16.mxu0 %v4669
    %6139 = vmatmul.mubr.bf16.gmra.mrb[0].mxu0 %v4668
    %v6140 = vpop.f32.mrb[0].mxu0
    %v6141 = vadd.f32 0.0, %v6140
    %v6142 = vpop.f32.mrb[0].mxu0
    %v6143 = vadd.f32 0.0, %v6142
    %v6144 = vpop.f32.mrb[0].mxu0
    %v6145 = vadd.f32 0.0, %v6144
    %v6146 = vpop.f32.mrb[0].mxu0
    %v6147 = vadd.f32 0.0, %v6146
    %6148 = vmatprep.mubr.bf16.mxu0 %v4671
    %6149 = vmatmul.mubr.bf16.gmra.mrb[0].mxu0 %v4670
    %v6150 = vpop.f32.mrb[0].mxu0
    %v6151 = vadd.f32 0.0, %v6150
    %v6152 = vpop.f32.mrb[0].mxu0
    %v6153 = vadd.f32 0.0, %v6152
    %v6154 = vpop.f32.mrb[0].mxu0
    %v6155 = vadd.f32 0.0, %v6154
    %v6156 = vpop.f32.mrb[0].mxu0
    %v6157 = vadd.f32 0.0, %v6156
    %6158 = vmatprep.mubr.bf16.mxu0 %v4673
    %6159 = vmatmul.mubr.bf16.gmra.mrb[0].mxu0 %v4672
    %v6160 = vpop.f32.mrb[0].mxu0
    %v6161 = vadd.f32 0.0, %v6160
    %v6162 = vpop.f32.mrb[0].mxu0
    %v6163 = vadd.f32 0.0, %v6162
    %v6164 = vpop.f32.mrb[0].mxu0
    %v6165 = vadd.f32 0.0, %v6164
    %v6166 = vpop.f32.mrb[0].mxu0
    %v6167 = vadd.f32 0.0, %v6166
    %6168 = vmatprep.mubr.bf16.mxu0 %v4675
    %6169 = vmatmul.mubr.bf16.gmra.mrb[0].mxu0 %v4674
    %v6170 = vpop.f32.mrb[0].mxu0
    %v6171 = vadd.f32 0.0, %v6170
    %v6172 = vpop.f32.mrb[0].mxu0
    %v6173 = vadd.f32 0.0, %v6172
    %v6174 = vpop.f32.mrb[0].mxu0
    %v6175 = vadd.f32 0.0, %v6174
    %v6176 = vpop.f32.mrb[0].mxu0
    %v6177 = vadd.f32 0.0, %v6176
    %6178 = vmatprep.mubr.bf16.mxu0 %v4677
    %6179 = vmatmul.mubr.bf16.gmra.mrb[0].mxu0 %v4676
    %v6180 = vpop.f32.mrb[0].mxu0
    %v6181 = vadd.f32 0.0, %v6180
    %v6182 = vpop.f32.mrb[0].mxu0
    %v6183 = vadd.f32 0.0, %v6182
    %v6184 = vpop.f32.mrb[0].mxu0
    %v6185 = vadd.f32 0.0, %v6184
    %v6186 = vpop.f32.mrb[0].mxu0
    %v6187 = vadd.f32 0.0, %v6186
    %6188 = vmatprep.mubr.bf16.mxu0 %v4679
    %6189 = vmatmul.mubr.bf16.gmra.mrb[0].mxu0 %v4678
    %v6190 = vpop.f32.mrb[0].mxu0
    %v6191 = vadd.f32 0.0, %v6190
    %v6192 = vpop.f32.mrb[0].mxu0
    %v6193 = vadd.f32 0.0, %v6192
    %v6194 = vpop.f32.mrb[0].mxu0
    %v6195 = vadd.f32 0.0, %v6194
    %v6196 = vpop.f32.mrb[0].mxu0
    %v6197 = vadd.f32 0.0, %v6196
    %6198 = vmatprep.mubr.bf16.mxu0 %v4681
    %6199 = vmatmul.mubr.bf16.gmra.mrb[0].mxu0 %v4680
    %v6200 = vpop.f32.mrb[0].mxu0
    %v6201 = vadd.f32 0.0, %v6200
    %v6202 = vpop.f32.mrb[0].mxu0
    %v6203 = vadd.f32 0.0, %v6202
    %v6204 = vpop.f32.mrb[0].mxu0
    %v6205 = vadd.f32 0.0, %v6204
    %v6206 = vpop.f32.mrb[0].mxu0
    %v6207 = vadd.f32 0.0, %v6206
    %6208 = vmatprep.mubr.bf16.mxu0 %v4683
    %6209 = vmatmul.mubr.bf16.gmra.mrb[0].mxu0 %v4682
    %v6210 = vpop.f32.mrb[0].mxu0
    %v6211 = vadd.f32 0.0, %v6210
    %v6212 = vpop.f32.mrb[0].mxu0
    %v6213 = vadd.f32 0.0, %v6212
    %v6214 = vpop.f32.mrb[0].mxu0
    %v6215 = vadd.f32 0.0, %v6214
    %v6216 = vpop.f32.mrb[0].mxu0
    %v6217 = vadd.f32 0.0, %v6216
    %6218 = vmatprep.mubr.bf16.mxu0 %v4685
    %6219 = vmatmul.mubr.bf16.gmra.mrb[0].mxu0 %v4684
    %v6220 = vpop.f32.mrb[0].mxu0
    %v6221 = vadd.f32 0.0, %v6220
    %v6222 = vpop.f32.mrb[0].mxu0
    %v6223 = vadd.f32 0.0, %v6222
    %v6224 = vpop.f32.mrb[0].mxu0
    %v6225 = vadd.f32 0.0, %v6224
    %v6226 = vpop.f32.mrb[0].mxu0
    %v6227 = vadd.f32 0.0, %v6226
    %6228 = vmatprep.mubr.bf16.mxu0 %v4687
    %6229 = vmatmul.mubr.bf16.gmra.mrb[0].mxu0 %v4686
    %v6230 = vpop.f32.mrb[0].mxu0
    %v6231 = vadd.f32 0.0, %v6230
    %v6232 = vpop.f32.mrb[0].mxu0
    %v6233 = vadd.f32 0.0, %v6232
    %v6234 = vpop.f32.mrb[0].mxu0
    %v6235 = vadd.f32 0.0, %v6234
    %v6236 = vpop.f32.mrb[0].mxu0
    %v6237 = vadd.f32 0.0, %v6236
    %6238 = vmatprep.mubr.bf16.mxu0 %v4689
    %6239 = vmatmul.mubr.bf16.gmra.mrb[0].mxu0 %v4688
    %v6240 = vpop.f32.mrb[0].mxu0
    %v6241 = vadd.f32 0.0, %v6240
    %v6242 = vpop.f32.mrb[0].mxu0
    %v6243 = vadd.f32 0.0, %v6242
    %v6244 = vpop.f32.mrb[0].mxu0
    %v6245 = vadd.f32 0.0, %v6244
    %v6246 = vpop.f32.mrb[0].mxu0
    %v6247 = vadd.f32 0.0, %v6246
    %6248 = vmatprep.mubr.bf16.mxu0 %v4691
    %6249 = vmatmul.mubr.bf16.gmra.mrb[0].mxu0 %v4690
    %v6250 = vpop.f32.mrb[0].mxu0
    %v6251 = vadd.f32 0.0, %v6250
    %v6252 = vpop.f32.mrb[0].mxu0
    %v6253 = vadd.f32 0.0, %v6252
    %v6254 = vpop.f32.mrb[0].mxu0
    %v6255 = vadd.f32 0.0, %v6254
    %v6256 = vpop.f32.mrb[0].mxu0
    %v6257 = vadd.f32 0.0, %v6256
    %6258 = vmatprep.mubr.bf16.mxu0 %v4693
    %6259 = vmatmul.mubr.bf16.gmra.mrb[0].mxu0 %v4692
    %v6260 = vpop.f32.mrb[0].mxu0
    %v6261 = vadd.f32 0.0, %v6260
    %v6262 = vpop.f32.mrb[0].mxu0
    %v6263 = vadd.f32 0.0, %v6262
    %v6264 = vpop.f32.mrb[0].mxu0
    %v6265 = vadd.f32 0.0, %v6264
    %v6266 = vpop.f32.mrb[0].mxu0
    %v6267 = vadd.f32 0.0, %v6266
    %6268 = vmatprep.mubr.bf16.mxu0 %v4695
    %6269 = vmatmul.mubr.bf16.gmra.mrb[0].mxu0 %v4694
    %v6270 = vpop.f32.mrb[0].mxu0
    %v6271 = vadd.f32 0.0, %v6270
    %v6272 = vpop.f32.mrb[0].mxu0
    %v6273 = vadd.f32 0.0, %v6272
    %v6274 = vpop.f32.mrb[0].mxu0
    %v6275 = vadd.f32 0.0, %v6274
    %v6276 = vpop.f32.mrb[0].mxu0
    %v6277 = vadd.f32 0.0, %v6276
    %6278 = vmatprep.mubr.bf16.mxu0 %v4697
    %6279 = vmatmul.mubr.bf16.gmra.mrb[0].mxu0 %v4696
    %v6280 = vpop.f32.mrb[0].mxu0
    %v6281 = vadd.f32 0.0, %v6280
    %v6282 = vpop.f32.mrb[0].mxu0
    %v6283 = vadd.f32 0.0, %v6282
    %v6284 = vpop.f32.mrb[0].mxu0
    %v6285 = vadd.f32 0.0, %v6284
    %v6286 = vpop.f32.mrb[0].mxu0
    %v6287 = vadd.f32 0.0, %v6286
    %6288 = vmatprep.mubr.bf16.mxu0 %v4699
    %6289 = vmatmul.mubr.bf16.gmra.mrb[0].mxu0 %v4698
    %v6290 = vpop.f32.mrb[0].mxu0
    %v6291 = vadd.f32 0.0, %v6290
    %v6292 = vpop.f32.mrb[0].mxu0
    %v6293 = vadd.f32 0.0, %v6292
    %v6294 = vpop.f32.mrb[0].mxu0
    %v6295 = vadd.f32 0.0, %v6294
    %v6296 = vpop.f32.mrb[0].mxu0
    %v6297 = vadd.f32 0.0, %v6296
    %6298 = vmatprep.mubr.bf16.mxu0 %v4701
    %6299 = vmatmul.mubr.bf16.gmra.mrb[0].mxu0 %v4700
    %v6300 = vpop.f32.mrb[0].mxu0
    %v6301 = vadd.f32 0.0, %v6300
    %v6302 = vpop.f32.mrb[0].mxu0
    %v6303 = vadd.f32 0.0, %v6302
    %v6304 = vpop.f32.mrb[0].mxu0
    %v6305 = vadd.f32 0.0, %v6304
    %v6306 = vpop.f32.mrb[0].mxu0
    %v6307 = vadd.f32 0.0, %v6306
    %6308 = vmatprep.mubr.bf16.mxu0 %v4703
    %6309 = vmatmul.mubr.bf16.gmra.mrb[0].mxu0 %v4702
    %v6310 = vpop.f32.mrb[0].mxu0
    %v6311 = vadd.f32 0.0, %v6310
    %v6312 = vpop.f32.mrb[0].mxu0
    %v6313 = vadd.f32 0.0, %v6312
    %v6314 = vpop.f32.mrb[0].mxu0
    %v6315 = vadd.f32 0.0, %v6314
    %v6316 = vpop.f32.mrb[0].mxu0
    %v6317 = vadd.f32 0.0, %v6316
    %6318 = vmatprep.mubr.bf16.mxu0 %v4705
    %6319 = vmatmul.mubr.bf16.gmra.mrb[0].mxu0 %v4704
    %v6320 = vpop.f32.mrb[0].mxu0
    %v6321 = vadd.f32 0.0, %v6320
    %v6322 = vpop.f32.mrb[0].mxu0
    %v6323 = vadd.f32 0.0, %v6322
    %v6324 = vpop.f32.mrb[0].mxu0
    %v6325 = vadd.f32 0.0, %v6324
    %v6326 = vpop.f32.mrb[0].mxu0
    %v6327 = vadd.f32 0.0, %v6326
    %6328 = vmatprep.mubr.bf16.mxu0 %v4707
    %6329 = vmatmul.mubr.bf16.gmra.mrb[0].mxu0 %v4706
    %v6330 = vpop.f32.mrb[0].mxu0
    %v6331 = vadd.f32 0.0, %v6330
    %v6332 = vpop.f32.mrb[0].mxu0
    %v6333 = vadd.f32 0.0, %v6332
    %v6334 = vpop.f32.mrb[0].mxu0
    %v6335 = vadd.f32 0.0, %v6334
    %v6336 = vpop.f32.mrb[0].mxu0
    %v6337 = vadd.f32 0.0, %v6336
    %6338 = vmatprep.mubr.bf16.mxu0 %v4709
    %6339 = vmatmul.mubr.bf16.gmra.mrb[0].mxu0 %v4708
    %v6340 = vpop.f32.mrb[0].mxu0
    %v6341 = vadd.f32 0.0, %v6340
    %v6342 = vpop.f32.mrb[0].mxu0
    %v6343 = vadd.f32 0.0, %v6342
    %v6344 = vpop.f32.mrb[0].mxu0
    %v6345 = vadd.f32 0.0, %v6344
    %v6346 = vpop.f32.mrb[0].mxu0
    %v6347 = vadd.f32 0.0, %v6346
    %6348 = vmatprep.mubr.bf16.mxu0 %v4711
    %6349 = vmatmul.mubr.bf16.gmra.mrb[0].mxu0 %v4710
    %v6350 = vpop.f32.mrb[0].mxu0
    %v6351 = vadd.f32 0.0, %v6350
    %v6352 = vpop.f32.mrb[0].mxu0
    %v6353 = vadd.f32 0.0, %v6352
    %v6354 = vpop.f32.mrb[0].mxu0
    %v6355 = vadd.f32 0.0, %v6354
    %v6356 = vpop.f32.mrb[0].mxu0
    %v6357 = vadd.f32 0.0, %v6356
    %6358 = vmatprep.mubr.bf16.mxu0 %v4713
    %6359 = vmatmul.mubr.bf16.gmra.mrb[0].mxu0 %v4712
    %v6360 = vpop.f32.mrb[0].mxu0
    %v6361 = vadd.f32 0.0, %v6360
    %v6362 = vpop.f32.mrb[0].mxu0
    %v6363 = vadd.f32 0.0, %v6362
    %v6364 = vpop.f32.mrb[0].mxu0
    %v6365 = vadd.f32 0.0, %v6364
    %v6366 = vpop.f32.mrb[0].mxu0
    %v6367 = vadd.f32 0.0, %v6366
    %6368 = vmatprep.mubr.bf16.mxu0 %v4715
    %6369 = vmatmul.mubr.bf16.gmra.mrb[0].mxu0 %v4714
    %v6370 = vpop.f32.mrb[0].mxu0
    %v6371 = vadd.f32 0.0, %v6370
    %v6372 = vpop.f32.mrb[0].mxu0
    %v6373 = vadd.f32 0.0, %v6372
    %v6374 = vpop.f32.mrb[0].mxu0
    %v6375 = vadd.f32 0.0, %v6374
    %v6376 = vpop.f32.mrb[0].mxu0
    %v6377 = vadd.f32 0.0, %v6376
    %6378 = vmatprep.mubr.bf16.mxu0 %v4717
    %6379 = vmatmul.mubr.bf16.gmra.mrb[0].mxu0 %v4716
    %v6380 = vpop.f32.mrb[0].mxu0
    %v6381 = vadd.f32 0.0, %v6380
    %v6382 = vpop.f32.mrb[0].mxu0
    %v6383 = vadd.f32 0.0, %v6382
    %v6384 = vpop.f32.mrb[0].mxu0
    %v6385 = vadd.f32 0.0, %v6384
    %v6386 = vpop.f32.mrb[0].mxu0
    %v6387 = vadd.f32 0.0, %v6386
    %6388 = vmatprep.mubr.bf16.mxu0 %v4719
    %6389 = vmatmul.mubr.bf16.gmra.mrb[0].mxu0 %v4718
    %v6390 = vpop.f32.mrb[0].mxu0
    %v6391 = vadd.f32 0.0, %v6390
    %v6392 = vpop.f32.mrb[0].mxu0
    %v6393 = vadd.f32 0.0, %v6392
    %v6394 = vpop.f32.mrb[0].mxu0
    %v6395 = vadd.f32 0.0, %v6394
    %v6396 = vpop.f32.mrb[0].mxu0
    %v6397 = vadd.f32 0.0, %v6396
    %6398 = vmatprep.mubr.bf16.mxu0 %v4721
    %6399 = vmatmul.mubr.bf16.gmra.mrb[0].mxu0 %v4720
    %v6400 = vpop.f32.mrb[0].mxu0
    %v6401 = vadd.f32 0.0, %v6400
    %v6402 = vpop.f32.mrb[0].mxu0
    %v6403 = vadd.f32 0.0, %v6402
    %v6404 = vpop.f32.mrb[0].mxu0
    %v6405 = vadd.f32 0.0, %v6404
    %v6406 = vpop.f32.mrb[0].mxu0
    %v6407 = vadd.f32 0.0, %v6406
    %6408 = vmatprep.mubr.bf16.mxu0 %v4723
    %6409 = vmatmul.mubr.bf16.gmra.mrb[0].mxu0 %v4722
    %v6410 = vpop.f32.mrb[0].mxu0
    %v6411 = vadd.f32 0.0, %v6410
    %v6412 = vpop.f32.mrb[0].mxu0
    %v6413 = vadd.f32 0.0, %v6412
    %v6414 = vpop.f32.mrb[0].mxu0
    %v6415 = vadd.f32 0.0, %v6414
    %v6416 = vpop.f32.mrb[0].mxu0
    %v6417 = vadd.f32 0.0, %v6416
    %6418 = vdwg.mxu0
    %v6419 = vadd.f32 %v5516, %v6081
    %v6420 = vadd.f32 %v5518, %v6083
    %v6421 = vadd.f32 %v5520, %v6085
    %v6422 = vadd.f32 %v5522, %v6087
    %v6423 = vadd.f32 %v5526, %v6091
    %v6424 = vadd.f32 %v5528, %v6093
    %v6425 = vadd.f32 %v5530, %v6095
    %v6426 = vadd.f32 %v5532, %v6097
    %v6427 = vadd.f32 %v5536, %v6101
    %v6428 = vadd.f32 %v5538, %v6103
    %v6429 = vadd.f32 %v5540, %v6105
    %v6430 = vadd.f32 %v5542, %v6107
    %v6431 = vadd.f32 %v5546, %v6111
    %v6432 = vadd.f32 %v5548, %v6113
    %v6433 = vadd.f32 %v5550, %v6115
    %v6434 = vadd.f32 %v5552, %v6117
    %v6435 = vadd.f32 %v5556, %v6121
    %v6436 = vadd.f32 %v5558, %v6123
    %v6437 = vadd.f32 %v5560, %v6125
    %v6438 = vadd.f32 %v5562, %v6127
    %v6439 = vadd.f32 %v5566, %v6131
    %v6440 = vadd.f32 %v5568, %v6133
    %v6441 = vadd.f32 %v5570, %v6135
    %v6442 = vadd.f32 %v5572, %v6137
    %v6443 = vadd.f32 %v5576, %v6141
    %v6444 = vadd.f32 %v5578, %v6143
    %v6445 = vadd.f32 %v5580, %v6145
    %v6446 = vadd.f32 %v5582, %v6147
    %v6447 = vadd.f32 %v5586, %v6151
    %v6448 = vadd.f32 %v5588, %v6153
    %v6449 = vadd.f32 %v5590, %v6155
    %v6450 = vadd.f32 %v5592, %v6157
    %v6451 = vadd.f32 %v5596, %v6161
    %v6452 = vadd.f32 %v5598, %v6163
    %v6453 = vadd.f32 %v5600, %v6165
    %v6454 = vadd.f32 %v5602, %v6167
    %v6455 = vadd.f32 %v5606, %v6171
    %v6456 = vadd.f32 %v5608, %v6173
    %v6457 = vadd.f32 %v5610, %v6175
    %v6458 = vadd.f32 %v5612, %v6177
    %v6459 = vadd.f32 %v5616, %v6181
    %v6460 = vadd.f32 %v5618, %v6183
    %v6461 = vadd.f32 %v5620, %v6185
    %v6462 = vadd.f32 %v5622, %v6187
    %v6463 = vadd.f32 %v5626, %v6191
    %v6464 = vadd.f32 %v5628, %v6193
    %v6465 = vadd.f32 %v5630, %v6195
    %v6466 = vadd.f32 %v5632, %v6197
    %v6467 = vadd.f32 %v5636, %v6201
    %v6468 = vadd.f32 %v5638, %v6203
    %v6469 = vadd.f32 %v5640, %v6205
    %v6470 = vadd.f32 %v5642, %v6207
    %v6471 = vadd.f32 %v5646, %v6211
    %v6472 = vadd.f32 %v5648, %v6213
    %v6473 = vadd.f32 %v5650, %v6215
    %v6474 = vadd.f32 %v5652, %v6217
    %v6475 = vadd.f32 %v5656, %v6221
    %v6476 = vadd.f32 %v5658, %v6223
    %v6477 = vadd.f32 %v5660, %v6225
    %v6478 = vadd.f32 %v5662, %v6227
    %v6479 = vadd.f32 %v5666, %v6231
    %v6480 = vadd.f32 %v5668, %v6233
    %v6481 = vadd.f32 %v5670, %v6235
    %v6482 = vadd.f32 %v5672, %v6237
    %v6483 = vadd.f32 %v5676, %v6241
    %v6484 = vadd.f32 %v5678, %v6243
    %v6485 = vadd.f32 %v5680, %v6245
    %v6486 = vadd.f32 %v5682, %v6247
    %v6487 = vadd.f32 %v5686, %v6251
    %v6488 = vadd.f32 %v5688, %v6253
    %v6489 = vadd.f32 %v5690, %v6255
    %v6490 = vadd.f32 %v5692, %v6257
    %v6491 = vadd.f32 %v5696, %v6261
    %v6492 = vadd.f32 %v5698, %v6263
    %v6493 = vadd.f32 %v5700, %v6265
    %v6494 = vadd.f32 %v5702, %v6267
    %v6495 = vadd.f32 %v5706, %v6271
    %v6496 = vadd.f32 %v5708, %v6273
    %v6497 = vadd.f32 %v5710, %v6275
    %v6498 = vadd.f32 %v5712, %v6277
    %v6499 = vadd.f32 %v5716, %v6281
    %v6500 = vadd.f32 %v5718, %v6283
    %v6501 = vadd.f32 %v5720, %v6285
    %v6502 = vadd.f32 %v5722, %v6287
    %v6503 = vadd.f32 %v5726, %v6291
    %v6504 = vadd.f32 %v5728, %v6293
    %v6505 = vadd.f32 %v5730, %v6295
    %v6506 = vadd.f32 %v5732, %v6297
    %v6507 = vadd.f32 %v5736, %v6301
    %v6508 = vadd.f32 %v5738, %v6303
    %v6509 = vadd.f32 %v5740, %v6305
    %v6510 = vadd.f32 %v5742, %v6307
    %v6511 = vadd.f32 %v5746, %v6311
    %v6512 = vadd.f32 %v5748, %v6313
    %v6513 = vadd.f32 %v5750, %v6315
    %v6514 = vadd.f32 %v5752, %v6317
    %v6515 = vadd.f32 %v5756, %v6321
    %v6516 = vadd.f32 %v5758, %v6323
    %v6517 = vadd.f32 %v5760, %v6325
    %v6518 = vadd.f32 %v5762, %v6327
    %v6519 = vadd.f32 %v5766, %v6331
    %v6520 = vadd.f32 %v5768, %v6333
    %v6521 = vadd.f32 %v5770, %v6335
    %v6522 = vadd.f32 %v5772, %v6337
    %v6523 = vadd.f32 %v5776, %v6341
    %v6524 = vadd.f32 %v5778, %v6343
    %v6525 = vadd.f32 %v5780, %v6345
    %v6526 = vadd.f32 %v5782, %v6347
    %v6527 = vadd.f32 %v5786, %v6351
    %v6528 = vadd.f32 %v5788, %v6353
    %v6529 = vadd.f32 %v5790, %v6355
    %v6530 = vadd.f32 %v5792, %v6357
    %v6531 = vadd.f32 %v5796, %v6361
    %v6532 = vadd.f32 %v5798, %v6363
    %v6533 = vadd.f32 %v5800, %v6365
    %v6534 = vadd.f32 %v5802, %v6367
    %v6535 = vadd.f32 %v5806, %v6371
    %v6536 = vadd.f32 %v5808, %v6373
    %v6537 = vadd.f32 %v5810, %v6375
    %v6538 = vadd.f32 %v5812, %v6377
    %v6539 = vadd.f32 %v5816, %v6381
    %v6540 = vadd.f32 %v5818, %v6383
    %v6541 = vadd.f32 %v5820, %v6385
    %v6542 = vadd.f32 %v5822, %v6387
    %v6543 = vadd.f32 %v5826, %v6391
    %v6544 = vadd.f32 %v5828, %v6393
    %v6545 = vadd.f32 %v5830, %v6395
    %v6546 = vadd.f32 %v5832, %v6397
    %v6547 = vadd.f32 %v5836, %v6401
    %v6548 = vadd.f32 %v5838, %v6403
    %v6549 = vadd.f32 %v5840, %v6405
    %v6550 = vadd.f32 %v5842, %v6407
    %v6551 = vadd.f32 %v5846, %v6411
    %v6552 = vadd.f32 %v5848, %v6413
    %v6553 = vadd.f32 %v5850, %v6415
    %v6554 = vadd.f32 %v5852, %v6417
    %v6555 = vld [vmem:[%s4] sm:$0x3]
    %v6557 = vlaneseq
    %v6558 = vshrl.u32 %v6557, 7
    %v6559 = vsub.s32 0, %v6558
    %v6560 = vrot.slane %v6555, %v6559
    %v6561 = vlaneseq
    %v6562 = vshrl.u32 %v6561, 7
    %v6563 = vsub.s32 1, %v6562
    %v6564 = vrot.slane %v6555, %v6563
    %v6567 = vadd.f32 %v6419, %v6560
    %v6568 = vadd.f32 %v6420, %v6564
    %v6569 = vadd.f32 %v6421, %v6560
    %v6570 = vadd.f32 %v6422, %v6564
    %v6571 = vadd.f32 %v6423, %v6560
    %v6572 = vadd.f32 %v6424, %v6564
    %v6573 = vadd.f32 %v6425, %v6560
    %v6574 = vadd.f32 %v6426, %v6564
    %v6575 = vadd.f32 %v6427, %v6560
    %v6576 = vadd.f32 %v6428, %v6564
    %v6577 = vadd.f32 %v6429, %v6560
    %v6578 = vadd.f32 %v6430, %v6564
    %v6579 = vadd.f32 %v6431, %v6560
    %v6580 = vadd.f32 %v6432, %v6564
    %v6581 = vadd.f32 %v6433, %v6560
    %v6582 = vadd.f32 %v6434, %v6564
    %v6583 = vadd.f32 %v6435, %v6560
    %v6584 = vadd.f32 %v6436, %v6564
    %v6585 = vadd.f32 %v6437, %v6560
    %v6586 = vadd.f32 %v6438, %v6564
    %v6587 = vadd.f32 %v6439, %v6560
    %v6588 = vadd.f32 %v6440, %v6564
    %v6589 = vadd.f32 %v6441, %v6560
    %v6590 = vadd.f32 %v6442, %v6564
    %v6591 = vadd.f32 %v6443, %v6560
    %v6592 = vadd.f32 %v6444, %v6564
    %v6593 = vadd.f32 %v6445, %v6560
    %v6594 = vadd.f32 %v6446, %v6564
    %v6595 = vadd.f32 %v6447, %v6560
    %v6596 = vadd.f32 %v6448, %v6564
    %v6597 = vadd.f32 %v6449, %v6560
    %v6598 = vadd.f32 %v6450, %v6564
    %v6599 = vadd.f32 %v6451, %v6560
    %v6600 = vadd.f32 %v6452, %v6564
    %v6601 = vadd.f32 %v6453, %v6560
    %v6602 = vadd.f32 %v6454, %v6564
    %v6603 = vadd.f32 %v6455, %v6560
    %v6604 = vadd.f32 %v6456, %v6564
    %v6605 = vadd.f32 %v6457, %v6560
    %v6606 = vadd.f32 %v6458, %v6564
    %v6607 = vadd.f32 %v6459, %v6560
    %v6608 = vadd.f32 %v6460, %v6564
    %v6609 = vadd.f32 %v6461, %v6560
    %v6610 = vadd.f32 %v6462, %v6564
    %v6611 = vadd.f32 %v6463, %v6560
    %v6612 = vadd.f32 %v6464, %v6564
    %v6613 = vadd.f32 %v6465, %v6560
    %v6614 = vadd.f32 %v6466, %v6564
    %v6615 = vadd.f32 %v6467, %v6560
    %v6616 = vadd.f32 %v6468, %v6564
    %v6617 = vadd.f32 %v6469, %v6560
    %v6618 = vadd.f32 %v6470, %v6564
    %v6619 = vadd.f32 %v6471, %v6560
    %v6620 = vadd.f32 %v6472, %v6564
    %v6621 = vadd.f32 %v6473, %v6560
    %v6622 = vadd.f32 %v6474, %v6564
    %v6623 = vadd.f32 %v6475, %v6560
    %v6624 = vadd.f32 %v6476, %v6564
    %v6625 = vadd.f32 %v6477, %v6560
    %v6626 = vadd.f32 %v6478, %v6564
    %v6627 = vadd.f32 %v6479, %v6560
    %v6628 = vadd.f32 %v6480, %v6564
    %v6629 = vadd.f32 %v6481, %v6560
    %v6630 = vadd.f32 %v6482, %v6564
    %v6631 = vadd.f32 %v6483, %v6560
    %v6632 = vadd.f32 %v6484, %v6564
    %v6633 = vadd.f32 %v6485, %v6560
    %v6634 = vadd.f32 %v6486, %v6564
    %v6635 = vadd.f32 %v6487, %v6560
    %v6636 = vadd.f32 %v6488, %v6564
    %v6637 = vadd.f32 %v6489, %v6560
    %v6638 = vadd.f32 %v6490, %v6564
    %v6639 = vadd.f32 %v6491, %v6560
    %v6640 = vadd.f32 %v6492, %v6564
    %v6641 = vadd.f32 %v6493, %v6560
    %v6642 = vadd.f32 %v6494, %v6564
    %v6643 = vadd.f32 %v6495, %v6560
    %v6644 = vadd.f32 %v6496, %v6564
    %v6645 = vadd.f32 %v6497, %v6560
    %v6646 = vadd.f32 %v6498, %v6564
    %v6647 = vadd.f32 %v6499, %v6560
    %v6648 = vadd.f32 %v6500, %v6564
    %v6649 = vadd.f32 %v6501, %v6560
    %v6650 = vadd.f32 %v6502, %v6564
    %v6651 = vadd.f32 %v6503, %v6560
    %v6652 = vadd.f32 %v6504, %v6564
    %v6653 = vadd.f32 %v6505, %v6560
    %v6654 = vadd.f32 %v6506, %v6564
    %v6655 = vadd.f32 %v6507, %v6560
    %v6656 = vadd.f32 %v6508, %v6564
    %v6657 = vadd.f32 %v6509, %v6560
    %v6658 = vadd.f32 %v6510, %v6564
    %v6659 = vadd.f32 %v6511, %v6560
    %v6660 = vadd.f32 %v6512, %v6564
    %v6661 = vadd.f32 %v6513, %v6560
    %v6662 = vadd.f32 %v6514, %v6564
    %v6663 = vadd.f32 %v6515, %v6560
    %v6664 = vadd.f32 %v6516, %v6564
    %v6665 = vadd.f32 %v6517, %v6560
    %v6666 = vadd.f32 %v6518, %v6564
    %v6667 = vadd.f32 %v6519, %v6560
    %v6668 = vadd.f32 %v6520, %v6564
    %v6669 = vadd.f32 %v6521, %v6560
    %v6670 = vadd.f32 %v6522, %v6564
    %v6671 = vadd.f32 %v6523, %v6560
    %v6672 = vadd.f32 %v6524, %v6564
    %v6673 = vadd.f32 %v6525, %v6560
    %v6674 = vadd.f32 %v6526, %v6564
    %v6675 = vadd.f32 %v6527, %v6560
    %v6676 = vadd.f32 %v6528, %v6564
    %v6677 = vadd.f32 %v6529, %v6560
    %v6678 = vadd.f32 %v6530, %v6564
    %v6679 = vadd.f32 %v6531, %v6560
    %v6680 = vadd.f32 %v6532, %v6564
    %v6681 = vadd.f32 %v6533, %v6560
    %v6682 = vadd.f32 %v6534, %v6564
    %v6683 = vadd.f32 %v6535, %v6560
    %v6684 = vadd.f32 %v6536, %v6564
    %v6685 = vadd.f32 %v6537, %v6560
    %v6686 = vadd.f32 %v6538, %v6564
    %v6687 = vadd.f32 %v6539, %v6560
    %v6688 = vadd.f32 %v6540, %v6564
    %v6689 = vadd.f32 %v6541, %v6560
    %v6690 = vadd.f32 %v6542, %v6564
    %v6691 = vadd.f32 %v6543, %v6560
    %v6692 = vadd.f32 %v6544, %v6564
    %v6693 = vadd.f32 %v6545, %v6560
    %v6694 = vadd.f32 %v6546, %v6564
    %v6695 = vadd.f32 %v6547, %v6560
    %v6696 = vadd.f32 %v6548, %v6564
    %v6697 = vadd.f32 %v6549, %v6560
    %v6698 = vadd.f32 %v6550, %v6564
    %v6699 = vadd.f32 %v6551, %v6560
    %v6700 = vadd.f32 %v6552, %v6564
    %v6701 = vadd.f32 %v6553, %v6560
    %v6702 = vadd.f32 %v6554, %v6564
    %v6703 = vmax.f32 %v6567, 0.0
    %v6704 = vmax.f32 %v6568, 0.0
    %v6705 = vmax.f32 %v6569, 0.0
    %v6706 = vmax.f32 %v6570, 0.0
    %v6707 = vmax.f32 %v6571, 0.0
    %v6708 = vmax.f32 %v6572, 0.0
    %v6709 = vmax.f32 %v6573, 0.0
    %v6710 = vmax.f32 %v6574, 0.0
    %v6711 = vmax.f32 %v6575, 0.0
    %v6712 = vmax.f32 %v6576, 0.0
    %v6713 = vmax.f32 %v6577, 0.0
    %v6714 = vmax.f32 %v6578, 0.0
    %v6715 = vmax.f32 %v6579, 0.0
    %v6716 = vmax.f32 %v6580, 0.0
    %v6717 = vmax.f32 %v6581, 0.0
    %v6718 = vmax.f32 %v6582, 0.0
    %v6719 = vmax.f32 %v6583, 0.0
    %v6720 = vmax.f32 %v6584, 0.0
    %v6721 = vmax.f32 %v6585, 0.0
    %v6722 = vmax.f32 %v6586, 0.0
    %v6723 = vmax.f32 %v6587, 0.0
    %v6724 = vmax.f32 %v6588, 0.0
    %v6725 = vmax.f32 %v6589, 0.0
    %v6726 = vmax.f32 %v6590, 0.0
    %v6727 = vmax.f32 %v6591, 0.0
    %v6728 = vmax.f32 %v6592, 0.0
    %v6729 = vmax.f32 %v6593, 0.0
    %v6730 = vmax.f32 %v6594, 0.0
    %v6731 = vmax.f32 %v6595, 0.0
    %v6732 = vmax.f32 %v6596, 0.0
    %v6733 = vmax.f32 %v6597, 0.0
    %v6734 = vmax.f32 %v6598, 0.0
    %v6735 = vmax.f32 %v6599, 0.0
    %v6736 = vmax.f32 %v6600, 0.0
    %v6737 = vmax.f32 %v6601, 0.0
    %v6738 = vmax.f32 %v6602, 0.0
    %v6739 = vmax.f32 %v6603, 0.0
    %v6740 = vmax.f32 %v6604, 0.0
    %v6741 = vmax.f32 %v6605, 0.0
    %v6742 = vmax.f32 %v6606, 0.0
    %v6743 = vmax.f32 %v6607, 0.0
    %v6744 = vmax.f32 %v6608, 0.0
    %v6745 = vmax.f32 %v6609, 0.0
    %v6746 = vmax.f32 %v6610, 0.0
    %v6747 = vmax.f32 %v6611, 0.0
    %v6748 = vmax.f32 %v6612, 0.0
    %v6749 = vmax.f32 %v6613, 0.0
    %v6750 = vmax.f32 %v6614, 0.0
    %v6751 = vmax.f32 %v6615, 0.0
    %v6752 = vmax.f32 %v6616, 0.0
    %v6753 = vmax.f32 %v6617, 0.0
    %v6754 = vmax.f32 %v6618, 0.0
    %v6755 = vmax.f32 %v6619, 0.0
    %v6756 = vmax.f32 %v6620, 0.0
    %v6757 = vmax.f32 %v6621, 0.0
    %v6758 = vmax.f32 %v6622, 0.0
    %v6759 = vmax.f32 %v6623, 0.0
    %v6760 = vmax.f32 %v6624, 0.0
    %v6761 = vmax.f32 %v6625, 0.0
    %v6762 = vmax.f32 %v6626, 0.0
    %v6763 = vmax.f32 %v6627, 0.0
    %v6764 = vmax.f32 %v6628, 0.0
    %v6765 = vmax.f32 %v6629, 0.0
    %v6766 = vmax.f32 %v6630, 0.0
    %v6767 = vmax.f32 %v6631, 0.0
    %v6768 = vmax.f32 %v6632, 0.0
    %v6769 = vmax.f32 %v6633, 0.0
    %v6770 = vmax.f32 %v6634, 0.0
    %v6771 = vmax.f32 %v6635, 0.0
    %v6772 = vmax.f32 %v6636, 0.0
    %v6773 = vmax.f32 %v6637, 0.0
    %v6774 = vmax.f32 %v6638, 0.0
    %v6775 = vmax.f32 %v6639, 0.0
    %v6776 = vmax.f32 %v6640, 0.0
    %v6777 = vmax.f32 %v6641, 0.0
    %v6778 = vmax.f32 %v6642, 0.0
    %v6779 = vmax.f32 %v6643, 0.0
    %v6780 = vmax.f32 %v6644, 0.0
    %v6781 = vmax.f32 %v6645, 0.0
    %v6782 = vmax.f32 %v6646, 0.0
    %v6783 = vmax.f32 %v6647, 0.0
    %v6784 = vmax.f32 %v6648, 0.0
    %v6785 = vmax.f32 %v6649, 0.0
    %v6786 = vmax.f32 %v6650, 0.0
    %v6787 = vmax.f32 %v6651, 0.0
    %v6788 = vmax.f32 %v6652, 0.0
    %v6789 = vmax.f32 %v6653, 0.0
    %v6790 = vmax.f32 %v6654, 0.0
    %v6791 = vmax.f32 %v6655, 0.0
    %v6792 = vmax.f32 %v6656, 0.0
    %v6793 = vmax.f32 %v6657, 0.0
    %v6794 = vmax.f32 %v6658, 0.0
    %v6795 = vmax.f32 %v6659, 0.0
    %v6796 = vmax.f32 %v6660, 0.0
    %v6797 = vmax.f32 %v6661, 0.0
    %v6798 = vmax.f32 %v6662, 0.0
    %v6799 = vmax.f32 %v6663, 0.0
    %v6800 = vmax.f32 %v6664, 0.0
    %v6801 = vmax.f32 %v6665, 0.0
    %v6802 = vmax.f32 %v6666, 0.0
    %v6803 = vmax.f32 %v6667, 0.0
    %v6804 = vmax.f32 %v6668, 0.0
    %v6805 = vmax.f32 %v6669, 0.0
    %v6806 = vmax.f32 %v6670, 0.0
    %v6807 = vmax.f32 %v6671, 0.0
    %v6808 = vmax.f32 %v6672, 0.0
    %v6809 = vmax.f32 %v6673, 0.0
    %v6810 = vmax.f32 %v6674, 0.0
    %v6811 = vmax.f32 %v6675, 0.0
    %v6812 = vmax.f32 %v6676, 0.0
    %v6813 = vmax.f32 %v6677, 0.0
    %v6814 = vmax.f32 %v6678, 0.0
    %v6815 = vmax.f32 %v6679, 0.0
    %v6816 = vmax.f32 %v6680, 0.0
    %v6817 = vmax.f32 %v6681, 0.0
    %v6818 = vmax.f32 %v6682, 0.0
    %v6819 = vmax.f32 %v6683, 0.0
    %v6820 = vmax.f32 %v6684, 0.0
    %v6821 = vmax.f32 %v6685, 0.0
    %v6822 = vmax.f32 %v6686, 0.0
    %v6823 = vmax.f32 %v6687, 0.0
    %v6824 = vmax.f32 %v6688, 0.0
    %v6825 = vmax.f32 %v6689, 0.0
    %v6826 = vmax.f32 %v6690, 0.0
    %v6827 = vmax.f32 %v6691, 0.0
    %v6828 = vmax.f32 %v6692, 0.0
    %v6829 = vmax.f32 %v6693, 0.0
    %v6830 = vmax.f32 %v6694, 0.0
    %v6831 = vmax.f32 %v6695, 0.0
    %v6832 = vmax.f32 %v6696, 0.0
    %v6833 = vmax.f32 %v6697, 0.0
    %v6834 = vmax.f32 %v6698, 0.0
    %v6835 = vmax.f32 %v6699, 0.0
    %v6836 = vmax.f32 %v6700, 0.0
    %v6837 = vmax.f32 %v6701, 0.0
    %v6838 = vmax.f32 %v6702, 0.0
    %6839 = vst [vmem:[#allocation2 + $0x20] sm:$0xff] %v6703
    %6840 = vst [vmem:[#allocation2 + $0x28] sm:$0xff] %v6704
    %6841 = vst [vmem:[#allocation2 + $0x30] sm:$0xff] %v6705
    %6842 = vst [vmem:[#allocation2 + $0x38] sm:$0xff] %v6706
    %6843 = vst [vmem:[#allocation2 + $0x40] sm:$0xff] %v6707
    %6844 = vst [vmem:[#allocation2 + $0x48] sm:$0xff] %v6708
    %6845 = vst [vmem:[#allocation2 + $0x50] sm:$0xff] %v6709
    %6846 = vst [vmem:[#allocation2 + $0x58] sm:$0xff] %v6710
    %6847 = vst [vmem:[#allocation2 + $0x60] sm:$0xff] %v6711
    %6848 = vst [vmem:[#allocation2 + $0x68] sm:$0xff] %v6712
    %6849 = vst [vmem:[#allocation2 + $0x70] sm:$0xff] %v6713
    %6850 = vst [vmem:[#allocation2 + $0x78] sm:$0xff] %v6714
    %6851 = vst [vmem:[#allocation2 + $0x80] sm:$0xff] %v6715
    %6852 = vst [vmem:[#allocation2 + $0x88] sm:$0xff] %v6716
    %6853 = vst [vmem:[#allocation2 + $0x90] sm:$0xff] %v6717
    %6854 = vst [vmem:[#allocation2 + $0x98] sm:$0xff] %v6718
    %6855 = vst [vmem:[#allocation2 + $0xa0] sm:$0xff] %v6719
    %6856 = vst [vmem:[#allocation2 + $0xa8] sm:$0xff] %v6720
    %6857 = vst [vmem:[#allocation2 + $0xb0] sm:$0xff] %v6721
    %6858 = vst [vmem:[#allocation2 + $0xb8] sm:$0xff] %v6722
    %6859 = vst [vmem:[#allocation2 + $0xc0] sm:$0xff] %v6723
    %6860 = vst [vmem:[#allocation2 + $0xc8] sm:$0xff] %v6724
    %6861 = vst [vmem:[#allocation2 + $0xd0] sm:$0xff] %v6725
    %6862 = vst [vmem:[#allocation2 + $0xd8] sm:$0xff] %v6726
    %6863 = vst [vmem:[#allocation2 + $0xe0] sm:$0xff] %v6727
    %6864 = vst [vmem:[#allocation2 + $0xe8] sm:$0xff] %v6728
    %6865 = vst [vmem:[#allocation2 + $0xf0] sm:$0xff] %v6729
    %6866 = vst [vmem:[#allocation2 + $0xf8] sm:$0xff] %v6730
    %6867 = vst [vmem:[#allocation2 + $0x100] sm:$0xff] %v6731
    %6868 = vst [vmem:[#allocation2 + $0x108] sm:$0xff] %v6732
    %6869 = vst [vmem:[#allocation2 + $0x110] sm:$0xff] %v6733
    %6870 = vst [vmem:[#allocation2 + $0x118] sm:$0xff] %v6734
    %6871 = vst [vmem:[#allocation2 + $0x120] sm:$0xff] %v6735
    %6872 = vst [vmem:[#allocation2 + $0x128] sm:$0xff] %v6736
    %6873 = vst [vmem:[#allocation2 + $0x130] sm:$0xff] %v6737
    %6874 = vst [vmem:[#allocation2 + $0x138] sm:$0xff] %v6738
    %6875 = vst [vmem:[#allocation2 + $0x140] sm:$0xff] %v6739
    %6876 = vst [vmem:[#allocation2 + $0x148] sm:$0xff] %v6740
    %6877 = vst [vmem:[#allocation2 + $0x150] sm:$0xff] %v6741
    %6878 = vst [vmem:[#allocation2 + $0x158] sm:$0xff] %v6742
    %6879 = vst [vmem:[#allocation2 + $0x160] sm:$0xff] %v6743
    %6880 = vst [vmem:[#allocation2 + $0x168] sm:$0xff] %v6744
    %6881 = vst [vmem:[#allocation2 + $0x170] sm:$0xff] %v6745
    %6882 = vst [vmem:[#allocation2 + $0x178] sm:$0xff] %v6746
    %6883 = vst [vmem:[#allocation2 + $0x180] sm:$0xff] %v6747
    %6884 = vst [vmem:[#allocation2 + $0x188] sm:$0xff] %v6748
    %6885 = vst [vmem:[#allocation2 + $0x190] sm:$0xff] %v6749
    %6886 = vst [vmem:[#allocation2 + $0x198] sm:$0xff] %v6750
    %6887 = vst [vmem:[#allocation2 + $0x1a0] sm:$0xff] %v6751
    %6888 = vst [vmem:[#allocation2 + $0x1a8] sm:$0xff] %v6752
    %6889 = vst [vmem:[#allocation2 + $0x1b0] sm:$0xff] %v6753
    %6890 = vst [vmem:[#allocation2 + $0x1b8] sm:$0xff] %v6754
    %6891 = vst [vmem:[#allocation2 + $0x1c0] sm:$0xff] %v6755
    %6892 = vst [vmem:[#allocation2 + $0x1c8] sm:$0xff] %v6756
    %6893 = vst [vmem:[#allocation2 + $0x1d0] sm:$0xff] %v6757
    %6894 = vst [vmem:[#allocation2 + $0x1d8] sm:$0xff] %v6758
    %6895 = vst [vmem:[#allocation2 + $0x1e0] sm:$0xff] %v6759
    %6896 = vst [vmem:[#allocation2 + $0x1e8] sm:$0xff] %v6760
    %6897 = vst [vmem:[#allocation2 + $0x1f0] sm:$0xff] %v6761
    %6898 = vst [vmem:[#allocation2 + $0x1f8] sm:$0xff] %v6762
    %6899 = vst [vmem:[#allocation2 + $0x200] sm:$0xff] %v6763
    %6900 = vst [vmem:[#allocation2 + $0x208] sm:$0xff] %v6764
    %6901 = vst [vmem:[#allocation2 + $0x210] sm:$0xff] %v6765
    %6902 = vst [vmem:[#allocation2 + $0x218] sm:$0xff] %v6766
    %6903 = vst [vmem:[#allocation2 + $0x220] sm:$0xff] %v6767
    %6904 = vst [vmem:[#allocation2 + $0x228] sm:$0xff] %v6768
    %6905 = vst [vmem:[#allocation2 + $0x230] sm:$0xff] %v6769
    %6906 = vst [vmem:[#allocation2 + $0x238] sm:$0xff] %v6770
    %6907 = vst [vmem:[#allocation2 + $0x240] sm:$0xff] %v6771
    %6908 = vst [vmem:[#allocation2 + $0x248] sm:$0xff] %v6772
    %6909 = vst [vmem:[#allocation2 + $0x250] sm:$0xff] %v6773
    %6910 = vst [vmem:[#allocation2 + $0x258] sm:$0xff] %v6774
    %6911 = vst [vmem:[#allocation2 + $0x260] sm:$0xff] %v6775
    %6912 = vst [vmem:[#allocation2 + $0x268] sm:$0xff] %v6776
    %6913 = vst [vmem:[#allocation2 + $0x270] sm:$0xff] %v6777
    %6914 = vst [vmem:[#allocation2 + $0x278] sm:$0xff] %v6778
    %6915 = vst [vmem:[#allocation2 + $0x280] sm:$0xff] %v6779
    %6916 = vst [vmem:[#allocation2 + $0x288] sm:$0xff] %v6780
    %6917 = vst [vmem:[#allocation2 + $0x290] sm:$0xff] %v6781
    %6918 = vst [vmem:[#allocation2 + $0x298] sm:$0xff] %v6782
    %6919 = vst [vmem:[#allocation2 + $0x2a0] sm:$0xff] %v6783
    %6920 = vst [vmem:[#allocation2 + $0x2a8] sm:$0xff] %v6784
    %6921 = vst [vmem:[#allocation2 + $0x2b0] sm:$0xff] %v6785
    %6922 = vst [vmem:[#allocation2 + $0x2b8] sm:$0xff] %v6786
    %6923 = vst [vmem:[#allocation2 + $0x2c0] sm:$0xff] %v6787
    %6924 = vst [vmem:[#allocation2 + $0x2c8] sm:$0xff] %v6788
    %6925 = vst [vmem:[#allocation2 + $0x2d0] sm:$0xff] %v6789
    %6926 = vst [vmem:[#allocation2 + $0x2d8] sm:$0xff] %v6790
    %6927 = vst [vmem:[#allocation2 + $0x2e0] sm:$0xff] %v6791
    %6928 = vst [vmem:[#allocation2 + $0x2e8] sm:$0xff] %v6792
    %6929 = vst [vmem:[#allocation2 + $0x2f0] sm:$0xff] %v6793
    %6930 = vst [vmem:[#allocation2 + $0x2f8] sm:$0xff] %v6794
    %6931 = vst [vmem:[#allocation2 + $0x300] sm:$0xff] %v6795
    %6932 = vst [vmem:[#allocation2 + $0x308] sm:$0xff] %v6796
    %6933 = vst [vmem:[#allocation2 + $0x310] sm:$0xff] %v6797
    %6934 = vst [vmem:[#allocation2 + $0x318] sm:$0xff] %v6798
    %6935 = vst [vmem:[#allocation2 + $0x320] sm:$0xff] %v6799
    %6936 = vst [vmem:[#allocation2 + $0x328] sm:$0xff] %v6800
    %6937 = vst [vmem:[#allocation2 + $0x330] sm:$0xff] %v6801
    %6938 = vst [vmem:[#allocation2 + $0x338] sm:$0xff] %v6802
    %6939 = vst [vmem:[#allocation2 + $0x340] sm:$0xff] %v6803
    %6940 = vst [vmem:[#allocation2 + $0x348] sm:$0xff] %v6804
    %6941 = vst [vmem:[#allocation2 + $0x350] sm:$0xff] %v6805
    %6942 = vst [vmem:[#allocation2 + $0x358] sm:$0xff] %v6806
    %6943 = vst [vmem:[#allocation2 + $0x360] sm:$0xff] %v6807
    %6944 = vst [vmem:[#allocation2 + $0x368] sm:$0xff] %v6808
    %6945 = vst [vmem:[#allocation2 + $0x370] sm:$0xff] %v6809
    %6946 = vst [vmem:[#allocation2 + $0x378] sm:$0xff] %v6810
    %6947 = vst [vmem:[#allocation2 + $0x380] sm:$0xff] %v6811
    %6948 = vst [vmem:[#allocation2 + $0x388] sm:$0xff] %v6812
    %6949 = vst [vmem:[#allocation2 + $0x390] sm:$0xff] %v6813
    %6950 = vst [vmem:[#allocation2 + $0x398] sm:$0xff] %v6814
    %6951 = vst [vmem:[#allocation2 + $0x3a0] sm:$0xff] %v6815
    %6952 = vst [vmem:[#allocation2 + $0x3a8] sm:$0xff] %v6816
    %6953 = vst [vmem:[#allocation2 + $0x3b0] sm:$0xff] %v6817
    %6954 = vst [vmem:[#allocation2 + $0x3b8] sm:$0xff] %v6818
    %6955 = vst [vmem:[#allocation2 + $0x3c0] sm:$0xff] %v6819
    %6956 = vst [vmem:[#allocation2 + $0x3c8] sm:$0xff] %v6820
    %6957 = vst [vmem:[#allocation2 + $0x3d0] sm:$0xff] %v6821
    %6958 = vst [vmem:[#allocation2 + $0x3d8] sm:$0xff] %v6822
    %6959 = vst [vmem:[#allocation2 + $0x3e0] sm:$0xff] %v6823
    %6960 = vst [vmem:[#allocation2 + $0x3e8] sm:$0xff] %v6824
    %6961 = vst [vmem:[#allocation2 + $0x3f0] sm:$0xff] %v6825
    %6962 = vst [vmem:[#allocation2 + $0x3f8] sm:$0xff] %v6826
    %6963 = vst [vmem:[#allocation2 + $0x400] sm:$0xff] %v6827
    %6964 = vst [vmem:[#allocation2 + $0x408] sm:$0xff] %v6828
    %6965 = vst [vmem:[#allocation2 + $0x410] sm:$0xff] %v6829
    %6966 = vst [vmem:[#allocation2 + $0x418] sm:$0xff] %v6830
    %6967 = vst [vmem:[#allocation2 + $0x420] sm:$0xff] %v6831
    %6968 = vst [vmem:[#allocation2 + $0x428] sm:$0xff] %v6832
    %6969 = vst [vmem:[#allocation2 + $0x430] sm:$0xff] %v6833
    %6970 = vst [vmem:[#allocation2 + $0x438] sm:$0xff] %v6834
    %6971 = vst [vmem:[#allocation2 + $0x440] sm:$0xff] %v6835
    %6972 = vst [vmem:[#allocation2 + $0x448] sm:$0xff] %v6836
    %6973 = vst [vmem:[#allocation2 + $0x450] sm:$0xff] %v6837
    %6974 = vst [vmem:[#allocation2 + $0x458] sm:$0xff] %v6838
    %v6975 = vld [vmem:[#allocation2 + $0x20] sm:$0xff]
    %v6976 = vld [vmem:[#allocation2 + $0x28] sm:$0xff]
    %v6977 = vld [vmem:[#allocation2 + $0x30] sm:$0xff]
    %v6978 = vld [vmem:[#allocation2 + $0x38] sm:$0xff]
    %v6979 = vld [vmem:[#allocation2 + $0x40] sm:$0xff]
    %v6980 = vld [vmem:[#allocation2 + $0x48] sm:$0xff]
    %v6981 = vld [vmem:[#allocation2 + $0x50] sm:$0xff]
    %v6982 = vld [vmem:[#allocation2 + $0x58] sm:$0xff]
    %v6983 = vld [vmem:[#allocation2 + $0x60] sm:$0xff]
    %v6984 = vld [vmem:[#allocation2 + $0x68] sm:$0xff]
    %v6985 = vld [vmem:[#allocation2 + $0x70] sm:$0xff]
    %v6986 = vld [vmem:[#allocation2 + $0x78] sm:$0xff]
    %v6987 = vld [vmem:[#allocation2 + $0x80] sm:$0xff]
    %v6988 = vld [vmem:[#allocation2 + $0x88] sm:$0xff]
    %v6989 = vld [vmem:[#allocation2 + $0x90] sm:$0xff]
    %v6990 = vld [vmem:[#allocation2 + $0x98] sm:$0xff]
    %v6991 = vld [vmem:[#allocation2 + $0xa0] sm:$0xff]
    %v6992 = vld [vmem:[#allocation2 + $0xa8] sm:$0xff]
    %v6993 = vld [vmem:[#allocation2 + $0xb0] sm:$0xff]
    %v6994 = vld [vmem:[#allocation2 + $0xb8] sm:$0xff]
    %v6995 = vld [vmem:[#allocation2 + $0xc0] sm:$0xff]
    %v6996 = vld [vmem:[#allocation2 + $0xc8] sm:$0xff]
    %v6997 = vld [vmem:[#allocation2 + $0xd0] sm:$0xff]
    %v6998 = vld [vmem:[#allocation2 + $0xd8] sm:$0xff]
    %v6999 = vld [vmem:[#allocation2 + $0xe0] sm:$0xff]
    %v7000 = vld [vmem:[#allocation2 + $0xe8] sm:$0xff]
    %v7001 = vld [vmem:[#allocation2 + $0xf0] sm:$0xff]
    %v7002 = vld [vmem:[#allocation2 + $0xf8] sm:$0xff]
    %v7003 = vld [vmem:[#allocation2 + $0x100] sm:$0xff]
    %v7004 = vld [vmem:[#allocation2 + $0x108] sm:$0xff]
    %v7005 = vld [vmem:[#allocation2 + $0x110] sm:$0xff]
    %v7006 = vld [vmem:[#allocation2 + $0x118] sm:$0xff]
    %v7007 = vld [vmem:[#allocation2 + $0x120] sm:$0xff]
    %v7008 = vld [vmem:[#allocation2 + $0x128] sm:$0xff]
    %v7009 = vld [vmem:[#allocation2 + $0x130] sm:$0xff]
    %v7010 = vld [vmem:[#allocation2 + $0x138] sm:$0xff]
    %v7011 = vld [vmem:[#allocation2 + $0x140] sm:$0xff]
    %v7012 = vld [vmem:[#allocation2 + $0x148] sm:$0xff]
    %v7013 = vld [vmem:[#allocation2 + $0x150] sm:$0xff]
    %v7014 = vld [vmem:[#allocation2 + $0x158] sm:$0xff]
    %v7015 = vld [vmem:[#allocation2 + $0x160] sm:$0xff]
    %v7016 = vld [vmem:[#allocation2 + $0x168] sm:$0xff]
    %v7017 = vld [vmem:[#allocation2 + $0x170] sm:$0xff]
    %v7018 = vld [vmem:[#allocation2 + $0x178] sm:$0xff]
    %v7019 = vld [vmem:[#allocation2 + $0x180] sm:$0xff]
    %v7020 = vld [vmem:[#allocation2 + $0x188] sm:$0xff]
    %v7021 = vld [vmem:[#allocation2 + $0x190] sm:$0xff]
    %v7022 = vld [vmem:[#allocation2 + $0x198] sm:$0xff]
    %v7023 = vld [vmem:[#allocation2 + $0x1a0] sm:$0xff]
    %v7024 = vld [vmem:[#allocation2 + $0x1a8] sm:$0xff]
    %v7025 = vld [vmem:[#allocation2 + $0x1b0] sm:$0xff]
    %v7026 = vld [vmem:[#allocation2 + $0x1b8] sm:$0xff]
    %v7027 = vld [vmem:[#allocation2 + $0x1c0] sm:$0xff]
    %v7028 = vld [vmem:[#allocation2 + $0x1c8] sm:$0xff]
    %v7029 = vld [vmem:[#allocation2 + $0x1d0] sm:$0xff]
    %v7030 = vld [vmem:[#allocation2 + $0x1d8] sm:$0xff]
    %v7031 = vld [vmem:[#allocation2 + $0x1e0] sm:$0xff]
    %v7032 = vld [vmem:[#allocation2 + $0x1e8] sm:$0xff]
    %v7033 = vld [vmem:[#allocation2 + $0x1f0] sm:$0xff]
    %v7034 = vld [vmem:[#allocation2 + $0x1f8] sm:$0xff]
    %v7035 = vld [vmem:[#allocation2 + $0x200] sm:$0xff]
    %v7036 = vld [vmem:[#allocation2 + $0x208] sm:$0xff]
    %v7037 = vld [vmem:[#allocation2 + $0x210] sm:$0xff]
    %v7038 = vld [vmem:[#allocation2 + $0x218] sm:$0xff]
    %v7039 = vld [vmem:[#allocation2 + $0x220] sm:$0xff]
    %v7040 = vld [vmem:[#allocation2 + $0x228] sm:$0xff]
    %v7041 = vld [vmem:[#allocation2 + $0x230] sm:$0xff]
    %v7042 = vld [vmem:[#allocation2 + $0x238] sm:$0xff]
    %v7043 = vld [vmem:[#allocation2 + $0x240] sm:$0xff]
    %v7044 = vld [vmem:[#allocation2 + $0x248] sm:$0xff]
    %v7045 = vld [vmem:[#allocation2 + $0x250] sm:$0xff]
    %v7046 = vld [vmem:[#allocation2 + $0x258] sm:$0xff]
    %v7047 = vld [vmem:[#allocation2 + $0x260] sm:$0xff]
    %v7048 = vld [vmem:[#allocation2 + $0x268] sm:$0xff]
    %v7049 = vld [vmem:[#allocation2 + $0x270] sm:$0xff]
    %v7050 = vld [vmem:[#allocation2 + $0x278] sm:$0xff]
    %v7051 = vld [vmem:[#allocation2 + $0x280] sm:$0xff]
    %v7052 = vld [vmem:[#allocation2 + $0x288] sm:$0xff]
    %v7053 = vld [vmem:[#allocation2 + $0x290] sm:$0xff]
    %v7054 = vld [vmem:[#allocation2 + $0x298] sm:$0xff]
    %v7055 = vld [vmem:[#allocation2 + $0x2a0] sm:$0xff]
    %v7056 = vld [vmem:[#allocation2 + $0x2a8] sm:$0xff]
    %v7057 = vld [vmem:[#allocation2 + $0x2b0] sm:$0xff]
    %v7058 = vld [vmem:[#allocation2 + $0x2b8] sm:$0xff]
    %v7059 = vld [vmem:[#allocation2 + $0x2c0] sm:$0xff]
    %v7060 = vld [vmem:[#allocation2 + $0x2c8] sm:$0xff]
    %v7061 = vld [vmem:[#allocation2 + $0x2d0] sm:$0xff]
    %v7062 = vld [vmem:[#allocation2 + $0x2d8] sm:$0xff]
    %v7063 = vld [vmem:[#allocation2 + $0x2e0] sm:$0xff]
    %v7064 = vld [vmem:[#allocation2 + $0x2e8] sm:$0xff]
    %v7065 = vld [vmem:[#allocation2 + $0x2f0] sm:$0xff]
    %v7066 = vld [vmem:[#allocation2 + $0x2f8] sm:$0xff]
    %v7067 = vld [vmem:[#allocation2 + $0x300] sm:$0xff]
    %v7068 = vld [vmem:[#allocation2 + $0x308] sm:$0xff]
    %v7069 = vld [vmem:[#allocation2 + $0x310] sm:$0xff]
    %v7070 = vld [vmem:[#allocation2 + $0x318] sm:$0xff]
    %v7071 = vld [vmem:[#allocation2 + $0x320] sm:$0xff]
    %v7072 = vld [vmem:[#allocation2 + $0x328] sm:$0xff]
    %v7073 = vld [vmem:[#allocation2 + $0x330] sm:$0xff]
    %v7074 = vld [vmem:[#allocation2 + $0x338] sm:$0xff]
    %v7075 = vld [vmem:[#allocation2 + $0x340] sm:$0xff]
    %v7076 = vld [vmem:[#allocation2 + $0x348] sm:$0xff]
    %v7077 = vld [vmem:[#allocation2 + $0x350] sm:$0xff]
    %v7078 = vld [vmem:[#allocation2 + $0x358] sm:$0xff]
    %v7079 = vld [vmem:[#allocation2 + $0x360] sm:$0xff]
    %v7080 = vld [vmem:[#allocation2 + $0x368] sm:$0xff]
    %v7081 = vld [vmem:[#allocation2 + $0x370] sm:$0xff]
    %v7082 = vld [vmem:[#allocation2 + $0x378] sm:$0xff]
    %v7083 = vld [vmem:[#allocation2 + $0x380] sm:$0xff]
    %v7084 = vld [vmem:[#allocation2 + $0x388] sm:$0xff]
    %v7085 = vld [vmem:[#allocation2 + $0x390] sm:$0xff]
    %v7086 = vld [vmem:[#allocation2 + $0x398] sm:$0xff]
    %v7087 = vld [vmem:[#allocation2 + $0x3a0] sm:$0xff]
    %v7088 = vld [vmem:[#allocation2 + $0x3a8] sm:$0xff]
    %v7089 = vld [vmem:[#allocation2 + $0x3b0] sm:$0xff]
    %v7090 = vld [vmem:[#allocation2 + $0x3b8] sm:$0xff]
    %v7091 = vld [vmem:[#allocation2 + $0x3c0] sm:$0xff]
    %v7092 = vld [vmem:[#allocation2 + $0x3c8] sm:$0xff]
    %v7093 = vld [vmem:[#allocation2 + $0x3d0] sm:$0xff]
    %v7094 = vld [vmem:[#allocation2 + $0x3d8] sm:$0xff]
    %v7095 = vld [vmem:[#allocation2 + $0x3e0] sm:$0xff]
    %v7096 = vld [vmem:[#allocation2 + $0x3e8] sm:$0xff]
    %v7097 = vld [vmem:[#allocation2 + $0x3f0] sm:$0xff]
    %v7098 = vld [vmem:[#allocation2 + $0x3f8] sm:$0xff]
    %v7099 = vld [vmem:[#allocation2 + $0x400] sm:$0xff]
    %v7100 = vld [vmem:[#allocation2 + $0x408] sm:$0xff]
    %v7101 = vld [vmem:[#allocation2 + $0x410] sm:$0xff]
    %v7102 = vld [vmem:[#allocation2 + $0x418] sm:$0xff]
    %v7103 = vpack.c.bf16 %v6977, %v6975
    %v7104 = vpack.c.bf16 %v6978, %v6976
    %v7105 = vpack.c.bf16 %v6981, %v6979
    %v7106 = vpack.c.bf16 %v6982, %v6980
    %v7107 = vpack.c.bf16 %v6985, %v6983
    %v7108 = vpack.c.bf16 %v6986, %v6984
    %v7109 = vpack.c.bf16 %v6989, %v6987
    %v7110 = vpack.c.bf16 %v6990, %v6988
    %v7111 = vpack.c.bf16 %v6993, %v6991
    %v7112 = vpack.c.bf16 %v6994, %v6992
    %v7113 = vpack.c.bf16 %v6997, %v6995
    %v7114 = vpack.c.bf16 %v6998, %v6996
    %v7115 = vpack.c.bf16 %v7001, %v6999
    %v7116 = vpack.c.bf16 %v7002, %v7000
    %v7117 = vpack.c.bf16 %v7005, %v7003
    %v7118 = vpack.c.bf16 %v7006, %v7004
    %v7119 = vpack.c.bf16 %v7009, %v7007
    %v7120 = vpack.c.bf16 %v7010, %v7008
    %v7121 = vpack.c.bf16 %v7013, %v7011
    %v7122 = vpack.c.bf16 %v7014, %v7012
    %v7123 = vpack.c.bf16 %v7017, %v7015
    %v7124 = vpack.c.bf16 %v7018, %v7016
    %v7125 = vpack.c.bf16 %v7021, %v7019
    %v7126 = vpack.c.bf16 %v7022, %v7020
    %v7127 = vpack.c.bf16 %v7025, %v7023
    %v7128 = vpack.c.bf16 %v7026, %v7024
    %v7129 = vpack.c.bf16 %v7029, %v7027
    %v7130 = vpack.c.bf16 %v7030, %v7028
    %v7131 = vpack.c.bf16 %v7033, %v7031
    %v7132 = vpack.c.bf16 %v7034, %v7032
    %v7133 = vpack.c.bf16 %v7037, %v7035
    %v7134 = vpack.c.bf16 %v7038, %v7036
    %v7135 = vpack.c.bf16 %v7041, %v7039
    %v7136 = vpack.c.bf16 %v7042, %v7040
    %v7137 = vpack.c.bf16 %v7045, %v7043
    %v7138 = vpack.c.bf16 %v7046, %v7044
    %v7139 = vpack.c.bf16 %v7049, %v7047
    %v7140 = vpack.c.bf16 %v7050, %v7048
    %v7141 = vpack.c.bf16 %v7053, %v7051
    %v7142 = vpack.c.bf16 %v7054, %v7052
    %v7143 = vpack.c.bf16 %v7057, %v7055
    %v7144 = vpack.c.bf16 %v7058, %v7056
    %v7145 = vpack.c.bf16 %v7061, %v7059
    %v7146 = vpack.c.bf16 %v7062, %v7060
    %v7147 = vpack.c.bf16 %v7065, %v7063
    %v7148 = vpack.c.bf16 %v7066, %v7064
    %v7149 = vpack.c.bf16 %v7069, %v7067
    %v7150 = vpack.c.bf16 %v7070, %v7068
    %v7151 = vpack.c.bf16 %v7073, %v7071
    %v7152 = vpack.c.bf16 %v7074, %v7072
    %v7153 = vpack.c.bf16 %v7077, %v7075
    %v7154 = vpack.c.bf16 %v7078, %v7076
    %v7155 = vpack.c.bf16 %v7081, %v7079
    %v7156 = vpack.c.bf16 %v7082, %v7080
    %v7157 = vpack.c.bf16 %v7085, %v7083
    %v7158 = vpack.c.bf16 %v7086, %v7084
    %v7159 = vpack.c.bf16 %v7089, %v7087
    %v7160 = vpack.c.bf16 %v7090, %v7088
    %v7161 = vpack.c.bf16 %v7093, %v7091
    %v7162 = vpack.c.bf16 %v7094, %v7092
    %v7163 = vpack.c.bf16 %v7097, %v7095
    %v7164 = vpack.c.bf16 %v7098, %v7096
    %v7165 = vpack.c.bf16 %v7101, %v7099
    %v7166 = vpack.c.bf16 %v7102, %v7100
    %v7167 = vld [vmem:[#allocation2 + $0x420] sm:$0xff]
    %v7168 = vld [vmem:[#allocation2 + $0x428] sm:$0xff]
    %v7169 = vld [vmem:[#allocation2 + $0x430] sm:$0xff]
    %v7170 = vld [vmem:[#allocation2 + $0x438] sm:$0xff]
    %v7171 = vpack.c.bf16 %v7169, %v7167
    %v7172 = vpack.c.bf16 %v7170, %v7168
    %v7173 = vld [vmem:[#allocation2 + $0x440] sm:$0xff]
    %v7174 = vld [vmem:[#allocation2 + $0x448] sm:$0xff]
    %v7175 = vld [vmem:[#allocation2 + $0x450] sm:$0xff]
    %v7176 = vld [vmem:[#allocation2 + $0x458] sm:$0xff]
    %v7177 = vpack.c.bf16 %v7175, %v7173
    %v7178 = vpack.c.bf16 %v7176, %v7174
    %v7179 = vld [vmem:[%s5] sm:$0xf]
    %v7180 = vld [vmem:[%s5 + $0x4] sm:$0xf]
    %v7181 = vld [vmem:[%s5 + $0x8] sm:$0xf]
    %v7182 = vld [vmem:[%s5 + $0xc] sm:$0xf]
    %v7183 = vld [vmem:[%s5 + $0x10] sm:$0xf]
    %v7184 = vld [vmem:[%s5 + $0x14] sm:$0xf]
    %v7185 = vld [vmem:[%s5 + $0x18] sm:$0xf]
    %v7186 = vld [vmem:[%s5 + $0x1c] sm:$0xf]
    %v7187 = vld [vmem:[%s5 + $0x20] sm:$0xf]
    %v7188 = vld [vmem:[%s5 + $0x24] sm:$0xf]
    %v7189 = vld [vmem:[%s5 + $0x28] sm:$0xf]
    %v7190 = vld [vmem:[%s5 + $0x2c] sm:$0xf]
    %v7191 = vld [vmem:[%s5 + $0x30] sm:$0xf]
    %v7192 = vld [vmem:[%s5 + $0x34] sm:$0xf]
    %v7193 = vld [vmem:[%s5 + $0x38] sm:$0xf]
    %v7194 = vld [vmem:[%s5 + $0x3c] sm:$0xf]
    %v7195 = vld [vmem:[%s5 + $0x40] sm:$0xf]
    %v7196 = vld [vmem:[%s5 + $0x44] sm:$0xf]
    %v7197 = vld [vmem:[%s5 + $0x48] sm:$0xf]
    %v7198 = vld [vmem:[%s5 + $0x4c] sm:$0xf]
    %v7199 = vld [vmem:[%s5 + $0x50] sm:$0xf]
    %v7200 = vld [vmem:[%s5 + $0x54] sm:$0xf]
    %v7201 = vld [vmem:[%s5 + $0x58] sm:$0xf]
    %v7202 = vld [vmem:[%s5 + $0x5c] sm:$0xf]
    %v7203 = vld [vmem:[%s5 + $0x60] sm:$0xf]
    %v7204 = vld [vmem:[%s5 + $0x64] sm:$0xf]
    %v7205 = vld [vmem:[%s5 + $0x68] sm:$0xf]
    %v7206 = vld [vmem:[%s5 + $0x6c] sm:$0xf]
    %v7207 = vld [vmem:[%s5 + $0x70] sm:$0xf]
    %v7208 = vld [vmem:[%s5 + $0x74] sm:$0xf]
    %v7209 = vld [vmem:[%s5 + $0x78] sm:$0xf]
    %v7210 = vld [vmem:[%s5 + $0x7c] sm:$0xf]
    %s7211 = scalar_lea.vmem %s5, 128
    %v7212 = vld [vmem:[%s7211] sm:$0xf]
    %v7213 = vld [vmem:[%s7211 + $0x4] sm:$0xf]
    %v7214 = vld [vmem:[%s7211 + $0x8] sm:$0xf]
    %v7215 = vld [vmem:[%s7211 + $0xc] sm:$0xf]
    %v7216 = vld [vmem:[%s7211 + $0x10] sm:$0xf]
    %v7217 = vld [vmem:[%s7211 + $0x14] sm:$0xf]
    %v7218 = vld [vmem:[%s7211 + $0x18] sm:$0xf]
    %v7219 = vld [vmem:[%s7211 + $0x1c] sm:$0xf]
    %v7220 = vld [vmem:[%s7211 + $0x20] sm:$0xf]
    %v7221 = vld [vmem:[%s7211 + $0x24] sm:$0xf]
    %v7222 = vld [vmem:[%s7211 + $0x28] sm:$0xf]
    %v7223 = vld [vmem:[%s7211 + $0x2c] sm:$0xf]
    %v7224 = vld [vmem:[%s7211 + $0x30] sm:$0xf]
    %v7225 = vld [vmem:[%s7211 + $0x34] sm:$0xf]
    %v7226 = vld [vmem:[%s7211 + $0x38] sm:$0xf]
    %v7227 = vld [vmem:[%s7211 + $0x3c] sm:$0xf]
    %v7228 = vld [vmem:[%s7211 + $0x40] sm:$0xf]
    %v7229 = vld [vmem:[%s7211 + $0x44] sm:$0xf]
    %v7230 = vld [vmem:[%s7211 + $0x48] sm:$0xf]
    %v7231 = vld [vmem:[%s7211 + $0x4c] sm:$0xf]
    %v7232 = vld [vmem:[%s7211 + $0x50] sm:$0xf]
    %v7233 = vld [vmem:[%s7211 + $0x54] sm:$0xf]
    %v7234 = vld [vmem:[%s7211 + $0x58] sm:$0xf]
    %v7235 = vld [vmem:[%s7211 + $0x5c] sm:$0xf]
    %v7236 = vld [vmem:[%s7211 + $0x60] sm:$0xf]
    %v7237 = vld [vmem:[%s7211 + $0x64] sm:$0xf]
    %v7238 = vld [vmem:[%s7211 + $0x68] sm:$0xf]
    %v7239 = vld [vmem:[%s7211 + $0x6c] sm:$0xf]
    %v7240 = vld [vmem:[%s7211 + $0x70] sm:$0xf]
    %v7241 = vld [vmem:[%s7211 + $0x74] sm:$0xf]
    %v7242 = vld [vmem:[%s7211 + $0x78] sm:$0xf]
    %v7243 = vld [vmem:[%s7211 + $0x7c] sm:$0xf]
    %v7276 = vunpack.c.l.b16 %v7212
    %v7277 = vunpack.c.l.b16 %v7213
    %v7278 = vunpack.c.l.b16 %v7214
    %v7279 = vunpack.c.l.b16 %v7215
    %v7280 = vunpack.c.l.b16 %v7216
    %v7281 = vunpack.c.l.b16 %v7217
    %v7282 = vunpack.c.l.b16 %v7218
    %v7283 = vunpack.c.l.b16 %v7219
    %v7284 = vunpack.c.l.b16 %v7220
    %v7285 = vunpack.c.l.b16 %v7221
    %v7286 = vunpack.c.l.b16 %v7222
    %v7287 = vunpack.c.l.b16 %v7223
    %v7288 = vunpack.c.l.b16 %v7224
    %v7289 = vunpack.c.l.b16 %v7225
    %v7290 = vunpack.c.l.b16 %v7226
    %v7291 = vunpack.c.l.b16 %v7227
    %v7292 = vunpack.c.l.b16 %v7228
    %v7293 = vunpack.c.l.b16 %v7229
    %v7294 = vunpack.c.l.b16 %v7230
    %v7295 = vunpack.c.l.b16 %v7231
    %v7296 = vunpack.c.l.b16 %v7232
    %v7297 = vunpack.c.l.b16 %v7233
    %v7298 = vunpack.c.l.b16 %v7234
    %v7299 = vunpack.c.l.b16 %v7235
    %v7300 = vunpack.c.l.b16 %v7236
    %v7301 = vunpack.c.l.b16 %v7237
    %v7302 = vunpack.c.l.b16 %v7238
    %v7303 = vunpack.c.l.b16 %v7239
    %v7304 = vunpack.c.l.b16 %v7240
    %v7305 = vunpack.c.l.b16 %v7241
    %v7306 = vunpack.c.l.b16 %v7242
    %v7307 = vunpack.c.l.b16 %v7243
    %v7308 = vpack.c.b16 %v7277, %v7276
    %v7309 = vpack.c.b16 %v7279, %v7278
    %v7310 = vpack.c.b16 %v7281, %v7280
    %v7311 = vpack.c.b16 %v7283, %v7282
    %v7312 = vpack.c.b16 %v7285, %v7284
    %v7313 = vpack.c.b16 %v7287, %v7286
    %v7314 = vpack.c.b16 %v7289, %v7288
    %v7315 = vpack.c.b16 %v7291, %v7290
    %v7316 = vpack.c.b16 %v7293, %v7292
    %v7317 = vpack.c.b16 %v7295, %v7294
    %v7318 = vpack.c.b16 %v7297, %v7296
    %v7319 = vpack.c.b16 %v7299, %v7298
    %v7320 = vpack.c.b16 %v7301, %v7300
    %v7321 = vpack.c.b16 %v7303, %v7302
    %v7322 = vpack.c.b16 %v7305, %v7304
    %v7323 = vpack.c.b16 %v7307, %v7306
    %7340 = vmatprep.subr.bf16.mxu0 0
    %7341 = vmatpush1.bf16.msra.mxu0 %v7308
    %7342 = vmatprep.subr.bf16.mxu0 0
    %7343 = vmatpush1.bf16.msra.mxu0 %v7309
    %7344 = vmatprep.subr.bf16.mxu0 0
    %7345 = vmatpush1.bf16.msra.mxu0 %v7310
    %7346 = vmatprep.subr.bf16.mxu0 0
    %7347 = vmatpush1.bf16.msra.mxu0 %v7311
    %7348 = vmatprep.subr.bf16.mxu0 0
    %7349 = vmatpush1.bf16.msra.mxu0 %v7312
    %7350 = vmatprep.subr.bf16.mxu0 0
    %7351 = vmatpush1.bf16.msra.mxu0 %v7313
    %7352 = vmatprep.subr.bf16.mxu0 0
    %7353 = vmatpush1.bf16.msra.mxu0 %v7314
    %7354 = vmatprep.subr.bf16.mxu0 0
    %7355 = vmatpush1.bf16.msra.mxu0 %v7315
    %7356 = vmatprep.subr.bf16.mxu0 0
    %7357 = vmatpush1.bf16.msra.mxu0 %v7316
    %7358 = vmatprep.subr.bf16.mxu0 0
    %7359 = vmatpush1.bf16.msra.mxu0 %v7317
    %7360 = vmatprep.subr.bf16.mxu0 0
    %7361 = vmatpush1.bf16.msra.mxu0 %v7318
    %7362 = vmatprep.subr.bf16.mxu0 0
    %7363 = vmatpush1.bf16.msra.mxu0 %v7319
    %7364 = vmatprep.subr.bf16.mxu0 0
    %7365 = vmatpush1.bf16.msra.mxu0 %v7320
    %7366 = vmatprep.subr.bf16.mxu0 0
    %7367 = vmatpush1.bf16.msra.mxu0 %v7321
    %7368 = vmatprep.subr.bf16.mxu0 0
    %7369 = vmatpush1.bf16.msra.mxu0 %v7322
    %7370 = vmatprep.subr.bf16.mxu0 0
    %7371 = vmatpush1.bf16.msra.mxu0 %v7323
    %7372 = vmatprep.mubr.bf16.mxu0 %v7106
    %7373 = vmatmul.mubr.bf16.gmra.mrb[0].mxu0 %v7105
    %v7374 = vpop.f32.mrb[0].mxu0
    %v7375 = vadd.f32 0.0, %v7374
    %v7376 = vpop.f32.mrb[0].mxu0
    %v7377 = vpop.f32.mrb[0].mxu0
    %v7378 = vadd.f32 0.0, %v7377
    %v7379 = vpop.f32.mrb[0].mxu0
    %7380 = vmatprep.mubr.bf16.mxu0 %v7108
    %7381 = vmatmul.mubr.bf16.gmra.mrb[0].mxu0 %v7107
    %v7382 = vpop.f32.mrb[0].mxu0
    %v7383 = vadd.f32 0.0, %v7382
    %v7384 = vpop.f32.mrb[0].mxu0
    %v7385 = vpop.f32.mrb[0].mxu0
    %v7386 = vadd.f32 0.0, %v7385
    %v7387 = vpop.f32.mrb[0].mxu0
    %7388 = vmatprep.mubr.bf16.mxu0 %v7110
    %7389 = vmatmul.mubr.bf16.gmra.mrb[0].mxu0 %v7109
    %v7390 = vpop.f32.mrb[0].mxu0
    %v7391 = vadd.f32 0.0, %v7390
    %v7392 = vpop.f32.mrb[0].mxu0
    %v7393 = vpop.f32.mrb[0].mxu0
    %v7394 = vadd.f32 0.0, %v7393
    %v7395 = vpop.f32.mrb[0].mxu0
    %7396 = vmatprep.mubr.bf16.mxu0 %v7112
    %7397 = vmatmul.mubr.bf16.gmra.mrb[0].mxu0 %v7111
    %v7398 = vpop.f32.mrb[0].mxu0
    %v7399 = vadd.f32 0.0, %v7398
    %v7400 = vpop.f32.mrb[0].mxu0
    %v7401 = vpop.f32.mrb[0].mxu0
    %v7402 = vadd.f32 0.0, %v7401
    %v7403 = vpop.f32.mrb[0].mxu0
    %7404 = vmatprep.mubr.bf16.mxu0 %v7114
    %7405 = vmatmul.mubr.bf16.gmra.mrb[0].mxu0 %v7113
    %v7406 = vpop.f32.mrb[0].mxu0
    %v7407 = vadd.f32 0.0, %v7406
    %v7408 = vpop.f32.mrb[0].mxu0
    %v7409 = vpop.f32.mrb[0].mxu0
    %v7410 = vadd.f32 0.0, %v7409
    %v7411 = vpop.f32.mrb[0].mxu0
    %7412 = vmatprep.mubr.bf16.mxu0 %v7116
    %7413 = vmatmul.mubr.bf16.gmra.mrb[0].mxu0 %v7115
    %v7414 = vpop.f32.mrb[0].mxu0
    %v7415 = vadd.f32 0.0, %v7414
    %v7416 = vpop.f32.mrb[0].mxu0
    %v7417 = vpop.f32.mrb[0].mxu0
    %v7418 = vadd.f32 0.0, %v7417
    %v7419 = vpop.f32.mrb[0].mxu0
    %7420 = vmatprep.mubr.bf16.mxu0 %v7118
    %7421 = vmatmul.mubr.bf16.gmra.mrb[0].mxu0 %v7117
    %v7422 = vpop.f32.mrb[0].mxu0
    %v7423 = vadd.f32 0.0, %v7422
    %v7424 = vpop.f32.mrb[0].mxu0
    %v7425 = vpop.f32.mrb[0].mxu0
    %v7426 = vadd.f32 0.0, %v7425
    %v7427 = vpop.f32.mrb[0].mxu0
    %7428 = vmatprep.mubr.bf16.mxu0 %v7120
    %7429 = vmatmul.mubr.bf16.gmra.mrb[0].mxu0 %v7119
    %v7430 = vpop.f32.mrb[0].mxu0
    %v7431 = vadd.f32 0.0, %v7430
    %v7432 = vpop.f32.mrb[0].mxu0
    %v7433 = vpop.f32.mrb[0].mxu0
    %v7434 = vadd.f32 0.0, %v7433
    %v7435 = vpop.f32.mrb[0].mxu0
    %7436 = vmatprep.mubr.bf16.mxu0 %v7122
    %7437 = vmatmul.mubr.bf16.gmra.mrb[0].mxu0 %v7121
    %v7438 = vpop.f32.mrb[0].mxu0
    %v7439 = vadd.f32 0.0, %v7438
    %v7440 = vpop.f32.mrb[0].mxu0
    %v7441 = vpop.f32.mrb[0].mxu0
    %v7442 = vadd.f32 0.0, %v7441
    %v7443 = vpop.f32.mrb[0].mxu0
    %7444 = vmatprep.mubr.bf16.mxu0 %v7124
    %7445 = vmatmul.mubr.bf16.gmra.mrb[0].mxu0 %v7123
    %v7446 = vpop.f32.mrb[0].mxu0
    %v7447 = vadd.f32 0.0, %v7446
    %v7448 = vpop.f32.mrb[0].mxu0
    %v7449 = vpop.f32.mrb[0].mxu0
    %v7450 = vadd.f32 0.0, %v7449
    %v7451 = vpop.f32.mrb[0].mxu0
    %7452 = vmatprep.mubr.bf16.mxu0 %v7126
    %7453 = vmatmul.mubr.bf16.gmra.mrb[0].mxu0 %v7125
    %v7454 = vpop.f32.mrb[0].mxu0
    %v7455 = vadd.f32 0.0, %v7454
    %v7456 = vpop.f32.mrb[0].mxu0
    %v7457 = vpop.f32.mrb[0].mxu0
    %v7458 = vadd.f32 0.0, %v7457
    %v7459 = vpop.f32.mrb[0].mxu0
    %7460 = vmatprep.mubr.bf16.mxu0 %v7128
    %7461 = vmatmul.mubr.bf16.gmra.mrb[0].mxu0 %v7127
    %v7462 = vpop.f32.mrb[0].mxu0
    %v7463 = vadd.f32 0.0, %v7462
    %v7464 = vpop.f32.mrb[0].mxu0
    %v7465 = vpop.f32.mrb[0].mxu0
    %v7466 = vadd.f32 0.0, %v7465
    %v7467 = vpop.f32.mrb[0].mxu0
    %7468 = vmatprep.mubr.bf16.mxu0 %v7130
    %7469 = vmatmul.mubr.bf16.gmra.mrb[0].mxu0 %v7129
    %v7470 = vpop.f32.mrb[0].mxu0
    %v7471 = vadd.f32 0.0, %v7470
    %v7472 = vpop.f32.mrb[0].mxu0
    %v7473 = vpop.f32.mrb[0].mxu0
    %v7474 = vadd.f32 0.0, %v7473
    %v7475 = vpop.f32.mrb[0].mxu0
    %7476 = vmatprep.mubr.bf16.mxu0 %v7132
    %7477 = vmatmul.mubr.bf16.gmra.mrb[0].mxu0 %v7131
    %v7478 = vpop.f32.mrb[0].mxu0
    %v7479 = vadd.f32 0.0, %v7478
    %v7480 = vpop.f32.mrb[0].mxu0
    %v7481 = vpop.f32.mrb[0].mxu0
    %v7482 = vadd.f32 0.0, %v7481
    %v7483 = vpop.f32.mrb[0].mxu0
    %7484 = vmatprep.mubr.bf16.mxu0 %v7134
    %7485 = vmatmul.mubr.bf16.gmra.mrb[0].mxu0 %v7133
    %v7486 = vpop.f32.mrb[0].mxu0
    %v7487 = vadd.f32 0.0, %v7486
    %v7488 = vpop.f32.mrb[0].mxu0
    %v7489 = vpop.f32.mrb[0].mxu0
    %v7490 = vadd.f32 0.0, %v7489
    %v7491 = vpop.f32.mrb[0].mxu0
    %7492 = vmatprep.mubr.bf16.mxu0 %v7136
    %7493 = vmatmul.mubr.bf16.gmra.mrb[0].mxu0 %v7135
    %v7494 = vpop.f32.mrb[0].mxu0
    %v7495 = vadd.f32 0.0, %v7494
    %v7496 = vpop.f32.mrb[0].mxu0
    %v7497 = vpop.f32.mrb[0].mxu0
    %v7498 = vadd.f32 0.0, %v7497
    %v7499 = vpop.f32.mrb[0].mxu0
    %7500 = vmatprep.mubr.bf16.mxu0 %v7138
    %7501 = vmatmul.mubr.bf16.gmra.mrb[0].mxu0 %v7137
    %v7502 = vpop.f32.mrb[0].mxu0
    %v7503 = vadd.f32 0.0, %v7502
    %v7504 = vpop.f32.mrb[0].mxu0
    %v7505 = vpop.f32.mrb[0].mxu0
    %v7506 = vadd.f32 0.0, %v7505
    %v7507 = vpop.f32.mrb[0].mxu0
    %7508 = vmatprep.mubr.bf16.mxu0 %v7140
    %7509 = vmatmul.mubr.bf16.gmra.mrb[0].mxu0 %v7139
    %v7510 = vpop.f32.mrb[0].mxu0
    %v7511 = vadd.f32 0.0, %v7510
    %v7512 = vpop.f32.mrb[0].mxu0
    %v7513 = vpop.f32.mrb[0].mxu0
    %v7514 = vadd.f32 0.0, %v7513
    %v7515 = vpop.f32.mrb[0].mxu0
    %7516 = vmatprep.mubr.bf16.mxu0 %v7142
    %7517 = vmatmul.mubr.bf16.gmra.mrb[0].mxu0 %v7141
    %v7518 = vpop.f32.mrb[0].mxu0
    %v7519 = vadd.f32 0.0, %v7518
    %v7520 = vpop.f32.mrb[0].mxu0
    %v7521 = vpop.f32.mrb[0].mxu0
    %v7522 = vadd.f32 0.0, %v7521
    %v7523 = vpop.f32.mrb[0].mxu0
    %7524 = vmatprep.mubr.bf16.mxu0 %v7144
    %7525 = vmatmul.mubr.bf16.gmra.mrb[0].mxu0 %v7143
    %v7526 = vpop.f32.mrb[0].mxu0
    %v7527 = vadd.f32 0.0, %v7526
    %v7528 = vpop.f32.mrb[0].mxu0
    %v7529 = vpop.f32.mrb[0].mxu0
    %v7530 = vadd.f32 0.0, %v7529
    %v7531 = vpop.f32.mrb[0].mxu0
    %7532 = vmatprep.mubr.bf16.mxu0 %v7146
    %7533 = vmatmul.mubr.bf16.gmra.mrb[0].mxu0 %v7145
    %v7534 = vpop.f32.mrb[0].mxu0
    %v7535 = vadd.f32 0.0, %v7534
    %v7536 = vpop.f32.mrb[0].mxu0
    %v7537 = vpop.f32.mrb[0].mxu0
    %v7538 = vadd.f32 0.0, %v7537
    %v7539 = vpop.f32.mrb[0].mxu0
    %7540 = vmatprep.mubr.bf16.mxu0 %v7148
    %7541 = vmatmul.mubr.bf16.gmra.mrb[0].mxu0 %v7147
    %v7542 = vpop.f32.mrb[0].mxu0
    %v7543 = vadd.f32 0.0, %v7542
    %v7544 = vpop.f32.mrb[0].mxu0
    %v7545 = vpop.f32.mrb[0].mxu0
    %v7546 = vadd.f32 0.0, %v7545
    %v7547 = vpop.f32.mrb[0].mxu0
    %7548 = vmatprep.mubr.bf16.mxu0 %v7150
    %7549 = vmatmul.mubr.bf16.gmra.mrb[0].mxu0 %v7149
    %v7550 = vpop.f32.mrb[0].mxu0
    %v7551 = vadd.f32 0.0, %v7550
    %v7552 = vpop.f32.mrb[0].mxu0
    %v7553 = vpop.f32.mrb[0].mxu0
    %v7554 = vadd.f32 0.0, %v7553
    %v7555 = vpop.f32.mrb[0].mxu0
    %7556 = vmatprep.mubr.bf16.mxu0 %v7152
    %7557 = vmatmul.mubr.bf16.gmra.mrb[0].mxu0 %v7151
    %v7558 = vpop.f32.mrb[0].mxu0
    %v7559 = vadd.f32 0.0, %v7558
    %v7560 = vpop.f32.mrb[0].mxu0
    %v7561 = vpop.f32.mrb[0].mxu0
    %v7562 = vadd.f32 0.0, %v7561
    %v7563 = vpop.f32.mrb[0].mxu0
    %7564 = vmatprep.mubr.bf16.mxu0 %v7154
    %7565 = vmatmul.mubr.bf16.gmra.mrb[0].mxu0 %v7153
    %v7566 = vpop.f32.mrb[0].mxu0
    %v7567 = vadd.f32 0.0, %v7566
    %v7568 = vpop.f32.mrb[0].mxu0
    %v7569 = vpop.f32.mrb[0].mxu0
    %v7570 = vadd.f32 0.0, %v7569
    %v7571 = vpop.f32.mrb[0].mxu0
    %7572 = vmatprep.mubr.bf16.mxu0 %v7156
    %7573 = vmatmul.mubr.bf16.gmra.mrb[0].mxu0 %v7155
    %v7574 = vpop.f32.mrb[0].mxu0
    %v7575 = vadd.f32 0.0, %v7574
    %v7576 = vpop.f32.mrb[0].mxu0
    %v7577 = vpop.f32.mrb[0].mxu0
    %v7578 = vadd.f32 0.0, %v7577
    %v7579 = vpop.f32.mrb[0].mxu0
    %7580 = vmatprep.mubr.bf16.mxu0 %v7158
    %7581 = vmatmul.mubr.bf16.gmra.mrb[0].mxu0 %v7157
    %v7582 = vpop.f32.mrb[0].mxu0
    %v7583 = vadd.f32 0.0, %v7582
    %v7584 = vpop.f32.mrb[0].mxu0
    %v7585 = vpop.f32.mrb[0].mxu0
    %v7586 = vadd.f32 0.0, %v7585
    %v7587 = vpop.f32.mrb[0].mxu0
    %7588 = vmatprep.mubr.bf16.mxu0 %v7160
    %7589 = vmatmul.mubr.bf16.gmra.mrb[0].mxu0 %v7159
    %v7590 = vpop.f32.mrb[0].mxu0
    %v7591 = vadd.f32 0.0, %v7590
    %v7592 = vpop.f32.mrb[0].mxu0
    %v7593 = vpop.f32.mrb[0].mxu0
    %v7594 = vadd.f32 0.0, %v7593
    %v7595 = vpop.f32.mrb[0].mxu0
    %7596 = vmatprep.mubr.bf16.mxu0 %v7162
    %7597 = vmatmul.mubr.bf16.gmra.mrb[0].mxu0 %v7161
    %v7598 = vpop.f32.mrb[0].mxu0
    %v7599 = vadd.f32 0.0, %v7598
    %v7600 = vpop.f32.mrb[0].mxu0
    %v7601 = vpop.f32.mrb[0].mxu0
    %v7602 = vadd.f32 0.0, %v7601
    %v7603 = vpop.f32.mrb[0].mxu0
    %7604 = vmatprep.mubr.bf16.mxu0 %v7164
    %7605 = vmatmul.mubr.bf16.gmra.mrb[0].mxu0 %v7163
    %v7606 = vpop.f32.mrb[0].mxu0
    %v7607 = vadd.f32 0.0, %v7606
    %v7608 = vpop.f32.mrb[0].mxu0
    %v7609 = vpop.f32.mrb[0].mxu0
    %v7610 = vadd.f32 0.0, %v7609
    %v7611 = vpop.f32.mrb[0].mxu0
    %7612 = vmatprep.mubr.bf16.mxu0 %v7166
    %7613 = vmatmul.mubr.bf16.gmra.mrb[0].mxu0 %v7165
    %v7614 = vpop.f32.mrb[0].mxu0
    %v7615 = vadd.f32 0.0, %v7614
    %v7616 = vpop.f32.mrb[0].mxu0
    %v7617 = vpop.f32.mrb[0].mxu0
    %v7618 = vadd.f32 0.0, %v7617
    %v7619 = vpop.f32.mrb[0].mxu0
    %7620 = vmatprep.mubr.bf16.mxu0 %v7172
    %7621 = vmatmul.mubr.bf16.gmra.mrb[0].mxu0 %v7171
    %v7622 = vpop.f32.mrb[0].mxu0
    %v7623 = vadd.f32 0.0, %v7622
    %v7624 = vpop.f32.mrb[0].mxu0
    %v7625 = vpop.f32.mrb[0].mxu0
    %v7626 = vadd.f32 0.0, %v7625
    %v7627 = vpop.f32.mrb[0].mxu0
    %7628 = vdwg.mxu0
    %v7661 = vunpack.c.l.b16 %v7179
    %v7662 = vunpack.c.l.b16 %v7180
    %v7663 = vunpack.c.l.b16 %v7181
    %v7664 = vunpack.c.l.b16 %v7182
    %v7665 = vunpack.c.l.b16 %v7183
    %v7666 = vunpack.c.l.b16 %v7184
    %v7667 = vunpack.c.l.b16 %v7185
    %v7668 = vunpack.c.l.b16 %v7186
    %v7669 = vunpack.c.l.b16 %v7187
    %v7670 = vunpack.c.l.b16 %v7188
    %v7671 = vunpack.c.l.b16 %v7189
    %v7672 = vunpack.c.l.b16 %v7190
    %v7673 = vunpack.c.l.b16 %v7191
    %v7674 = vunpack.c.l.b16 %v7192
    %v7675 = vunpack.c.l.b16 %v7193
    %v7676 = vunpack.c.l.b16 %v7194
    %v7677 = vunpack.c.l.b16 %v7195
    %v7678 = vunpack.c.l.b16 %v7196
    %v7679 = vunpack.c.l.b16 %v7197
    %v7680 = vunpack.c.l.b16 %v7198
    %v7681 = vunpack.c.l.b16 %v7199
    %v7682 = vunpack.c.l.b16 %v7200
    %v7683 = vunpack.c.l.b16 %v7201
    %v7684 = vunpack.c.l.b16 %v7202
    %v7685 = vunpack.c.l.b16 %v7203
    %v7686 = vunpack.c.l.b16 %v7204
    %v7687 = vunpack.c.l.b16 %v7205
    %v7688 = vunpack.c.l.b16 %v7206
    %v7689 = vunpack.c.l.b16 %v7207
    %v7690 = vunpack.c.l.b16 %v7208
    %v7691 = vunpack.c.l.b16 %v7209
    %v7692 = vunpack.c.l.b16 %v7210
    %v7693 = vpack.c.b16 %v7662, %v7661
    %v7694 = vpack.c.b16 %v7664, %v7663
    %v7695 = vpack.c.b16 %v7666, %v7665
    %v7696 = vpack.c.b16 %v7668, %v7667
    %v7697 = vpack.c.b16 %v7670, %v7669
    %v7698 = vpack.c.b16 %v7672, %v7671
    %v7699 = vpack.c.b16 %v7674, %v7673
    %v7700 = vpack.c.b16 %v7676, %v7675
    %v7701 = vpack.c.b16 %v7678, %v7677
    %v7702 = vpack.c.b16 %v7680, %v7679
    %v7703 = vpack.c.b16 %v7682, %v7681
    %v7704 = vpack.c.b16 %v7684, %v7683
    %v7705 = vpack.c.b16 %v7686, %v7685
    %v7706 = vpack.c.b16 %v7688, %v7687
    %v7707 = vpack.c.b16 %v7690, %v7689
    %v7708 = vpack.c.b16 %v7692, %v7691
    %7725 = vmatprep.subr.bf16.mxu0 0
    %7726 = vmatpush1.bf16.msra.mxu0 %v7693
    %7727 = vmatprep.subr.bf16.mxu0 0
    %7728 = vmatpush1.bf16.msra.mxu0 %v7694
    %7729 = vmatprep.subr.bf16.mxu0 0
    %7730 = vmatpush1.bf16.msra.mxu0 %v7695
    %7731 = vmatprep.subr.bf16.mxu0 0
    %7732 = vmatpush1.bf16.msra.mxu0 %v7696
    %7733 = vmatprep.subr.bf16.mxu0 0
    %7734 = vmatpush1.bf16.msra.mxu0 %v7697
    %7735 = vmatprep.subr.bf16.mxu0 0
    %7736 = vmatpush1.bf16.msra.mxu0 %v7698
    %7737 = vmatprep.subr.bf16.mxu0 0
    %7738 = vmatpush1.bf16.msra.mxu0 %v7699
    %7739 = vmatprep.subr.bf16.mxu0 0
    %7740 = vmatpush1.bf16.msra.mxu0 %v7700
    %7741 = vmatprep.subr.bf16.mxu0 0
    %7742 = vmatpush1.bf16.msra.mxu0 %v7701
    %7743 = vmatprep.subr.bf16.mxu0 0
    %7744 = vmatpush1.bf16.msra.mxu0 %v7702
    %7745 = vmatprep.subr.bf16.mxu0 0
    %7746 = vmatpush1.bf16.msra.mxu0 %v7703
    %7747 = vmatprep.subr.bf16.mxu0 0
    %7748 = vmatpush1.bf16.msra.mxu0 %v7704
    %7749 = vmatprep.subr.bf16.mxu0 0
    %7750 = vmatpush1.bf16.msra.mxu0 %v7705
    %7751 = vmatprep.subr.bf16.mxu0 0
    %7752 = vmatpush1.bf16.msra.mxu0 %v7706
    %7753 = vmatprep.subr.bf16.mxu0 0
    %7754 = vmatpush1.bf16.msra.mxu0 %v7707
    %7755 = vmatprep.subr.bf16.mxu0 0
    %7756 = vmatpush1.bf16.msra.mxu0 %v7708
    %7757 = vmatprep.mubr.bf16.mxu0 %v7104
    %7758 = vmatmul.mubr.bf16.gmra.mrb[0].mxu0 %v7103
    %v7759 = vpop.f32.mrb[0].mxu0
    %v7760 = vadd.f32 %v7375, %v7759
    %v7761 = vpop.f32.mrb[0].mxu0
    %v7762 = vpop.f32.mrb[0].mxu0
    %v7763 = vadd.f32 %v7378, %v7762
    %v7764 = vpop.f32.mrb[0].mxu0
    %7765 = vmatprep.mubr.bf16.mxu0 %v7106
    %7766 = vmatmul.mubr.bf16.gmra.mrb[0].mxu0 %v7105
    %v7767 = vpop.f32.mrb[0].mxu0
    %v7768 = vadd.f32 %v7383, %v7767
    %v7769 = vpop.f32.mrb[0].mxu0
    %v7770 = vpop.f32.mrb[0].mxu0
    %v7771 = vadd.f32 %v7386, %v7770
    %v7772 = vpop.f32.mrb[0].mxu0
    %7773 = vmatprep.mubr.bf16.mxu0 %v7108
    %7774 = vmatmul.mubr.bf16.gmra.mrb[0].mxu0 %v7107
    %v7775 = vpop.f32.mrb[0].mxu0
    %v7776 = vadd.f32 %v7391, %v7775
    %v7777 = vpop.f32.mrb[0].mxu0
    %v7778 = vpop.f32.mrb[0].mxu0
    %v7779 = vadd.f32 %v7394, %v7778
    %v7780 = vpop.f32.mrb[0].mxu0
    %7781 = vmatprep.mubr.bf16.mxu0 %v7110
    %7782 = vmatmul.mubr.bf16.gmra.mrb[0].mxu0 %v7109
    %v7783 = vpop.f32.mrb[0].mxu0
    %v7784 = vadd.f32 %v7399, %v7783
    %v7785 = vpop.f32.mrb[0].mxu0
    %v7786 = vpop.f32.mrb[0].mxu0
    %v7787 = vadd.f32 %v7402, %v7786
    %v7788 = vpop.f32.mrb[0].mxu0
    %7789 = vmatprep.mubr.bf16.mxu0 %v7112
    %7790 = vmatmul.mubr.bf16.gmra.mrb[0].mxu0 %v7111
    %v7791 = vpop.f32.mrb[0].mxu0
    %v7792 = vadd.f32 %v7407, %v7791
    %v7793 = vpop.f32.mrb[0].mxu0
    %v7794 = vpop.f32.mrb[0].mxu0
    %v7795 = vadd.f32 %v7410, %v7794
    %v7796 = vpop.f32.mrb[0].mxu0
    %7797 = vmatprep.mubr.bf16.mxu0 %v7114
    %7798 = vmatmul.mubr.bf16.gmra.mrb[0].mxu0 %v7113
    %v7799 = vpop.f32.mrb[0].mxu0
    %v7800 = vadd.f32 %v7415, %v7799
    %v7801 = vpop.f32.mrb[0].mxu0
    %v7802 = vpop.f32.mrb[0].mxu0
    %v7803 = vadd.f32 %v7418, %v7802
    %v7804 = vpop.f32.mrb[0].mxu0
    %7805 = vmatprep.mubr.bf16.mxu0 %v7116
    %7806 = vmatmul.mubr.bf16.gmra.mrb[0].mxu0 %v7115
    %v7807 = vpop.f32.mrb[0].mxu0
    %v7808 = vadd.f32 %v7423, %v7807
    %v7809 = vpop.f32.mrb[0].mxu0
    %v7810 = vpop.f32.mrb[0].mxu0
    %v7811 = vadd.f32 %v7426, %v7810
    %v7812 = vpop.f32.mrb[0].mxu0
    %7813 = vmatprep.mubr.bf16.mxu0 %v7118
    %7814 = vmatmul.mubr.bf16.gmra.mrb[0].mxu0 %v7117
    %v7815 = vpop.f32.mrb[0].mxu0
    %v7816 = vadd.f32 %v7431, %v7815
    %v7817 = vpop.f32.mrb[0].mxu0
    %v7818 = vpop.f32.mrb[0].mxu0
    %v7819 = vadd.f32 %v7434, %v7818
    %v7820 = vpop.f32.mrb[0].mxu0
    %7821 = vmatprep.mubr.bf16.mxu0 %v7120
    %7822 = vmatmul.mubr.bf16.gmra.mrb[0].mxu0 %v7119
    %v7823 = vpop.f32.mrb[0].mxu0
    %v7824 = vadd.f32 %v7439, %v7823
    %v7825 = vpop.f32.mrb[0].mxu0
    %v7826 = vpop.f32.mrb[0].mxu0
    %v7827 = vadd.f32 %v7442, %v7826
    %v7828 = vpop.f32.mrb[0].mxu0
    %7829 = vmatprep.mubr.bf16.mxu0 %v7122
    %7830 = vmatmul.mubr.bf16.gmra.mrb[0].mxu0 %v7121
    %v7831 = vpop.f32.mrb[0].mxu0
    %v7832 = vadd.f32 %v7447, %v7831
    %v7833 = vpop.f32.mrb[0].mxu0
    %v7834 = vpop.f32.mrb[0].mxu0
    %v7835 = vadd.f32 %v7450, %v7834
    %v7836 = vpop.f32.mrb[0].mxu0
    %7837 = vmatprep.mubr.bf16.mxu0 %v7124
    %7838 = vmatmul.mubr.bf16.gmra.mrb[0].mxu0 %v7123
    %v7839 = vpop.f32.mrb[0].mxu0
    %v7840 = vadd.f32 %v7455, %v7839
    %v7841 = vpop.f32.mrb[0].mxu0
    %v7842 = vpop.f32.mrb[0].mxu0
    %v7843 = vadd.f32 %v7458, %v7842
    %v7844 = vpop.f32.mrb[0].mxu0
    %7845 = vmatprep.mubr.bf16.mxu0 %v7126
    %7846 = vmatmul.mubr.bf16.gmra.mrb[0].mxu0 %v7125
    %v7847 = vpop.f32.mrb[0].mxu0
    %v7848 = vadd.f32 %v7463, %v7847
    %v7849 = vpop.f32.mrb[0].mxu0
    %v7850 = vpop.f32.mrb[0].mxu0
    %v7851 = vadd.f32 %v7466, %v7850
    %v7852 = vpop.f32.mrb[0].mxu0
    %7853 = vmatprep.mubr.bf16.mxu0 %v7128
    %7854 = vmatmul.mubr.bf16.gmra.mrb[0].mxu0 %v7127
    %v7855 = vpop.f32.mrb[0].mxu0
    %v7856 = vadd.f32 %v7471, %v7855
    %v7857 = vpop.f32.mrb[0].mxu0
    %v7858 = vpop.f32.mrb[0].mxu0
    %v7859 = vadd.f32 %v7474, %v7858
    %v7860 = vpop.f32.mrb[0].mxu0
    %7861 = vmatprep.mubr.bf16.mxu0 %v7130
    %7862 = vmatmul.mubr.bf16.gmra.mrb[0].mxu0 %v7129
    %v7863 = vpop.f32.mrb[0].mxu0
    %v7864 = vadd.f32 %v7479, %v7863
    %v7865 = vpop.f32.mrb[0].mxu0
    %v7866 = vpop.f32.mrb[0].mxu0
    %v7867 = vadd.f32 %v7482, %v7866
    %v7868 = vpop.f32.mrb[0].mxu0
    %7869 = vmatprep.mubr.bf16.mxu0 %v7132
    %7870 = vmatmul.mubr.bf16.gmra.mrb[0].mxu0 %v7131
    %v7871 = vpop.f32.mrb[0].mxu0
    %v7872 = vadd.f32 %v7487, %v7871
    %v7873 = vpop.f32.mrb[0].mxu0
    %v7874 = vpop.f32.mrb[0].mxu0
    %v7875 = vadd.f32 %v7490, %v7874
    %v7876 = vpop.f32.mrb[0].mxu0
    %7877 = vmatprep.mubr.bf16.mxu0 %v7134
    %7878 = vmatmul.mubr.bf16.gmra.mrb[0].mxu0 %v7133
    %v7879 = vpop.f32.mrb[0].mxu0
    %v7880 = vadd.f32 %v7495, %v7879
    %v7881 = vpop.f32.mrb[0].mxu0
    %v7882 = vpop.f32.mrb[0].mxu0
    %v7883 = vadd.f32 %v7498, %v7882
    %v7884 = vpop.f32.mrb[0].mxu0
    %7885 = vmatprep.mubr.bf16.mxu0 %v7136
    %7886 = vmatmul.mubr.bf16.gmra.mrb[0].mxu0 %v7135
    %v7887 = vpop.f32.mrb[0].mxu0
    %v7888 = vadd.f32 %v7503, %v7887
    %v7889 = vpop.f32.mrb[0].mxu0
    %v7890 = vpop.f32.mrb[0].mxu0
    %v7891 = vadd.f32 %v7506, %v7890
    %v7892 = vpop.f32.mrb[0].mxu0
    %7893 = vmatprep.mubr.bf16.mxu0 %v7138
    %7894 = vmatmul.mubr.bf16.gmra.mrb[0].mxu0 %v7137
    %v7895 = vpop.f32.mrb[0].mxu0
    %v7896 = vadd.f32 %v7511, %v7895
    %v7897 = vpop.f32.mrb[0].mxu0
    %v7898 = vpop.f32.mrb[0].mxu0
    %v7899 = vadd.f32 %v7514, %v7898
    %v7900 = vpop.f32.mrb[0].mxu0
    %7901 = vmatprep.mubr.bf16.mxu0 %v7140
    %7902 = vmatmul.mubr.bf16.gmra.mrb[0].mxu0 %v7139
    %v7903 = vpop.f32.mrb[0].mxu0
    %v7904 = vadd.f32 %v7519, %v7903
    %v7905 = vpop.f32.mrb[0].mxu0
    %v7906 = vpop.f32.mrb[0].mxu0
    %v7907 = vadd.f32 %v7522, %v7906
    %v7908 = vpop.f32.mrb[0].mxu0
    %7909 = vmatprep.mubr.bf16.mxu0 %v7142
    %7910 = vmatmul.mubr.bf16.gmra.mrb[0].mxu0 %v7141
    %v7911 = vpop.f32.mrb[0].mxu0
    %v7912 = vadd.f32 %v7527, %v7911
    %v7913 = vpop.f32.mrb[0].mxu0
    %v7914 = vpop.f32.mrb[0].mxu0
    %v7915 = vadd.f32 %v7530, %v7914
    %v7916 = vpop.f32.mrb[0].mxu0
    %7917 = vmatprep.mubr.bf16.mxu0 %v7144
    %7918 = vmatmul.mubr.bf16.gmra.mrb[0].mxu0 %v7143
    %v7919 = vpop.f32.mrb[0].mxu0
    %v7920 = vadd.f32 %v7535, %v7919
    %v7921 = vpop.f32.mrb[0].mxu0
    %v7922 = vpop.f32.mrb[0].mxu0
    %v7923 = vadd.f32 %v7538, %v7922
    %v7924 = vpop.f32.mrb[0].mxu0
    %7925 = vmatprep.mubr.bf16.mxu0 %v7146
    %7926 = vmatmul.mubr.bf16.gmra.mrb[0].mxu0 %v7145
    %v7927 = vpop.f32.mrb[0].mxu0
    %v7928 = vadd.f32 %v7543, %v7927
    %v7929 = vpop.f32.mrb[0].mxu0
    %v7930 = vpop.f32.mrb[0].mxu0
    %v7931 = vadd.f32 %v7546, %v7930
    %v7932 = vpop.f32.mrb[0].mxu0
    %7933 = vmatprep.mubr.bf16.mxu0 %v7148
    %7934 = vmatmul.mubr.bf16.gmra.mrb[0].mxu0 %v7147
    %v7935 = vpop.f32.mrb[0].mxu0
    %v7936 = vadd.f32 %v7551, %v7935
    %v7937 = vpop.f32.mrb[0].mxu0
    %v7938 = vpop.f32.mrb[0].mxu0
    %v7939 = vadd.f32 %v7554, %v7938
    %v7940 = vpop.f32.mrb[0].mxu0
    %7941 = vmatprep.mubr.bf16.mxu0 %v7150
    %7942 = vmatmul.mubr.bf16.gmra.mrb[0].mxu0 %v7149
    %v7943 = vpop.f32.mrb[0].mxu0
    %v7944 = vadd.f32 %v7559, %v7943
    %v7945 = vpop.f32.mrb[0].mxu0
    %v7946 = vpop.f32.mrb[0].mxu0
    %v7947 = vadd.f32 %v7562, %v7946
    %v7948 = vpop.f32.mrb[0].mxu0
    %7949 = vmatprep.mubr.bf16.mxu0 %v7152
    %7950 = vmatmul.mubr.bf16.gmra.mrb[0].mxu0 %v7151
    %v7951 = vpop.f32.mrb[0].mxu0
    %v7952 = vadd.f32 %v7567, %v7951
    %v7953 = vpop.f32.mrb[0].mxu0
    %v7954 = vpop.f32.mrb[0].mxu0
    %v7955 = vadd.f32 %v7570, %v7954
    %v7956 = vpop.f32.mrb[0].mxu0
    %7957 = vmatprep.mubr.bf16.mxu0 %v7154
    %7958 = vmatmul.mubr.bf16.gmra.mrb[0].mxu0 %v7153
    %v7959 = vpop.f32.mrb[0].mxu0
    %v7960 = vadd.f32 %v7575, %v7959
    %v7961 = vpop.f32.mrb[0].mxu0
    %v7962 = vpop.f32.mrb[0].mxu0
    %v7963 = vadd.f32 %v7578, %v7962
    %v7964 = vpop.f32.mrb[0].mxu0
    %7965 = vmatprep.mubr.bf16.mxu0 %v7156
    %7966 = vmatmul.mubr.bf16.gmra.mrb[0].mxu0 %v7155
    %v7967 = vpop.f32.mrb[0].mxu0
    %v7968 = vadd.f32 %v7583, %v7967
    %v7969 = vpop.f32.mrb[0].mxu0
    %v7970 = vpop.f32.mrb[0].mxu0
    %v7971 = vadd.f32 %v7586, %v7970
    %v7972 = vpop.f32.mrb[0].mxu0
    %7973 = vmatprep.mubr.bf16.mxu0 %v7158
    %7974 = vmatmul.mubr.bf16.gmra.mrb[0].mxu0 %v7157
    %v7975 = vpop.f32.mrb[0].mxu0
    %v7976 = vadd.f32 %v7591, %v7975
    %v7977 = vpop.f32.mrb[0].mxu0
    %v7978 = vpop.f32.mrb[0].mxu0
    %v7979 = vadd.f32 %v7594, %v7978
    %v7980 = vpop.f32.mrb[0].mxu0
    %7981 = vmatprep.mubr.bf16.mxu0 %v7160
    %7982 = vmatmul.mubr.bf16.gmra.mrb[0].mxu0 %v7159
    %v7983 = vpop.f32.mrb[0].mxu0
    %v7984 = vadd.f32 %v7599, %v7983
    %v7985 = vpop.f32.mrb[0].mxu0
    %v7986 = vpop.f32.mrb[0].mxu0
    %v7987 = vadd.f32 %v7602, %v7986
    %v7988 = vpop.f32.mrb[0].mxu0
    %7989 = vmatprep.mubr.bf16.mxu0 %v7162
    %7990 = vmatmul.mubr.bf16.gmra.mrb[0].mxu0 %v7161
    %v7991 = vpop.f32.mrb[0].mxu0
    %v7992 = vadd.f32 %v7607, %v7991
    %v7993 = vpop.f32.mrb[0].mxu0
    %v7994 = vpop.f32.mrb[0].mxu0
    %v7995 = vadd.f32 %v7610, %v7994
    %v7996 = vpop.f32.mrb[0].mxu0
    %7997 = vmatprep.mubr.bf16.mxu0 %v7164
    %7998 = vmatmul.mubr.bf16.gmra.mrb[0].mxu0 %v7163
    %v7999 = vpop.f32.mrb[0].mxu0
    %v8000 = vadd.f32 %v7615, %v7999
    %v8001 = vpop.f32.mrb[0].mxu0
    %v8002 = vpop.f32.mrb[0].mxu0
    %v8003 = vadd.f32 %v7618, %v8002
    %v8004 = vpop.f32.mrb[0].mxu0
    %8005 = vmatprep.mubr.bf16.mxu0 %v7166
    %8006 = vmatmul.mubr.bf16.gmra.mrb[0].mxu0 %v7165
    %v8007 = vpop.f32.mrb[0].mxu0
    %v8008 = vadd.f32 %v7623, %v8007
    %v8009 = vpop.f32.mrb[0].mxu0
    %v8010 = vpop.f32.mrb[0].mxu0
    %v8011 = vadd.f32 %v7626, %v8010
    %v8012 = vpop.f32.mrb[0].mxu0
    %8013 = vdwg.mxu0
    %s8014 = scalar_lea.vmem %s5, 256
    %v8015 = vld [vmem:[%s8014] sm:$0xf]
    %v8016 = vld [vmem:[%s8014 + $0x4] sm:$0xf]
    %v8017 = vld [vmem:[%s8014 + $0x8] sm:$0xf]
    %v8018 = vld [vmem:[%s8014 + $0xc] sm:$0xf]
    %v8019 = vld [vmem:[%s8014 + $0x10] sm:$0xf]
    %v8020 = vld [vmem:[%s8014 + $0x14] sm:$0xf]
    %v8021 = vld [vmem:[%s8014 + $0x18] sm:$0xf]
    %v8022 = vld [vmem:[%s8014 + $0x1c] sm:$0xf]
    %v8023 = vld [vmem:[%s8014 + $0x20] sm:$0xf]
    %v8024 = vld [vmem:[%s8014 + $0x24] sm:$0xf]
    %v8025 = vld [vmem:[%s8014 + $0x28] sm:$0xf]
    %v8026 = vld [vmem:[%s8014 + $0x2c] sm:$0xf]
    %v8027 = vld [vmem:[%s8014 + $0x30] sm:$0xf]
    %v8028 = vld [vmem:[%s8014 + $0x34] sm:$0xf]
    %v8029 = vld [vmem:[%s8014 + $0x38] sm:$0xf]
    %v8030 = vld [vmem:[%s8014 + $0x3c] sm:$0xf]
    %v8031 = vld [vmem:[%s8014 + $0x40] sm:$0xf]
    %v8032 = vld [vmem:[%s8014 + $0x44] sm:$0xf]
    %v8033 = vld [vmem:[%s8014 + $0x48] sm:$0xf]
    %v8034 = vld [vmem:[%s8014 + $0x4c] sm:$0xf]
    %v8035 = vld [vmem:[%s8014 + $0x50] sm:$0xf]
    %v8036 = vld [vmem:[%s8014 + $0x54] sm:$0xf]
    %v8037 = vld [vmem:[%s8014 + $0x58] sm:$0xf]
    %v8038 = vld [vmem:[%s8014 + $0x5c] sm:$0xf]
    %v8039 = vld [vmem:[%s8014 + $0x60] sm:$0xf]
    %v8040 = vld [vmem:[%s8014 + $0x64] sm:$0xf]
    %v8041 = vld [vmem:[%s8014 + $0x68] sm:$0xf]
    %v8042 = vld [vmem:[%s8014 + $0x6c] sm:$0xf]
    %v8043 = vld [vmem:[%s8014 + $0x70] sm:$0xf]
    %v8044 = vld [vmem:[%s8014 + $0x74] sm:$0xf]
    %v8045 = vld [vmem:[%s8014 + $0x78] sm:$0xf]
    %v8046 = vld [vmem:[%s8014 + $0x7c] sm:$0xf]
    %v8079 = vunpack.c.l.b16 %v8015
    %v8080 = vunpack.c.l.b16 %v8016
    %v8081 = vunpack.c.l.b16 %v8017
    %v8082 = vunpack.c.l.b16 %v8018
    %v8083 = vunpack.c.l.b16 %v8019
    %v8084 = vunpack.c.l.b16 %v8020
    %v8085 = vunpack.c.l.b16 %v8021
    %v8086 = vunpack.c.l.b16 %v8022
    %v8087 = vunpack.c.l.b16 %v8023
    %v8088 = vunpack.c.l.b16 %v8024
    %v8089 = vunpack.c.l.b16 %v8025
    %v8090 = vunpack.c.l.b16 %v8026
    %v8091 = vunpack.c.l.b16 %v8027
    %v8092 = vunpack.c.l.b16 %v8028
    %v8093 = vunpack.c.l.b16 %v8029
    %v8094 = vunpack.c.l.b16 %v8030
    %v8095 = vunpack.c.l.b16 %v8031
    %v8096 = vunpack.c.l.b16 %v8032
    %v8097 = vunpack.c.l.b16 %v8033
    %v8098 = vunpack.c.l.b16 %v8034
    %v8099 = vunpack.c.l.b16 %v8035
    %v8100 = vunpack.c.l.b16 %v8036
    %v8101 = vunpack.c.l.b16 %v8037
    %v8102 = vunpack.c.l.b16 %v8038
    %v8103 = vunpack.c.l.b16 %v8039
    %v8104 = vunpack.c.l.b16 %v8040
    %v8105 = vunpack.c.l.b16 %v8041
    %v8106 = vunpack.c.l.b16 %v8042
    %v8107 = vunpack.c.l.b16 %v8043
    %v8108 = vunpack.c.l.b16 %v8044
    %v8109 = vunpack.c.l.b16 %v8045
    %v8110 = vunpack.c.l.b16 %v8046
    %v8111 = vpack.c.b16 %v8080, %v8079
    %v8112 = vpack.c.b16 %v8082, %v8081
    %v8113 = vpack.c.b16 %v8084, %v8083
    %v8114 = vpack.c.b16 %v8086, %v8085
    %v8115 = vpack.c.b16 %v8088, %v8087
    %v8116 = vpack.c.b16 %v8090, %v8089
    %v8117 = vpack.c.b16 %v8092, %v8091
    %v8118 = vpack.c.b16 %v8094, %v8093
    %v8119 = vpack.c.b16 %v8096, %v8095
    %v8120 = vpack.c.b16 %v8098, %v8097
    %v8121 = vpack.c.b16 %v8100, %v8099
    %v8122 = vpack.c.b16 %v8102, %v8101
    %v8123 = vpack.c.b16 %v8104, %v8103
    %v8124 = vpack.c.b16 %v8106, %v8105
    %v8125 = vpack.c.b16 %v8108, %v8107
    %v8126 = vpack.c.b16 %v8110, %v8109
    %8143 = vmatprep.subr.bf16.mxu0 0
    %8144 = vmatpush1.bf16.msra.mxu0 %v8111
    %8145 = vmatprep.subr.bf16.mxu0 0
    %8146 = vmatpush1.bf16.msra.mxu0 %v8112
    %8147 = vmatprep.subr.bf16.mxu0 0
    %8148 = vmatpush1.bf16.msra.mxu0 %v8113
    %8149 = vmatprep.subr.bf16.mxu0 0
    %8150 = vmatpush1.bf16.msra.mxu0 %v8114
    %8151 = vmatprep.subr.bf16.mxu0 0
    %8152 = vmatpush1.bf16.msra.mxu0 %v8115
    %8153 = vmatprep.subr.bf16.mxu0 0
    %8154 = vmatpush1.bf16.msra.mxu0 %v8116
    %8155 = vmatprep.subr.bf16.mxu0 0
    %8156 = vmatpush1.bf16.msra.mxu0 %v8117
    %8157 = vmatprep.subr.bf16.mxu0 0
    %8158 = vmatpush1.bf16.msra.mxu0 %v8118
    %8159 = vmatprep.subr.bf16.mxu0 0
    %8160 = vmatpush1.bf16.msra.mxu0 %v8119
    %8161 = vmatprep.subr.bf16.mxu0 0
    %8162 = vmatpush1.bf16.msra.mxu0 %v8120
    %8163 = vmatprep.subr.bf16.mxu0 0
    %8164 = vmatpush1.bf16.msra.mxu0 %v8121
    %8165 = vmatprep.subr.bf16.mxu0 0
    %8166 = vmatpush1.bf16.msra.mxu0 %v8122
    %8167 = vmatprep.subr.bf16.mxu0 0
    %8168 = vmatpush1.bf16.msra.mxu0 %v8123
    %8169 = vmatprep.subr.bf16.mxu0 0
    %8170 = vmatpush1.bf16.msra.mxu0 %v8124
    %8171 = vmatprep.subr.bf16.mxu0 0
    %8172 = vmatpush1.bf16.msra.mxu0 %v8125
    %8173 = vmatprep.subr.bf16.mxu0 0
    %8174 = vmatpush1.bf16.msra.mxu0 %v8126
    %8175 = vmatprep.mubr.bf16.mxu0 %v7108
    %8176 = vmatmul.mubr.bf16.gmra.mrb[0].mxu0 %v7107
    %v8177 = vpop.f32.mrb[0].mxu0
    %v8178 = vadd.f32 0.0, %v8177
    %v8179 = vpop.f32.mrb[0].mxu0
    %v8180 = vpop.f32.mrb[0].mxu0
    %v8181 = vadd.f32 0.0, %v8180
    %v8182 = vpop.f32.mrb[0].mxu0
    %8183 = vmatprep.mubr.bf16.mxu0 %v7110
    %8184 = vmatmul.mubr.bf16.gmra.mrb[0].mxu0 %v7109
    %v8185 = vpop.f32.mrb[0].mxu0
    %v8186 = vadd.f32 0.0, %v8185
    %v8187 = vpop.f32.mrb[0].mxu0
    %v8188 = vpop.f32.mrb[0].mxu0
    %v8189 = vadd.f32 0.0, %v8188
    %v8190 = vpop.f32.mrb[0].mxu0
    %8191 = vmatprep.mubr.bf16.mxu0 %v7112
    %8192 = vmatmul.mubr.bf16.gmra.mrb[0].mxu0 %v7111
    %v8193 = vpop.f32.mrb[0].mxu0
    %v8194 = vadd.f32 0.0, %v8193
    %v8195 = vpop.f32.mrb[0].mxu0
    %v8196 = vpop.f32.mrb[0].mxu0
    %v8197 = vadd.f32 0.0, %v8196
    %v8198 = vpop.f32.mrb[0].mxu0
    %8199 = vmatprep.mubr.bf16.mxu0 %v7114
    %8200 = vmatmul.mubr.bf16.gmra.mrb[0].mxu0 %v7113
    %v8201 = vpop.f32.mrb[0].mxu0
    %v8202 = vadd.f32 0.0, %v8201
    %v8203 = vpop.f32.mrb[0].mxu0
    %v8204 = vpop.f32.mrb[0].mxu0
    %v8205 = vadd.f32 0.0, %v8204
    %v8206 = vpop.f32.mrb[0].mxu0
    %8207 = vmatprep.mubr.bf16.mxu0 %v7116
    %8208 = vmatmul.mubr.bf16.gmra.mrb[0].mxu0 %v7115
    %v8209 = vpop.f32.mrb[0].mxu0
    %v8210 = vadd.f32 0.0, %v8209
    %v8211 = vpop.f32.mrb[0].mxu0
    %v8212 = vpop.f32.mrb[0].mxu0
    %v8213 = vadd.f32 0.0, %v8212
    %v8214 = vpop.f32.mrb[0].mxu0
    %8215 = vmatprep.mubr.bf16.mxu0 %v7118
    %8216 = vmatmul.mubr.bf16.gmra.mrb[0].mxu0 %v7117
    %v8217 = vpop.f32.mrb[0].mxu0
    %v8218 = vadd.f32 0.0, %v8217
    %v8219 = vpop.f32.mrb[0].mxu0
    %v8220 = vpop.f32.mrb[0].mxu0
    %v8221 = vadd.f32 0.0, %v8220
    %v8222 = vpop.f32.mrb[0].mxu0
    %8223 = vmatprep.mubr.bf16.mxu0 %v7120
    %8224 = vmatmul.mubr.bf16.gmra.mrb[0].mxu0 %v7119
    %v8225 = vpop.f32.mrb[0].mxu0
    %v8226 = vadd.f32 0.0, %v8225
    %v8227 = vpop.f32.mrb[0].mxu0
    %v8228 = vpop.f32.mrb[0].mxu0
    %v8229 = vadd.f32 0.0, %v8228
    %v8230 = vpop.f32.mrb[0].mxu0
    %8231 = vmatprep.mubr.bf16.mxu0 %v7122
    %8232 = vmatmul.mubr.bf16.gmra.mrb[0].mxu0 %v7121
    %v8233 = vpop.f32.mrb[0].mxu0
    %v8234 = vadd.f32 0.0, %v8233
    %v8235 = vpop.f32.mrb[0].mxu0
    %v8236 = vpop.f32.mrb[0].mxu0
    %v8237 = vadd.f32 0.0, %v8236
    %v8238 = vpop.f32.mrb[0].mxu0
    %8239 = vmatprep.mubr.bf16.mxu0 %v7124
    %8240 = vmatmul.mubr.bf16.gmra.mrb[0].mxu0 %v7123
    %v8241 = vpop.f32.mrb[0].mxu0
    %v8242 = vadd.f32 0.0, %v8241
    %v8243 = vpop.f32.mrb[0].mxu0
    %v8244 = vpop.f32.mrb[0].mxu0
    %v8245 = vadd.f32 0.0, %v8244
    %v8246 = vpop.f32.mrb[0].mxu0
    %8247 = vmatprep.mubr.bf16.mxu0 %v7126
    %8248 = vmatmul.mubr.bf16.gmra.mrb[0].mxu0 %v7125
    %v8249 = vpop.f32.mrb[0].mxu0
    %v8250 = vadd.f32 0.0, %v8249
    %v8251 = vpop.f32.mrb[0].mxu0
    %v8252 = vpop.f32.mrb[0].mxu0
    %v8253 = vadd.f32 0.0, %v8252
    %v8254 = vpop.f32.mrb[0].mxu0
    %8255 = vmatprep.mubr.bf16.mxu0 %v7128
    %8256 = vmatmul.mubr.bf16.gmra.mrb[0].mxu0 %v7127
    %v8257 = vpop.f32.mrb[0].mxu0
    %v8258 = vadd.f32 0.0, %v8257
    %v8259 = vpop.f32.mrb[0].mxu0
    %v8260 = vpop.f32.mrb[0].mxu0
    %v8261 = vadd.f32 0.0, %v8260
    %v8262 = vpop.f32.mrb[0].mxu0
    %8263 = vmatprep.mubr.bf16.mxu0 %v7130
    %8264 = vmatmul.mubr.bf16.gmra.mrb[0].mxu0 %v7129
    %v8265 = vpop.f32.mrb[0].mxu0
    %v8266 = vadd.f32 0.0, %v8265
    %v8267 = vpop.f32.mrb[0].mxu0
    %v8268 = vpop.f32.mrb[0].mxu0
    %v8269 = vadd.f32 0.0, %v8268
    %v8270 = vpop.f32.mrb[0].mxu0
    %8271 = vmatprep.mubr.bf16.mxu0 %v7132
    %8272 = vmatmul.mubr.bf16.gmra.mrb[0].mxu0 %v7131
    %v8273 = vpop.f32.mrb[0].mxu0
    %v8274 = vadd.f32 0.0, %v8273
    %v8275 = vpop.f32.mrb[0].mxu0
    %v8276 = vpop.f32.mrb[0].mxu0
    %v8277 = vadd.f32 0.0, %v8276
    %v8278 = vpop.f32.mrb[0].mxu0
    %8279 = vmatprep.mubr.bf16.mxu0 %v7134
    %8280 = vmatmul.mubr.bf16.gmra.mrb[0].mxu0 %v7133
    %v8281 = vpop.f32.mrb[0].mxu0
    %v8282 = vadd.f32 0.0, %v8281
    %v8283 = vpop.f32.mrb[0].mxu0
    %v8284 = vpop.f32.mrb[0].mxu0
    %v8285 = vadd.f32 0.0, %v8284
    %v8286 = vpop.f32.mrb[0].mxu0
    %8287 = vmatprep.mubr.bf16.mxu0 %v7136
    %8288 = vmatmul.mubr.bf16.gmra.mrb[0].mxu0 %v7135
    %v8289 = vpop.f32.mrb[0].mxu0
    %v8290 = vadd.f32 0.0, %v8289
    %v8291 = vpop.f32.mrb[0].mxu0
    %v8292 = vpop.f32.mrb[0].mxu0
    %v8293 = vadd.f32 0.0, %v8292
    %v8294 = vpop.f32.mrb[0].mxu0
    %8295 = vmatprep.mubr.bf16.mxu0 %v7138
    %8296 = vmatmul.mubr.bf16.gmra.mrb[0].mxu0 %v7137
    %v8297 = vpop.f32.mrb[0].mxu0
    %v8298 = vadd.f32 0.0, %v8297
    %v8299 = vpop.f32.mrb[0].mxu0
    %v8300 = vpop.f32.mrb[0].mxu0
    %v8301 = vadd.f32 0.0, %v8300
    %v8302 = vpop.f32.mrb[0].mxu0
    %8303 = vmatprep.mubr.bf16.mxu0 %v7140
    %8304 = vmatmul.mubr.bf16.gmra.mrb[0].mxu0 %v7139
    %v8305 = vpop.f32.mrb[0].mxu0
    %v8306 = vadd.f32 0.0, %v8305
    %v8307 = vpop.f32.mrb[0].mxu0
    %v8308 = vpop.f32.mrb[0].mxu0
    %v8309 = vadd.f32 0.0, %v8308
    %v8310 = vpop.f32.mrb[0].mxu0
    %8311 = vmatprep.mubr.bf16.mxu0 %v7142
    %8312 = vmatmul.mubr.bf16.gmra.mrb[0].mxu0 %v7141
    %v8313 = vpop.f32.mrb[0].mxu0
    %v8314 = vadd.f32 0.0, %v8313
    %v8315 = vpop.f32.mrb[0].mxu0
    %v8316 = vpop.f32.mrb[0].mxu0
    %v8317 = vadd.f32 0.0, %v8316
    %v8318 = vpop.f32.mrb[0].mxu0
    %8319 = vmatprep.mubr.bf16.mxu0 %v7144
    %8320 = vmatmul.mubr.bf16.gmra.mrb[0].mxu0 %v7143
    %v8321 = vpop.f32.mrb[0].mxu0
    %v8322 = vadd.f32 0.0, %v8321
    %v8323 = vpop.f32.mrb[0].mxu0
    %v8324 = vpop.f32.mrb[0].mxu0
    %v8325 = vadd.f32 0.0, %v8324
    %v8326 = vpop.f32.mrb[0].mxu0
    %8327 = vmatprep.mubr.bf16.mxu0 %v7146
    %8328 = vmatmul.mubr.bf16.gmra.mrb[0].mxu0 %v7145
    %v8329 = vpop.f32.mrb[0].mxu0
    %v8330 = vadd.f32 0.0, %v8329
    %v8331 = vpop.f32.mrb[0].mxu0
    %v8332 = vpop.f32.mrb[0].mxu0
    %v8333 = vadd.f32 0.0, %v8332
    %v8334 = vpop.f32.mrb[0].mxu0
    %8335 = vmatprep.mubr.bf16.mxu0 %v7148
    %8336 = vmatmul.mubr.bf16.gmra.mrb[0].mxu0 %v7147
    %v8337 = vpop.f32.mrb[0].mxu0
    %v8338 = vadd.f32 0.0, %v8337
    %v8339 = vpop.f32.mrb[0].mxu0
    %v8340 = vpop.f32.mrb[0].mxu0
    %v8341 = vadd.f32 0.0, %v8340
    %v8342 = vpop.f32.mrb[0].mxu0
    %8343 = vmatprep.mubr.bf16.mxu0 %v7150
    %8344 = vmatmul.mubr.bf16.gmra.mrb[0].mxu0 %v7149
    %v8345 = vpop.f32.mrb[0].mxu0
    %v8346 = vadd.f32 0.0, %v8345
    %v8347 = vpop.f32.mrb[0].mxu0
    %v8348 = vpop.f32.mrb[0].mxu0
    %v8349 = vadd.f32 0.0, %v8348
    %v8350 = vpop.f32.mrb[0].mxu0
    %8351 = vmatprep.mubr.bf16.mxu0 %v7152
    %8352 = vmatmul.mubr.bf16.gmra.mrb[0].mxu0 %v7151
    %v8353 = vpop.f32.mrb[0].mxu0
    %v8354 = vadd.f32 0.0, %v8353
    %v8355 = vpop.f32.mrb[0].mxu0
    %v8356 = vpop.f32.mrb[0].mxu0
    %v8357 = vadd.f32 0.0, %v8356
    %v8358 = vpop.f32.mrb[0].mxu0
    %8359 = vmatprep.mubr.bf16.mxu0 %v7154
    %8360 = vmatmul.mubr.bf16.gmra.mrb[0].mxu0 %v7153
    %v8361 = vpop.f32.mrb[0].mxu0
    %v8362 = vadd.f32 0.0, %v8361
    %v8363 = vpop.f32.mrb[0].mxu0
    %v8364 = vpop.f32.mrb[0].mxu0
    %v8365 = vadd.f32 0.0, %v8364
    %v8366 = vpop.f32.mrb[0].mxu0
    %8367 = vmatprep.mubr.bf16.mxu0 %v7156
    %8368 = vmatmul.mubr.bf16.gmra.mrb[0].mxu0 %v7155
    %v8369 = vpop.f32.mrb[0].mxu0
    %v8370 = vadd.f32 0.0, %v8369
    %v8371 = vpop.f32.mrb[0].mxu0
    %v8372 = vpop.f32.mrb[0].mxu0
    %v8373 = vadd.f32 0.0, %v8372
    %v8374 = vpop.f32.mrb[0].mxu0
    %8375 = vmatprep.mubr.bf16.mxu0 %v7158
    %8376 = vmatmul.mubr.bf16.gmra.mrb[0].mxu0 %v7157
    %v8377 = vpop.f32.mrb[0].mxu0
    %v8378 = vadd.f32 0.0, %v8377
    %v8379 = vpop.f32.mrb[0].mxu0
    %v8380 = vpop.f32.mrb[0].mxu0
    %v8381 = vadd.f32 0.0, %v8380
    %v8382 = vpop.f32.mrb[0].mxu0
    %8383 = vmatprep.mubr.bf16.mxu0 %v7160
    %8384 = vmatmul.mubr.bf16.gmra.mrb[0].mxu0 %v7159
    %v8385 = vpop.f32.mrb[0].mxu0
    %v8386 = vadd.f32 0.0, %v8385
    %v8387 = vpop.f32.mrb[0].mxu0
    %v8388 = vpop.f32.mrb[0].mxu0
    %v8389 = vadd.f32 0.0, %v8388
    %v8390 = vpop.f32.mrb[0].mxu0
    %8391 = vmatprep.mubr.bf16.mxu0 %v7162
    %8392 = vmatmul.mubr.bf16.gmra.mrb[0].mxu0 %v7161
    %v8393 = vpop.f32.mrb[0].mxu0
    %v8394 = vadd.f32 0.0, %v8393
    %v8395 = vpop.f32.mrb[0].mxu0
    %v8396 = vpop.f32.mrb[0].mxu0
    %v8397 = vadd.f32 0.0, %v8396
    %v8398 = vpop.f32.mrb[0].mxu0
    %8399 = vmatprep.mubr.bf16.mxu0 %v7164
    %8400 = vmatmul.mubr.bf16.gmra.mrb[0].mxu0 %v7163
    %v8401 = vpop.f32.mrb[0].mxu0
    %v8402 = vadd.f32 0.0, %v8401
    %v8403 = vpop.f32.mrb[0].mxu0
    %v8404 = vpop.f32.mrb[0].mxu0
    %v8405 = vadd.f32 0.0, %v8404
    %v8406 = vpop.f32.mrb[0].mxu0
    %8407 = vmatprep.mubr.bf16.mxu0 %v7166
    %8408 = vmatmul.mubr.bf16.gmra.mrb[0].mxu0 %v7165
    %v8409 = vpop.f32.mrb[0].mxu0
    %v8410 = vadd.f32 0.0, %v8409
    %v8411 = vpop.f32.mrb[0].mxu0
    %v8412 = vpop.f32.mrb[0].mxu0
    %v8413 = vadd.f32 0.0, %v8412
    %v8414 = vpop.f32.mrb[0].mxu0
    %8415 = vmatprep.mubr.bf16.mxu0 %v7172
    %8416 = vmatmul.mubr.bf16.gmra.mrb[0].mxu0 %v7171
    %v8417 = vpop.f32.mrb[0].mxu0
    %v8418 = vadd.f32 0.0, %v8417
    %v8419 = vpop.f32.mrb[0].mxu0
    %v8420 = vpop.f32.mrb[0].mxu0
    %v8421 = vadd.f32 0.0, %v8420
    %v8422 = vpop.f32.mrb[0].mxu0
    %8423 = vmatprep.mubr.bf16.mxu0 %v7178
    %8424 = vmatmul.mubr.bf16.gmra.mrb[0].mxu0 %v7177
    %v8425 = vpop.f32.mrb[0].mxu0
    %v8426 = vadd.f32 0.0, %v8425
    %v8427 = vpop.f32.mrb[0].mxu0
    %v8428 = vpop.f32.mrb[0].mxu0
    %v8429 = vadd.f32 0.0, %v8428
    %v8430 = vpop.f32.mrb[0].mxu0
    %8431 = vdwg.mxu0
    %v8432 = vadd.f32 %v7760, %v8178
    %v8433 = vadd.f32 %v7763, %v8181
    %v8434 = vadd.f32 %v7768, %v8186
    %v8435 = vadd.f32 %v7771, %v8189
    %v8436 = vadd.f32 %v7776, %v8194
    %v8437 = vadd.f32 %v7779, %v8197
    %v8438 = vadd.f32 %v7784, %v8202
    %v8439 = vadd.f32 %v7787, %v8205
    %v8440 = vadd.f32 %v7792, %v8210
    %v8441 = vadd.f32 %v7795, %v8213
    %v8442 = vadd.f32 %v7800, %v8218
    %v8443 = vadd.f32 %v7803, %v8221
    %v8444 = vadd.f32 %v7808, %v8226
    %v8445 = vadd.f32 %v7811, %v8229
    %v8446 = vadd.f32 %v7816, %v8234
    %v8447 = vadd.f32 %v7819, %v8237
    %v8448 = vadd.f32 %v7824, %v8242
    %v8449 = vadd.f32 %v7827, %v8245
    %v8450 = vadd.f32 %v7832, %v8250
    %v8451 = vadd.f32 %v7835, %v8253
    %v8452 = vadd.f32 %v7840, %v8258
    %v8453 = vadd.f32 %v7843, %v8261
    %v8454 = vadd.f32 %v7848, %v8266
    %v8455 = vadd.f32 %v7851, %v8269
    %v8456 = vadd.f32 %v7856, %v8274
    %v8457 = vadd.f32 %v7859, %v8277
    %v8458 = vadd.f32 %v7864, %v8282
    %v8459 = vadd.f32 %v7867, %v8285
    %v8460 = vadd.f32 %v7872, %v8290
    %v8461 = vadd.f32 %v7875, %v8293
    %v8462 = vadd.f32 %v7880, %v8298
    %v8463 = vadd.f32 %v7883, %v8301
    %v8464 = vadd.f32 %v7888, %v8306
    %v8465 = vadd.f32 %v7891, %v8309
    %v8466 = vadd.f32 %v7896, %v8314
    %v8467 = vadd.f32 %v7899, %v8317
    %v8468 = vadd.f32 %v7904, %v8322
    %v8469 = vadd.f32 %v7907, %v8325
    %v8470 = vadd.f32 %v7912, %v8330
    %v8471 = vadd.f32 %v7915, %v8333
    %v8472 = vadd.f32 %v7920, %v8338
    %v8473 = vadd.f32 %v7923, %v8341
    %v8474 = vadd.f32 %v7928, %v8346
    %v8475 = vadd.f32 %v7931, %v8349
    %v8476 = vadd.f32 %v7936, %v8354
    %v8477 = vadd.f32 %v7939, %v8357
    %v8478 = vadd.f32 %v7944, %v8362
    %v8479 = vadd.f32 %v7947, %v8365
    %v8480 = vadd.f32 %v7952, %v8370
    %v8481 = vadd.f32 %v7955, %v8373
    %v8482 = vadd.f32 %v7960, %v8378
    %v8483 = vadd.f32 %v7963, %v8381
    %v8484 = vadd.f32 %v7968, %v8386
    %v8485 = vadd.f32 %v7971, %v8389
    %v8486 = vadd.f32 %v7976, %v8394
    %v8487 = vadd.f32 %v7979, %v8397
    %v8488 = vadd.f32 %v7984, %v8402
    %v8489 = vadd.f32 %v7987, %v8405
    %v8490 = vadd.f32 %v7992, %v8410
    %v8491 = vadd.f32 %v7995, %v8413
    %v8492 = vadd.f32 %v8000, %v8418
    %v8493 = vadd.f32 %v8003, %v8421
    %v8494 = vadd.f32 %v8008, %v8426
    %v8495 = vadd.f32 %v8011, %v8429
    %v8496 = vld [vmem:[%s6] sm:$0x1]
    %v8498 = vlaneseq
    %v8499 = vshrl.u32 %v8498, 7
    %v8500 = vsub.s32 0, %v8499
    %v8501 = vrot.slane %v8496, %v8500
    %v8503 = vadd.f32 %v8432, %v8501
    %v8504 = vadd.f32 %v8433, %v8501
    %v8505 = vadd.f32 %v8434, %v8501
    %v8506 = vadd.f32 %v8435, %v8501
    %v8507 = vadd.f32 %v8436, %v8501
    %v8508 = vadd.f32 %v8437, %v8501
    %v8509 = vadd.f32 %v8438, %v8501
    %v8510 = vadd.f32 %v8439, %v8501
    %v8511 = vadd.f32 %v8440, %v8501
    %v8512 = vadd.f32 %v8441, %v8501
    %v8513 = vadd.f32 %v8442, %v8501
    %v8514 = vadd.f32 %v8443, %v8501
    %v8515 = vadd.f32 %v8444, %v8501
    %v8516 = vadd.f32 %v8445, %v8501
    %v8517 = vadd.f32 %v8446, %v8501
    %v8518 = vadd.f32 %v8447, %v8501
    %v8519 = vadd.f32 %v8448, %v8501
    %v8520 = vadd.f32 %v8449, %v8501
    %v8521 = vadd.f32 %v8450, %v8501
    %v8522 = vadd.f32 %v8451, %v8501
    %v8523 = vadd.f32 %v8452, %v8501
    %v8524 = vadd.f32 %v8453, %v8501
    %v8525 = vadd.f32 %v8454, %v8501
    %v8526 = vadd.f32 %v8455, %v8501
    %v8527 = vadd.f32 %v8456, %v8501
    %v8528 = vadd.f32 %v8457, %v8501
    %v8529 = vadd.f32 %v8458, %v8501
    %v8530 = vadd.f32 %v8459, %v8501
    %v8531 = vadd.f32 %v8460, %v8501
    %v8532 = vadd.f32 %v8461, %v8501
    %v8533 = vadd.f32 %v8462, %v8501
    %v8534 = vadd.f32 %v8463, %v8501
    %v8535 = vadd.f32 %v8464, %v8501
    %v8536 = vadd.f32 %v8465, %v8501
    %v8537 = vadd.f32 %v8466, %v8501
    %v8538 = vadd.f32 %v8467, %v8501
    %v8539 = vadd.f32 %v8468, %v8501
    %v8540 = vadd.f32 %v8469, %v8501
    %v8541 = vadd.f32 %v8470, %v8501
    %v8542 = vadd.f32 %v8471, %v8501
    %v8543 = vadd.f32 %v8472, %v8501
    %v8544 = vadd.f32 %v8473, %v8501
    %v8545 = vadd.f32 %v8474, %v8501
    %v8546 = vadd.f32 %v8475, %v8501
    %v8547 = vadd.f32 %v8476, %v8501
    %v8548 = vadd.f32 %v8477, %v8501
    %v8549 = vadd.f32 %v8478, %v8501
    %v8550 = vadd.f32 %v8479, %v8501
    %v8551 = vadd.f32 %v8480, %v8501
    %v8552 = vadd.f32 %v8481, %v8501
    %v8553 = vadd.f32 %v8482, %v8501
    %v8554 = vadd.f32 %v8483, %v8501
    %v8555 = vadd.f32 %v8484, %v8501
    %v8556 = vadd.f32 %v8485, %v8501
    %v8557 = vadd.f32 %v8486, %v8501
    %v8558 = vadd.f32 %v8487, %v8501
    %v8559 = vadd.f32 %v8488, %v8501
    %v8560 = vadd.f32 %v8489, %v8501
    %v8561 = vadd.f32 %v8490, %v8501
    %v8562 = vadd.f32 %v8491, %v8501
    %v8563 = vadd.f32 %v8492, %v8501
    %v8564 = vadd.f32 %v8493, %v8501
    %v8565 = vadd.f32 %v8494, %v8501
    %v8566 = vadd.f32 %v8495, %v8501
    %v8567 = vmax.f32 %v8503, 0.0
    %v8568 = vmax.f32 %v8504, 0.0
    %v8569 = vmax.f32 %v8505, 0.0
    %v8570 = vmax.f32 %v8506, 0.0
    %v8571 = vmax.f32 %v8507, 0.0
    %v8572 = vmax.f32 %v8508, 0.0
    %v8573 = vmax.f32 %v8509, 0.0
    %v8574 = vmax.f32 %v8510, 0.0
    %v8575 = vmax.f32 %v8511, 0.0
    %v8576 = vmax.f32 %v8512, 0.0
    %v8577 = vmax.f32 %v8513, 0.0
    %v8578 = vmax.f32 %v8514, 0.0
    %v8579 = vmax.f32 %v8515, 0.0
    %v8580 = vmax.f32 %v8516, 0.0
    %v8581 = vmax.f32 %v8517, 0.0
    %v8582 = vmax.f32 %v8518, 0.0
    %v8583 = vmax.f32 %v8519, 0.0
    %v8584 = vmax.f32 %v8520, 0.0
    %v8585 = vmax.f32 %v8521, 0.0
    %v8586 = vmax.f32 %v8522, 0.0
    %v8587 = vmax.f32 %v8523, 0.0
    %v8588 = vmax.f32 %v8524, 0.0
    %v8589 = vmax.f32 %v8525, 0.0
    %v8590 = vmax.f32 %v8526, 0.0
    %v8591 = vmax.f32 %v8527, 0.0
    %v8592 = vmax.f32 %v8528, 0.0
    %v8593 = vmax.f32 %v8529, 0.0
    %v8594 = vmax.f32 %v8530, 0.0
    %v8595 = vmax.f32 %v8531, 0.0
    %v8596 = vmax.f32 %v8532, 0.0
    %v8597 = vmax.f32 %v8533, 0.0
    %v8598 = vmax.f32 %v8534, 0.0
    %v8599 = vmax.f32 %v8535, 0.0
    %v8600 = vmax.f32 %v8536, 0.0
    %v8601 = vmax.f32 %v8537, 0.0
    %v8602 = vmax.f32 %v8538, 0.0
    %v8603 = vmax.f32 %v8539, 0.0
    %v8604 = vmax.f32 %v8540, 0.0
    %v8605 = vmax.f32 %v8541, 0.0
    %v8606 = vmax.f32 %v8542, 0.0
    %v8607 = vmax.f32 %v8543, 0.0
    %v8608 = vmax.f32 %v8544, 0.0
    %v8609 = vmax.f32 %v8545, 0.0
    %v8610 = vmax.f32 %v8546, 0.0
    %v8611 = vmax.f32 %v8547, 0.0
    %v8612 = vmax.f32 %v8548, 0.0
    %v8613 = vmax.f32 %v8549, 0.0
    %v8614 = vmax.f32 %v8550, 0.0
    %v8615 = vmax.f32 %v8551, 0.0
    %v8616 = vmax.f32 %v8552, 0.0
    %v8617 = vmax.f32 %v8553, 0.0
    %v8618 = vmax.f32 %v8554, 0.0
    %v8619 = vmax.f32 %v8555, 0.0
    %v8620 = vmax.f32 %v8556, 0.0
    %v8621 = vmax.f32 %v8557, 0.0
    %v8622 = vmax.f32 %v8558, 0.0
    %v8623 = vmax.f32 %v8559, 0.0
    %v8624 = vmax.f32 %v8560, 0.0
    %v8625 = vmax.f32 %v8561, 0.0
    %v8626 = vmax.f32 %v8562, 0.0
    %v8627 = vmax.f32 %v8563, 0.0
    %v8628 = vmax.f32 %v8564, 0.0
    %v8629 = vmax.f32 %v8565, 0.0
    %v8630 = vmax.f32 %v8566, 0.0
    %v8631 = vpack.c.bf16 %v8568, %v8567
    %v8632 = vpack.c.bf16 %v8570, %v8569
    %v8633 = vpack.c.bf16 %v8572, %v8571
    %v8634 = vpack.c.bf16 %v8574, %v8573
    %v8635 = vpack.c.bf16 %v8576, %v8575
    %v8636 = vpack.c.bf16 %v8578, %v8577
    %v8637 = vpack.c.bf16 %v8580, %v8579
    %v8638 = vpack.c.bf16 %v8582, %v8581
    %v8639 = vpack.c.bf16 %v8584, %v8583
    %v8640 = vpack.c.bf16 %v8586, %v8585
    %v8641 = vpack.c.bf16 %v8588, %v8587
    %v8642 = vpack.c.bf16 %v8590, %v8589
    %v8643 = vpack.c.bf16 %v8592, %v8591
    %v8644 = vpack.c.bf16 %v8594, %v8593
    %v8645 = vpack.c.bf16 %v8596, %v8595
    %v8646 = vpack.c.bf16 %v8598, %v8597
    %v8647 = vpack.c.bf16 %v8600, %v8599
    %v8648 = vpack.c.bf16 %v8602, %v8601
    %v8649 = vpack.c.bf16 %v8604, %v8603
    %v8650 = vpack.c.bf16 %v8606, %v8605
    %v8651 = vpack.c.bf16 %v8608, %v8607
    %v8652 = vpack.c.bf16 %v8610, %v8609
    %v8653 = vpack.c.bf16 %v8612, %v8611
    %v8654 = vpack.c.bf16 %v8614, %v8613
    %v8655 = vpack.c.bf16 %v8616, %v8615
    %v8656 = vpack.c.bf16 %v8618, %v8617
    %v8657 = vpack.c.bf16 %v8620, %v8619
    %v8658 = vpack.c.bf16 %v8622, %v8621
    %v8659 = vpack.c.bf16 %v8624, %v8623
    %v8660 = vpack.c.bf16 %v8626, %v8625
    %v8661 = vpack.c.bf16 %v8628, %v8627
    %v8662 = vpack.c.bf16 %v8630, %v8629
    %v8663 = vld [vmem:[#allocation3] sm:$0xf]
    %v8664 = vld [vmem:[#allocation3 + $0x4] sm:$0xf]
    %v8665 = vld [vmem:[#allocation3 + $0x8] sm:$0xf]
    %v8666 = vld [vmem:[#allocation3 + $0xc] sm:$0xf]
    %s8667 = scalar_lea.vmem [#allocation3], 16
    %v8668 = vld [vmem:[%s8667] sm:$0xf]
    %v8669 = vld [vmem:[%s8667 + $0x4] sm:$0xf]
    %v8670 = vld [vmem:[%s8667 + $0x8] sm:$0xf]
    %v8671 = vld [vmem:[%s8667 + $0xc] sm:$0xf]
    %v8676 = vunpack.c.l.b16 %v8668
    %v8677 = vunpack.c.l.b16 %v8669
    %v8678 = vunpack.c.l.b16 %v8670
    %v8679 = vunpack.c.l.b16 %v8671
    %v8680 = vpack.c.b16 %v8677, %v8676
    %v8681 = vpack.c.b16 %v8679, %v8678
    %vm8684 = vcmask 261120
    %v8686 = vsel %vm8684, %v8632, 0
    %8688 = vmatprep.subr.bf16.mxu0 0
    %8689 = vmatpush1.bf16.msra.mxu0 %v8680
    %8690 = vmatprep.subr.bf16.mxu0 0
    %8691 = vmatpush1.bf16.msra.mxu0 %v8681
    %8692 = vmatprep.subr.bf16.mxu0 0
    %8693 = vmatpush1.bf16.msra.mxu0 0
    %8694 = vmatprep.subr.bf16.mxu0 0
    %8695 = vmatpush1.bf16.msra.mxu0 0
    %8696 = vmatprep.subr.bf16.mxu0 0
    %8697 = vmatpush1.bf16.msra.mxu0 0
    %8698 = vmatprep.subr.bf16.mxu0 0
    %8699 = vmatpush1.bf16.msra.mxu0 0
    %8700 = vmatprep.subr.bf16.mxu0 0
    %8701 = vmatpush1.bf16.msra.mxu0 0
    %8702 = vmatprep.subr.bf16.mxu0 0
    %8703 = vmatpush1.bf16.msra.mxu0 0
    %8704 = vmatprep.subr.bf16.mxu0 0
    %8705 = vmatpush1.bf16.msra.mxu0 0
    %8706 = vmatprep.subr.bf16.mxu0 0
    %8707 = vmatpush1.bf16.msra.mxu0 0
    %8708 = vmatprep.subr.bf16.mxu0 0
    %8709 = vmatpush1.bf16.msra.mxu0 0
    %8710 = vmatprep.subr.bf16.mxu0 0
    %8711 = vmatpush1.bf16.msra.mxu0 0
    %8712 = vmatprep.subr.bf16.mxu0 0
    %8713 = vmatpush1.bf16.msra.mxu0 0
    %8714 = vmatprep.subr.bf16.mxu0 0
    %8715 = vmatpush1.bf16.msra.mxu0 0
    %8716 = vmatprep.subr.bf16.mxu0 0
    %8717 = vmatpush1.bf16.msra.mxu0 0
    %8718 = vmatprep.subr.bf16.mxu0 0
    %8719 = vmatpush1.bf16.msra.mxu0 0
    %8720 = vmatprep.mubr.bf16.mxu0 0
    %8721 = vmatmul.mubr.bf16.gmra.mrb[0].mxu0 %v8686
    %v8722 = vpop.f32.mrb[0].mxu0
    %v8723 = vadd.f32 0.0, %v8722
    %v8724 = vpop.f32.mrb[0].mxu0
    %v8725 = vpop.f32.mrb[0].mxu0
    %v8726 = vadd.f32 0.0, %v8725
    %v8727 = vpop.f32.mrb[0].mxu0
    %8728 = vdwg.mxu0
    %v8733 = vunpack.c.l.b16 %v8663
    %v8734 = vunpack.c.l.b16 %v8664
    %v8735 = vunpack.c.l.b16 %v8665
    %v8736 = vunpack.c.l.b16 %v8666
    %v8737 = vpack.c.b16 %v8734, %v8733
    %v8738 = vpack.c.b16 %v8736, %v8735
    %v8742 = vsel %vm8684, %v8631, 0
    %8744 = vmatprep.subr.bf16.mxu0 0
    %8745 = vmatpush1.bf16.msra.mxu0 %v8737
    %8746 = vmatprep.subr.bf16.mxu0 0
    %8747 = vmatpush1.bf16.msra.mxu0 %v8738
    %8748 = vmatprep.subr.bf16.mxu0 0
    %8749 = vmatpush1.bf16.msra.mxu0 0
    %8750 = vmatprep.subr.bf16.mxu0 0
    %8751 = vmatpush1.bf16.msra.mxu0 0
    %8752 = vmatprep.subr.bf16.mxu0 0
    %8753 = vmatpush1.bf16.msra.mxu0 0
    %8754 = vmatprep.subr.bf16.mxu0 0
    %8755 = vmatpush1.bf16.msra.mxu0 0
    %8756 = vmatprep.subr.bf16.mxu0 0
    %8757 = vmatpush1.bf16.msra.mxu0 0
    %8758 = vmatprep.subr.bf16.mxu0 0
    %8759 = vmatpush1.bf16.msra.mxu0 0
    %8760 = vmatprep.subr.bf16.mxu0 0
    %8761 = vmatpush1.bf16.msra.mxu0 0
    %8762 = vmatprep.subr.bf16.mxu0 0
    %8763 = vmatpush1.bf16.msra.mxu0 0
    %8764 = vmatprep.subr.bf16.mxu0 0
    %8765 = vmatpush1.bf16.msra.mxu0 0
    %8766 = vmatprep.subr.bf16.mxu0 0
    %8767 = vmatpush1.bf16.msra.mxu0 0
    %8768 = vmatprep.subr.bf16.mxu0 0
    %8769 = vmatpush1.bf16.msra.mxu0 0
    %8770 = vmatprep.subr.bf16.mxu0 0
    %8771 = vmatpush1.bf16.msra.mxu0 0
    %8772 = vmatprep.subr.bf16.mxu0 0
    %8773 = vmatpush1.bf16.msra.mxu0 0
    %8774 = vmatprep.subr.bf16.mxu0 0
    %8775 = vmatpush1.bf16.msra.mxu0 0
    %8776 = vmatprep.mubr.bf16.mxu0 0
    %8777 = vmatmul.mubr.bf16.gmra.mrb[0].mxu0 %v8742
    %v8778 = vpop.f32.mrb[0].mxu0
    %v8779 = vadd.f32 %v8723, %v8778
    %v8780 = vpop.f32.mrb[0].mxu0
    %v8781 = vpop.f32.mrb[0].mxu0
    %v8782 = vadd.f32 %v8726, %v8781
    %v8783 = vpop.f32.mrb[0].mxu0
    %8784 = vdwg.mxu0
    %s8785 = scalar_lea.vmem [#allocation3], 32
    %v8786 = vld [vmem:[%s8785] sm:$0xf]
    %v8787 = vld [vmem:[%s8785 + $0x4] sm:$0xf]
    %v8788 = vld [vmem:[%s8785 + $0x8] sm:$0xf]
    %v8789 = vld [vmem:[%s8785 + $0xc] sm:$0xf]
    %v8794 = vunpack.c.l.b16 %v8786
    %v8795 = vunpack.c.l.b16 %v8787
    %v8796 = vunpack.c.l.b16 %v8788
    %v8797 = vunpack.c.l.b16 %v8789
    %v8798 = vpack.c.b16 %v8795, %v8794
    %v8799 = vpack.c.b16 %v8797, %v8796
    %v8803 = vsel %vm8684, %v8633, 0
    %8805 = vmatprep.subr.bf16.mxu0 0
    %8806 = vmatpush1.bf16.msra.mxu0 %v8798
    %8807 = vmatprep.subr.bf16.mxu0 0
    %8808 = vmatpush1.bf16.msra.mxu0 %v8799
    %8809 = vmatprep.subr.bf16.mxu0 0
    %8810 = vmatpush1.bf16.msra.mxu0 0
    %8811 = vmatprep.subr.bf16.mxu0 0
    %8812 = vmatpush1.bf16.msra.mxu0 0
    %8813 = vmatprep.subr.bf16.mxu0 0
    %8814 = vmatpush1.bf16.msra.mxu0 0
    %8815 = vmatprep.subr.bf16.mxu0 0
    %8816 = vmatpush1.bf16.msra.mxu0 0
    %8817 = vmatprep.subr.bf16.mxu0 0
    %8818 = vmatpush1.bf16.msra.mxu0 0
    %8819 = vmatprep.subr.bf16.mxu0 0
    %8820 = vmatpush1.bf16.msra.mxu0 0
    %8821 = vmatprep.subr.bf16.mxu0 0
    %8822 = vmatpush1.bf16.msra.mxu0 0
    %8823 = vmatprep.subr.bf16.mxu0 0
    %8824 = vmatpush1.bf16.msra.mxu0 0
    %8825 = vmatprep.subr.bf16.mxu0 0
    %8826 = vmatpush1.bf16.msra.mxu0 0
    %8827 = vmatprep.subr.bf16.mxu0 0
    %8828 = vmatpush1.bf16.msra.mxu0 0
    %8829 = vmatprep.subr.bf16.mxu0 0
    %8830 = vmatpush1.bf16.msra.mxu0 0
    %8831 = vmatprep.subr.bf16.mxu0 0
    %8832 = vmatpush1.bf16.msra.mxu0 0
    %8833 = vmatprep.subr.bf16.mxu0 0
    %8834 = vmatpush1.bf16.msra.mxu0 0
    %8835 = vmatprep.subr.bf16.mxu0 0
    %8836 = vmatpush1.bf16.msra.mxu0 0
    %8837 = vmatprep.mubr.bf16.mxu0 0
    %8838 = vmatmul.mubr.bf16.gmra.mrb[0].mxu0 %v8803
    %v8839 = vpop.f32.mrb[0].mxu0
    %v8840 = vadd.f32 0.0, %v8839
    %v8841 = vpop.f32.mrb[0].mxu0
    %v8842 = vpop.f32.mrb[0].mxu0
    %v8843 = vadd.f32 0.0, %v8842
    %v8844 = vpop.f32.mrb[0].mxu0
    %8845 = vdwg.mxu0
    %v8846 = vadd.f32 %v8779, %v8840
    %v8847 = vadd.f32 %v8782, %v8843
    %s8848 = scalar_lea.vmem [#allocation3], 48
    %v8849 = vld [vmem:[%s8848] sm:$0xf]
    %v8850 = vld [vmem:[%s8848 + $0x4] sm:$0xf]
    %v8851 = vld [vmem:[%s8848 + $0x8] sm:$0xf]
    %v8852 = vld [vmem:[%s8848 + $0xc] sm:$0xf]
    %v8857 = vunpack.c.l.b16 %v8849
    %v8858 = vunpack.c.l.b16 %v8850
    %v8859 = vunpack.c.l.b16 %v8851
    %v8860 = vunpack.c.l.b16 %v8852
    %v8861 = vpack.c.b16 %v8858, %v8857
    %v8862 = vpack.c.b16 %v8860, %v8859
    %v8866 = vsel %vm8684, %v8634, 0
    %8868 = vmatprep.subr.bf16.mxu0 0
    %8869 = vmatpush1.bf16.msra.mxu0 %v8861
    %8870 = vmatprep.subr.bf16.mxu0 0
    %8871 = vmatpush1.bf16.msra.mxu0 %v8862
    %8872 = vmatprep.subr.bf16.mxu0 0
    %8873 = vmatpush1.bf16.msra.mxu0 0
    %8874 = vmatprep.subr.bf16.mxu0 0
    %8875 = vmatpush1.bf16.msra.mxu0 0
    %8876 = vmatprep.subr.bf16.mxu0 0
    %8877 = vmatpush1.bf16.msra.mxu0 0
    %8878 = vmatprep.subr.bf16.mxu0 0
    %8879 = vmatpush1.bf16.msra.mxu0 0
    %8880 = vmatprep.subr.bf16.mxu0 0
    %8881 = vmatpush1.bf16.msra.mxu0 0
    %8882 = vmatprep.subr.bf16.mxu0 0
    %8883 = vmatpush1.bf16.msra.mxu0 0
    %8884 = vmatprep.subr.bf16.mxu0 0
    %8885 = vmatpush1.bf16.msra.mxu0 0
    %8886 = vmatprep.subr.bf16.mxu0 0
    %8887 = vmatpush1.bf16.msra.mxu0 0
    %8888 = vmatprep.subr.bf16.mxu0 0
    %8889 = vmatpush1.bf16.msra.mxu0 0
    %8890 = vmatprep.subr.bf16.mxu0 0
    %8891 = vmatpush1.bf16.msra.mxu0 0
    %8892 = vmatprep.subr.bf16.mxu0 0
    %8893 = vmatpush1.bf16.msra.mxu0 0
    %8894 = vmatprep.subr.bf16.mxu0 0
    %8895 = vmatpush1.bf16.msra.mxu0 0
    %8896 = vmatprep.subr.bf16.mxu0 0
    %8897 = vmatpush1.bf16.msra.mxu0 0
    %8898 = vmatprep.subr.bf16.mxu0 0
    %8899 = vmatpush1.bf16.msra.mxu0 0
    %8900 = vmatprep.mubr.bf16.mxu0 0
    %8901 = vmatmul.mubr.bf16.gmra.mrb[0].mxu0 %v8866
    %v8902 = vpop.f32.mrb[0].mxu0
    %v8903 = vadd.f32 0.0, %v8902
    %v8904 = vpop.f32.mrb[0].mxu0
    %v8905 = vpop.f32.mrb[0].mxu0
    %v8906 = vadd.f32 0.0, %v8905
    %v8907 = vpop.f32.mrb[0].mxu0
    %8908 = vdwg.mxu0
    %v8909 = vadd.f32 %v8846, %v8903
    %v8910 = vadd.f32 %v8847, %v8906
    %s8911 = scalar_lea.vmem [#allocation3], 64
    %v8912 = vld [vmem:[%s8911] sm:$0xf]
    %v8913 = vld [vmem:[%s8911 + $0x4] sm:$0xf]
    %v8914 = vld [vmem:[%s8911 + $0x8] sm:$0xf]
    %v8915 = vld [vmem:[%s8911 + $0xc] sm:$0xf]
    %v8920 = vunpack.c.l.b16 %v8912
    %v8921 = vunpack.c.l.b16 %v8913
    %v8922 = vunpack.c.l.b16 %v8914
    %v8923 = vunpack.c.l.b16 %v8915
    %v8924 = vpack.c.b16 %v8921, %v8920
    %v8925 = vpack.c.b16 %v8923, %v8922
    %v8929 = vsel %vm8684, %v8635, 0
    %8931 = vmatprep.subr.bf16.mxu0 0
    %8932 = vmatpush1.bf16.msra.mxu0 %v8924
    %8933 = vmatprep.subr.bf16.mxu0 0
    %8934 = vmatpush1.bf16.msra.mxu0 %v8925
    %8935 = vmatprep.subr.bf16.mxu0 0
    %8936 = vmatpush1.bf16.msra.mxu0 0
    %8937 = vmatprep.subr.bf16.mxu0 0
    %8938 = vmatpush1.bf16.msra.mxu0 0
    %8939 = vmatprep.subr.bf16.mxu0 0
    %8940 = vmatpush1.bf16.msra.mxu0 0
    %8941 = vmatprep.subr.bf16.mxu0 0
    %8942 = vmatpush1.bf16.msra.mxu0 0
    %8943 = vmatprep.subr.bf16.mxu0 0
    %8944 = vmatpush1.bf16.msra.mxu0 0
    %8945 = vmatprep.subr.bf16.mxu0 0
    %8946 = vmatpush1.bf16.msra.mxu0 0
    %8947 = vmatprep.subr.bf16.mxu0 0
    %8948 = vmatpush1.bf16.msra.mxu0 0
    %8949 = vmatprep.subr.bf16.mxu0 0
    %8950 = vmatpush1.bf16.msra.mxu0 0
    %8951 = vmatprep.subr.bf16.mxu0 0
    %8952 = vmatpush1.bf16.msra.mxu0 0
    %8953 = vmatprep.subr.bf16.mxu0 0
    %8954 = vmatpush1.bf16.msra.mxu0 0
    %8955 = vmatprep.subr.bf16.mxu0 0
    %8956 = vmatpush1.bf16.msra.mxu0 0
    %8957 = vmatprep.subr.bf16.mxu0 0
    %8958 = vmatpush1.bf16.msra.mxu0 0
    %8959 = vmatprep.subr.bf16.mxu0 0
    %8960 = vmatpush1.bf16.msra.mxu0 0
    %8961 = vmatprep.subr.bf16.mxu0 0
    %8962 = vmatpush1.bf16.msra.mxu0 0
    %8963 = vmatprep.mubr.bf16.mxu0 0
    %8964 = vmatmul.mubr.bf16.gmra.mrb[0].mxu0 %v8929
    %v8965 = vpop.f32.mrb[0].mxu0
    %v8966 = vadd.f32 0.0, %v8965
    %v8967 = vpop.f32.mrb[0].mxu0
    %v8968 = vpop.f32.mrb[0].mxu0
    %v8969 = vadd.f32 0.0, %v8968
    %v8970 = vpop.f32.mrb[0].mxu0
    %8971 = vdwg.mxu0
    %v8972 = vadd.f32 %v8909, %v8966
    %v8973 = vadd.f32 %v8910, %v8969
    %s8974 = scalar_lea.vmem [#allocation3], 80
    %v8975 = vld [vmem:[%s8974] sm:$0xf]
    %v8976 = vld [vmem:[%s8974 + $0x4] sm:$0xf]
    %v8977 = vld [vmem:[%s8974 + $0x8] sm:$0xf]
    %v8978 = vld [vmem:[%s8974 + $0xc] sm:$0xf]
    %v8983 = vunpack.c.l.b16 %v8975
    %v8984 = vunpack.c.l.b16 %v8976
    %v8985 = vunpack.c.l.b16 %v8977
    %v8986 = vunpack.c.l.b16 %v8978
    %v8987 = vpack.c.b16 %v8984, %v8983
    %v8988 = vpack.c.b16 %v8986, %v8985
    %v8992 = vsel %vm8684, %v8636, 0
    %8994 = vmatprep.subr.bf16.mxu0 0
    %8995 = vmatpush1.bf16.msra.mxu0 %v8987
    %8996 = vmatprep.subr.bf16.mxu0 0
    %8997 = vmatpush1.bf16.msra.mxu0 %v8988
    %8998 = vmatprep.subr.bf16.mxu0 0
    %8999 = vmatpush1.bf16.msra.mxu0 0
    %9000 = vmatprep.subr.bf16.mxu0 0
    %9001 = vmatpush1.bf16.msra.mxu0 0
    %9002 = vmatprep.subr.bf16.mxu0 0
    %9003 = vmatpush1.bf16.msra.mxu0 0
    %9004 = vmatprep.subr.bf16.mxu0 0
    %9005 = vmatpush1.bf16.msra.mxu0 0
    %9006 = vmatprep.subr.bf16.mxu0 0
    %9007 = vmatpush1.bf16.msra.mxu0 0
    %9008 = vmatprep.subr.bf16.mxu0 0
    %9009 = vmatpush1.bf16.msra.mxu0 0
    %9010 = vmatprep.subr.bf16.mxu0 0
    %9011 = vmatpush1.bf16.msra.mxu0 0
    %9012 = vmatprep.subr.bf16.mxu0 0
    %9013 = vmatpush1.bf16.msra.mxu0 0
    %9014 = vmatprep.subr.bf16.mxu0 0
    %9015 = vmatpush1.bf16.msra.mxu0 0
    %9016 = vmatprep.subr.bf16.mxu0 0
    %9017 = vmatpush1.bf16.msra.mxu0 0
    %9018 = vmatprep.subr.bf16.mxu0 0
    %9019 = vmatpush1.bf16.msra.mxu0 0
    %9020 = vmatprep.subr.bf16.mxu0 0
    %9021 = vmatpush1.bf16.msra.mxu0 0
    %9022 = vmatprep.subr.bf16.mxu0 0
    %9023 = vmatpush1.bf16.msra.mxu0 0
    %9024 = vmatprep.subr.bf16.mxu0 0
    %9025 = vmatpush1.bf16.msra.mxu0 0
    %9026 = vmatprep.mubr.bf16.mxu0 0
    %9027 = vmatmul.mubr.bf16.gmra.mrb[0].mxu0 %v8992
    %v9028 = vpop.f32.mrb[0].mxu0
    %v9029 = vadd.f32 0.0, %v9028
    %v9030 = vpop.f32.mrb[0].mxu0
    %v9031 = vpop.f32.mrb[0].mxu0
    %v9032 = vadd.f32 0.0, %v9031
    %v9033 = vpop.f32.mrb[0].mxu0
    %9034 = vdwg.mxu0
    %v9035 = vadd.f32 %v8972, %v9029
    %v9036 = vadd.f32 %v8973, %v9032
    %s9037 = scalar_lea.vmem [#allocation3], 96
    %v9038 = vld [vmem:[%s9037] sm:$0xf]
    %v9039 = vld [vmem:[%s9037 + $0x4] sm:$0xf]
    %v9040 = vld [vmem:[%s9037 + $0x8] sm:$0xf]
    %v9041 = vld [vmem:[%s9037 + $0xc] sm:$0xf]
    %v9046 = vunpack.c.l.b16 %v9038
    %v9047 = vunpack.c.l.b16 %v9039
    %v9048 = vunpack.c.l.b16 %v9040
    %v9049 = vunpack.c.l.b16 %v9041
    %v9050 = vpack.c.b16 %v9047, %v9046
    %v9051 = vpack.c.b16 %v9049, %v9048
    %v9055 = vsel %vm8684, %v8637, 0
    %9057 = vmatprep.subr.bf16.mxu0 0
    %9058 = vmatpush1.bf16.msra.mxu0 %v9050
    %9059 = vmatprep.subr.bf16.mxu0 0
    %9060 = vmatpush1.bf16.msra.mxu0 %v9051
    %9061 = vmatprep.subr.bf16.mxu0 0
    %9062 = vmatpush1.bf16.msra.mxu0 0
    %9063 = vmatprep.subr.bf16.mxu0 0
    %9064 = vmatpush1.bf16.msra.mxu0 0
    %9065 = vmatprep.subr.bf16.mxu0 0
    %9066 = vmatpush1.bf16.msra.mxu0 0
    %9067 = vmatprep.subr.bf16.mxu0 0
    %9068 = vmatpush1.bf16.msra.mxu0 0
    %9069 = vmatprep.subr.bf16.mxu0 0
    %9070 = vmatpush1.bf16.msra.mxu0 0
    %9071 = vmatprep.subr.bf16.mxu0 0
    %9072 = vmatpush1.bf16.msra.mxu0 0
    %9073 = vmatprep.subr.bf16.mxu0 0
    %9074 = vmatpush1.bf16.msra.mxu0 0
    %9075 = vmatprep.subr.bf16.mxu0 0
    %9076 = vmatpush1.bf16.msra.mxu0 0
    %9077 = vmatprep.subr.bf16.mxu0 0
    %9078 = vmatpush1.bf16.msra.mxu0 0
    %9079 = vmatprep.subr.bf16.mxu0 0
    %9080 = vmatpush1.bf16.msra.mxu0 0
    %9081 = vmatprep.subr.bf16.mxu0 0
    %9082 = vmatpush1.bf16.msra.mxu0 0
    %9083 = vmatprep.subr.bf16.mxu0 0
    %9084 = vmatpush1.bf16.msra.mxu0 0
    %9085 = vmatprep.subr.bf16.mxu0 0
    %9086 = vmatpush1.bf16.msra.mxu0 0
    %9087 = vmatprep.subr.bf16.mxu0 0
    %9088 = vmatpush1.bf16.msra.mxu0 0
    %9089 = vmatprep.mubr.bf16.mxu0 0
    %9090 = vmatmul.mubr.bf16.gmra.mrb[0].mxu0 %v9055
    %v9091 = vpop.f32.mrb[0].mxu0
    %v9092 = vadd.f32 0.0, %v9091
    %v9093 = vpop.f32.mrb[0].mxu0
    %v9094 = vpop.f32.mrb[0].mxu0
    %v9095 = vadd.f32 0.0, %v9094
    %v9096 = vpop.f32.mrb[0].mxu0
    %9097 = vdwg.mxu0
    %v9098 = vadd.f32 %v9035, %v9092
    %v9099 = vadd.f32 %v9036, %v9095
    %s9100 = scalar_lea.vmem [#allocation3], 112
    %v9101 = vld [vmem:[%s9100] sm:$0xf]
    %v9102 = vld [vmem:[%s9100 + $0x4] sm:$0xf]
    %v9103 = vld [vmem:[%s9100 + $0x8] sm:$0xf]
    %v9104 = vld [vmem:[%s9100 + $0xc] sm:$0xf]
    %v9109 = vunpack.c.l.b16 %v9101
    %v9110 = vunpack.c.l.b16 %v9102
    %v9111 = vunpack.c.l.b16 %v9103
    %v9112 = vunpack.c.l.b16 %v9104
    %v9113 = vpack.c.b16 %v9110, %v9109
    %v9114 = vpack.c.b16 %v9112, %v9111
    %v9118 = vsel %vm8684, %v8638, 0
    %9120 = vmatprep.subr.bf16.mxu0 0
    %9121 = vmatpush1.bf16.msra.mxu0 %v9113
    %9122 = vmatprep.subr.bf16.mxu0 0
    %9123 = vmatpush1.bf16.msra.mxu0 %v9114
    %9124 = vmatprep.subr.bf16.mxu0 0
    %9125 = vmatpush1.bf16.msra.mxu0 0
    %9126 = vmatprep.subr.bf16.mxu0 0
    %9127 = vmatpush1.bf16.msra.mxu0 0
    %9128 = vmatprep.subr.bf16.mxu0 0
    %9129 = vmatpush1.bf16.msra.mxu0 0
    %9130 = vmatprep.subr.bf16.mxu0 0
    %9131 = vmatpush1.bf16.msra.mxu0 0
    %9132 = vmatprep.subr.bf16.mxu0 0
    %9133 = vmatpush1.bf16.msra.mxu0 0
    %9134 = vmatprep.subr.bf16.mxu0 0
    %9135 = vmatpush1.bf16.msra.mxu0 0
    %9136 = vmatprep.subr.bf16.mxu0 0
    %9137 = vmatpush1.bf16.msra.mxu0 0
    %9138 = vmatprep.subr.bf16.mxu0 0
    %9139 = vmatpush1.bf16.msra.mxu0 0
    %9140 = vmatprep.subr.bf16.mxu0 0
    %9141 = vmatpush1.bf16.msra.mxu0 0
    %9142 = vmatprep.subr.bf16.mxu0 0
    %9143 = vmatpush1.bf16.msra.mxu0 0
    %9144 = vmatprep.subr.bf16.mxu0 0
    %9145 = vmatpush1.bf16.msra.mxu0 0
    %9146 = vmatprep.subr.bf16.mxu0 0
    %9147 = vmatpush1.bf16.msra.mxu0 0
    %9148 = vmatprep.subr.bf16.mxu0 0
    %9149 = vmatpush1.bf16.msra.mxu0 0
    %9150 = vmatprep.subr.bf16.mxu0 0
    %9151 = vmatpush1.bf16.msra.mxu0 0
    %9152 = vmatprep.mubr.bf16.mxu0 0
    %9153 = vmatmul.mubr.bf16.gmra.mrb[0].mxu0 %v9118
    %v9154 = vpop.f32.mrb[0].mxu0
    %v9155 = vadd.f32 0.0, %v9154
    %v9156 = vpop.f32.mrb[0].mxu0
    %v9157 = vpop.f32.mrb[0].mxu0
    %v9158 = vadd.f32 0.0, %v9157
    %v9159 = vpop.f32.mrb[0].mxu0
    %9160 = vdwg.mxu0
    %v9161 = vadd.f32 %v9098, %v9155
    %v9162 = vadd.f32 %v9099, %v9158
    %s9163 = scalar_lea.vmem [#allocation3], 128
    %v9164 = vld [vmem:[%s9163] sm:$0xf]
    %v9165 = vld [vmem:[%s9163 + $0x4] sm:$0xf]
    %v9166 = vld [vmem:[%s9163 + $0x8] sm:$0xf]
    %v9167 = vld [vmem:[%s9163 + $0xc] sm:$0xf]
    %v9172 = vunpack.c.l.b16 %v9164
    %v9173 = vunpack.c.l.b16 %v9165
    %v9174 = vunpack.c.l.b16 %v9166
    %v9175 = vunpack.c.l.b16 %v9167
    %v9176 = vpack.c.b16 %v9173, %v9172
    %v9177 = vpack.c.b16 %v9175, %v9174
    %v9181 = vsel %vm8684, %v8639, 0
    %9183 = vmatprep.subr.bf16.mxu0 0
    %9184 = vmatpush1.bf16.msra.mxu0 %v9176
    %9185 = vmatprep.subr.bf16.mxu0 0
    %9186 = vmatpush1.bf16.msra.mxu0 %v9177
    %9187 = vmatprep.subr.bf16.mxu0 0
    %9188 = vmatpush1.bf16.msra.mxu0 0
    %9189 = vmatprep.subr.bf16.mxu0 0
    %9190 = vmatpush1.bf16.msra.mxu0 0
    %9191 = vmatprep.subr.bf16.mxu0 0
    %9192 = vmatpush1.bf16.msra.mxu0 0
    %9193 = vmatprep.subr.bf16.mxu0 0
    %9194 = vmatpush1.bf16.msra.mxu0 0
    %9195 = vmatprep.subr.bf16.mxu0 0
    %9196 = vmatpush1.bf16.msra.mxu0 0
    %9197 = vmatprep.subr.bf16.mxu0 0
    %9198 = vmatpush1.bf16.msra.mxu0 0
    %9199 = vmatprep.subr.bf16.mxu0 0
    %9200 = vmatpush1.bf16.msra.mxu0 0
    %9201 = vmatprep.subr.bf16.mxu0 0
    %9202 = vmatpush1.bf16.msra.mxu0 0
    %9203 = vmatprep.subr.bf16.mxu0 0
    %9204 = vmatpush1.bf16.msra.mxu0 0
    %9205 = vmatprep.subr.bf16.mxu0 0
    %9206 = vmatpush1.bf16.msra.mxu0 0
    %9207 = vmatprep.subr.bf16.mxu0 0
    %9208 = vmatpush1.bf16.msra.mxu0 0
    %9209 = vmatprep.subr.bf16.mxu0 0
    %9210 = vmatpush1.bf16.msra.mxu0 0
    %9211 = vmatprep.subr.bf16.mxu0 0
    %9212 = vmatpush1.bf16.msra.mxu0 0
    %9213 = vmatprep.subr.bf16.mxu0 0
    %9214 = vmatpush1.bf16.msra.mxu0 0
    %9215 = vmatprep.mubr.bf16.mxu0 0
    %9216 = vmatmul.mubr.bf16.gmra.mrb[0].mxu0 %v9181
    %v9217 = vpop.f32.mrb[0].mxu0
    %v9218 = vadd.f32 0.0, %v9217
    %v9219 = vpop.f32.mrb[0].mxu0
    %v9220 = vpop.f32.mrb[0].mxu0
    %v9221 = vadd.f32 0.0, %v9220
    %v9222 = vpop.f32.mrb[0].mxu0
    %9223 = vdwg.mxu0
    %v9224 = vadd.f32 %v9161, %v9218
    %v9225 = vadd.f32 %v9162, %v9221
    %s9226 = scalar_lea.vmem [#allocation3], 144
    %v9227 = vld [vmem:[%s9226] sm:$0xf]
    %v9228 = vld [vmem:[%s9226 + $0x4] sm:$0xf]
    %v9229 = vld [vmem:[%s9226 + $0x8] sm:$0xf]
    %v9230 = vld [vmem:[%s9226 + $0xc] sm:$0xf]
    %v9235 = vunpack.c.l.b16 %v9227
    %v9236 = vunpack.c.l.b16 %v9228
    %v9237 = vunpack.c.l.b16 %v9229
    %v9238 = vunpack.c.l.b16 %v9230
    %v9239 = vpack.c.b16 %v9236, %v9235
    %v9240 = vpack.c.b16 %v9238, %v9237
    %v9244 = vsel %vm8684, %v8640, 0
    %9246 = vmatprep.subr.bf16.mxu0 0
    %9247 = vmatpush1.bf16.msra.mxu0 %v9239
    %9248 = vmatprep.subr.bf16.mxu0 0
    %9249 = vmatpush1.bf16.msra.mxu0 %v9240
    %9250 = vmatprep.subr.bf16.mxu0 0
    %9251 = vmatpush1.bf16.msra.mxu0 0
    %9252 = vmatprep.subr.bf16.mxu0 0
    %9253 = vmatpush1.bf16.msra.mxu0 0
    %9254 = vmatprep.subr.bf16.mxu0 0
    %9255 = vmatpush1.bf16.msra.mxu0 0
    %9256 = vmatprep.subr.bf16.mxu0 0
    %9257 = vmatpush1.bf16.msra.mxu0 0
    %9258 = vmatprep.subr.bf16.mxu0 0
    %9259 = vmatpush1.bf16.msra.mxu0 0
    %9260 = vmatprep.subr.bf16.mxu0 0
    %9261 = vmatpush1.bf16.msra.mxu0 0
    %9262 = vmatprep.subr.bf16.mxu0 0
    %9263 = vmatpush1.bf16.msra.mxu0 0
    %9264 = vmatprep.subr.bf16.mxu0 0
    %9265 = vmatpush1.bf16.msra.mxu0 0
    %9266 = vmatprep.subr.bf16.mxu0 0
    %9267 = vmatpush1.bf16.msra.mxu0 0
    %9268 = vmatprep.subr.bf16.mxu0 0
    %9269 = vmatpush1.bf16.msra.mxu0 0
    %9270 = vmatprep.subr.bf16.mxu0 0
    %9271 = vmatpush1.bf16.msra.mxu0 0
    %9272 = vmatprep.subr.bf16.mxu0 0
    %9273 = vmatpush1.bf16.msra.mxu0 0
    %9274 = vmatprep.subr.bf16.mxu0 0
    %9275 = vmatpush1.bf16.msra.mxu0 0
    %9276 = vmatprep.subr.bf16.mxu0 0
    %9277 = vmatpush1.bf16.msra.mxu0 0
    %9278 = vmatprep.mubr.bf16.mxu0 0
    %9279 = vmatmul.mubr.bf16.gmra.mrb[0].mxu0 %v9244
    %v9280 = vpop.f32.mrb[0].mxu0
    %v9281 = vadd.f32 0.0, %v9280
    %v9282 = vpop.f32.mrb[0].mxu0
    %v9283 = vpop.f32.mrb[0].mxu0
    %v9284 = vadd.f32 0.0, %v9283
    %v9285 = vpop.f32.mrb[0].mxu0
    %9286 = vdwg.mxu0
    %v9287 = vadd.f32 %v9224, %v9281
    %v9288 = vadd.f32 %v9225, %v9284
    %s9289 = scalar_lea.vmem [#allocation3], 160
    %v9290 = vld [vmem:[%s9289] sm:$0xf]
    %v9291 = vld [vmem:[%s9289 + $0x4] sm:$0xf]
    %v9292 = vld [vmem:[%s9289 + $0x8] sm:$0xf]
    %v9293 = vld [vmem:[%s9289 + $0xc] sm:$0xf]
    %v9298 = vunpack.c.l.b16 %v9290
    %v9299 = vunpack.c.l.b16 %v9291
    %v9300 = vunpack.c.l.b16 %v9292
    %v9301 = vunpack.c.l.b16 %v9293
    %v9302 = vpack.c.b16 %v9299, %v9298
    %v9303 = vpack.c.b16 %v9301, %v9300
    %v9307 = vsel %vm8684, %v8641, 0
    %9309 = vmatprep.subr.bf16.mxu0 0
    %9310 = vmatpush1.bf16.msra.mxu0 %v9302
    %9311 = vmatprep.subr.bf16.mxu0 0
    %9312 = vmatpush1.bf16.msra.mxu0 %v9303
    %9313 = vmatprep.subr.bf16.mxu0 0
    %9314 = vmatpush1.bf16.msra.mxu0 0
    %9315 = vmatprep.subr.bf16.mxu0 0
    %9316 = vmatpush1.bf16.msra.mxu0 0
    %9317 = vmatprep.subr.bf16.mxu0 0
    %9318 = vmatpush1.bf16.msra.mxu0 0
    %9319 = vmatprep.subr.bf16.mxu0 0
    %9320 = vmatpush1.bf16.msra.mxu0 0
    %9321 = vmatprep.subr.bf16.mxu0 0
    %9322 = vmatpush1.bf16.msra.mxu0 0
    %9323 = vmatprep.subr.bf16.mxu0 0
    %9324 = vmatpush1.bf16.msra.mxu0 0
    %9325 = vmatprep.subr.bf16.mxu0 0
    %9326 = vmatpush1.bf16.msra.mxu0 0
    %9327 = vmatprep.subr.bf16.mxu0 0
    %9328 = vmatpush1.bf16.msra.mxu0 0
    %9329 = vmatprep.subr.bf16.mxu0 0
    %9330 = vmatpush1.bf16.msra.mxu0 0
    %9331 = vmatprep.subr.bf16.mxu0 0
    %9332 = vmatpush1.bf16.msra.mxu0 0
    %9333 = vmatprep.subr.bf16.mxu0 0
    %9334 = vmatpush1.bf16.msra.mxu0 0
    %9335 = vmatprep.subr.bf16.mxu0 0
    %9336 = vmatpush1.bf16.msra.mxu0 0
    %9337 = vmatprep.subr.bf16.mxu0 0
    %9338 = vmatpush1.bf16.msra.mxu0 0
    %9339 = vmatprep.subr.bf16.mxu0 0
    %9340 = vmatpush1.bf16.msra.mxu0 0
    %9341 = vmatprep.mubr.bf16.mxu0 0
    %9342 = vmatmul.mubr.bf16.gmra.mrb[0].mxu0 %v9307
    %v9343 = vpop.f32.mrb[0].mxu0
    %v9344 = vadd.f32 0.0, %v9343
    %v9345 = vpop.f32.mrb[0].mxu0
    %v9346 = vpop.f32.mrb[0].mxu0
    %v9347 = vadd.f32 0.0, %v9346
    %v9348 = vpop.f32.mrb[0].mxu0
    %9349 = vdwg.mxu0
    %v9350 = vadd.f32 %v9287, %v9344
    %v9351 = vadd.f32 %v9288, %v9347
    %s9352 = scalar_lea.vmem [#allocation3], 176
    %v9353 = vld [vmem:[%s9352] sm:$0xf]
    %v9354 = vld [vmem:[%s9352 + $0x4] sm:$0xf]
    %v9355 = vld [vmem:[%s9352 + $0x8] sm:$0xf]
    %v9356 = vld [vmem:[%s9352 + $0xc] sm:$0xf]
    %v9361 = vunpack.c.l.b16 %v9353
    %v9362 = vunpack.c.l.b16 %v9354
    %v9363 = vunpack.c.l.b16 %v9355
    %v9364 = vunpack.c.l.b16 %v9356
    %v9365 = vpack.c.b16 %v9362, %v9361
    %v9366 = vpack.c.b16 %v9364, %v9363
    %v9370 = vsel %vm8684, %v8642, 0
    %9372 = vmatprep.subr.bf16.mxu0 0
    %9373 = vmatpush1.bf16.msra.mxu0 %v9365
    %9374 = vmatprep.subr.bf16.mxu0 0
    %9375 = vmatpush1.bf16.msra.mxu0 %v9366
    %9376 = vmatprep.subr.bf16.mxu0 0
    %9377 = vmatpush1.bf16.msra.mxu0 0
    %9378 = vmatprep.subr.bf16.mxu0 0
    %9379 = vmatpush1.bf16.msra.mxu0 0
    %9380 = vmatprep.subr.bf16.mxu0 0
    %9381 = vmatpush1.bf16.msra.mxu0 0
    %9382 = vmatprep.subr.bf16.mxu0 0
    %9383 = vmatpush1.bf16.msra.mxu0 0
    %9384 = vmatprep.subr.bf16.mxu0 0
    %9385 = vmatpush1.bf16.msra.mxu0 0
    %9386 = vmatprep.subr.bf16.mxu0 0
    %9387 = vmatpush1.bf16.msra.mxu0 0
    %9388 = vmatprep.subr.bf16.mxu0 0
    %9389 = vmatpush1.bf16.msra.mxu0 0
    %9390 = vmatprep.subr.bf16.mxu0 0
    %9391 = vmatpush1.bf16.msra.mxu0 0
    %9392 = vmatprep.subr.bf16.mxu0 0
    %9393 = vmatpush1.bf16.msra.mxu0 0
    %9394 = vmatprep.subr.bf16.mxu0 0
    %9395 = vmatpush1.bf16.msra.mxu0 0
    %9396 = vmatprep.subr.bf16.mxu0 0
    %9397 = vmatpush1.bf16.msra.mxu0 0
    %9398 = vmatprep.subr.bf16.mxu0 0
    %9399 = vmatpush1.bf16.msra.mxu0 0
    %9400 = vmatprep.subr.bf16.mxu0 0
    %9401 = vmatpush1.bf16.msra.mxu0 0
    %9402 = vmatprep.subr.bf16.mxu0 0
    %9403 = vmatpush1.bf16.msra.mxu0 0
    %9404 = vmatprep.mubr.bf16.mxu0 0
    %9405 = vmatmul.mubr.bf16.gmra.mrb[0].mxu0 %v9370
    %v9406 = vpop.f32.mrb[0].mxu0
    %v9407 = vadd.f32 0.0, %v9406
    %v9408 = vpop.f32.mrb[0].mxu0
    %v9409 = vpop.f32.mrb[0].mxu0
    %v9410 = vadd.f32 0.0, %v9409
    %v9411 = vpop.f32.mrb[0].mxu0
    %9412 = vdwg.mxu0
    %v9413 = vadd.f32 %v9350, %v9407
    %v9414 = vadd.f32 %v9351, %v9410
    %s9415 = scalar_lea.vmem [#allocation3], 192
    %v9416 = vld [vmem:[%s9415] sm:$0xf]
    %v9417 = vld [vmem:[%s9415 + $0x4] sm:$0xf]
    %v9418 = vld [vmem:[%s9415 + $0x8] sm:$0xf]
    %v9419 = vld [vmem:[%s9415 + $0xc] sm:$0xf]
    %v9424 = vunpack.c.l.b16 %v9416
    %v9425 = vunpack.c.l.b16 %v9417
    %v9426 = vunpack.c.l.b16 %v9418
    %v9427 = vunpack.c.l.b16 %v9419
    %v9428 = vpack.c.b16 %v9425, %v9424
    %v9429 = vpack.c.b16 %v9427, %v9426
    %v9433 = vsel %vm8684, %v8643, 0
    %9435 = vmatprep.subr.bf16.mxu0 0
    %9436 = vmatpush1.bf16.msra.mxu0 %v9428
    %9437 = vmatprep.subr.bf16.mxu0 0
    %9438 = vmatpush1.bf16.msra.mxu0 %v9429
    %9439 = vmatprep.subr.bf16.mxu0 0
    %9440 = vmatpush1.bf16.msra.mxu0 0
    %9441 = vmatprep.subr.bf16.mxu0 0
    %9442 = vmatpush1.bf16.msra.mxu0 0
    %9443 = vmatprep.subr.bf16.mxu0 0
    %9444 = vmatpush1.bf16.msra.mxu0 0
    %9445 = vmatprep.subr.bf16.mxu0 0
    %9446 = vmatpush1.bf16.msra.mxu0 0
    %9447 = vmatprep.subr.bf16.mxu0 0
    %9448 = vmatpush1.bf16.msra.mxu0 0
    %9449 = vmatprep.subr.bf16.mxu0 0
    %9450 = vmatpush1.bf16.msra.mxu0 0
    %9451 = vmatprep.subr.bf16.mxu0 0
    %9452 = vmatpush1.bf16.msra.mxu0 0
    %9453 = vmatprep.subr.bf16.mxu0 0
    %9454 = vmatpush1.bf16.msra.mxu0 0
    %9455 = vmatprep.subr.bf16.mxu0 0
    %9456 = vmatpush1.bf16.msra.mxu0 0
    %9457 = vmatprep.subr.bf16.mxu0 0
    %9458 = vmatpush1.bf16.msra.mxu0 0
    %9459 = vmatprep.subr.bf16.mxu0 0
    %9460 = vmatpush1.bf16.msra.mxu0 0
    %9461 = vmatprep.subr.bf16.mxu0 0
    %9462 = vmatpush1.bf16.msra.mxu0 0
    %9463 = vmatprep.subr.bf16.mxu0 0
    %9464 = vmatpush1.bf16.msra.mxu0 0
    %9465 = vmatprep.subr.bf16.mxu0 0
    %9466 = vmatpush1.bf16.msra.mxu0 0
    %9467 = vmatprep.mubr.bf16.mxu0 0
    %9468 = vmatmul.mubr.bf16.gmra.mrb[0].mxu0 %v9433
    %v9469 = vpop.f32.mrb[0].mxu0
    %v9470 = vadd.f32 0.0, %v9469
    %v9471 = vpop.f32.mrb[0].mxu0
    %v9472 = vpop.f32.mrb[0].mxu0
    %v9473 = vadd.f32 0.0, %v9472
    %v9474 = vpop.f32.mrb[0].mxu0
    %9475 = vdwg.mxu0
    %v9476 = vadd.f32 %v9413, %v9470
    %v9477 = vadd.f32 %v9414, %v9473
    %s9478 = scalar_lea.vmem [#allocation3], 208
    %v9479 = vld [vmem:[%s9478] sm:$0xf]
    %v9480 = vld [vmem:[%s9478 + $0x4] sm:$0xf]
    %v9481 = vld [vmem:[%s9478 + $0x8] sm:$0xf]
    %v9482 = vld [vmem:[%s9478 + $0xc] sm:$0xf]
    %v9487 = vunpack.c.l.b16 %v9479
    %v9488 = vunpack.c.l.b16 %v9480
    %v9489 = vunpack.c.l.b16 %v9481
    %v9490 = vunpack.c.l.b16 %v9482
    %v9491 = vpack.c.b16 %v9488, %v9487
    %v9492 = vpack.c.b16 %v9490, %v9489
    %v9496 = vsel %vm8684, %v8644, 0
    %9498 = vmatprep.subr.bf16.mxu0 0
    %9499 = vmatpush1.bf16.msra.mxu0 %v9491
    %9500 = vmatprep.subr.bf16.mxu0 0
    %9501 = vmatpush1.bf16.msra.mxu0 %v9492
    %9502 = vmatprep.subr.bf16.mxu0 0
    %9503 = vmatpush1.bf16.msra.mxu0 0
    %9504 = vmatprep.subr.bf16.mxu0 0
    %9505 = vmatpush1.bf16.msra.mxu0 0
    %9506 = vmatprep.subr.bf16.mxu0 0
    %9507 = vmatpush1.bf16.msra.mxu0 0
    %9508 = vmatprep.subr.bf16.mxu0 0
    %9509 = vmatpush1.bf16.msra.mxu0 0
    %9510 = vmatprep.subr.bf16.mxu0 0
    %9511 = vmatpush1.bf16.msra.mxu0 0
    %9512 = vmatprep.subr.bf16.mxu0 0
    %9513 = vmatpush1.bf16.msra.mxu0 0
    %9514 = vmatprep.subr.bf16.mxu0 0
    %9515 = vmatpush1.bf16.msra.mxu0 0
    %9516 = vmatprep.subr.bf16.mxu0 0
    %9517 = vmatpush1.bf16.msra.mxu0 0
    %9518 = vmatprep.subr.bf16.mxu0 0
    %9519 = vmatpush1.bf16.msra.mxu0 0
    %9520 = vmatprep.subr.bf16.mxu0 0
    %9521 = vmatpush1.bf16.msra.mxu0 0
    %9522 = vmatprep.subr.bf16.mxu0 0
    %9523 = vmatpush1.bf16.msra.mxu0 0
    %9524 = vmatprep.subr.bf16.mxu0 0
    %9525 = vmatpush1.bf16.msra.mxu0 0
    %9526 = vmatprep.subr.bf16.mxu0 0
    %9527 = vmatpush1.bf16.msra.mxu0 0
    %9528 = vmatprep.subr.bf16.mxu0 0
    %9529 = vmatpush1.bf16.msra.mxu0 0
    %9530 = vmatprep.mubr.bf16.mxu0 0
    %9531 = vmatmul.mubr.bf16.gmra.mrb[0].mxu0 %v9496
    %v9532 = vpop.f32.mrb[0].mxu0
    %v9533 = vadd.f32 0.0, %v9532
    %v9534 = vpop.f32.mrb[0].mxu0
    %v9535 = vpop.f32.mrb[0].mxu0
    %v9536 = vadd.f32 0.0, %v9535
    %v9537 = vpop.f32.mrb[0].mxu0
    %9538 = vdwg.mxu0
    %v9539 = vadd.f32 %v9476, %v9533
    %v9540 = vadd.f32 %v9477, %v9536
    %s9541 = scalar_lea.vmem [#allocation3], 224
    %v9542 = vld [vmem:[%s9541] sm:$0xf]
    %v9543 = vld [vmem:[%s9541 + $0x4] sm:$0xf]
    %v9544 = vld [vmem:[%s9541 + $0x8] sm:$0xf]
    %v9545 = vld [vmem:[%s9541 + $0xc] sm:$0xf]
    %v9550 = vunpack.c.l.b16 %v9542
    %v9551 = vunpack.c.l.b16 %v9543
    %v9552 = vunpack.c.l.b16 %v9544
    %v9553 = vunpack.c.l.b16 %v9545
    %v9554 = vpack.c.b16 %v9551, %v9550
    %v9555 = vpack.c.b16 %v9553, %v9552
    %v9559 = vsel %vm8684, %v8645, 0
    %9561 = vmatprep.subr.bf16.mxu0 0
    %9562 = vmatpush1.bf16.msra.mxu0 %v9554
    %9563 = vmatprep.subr.bf16.mxu0 0
    %9564 = vmatpush1.bf16.msra.mxu0 %v9555
    %9565 = vmatprep.subr.bf16.mxu0 0
    %9566 = vmatpush1.bf16.msra.mxu0 0
    %9567 = vmatprep.subr.bf16.mxu0 0
    %9568 = vmatpush1.bf16.msra.mxu0 0
    %9569 = vmatprep.subr.bf16.mxu0 0
    %9570 = vmatpush1.bf16.msra.mxu0 0
    %9571 = vmatprep.subr.bf16.mxu0 0
    %9572 = vmatpush1.bf16.msra.mxu0 0
    %9573 = vmatprep.subr.bf16.mxu0 0
    %9574 = vmatpush1.bf16.msra.mxu0 0
    %9575 = vmatprep.subr.bf16.mxu0 0
    %9576 = vmatpush1.bf16.msra.mxu0 0
    %9577 = vmatprep.subr.bf16.mxu0 0
    %9578 = vmatpush1.bf16.msra.mxu0 0
    %9579 = vmatprep.subr.bf16.mxu0 0
    %9580 = vmatpush1.bf16.msra.mxu0 0
    %9581 = vmatprep.subr.bf16.mxu0 0
    %9582 = vmatpush1.bf16.msra.mxu0 0
    %9583 = vmatprep.subr.bf16.mxu0 0
    %9584 = vmatpush1.bf16.msra.mxu0 0
    %9585 = vmatprep.subr.bf16.mxu0 0
    %9586 = vmatpush1.bf16.msra.mxu0 0
    %9587 = vmatprep.subr.bf16.mxu0 0
    %9588 = vmatpush1.bf16.msra.mxu0 0
    %9589 = vmatprep.subr.bf16.mxu0 0
    %9590 = vmatpush1.bf16.msra.mxu0 0
    %9591 = vmatprep.subr.bf16.mxu0 0
    %9592 = vmatpush1.bf16.msra.mxu0 0
    %9593 = vmatprep.mubr.bf16.mxu0 0
    %9594 = vmatmul.mubr.bf16.gmra.mrb[0].mxu0 %v9559
    %v9595 = vpop.f32.mrb[0].mxu0
    %v9596 = vadd.f32 0.0, %v9595
    %v9597 = vpop.f32.mrb[0].mxu0
    %v9598 = vpop.f32.mrb[0].mxu0
    %v9599 = vadd.f32 0.0, %v9598
    %v9600 = vpop.f32.mrb[0].mxu0
    %9601 = vdwg.mxu0
    %v9602 = vadd.f32 %v9539, %v9596
    %v9603 = vadd.f32 %v9540, %v9599
    %s9604 = scalar_lea.vmem [#allocation3], 240
    %v9605 = vld [vmem:[%s9604] sm:$0xf]
    %v9606 = vld [vmem:[%s9604 + $0x4] sm:$0xf]
    %v9607 = vld [vmem:[%s9604 + $0x8] sm:$0xf]
    %v9608 = vld [vmem:[%s9604 + $0xc] sm:$0xf]
    %v9613 = vunpack.c.l.b16 %v9605
    %v9614 = vunpack.c.l.b16 %v9606
    %v9615 = vunpack.c.l.b16 %v9607
    %v9616 = vunpack.c.l.b16 %v9608
    %v9617 = vpack.c.b16 %v9614, %v9613
    %v9618 = vpack.c.b16 %v9616, %v9615
    %v9622 = vsel %vm8684, %v8646, 0
    %9624 = vmatprep.subr.bf16.mxu0 0
    %9625 = vmatpush1.bf16.msra.mxu0 %v9617
    %9626 = vmatprep.subr.bf16.mxu0 0
    %9627 = vmatpush1.bf16.msra.mxu0 %v9618
    %9628 = vmatprep.subr.bf16.mxu0 0
    %9629 = vmatpush1.bf16.msra.mxu0 0
    %9630 = vmatprep.subr.bf16.mxu0 0
    %9631 = vmatpush1.bf16.msra.mxu0 0
    %9632 = vmatprep.subr.bf16.mxu0 0
    %9633 = vmatpush1.bf16.msra.mxu0 0
    %9634 = vmatprep.subr.bf16.mxu0 0
    %9635 = vmatpush1.bf16.msra.mxu0 0
    %9636 = vmatprep.subr.bf16.mxu0 0
    %9637 = vmatpush1.bf16.msra.mxu0 0
    %9638 = vmatprep.subr.bf16.mxu0 0
    %9639 = vmatpush1.bf16.msra.mxu0 0
    %9640 = vmatprep.subr.bf16.mxu0 0
    %9641 = vmatpush1.bf16.msra.mxu0 0
    %9642 = vmatprep.subr.bf16.mxu0 0
    %9643 = vmatpush1.bf16.msra.mxu0 0
    %9644 = vmatprep.subr.bf16.mxu0 0
    %9645 = vmatpush1.bf16.msra.mxu0 0
    %9646 = vmatprep.subr.bf16.mxu0 0
    %9647 = vmatpush1.bf16.msra.mxu0 0
    %9648 = vmatprep.subr.bf16.mxu0 0
    %9649 = vmatpush1.bf16.msra.mxu0 0
    %9650 = vmatprep.subr.bf16.mxu0 0
    %9651 = vmatpush1.bf16.msra.mxu0 0
    %9652 = vmatprep.subr.bf16.mxu0 0
    %9653 = vmatpush1.bf16.msra.mxu0 0
    %9654 = vmatprep.subr.bf16.mxu0 0
    %9655 = vmatpush1.bf16.msra.mxu0 0
    %9656 = vmatprep.mubr.bf16.mxu0 0
    %9657 = vmatmul.mubr.bf16.gmra.mrb[0].mxu0 %v9622
    %v9658 = vpop.f32.mrb[0].mxu0
    %v9659 = vadd.f32 0.0, %v9658
    %v9660 = vpop.f32.mrb[0].mxu0
    %v9661 = vpop.f32.mrb[0].mxu0
    %v9662 = vadd.f32 0.0, %v9661
    %v9663 = vpop.f32.mrb[0].mxu0
    %9664 = vdwg.mxu0
    %v9665 = vadd.f32 %v9602, %v9659
    %v9666 = vadd.f32 %v9603, %v9662
    %s9667 = scalar_lea.vmem [#allocation3], 256
    %v9668 = vld [vmem:[%s9667] sm:$0xf]
    %v9669 = vld [vmem:[%s9667 + $0x4] sm:$0xf]
    %v9670 = vld [vmem:[%s9667 + $0x8] sm:$0xf]
    %v9671 = vld [vmem:[%s9667 + $0xc] sm:$0xf]
    %v9676 = vunpack.c.l.b16 %v9668
    %v9677 = vunpack.c.l.b16 %v9669
    %v9678 = vunpack.c.l.b16 %v9670
    %v9679 = vunpack.c.l.b16 %v9671
    %v9680 = vpack.c.b16 %v9677, %v9676
    %v9681 = vpack.c.b16 %v9679, %v9678
    %v9685 = vsel %vm8684, %v8647, 0
    %9687 = vmatprep.subr.bf16.mxu0 0
    %9688 = vmatpush1.bf16.msra.mxu0 %v9680
    %9689 = vmatprep.subr.bf16.mxu0 0
    %9690 = vmatpush1.bf16.msra.mxu0 %v9681
    %9691 = vmatprep.subr.bf16.mxu0 0
    %9692 = vmatpush1.bf16.msra.mxu0 0
    %9693 = vmatprep.subr.bf16.mxu0 0
    %9694 = vmatpush1.bf16.msra.mxu0 0
    %9695 = vmatprep.subr.bf16.mxu0 0
    %9696 = vmatpush1.bf16.msra.mxu0 0
    %9697 = vmatprep.subr.bf16.mxu0 0
    %9698 = vmatpush1.bf16.msra.mxu0 0
    %9699 = vmatprep.subr.bf16.mxu0 0
    %9700 = vmatpush1.bf16.msra.mxu0 0
    %9701 = vmatprep.subr.bf16.mxu0 0
    %9702 = vmatpush1.bf16.msra.mxu0 0
    %9703 = vmatprep.subr.bf16.mxu0 0
    %9704 = vmatpush1.bf16.msra.mxu0 0
    %9705 = vmatprep.subr.bf16.mxu0 0
    %9706 = vmatpush1.bf16.msra.mxu0 0
    %9707 = vmatprep.subr.bf16.mxu0 0
    %9708 = vmatpush1.bf16.msra.mxu0 0
    %9709 = vmatprep.subr.bf16.mxu0 0
    %9710 = vmatpush1.bf16.msra.mxu0 0
    %9711 = vmatprep.subr.bf16.mxu0 0
    %9712 = vmatpush1.bf16.msra.mxu0 0
    %9713 = vmatprep.subr.bf16.mxu0 0
    %9714 = vmatpush1.bf16.msra.mxu0 0
    %9715 = vmatprep.subr.bf16.mxu0 0
    %9716 = vmatpush1.bf16.msra.mxu0 0
    %9717 = vmatprep.subr.bf16.mxu0 0
    %9718 = vmatpush1.bf16.msra.mxu0 0
    %9719 = vmatprep.mubr.bf16.mxu0 0
    %9720 = vmatmul.mubr.bf16.gmra.mrb[0].mxu0 %v9685
    %v9721 = vpop.f32.mrb[0].mxu0
    %v9722 = vadd.f32 0.0, %v9721
    %v9723 = vpop.f32.mrb[0].mxu0
    %v9724 = vpop.f32.mrb[0].mxu0
    %v9725 = vadd.f32 0.0, %v9724
    %v9726 = vpop.f32.mrb[0].mxu0
    %9727 = vdwg.mxu0
    %v9728 = vadd.f32 %v9665, %v9722
    %v9729 = vadd.f32 %v9666, %v9725
    %s9730 = scalar_lea.vmem [#allocation3], 272
    %v9731 = vld [vmem:[%s9730] sm:$0xf]
    %v9732 = vld [vmem:[%s9730 + $0x4] sm:$0xf]
    %v9733 = vld [vmem:[%s9730 + $0x8] sm:$0xf]
    %v9734 = vld [vmem:[%s9730 + $0xc] sm:$0xf]
    %v9739 = vunpack.c.l.b16 %v9731
    %v9740 = vunpack.c.l.b16 %v9732
    %v9741 = vunpack.c.l.b16 %v9733
    %v9742 = vunpack.c.l.b16 %v9734
    %v9743 = vpack.c.b16 %v9740, %v9739
    %v9744 = vpack.c.b16 %v9742, %v9741
    %v9748 = vsel %vm8684, %v8648, 0
    %9750 = vmatprep.subr.bf16.mxu0 0
    %9751 = vmatpush1.bf16.msra.mxu0 %v9743
    %9752 = vmatprep.subr.bf16.mxu0 0
    %9753 = vmatpush1.bf16.msra.mxu0 %v9744
    %9754 = vmatprep.subr.bf16.mxu0 0
    %9755 = vmatpush1.bf16.msra.mxu0 0
    %9756 = vmatprep.subr.bf16.mxu0 0
    %9757 = vmatpush1.bf16.msra.mxu0 0
    %9758 = vmatprep.subr.bf16.mxu0 0
    %9759 = vmatpush1.bf16.msra.mxu0 0
    %9760 = vmatprep.subr.bf16.mxu0 0
    %9761 = vmatpush1.bf16.msra.mxu0 0
    %9762 = vmatprep.subr.bf16.mxu0 0
    %9763 = vmatpush1.bf16.msra.mxu0 0
    %9764 = vmatprep.subr.bf16.mxu0 0
    %9765 = vmatpush1.bf16.msra.mxu0 0
    %9766 = vmatprep.subr.bf16.mxu0 0
    %9767 = vmatpush1.bf16.msra.mxu0 0
    %9768 = vmatprep.subr.bf16.mxu0 0
    %9769 = vmatpush1.bf16.msra.mxu0 0
    %9770 = vmatprep.subr.bf16.mxu0 0
    %9771 = vmatpush1.bf16.msra.mxu0 0
    %9772 = vmatprep.subr.bf16.mxu0 0
    %9773 = vmatpush1.bf16.msra.mxu0 0
    %9774 = vmatprep.subr.bf16.mxu0 0
    %9775 = vmatpush1.bf16.msra.mxu0 0
    %9776 = vmatprep.subr.bf16.mxu0 0
    %9777 = vmatpush1.bf16.msra.mxu0 0
    %9778 = vmatprep.subr.bf16.mxu0 0
    %9779 = vmatpush1.bf16.msra.mxu0 0
    %9780 = vmatprep.subr.bf16.mxu0 0
    %9781 = vmatpush1.bf16.msra.mxu0 0
    %9782 = vmatprep.mubr.bf16.mxu0 0
    %9783 = vmatmul.mubr.bf16.gmra.mrb[0].mxu0 %v9748
    %v9784 = vpop.f32.mrb[0].mxu0
    %v9785 = vadd.f32 0.0, %v9784
    %v9786 = vpop.f32.mrb[0].mxu0
    %v9787 = vpop.f32.mrb[0].mxu0
    %v9788 = vadd.f32 0.0, %v9787
    %v9789 = vpop.f32.mrb[0].mxu0
    %9790 = vdwg.mxu0
    %v9791 = vadd.f32 %v9728, %v9785
    %v9792 = vadd.f32 %v9729, %v9788
    %s9793 = scalar_lea.vmem [#allocation3], 288
    %v9794 = vld [vmem:[%s9793] sm:$0xf]
    %v9795 = vld [vmem:[%s9793 + $0x4] sm:$0xf]
    %v9796 = vld [vmem:[%s9793 + $0x8] sm:$0xf]
    %v9797 = vld [vmem:[%s9793 + $0xc] sm:$0xf]
    %v9802 = vunpack.c.l.b16 %v9794
    %v9803 = vunpack.c.l.b16 %v9795
    %v9804 = vunpack.c.l.b16 %v9796
    %v9805 = vunpack.c.l.b16 %v9797
    %v9806 = vpack.c.b16 %v9803, %v9802
    %v9807 = vpack.c.b16 %v9805, %v9804
    %v9811 = vsel %vm8684, %v8649, 0
    %9813 = vmatprep.subr.bf16.mxu0 0
    %9814 = vmatpush1.bf16.msra.mxu0 %v9806
    %9815 = vmatprep.subr.bf16.mxu0 0
    %9816 = vmatpush1.bf16.msra.mxu0 %v9807
    %9817 = vmatprep.subr.bf16.mxu0 0
    %9818 = vmatpush1.bf16.msra.mxu0 0
    %9819 = vmatprep.subr.bf16.mxu0 0
    %9820 = vmatpush1.bf16.msra.mxu0 0
    %9821 = vmatprep.subr.bf16.mxu0 0
    %9822 = vmatpush1.bf16.msra.mxu0 0
    %9823 = vmatprep.subr.bf16.mxu0 0
    %9824 = vmatpush1.bf16.msra.mxu0 0
    %9825 = vmatprep.subr.bf16.mxu0 0
    %9826 = vmatpush1.bf16.msra.mxu0 0
    %9827 = vmatprep.subr.bf16.mxu0 0
    %9828 = vmatpush1.bf16.msra.mxu0 0
    %9829 = vmatprep.subr.bf16.mxu0 0
    %9830 = vmatpush1.bf16.msra.mxu0 0
    %9831 = vmatprep.subr.bf16.mxu0 0
    %9832 = vmatpush1.bf16.msra.mxu0 0
    %9833 = vmatprep.subr.bf16.mxu0 0
    %9834 = vmatpush1.bf16.msra.mxu0 0
    %9835 = vmatprep.subr.bf16.mxu0 0
    %9836 = vmatpush1.bf16.msra.mxu0 0
    %9837 = vmatprep.subr.bf16.mxu0 0
    %9838 = vmatpush1.bf16.msra.mxu0 0
    %9839 = vmatprep.subr.bf16.mxu0 0
    %9840 = vmatpush1.bf16.msra.mxu0 0
    %9841 = vmatprep.subr.bf16.mxu0 0
    %9842 = vmatpush1.bf16.msra.mxu0 0
    %9843 = vmatprep.subr.bf16.mxu0 0
    %9844 = vmatpush1.bf16.msra.mxu0 0
    %9845 = vmatprep.mubr.bf16.mxu0 0
    %9846 = vmatmul.mubr.bf16.gmra.mrb[0].mxu0 %v9811
    %v9847 = vpop.f32.mrb[0].mxu0
    %v9848 = vadd.f32 0.0, %v9847
    %v9849 = vpop.f32.mrb[0].mxu0
    %v9850 = vpop.f32.mrb[0].mxu0
    %v9851 = vadd.f32 0.0, %v9850
    %v9852 = vpop.f32.mrb[0].mxu0
    %9853 = vdwg.mxu0
    %v9854 = vadd.f32 %v9791, %v9848
    %v9855 = vadd.f32 %v9792, %v9851
    %s9856 = scalar_lea.vmem [#allocation3], 304
    %v9857 = vld [vmem:[%s9856] sm:$0xf]
    %v9858 = vld [vmem:[%s9856 + $0x4] sm:$0xf]
    %v9859 = vld [vmem:[%s9856 + $0x8] sm:$0xf]
    %v9860 = vld [vmem:[%s9856 + $0xc] sm:$0xf]
    %v9865 = vunpack.c.l.b16 %v9857
    %v9866 = vunpack.c.l.b16 %v9858
    %v9867 = vunpack.c.l.b16 %v9859
    %v9868 = vunpack.c.l.b16 %v9860
    %v9869 = vpack.c.b16 %v9866, %v9865
    %v9870 = vpack.c.b16 %v9868, %v9867
    %v9874 = vsel %vm8684, %v8650, 0
    %9876 = vmatprep.subr.bf16.mxu0 0
    %9877 = vmatpush1.bf16.msra.mxu0 %v9869
    %9878 = vmatprep.subr.bf16.mxu0 0
    %9879 = vmatpush1.bf16.msra.mxu0 %v9870
    %9880 = vmatprep.subr.bf16.mxu0 0
    %9881 = vmatpush1.bf16.msra.mxu0 0
    %9882 = vmatprep.subr.bf16.mxu0 0
    %9883 = vmatpush1.bf16.msra.mxu0 0
    %9884 = vmatprep.subr.bf16.mxu0 0
    %9885 = vmatpush1.bf16.msra.mxu0 0
    %9886 = vmatprep.subr.bf16.mxu0 0
    %9887 = vmatpush1.bf16.msra.mxu0 0
    %9888 = vmatprep.subr.bf16.mxu0 0
    %9889 = vmatpush1.bf16.msra.mxu0 0
    %9890 = vmatprep.subr.bf16.mxu0 0
    %9891 = vmatpush1.bf16.msra.mxu0 0
    %9892 = vmatprep.subr.bf16.mxu0 0
    %9893 = vmatpush1.bf16.msra.mxu0 0
    %9894 = vmatprep.subr.bf16.mxu0 0
    %9895 = vmatpush1.bf16.msra.mxu0 0
    %9896 = vmatprep.subr.bf16.mxu0 0
    %9897 = vmatpush1.bf16.msra.mxu0 0
    %9898 = vmatprep.subr.bf16.mxu0 0
    %9899 = vmatpush1.bf16.msra.mxu0 0
    %9900 = vmatprep.subr.bf16.mxu0 0
    %9901 = vmatpush1.bf16.msra.mxu0 0
    %9902 = vmatprep.subr.bf16.mxu0 0
    %9903 = vmatpush1.bf16.msra.mxu0 0
    %9904 = vmatprep.subr.bf16.mxu0 0
    %9905 = vmatpush1.bf16.msra.mxu0 0
    %9906 = vmatprep.subr.bf16.mxu0 0
    %9907 = vmatpush1.bf16.msra.mxu0 0
    %9908 = vmatprep.mubr.bf16.mxu0 0
    %9909 = vmatmul.mubr.bf16.gmra.mrb[0].mxu0 %v9874
    %v9910 = vpop.f32.mrb[0].mxu0
    %v9911 = vadd.f32 0.0, %v9910
    %v9912 = vpop.f32.mrb[0].mxu0
    %v9913 = vpop.f32.mrb[0].mxu0
    %v9914 = vadd.f32 0.0, %v9913
    %v9915 = vpop.f32.mrb[0].mxu0
    %9916 = vdwg.mxu0
    %v9917 = vadd.f32 %v9854, %v9911
    %v9918 = vadd.f32 %v9855, %v9914
    %s9919 = scalar_lea.vmem [#allocation3], 320
    %v9920 = vld [vmem:[%s9919] sm:$0xf]
    %v9921 = vld [vmem:[%s9919 + $0x4] sm:$0xf]
    %v9922 = vld [vmem:[%s9919 + $0x8] sm:$0xf]
    %v9923 = vld [vmem:[%s9919 + $0xc] sm:$0xf]
    %v9928 = vunpack.c.l.b16 %v9920
    %v9929 = vunpack.c.l.b16 %v9921
    %v9930 = vunpack.c.l.b16 %v9922
    %v9931 = vunpack.c.l.b16 %v9923
    %v9932 = vpack.c.b16 %v9929, %v9928
    %v9933 = vpack.c.b16 %v9931, %v9930
    %v9937 = vsel %vm8684, %v8651, 0
    %9939 = vmatprep.subr.bf16.mxu0 0
    %9940 = vmatpush1.bf16.msra.mxu0 %v9932
    %9941 = vmatprep.subr.bf16.mxu0 0
    %9942 = vmatpush1.bf16.msra.mxu0 %v9933
    %9943 = vmatprep.subr.bf16.mxu0 0
    %9944 = vmatpush1.bf16.msra.mxu0 0
    %9945 = vmatprep.subr.bf16.mxu0 0
    %9946 = vmatpush1.bf16.msra.mxu0 0
    %9947 = vmatprep.subr.bf16.mxu0 0
    %9948 = vmatpush1.bf16.msra.mxu0 0
    %9949 = vmatprep.subr.bf16.mxu0 0
    %9950 = vmatpush1.bf16.msra.mxu0 0
    %9951 = vmatprep.subr.bf16.mxu0 0
    %9952 = vmatpush1.bf16.msra.mxu0 0
    %9953 = vmatprep.subr.bf16.mxu0 0
    %9954 = vmatpush1.bf16.msra.mxu0 0
    %9955 = vmatprep.subr.bf16.mxu0 0
    %9956 = vmatpush1.bf16.msra.mxu0 0
    %9957 = vmatprep.subr.bf16.mxu0 0
    %9958 = vmatpush1.bf16.msra.mxu0 0
    %9959 = vmatprep.subr.bf16.mxu0 0
    %9960 = vmatpush1.bf16.msra.mxu0 0
    %9961 = vmatprep.subr.bf16.mxu0 0
    %9962 = vmatpush1.bf16.msra.mxu0 0
    %9963 = vmatprep.subr.bf16.mxu0 0
    %9964 = vmatpush1.bf16.msra.mxu0 0
    %9965 = vmatprep.subr.bf16.mxu0 0
    %9966 = vmatpush1.bf16.msra.mxu0 0
    %9967 = vmatprep.subr.bf16.mxu0 0
    %9968 = vmatpush1.bf16.msra.mxu0 0
    %9969 = vmatprep.subr.bf16.mxu0 0
    %9970 = vmatpush1.bf16.msra.mxu0 0
    %9971 = vmatprep.mubr.bf16.mxu0 0
    %9972 = vmatmul.mubr.bf16.gmra.mrb[0].mxu0 %v9937
    %v9973 = vpop.f32.mrb[0].mxu0
    %v9974 = vadd.f32 0.0, %v9973
    %v9975 = vpop.f32.mrb[0].mxu0
    %v9976 = vpop.f32.mrb[0].mxu0
    %v9977 = vadd.f32 0.0, %v9976
    %v9978 = vpop.f32.mrb[0].mxu0
    %9979 = vdwg.mxu0
    %v9980 = vadd.f32 %v9917, %v9974
    %v9981 = vadd.f32 %v9918, %v9977
    %s9982 = scalar_lea.vmem [#allocation3], 336
    %v9983 = vld [vmem:[%s9982] sm:$0xf]
    %v9984 = vld [vmem:[%s9982 + $0x4] sm:$0xf]
    %v9985 = vld [vmem:[%s9982 + $0x8] sm:$0xf]
    %v9986 = vld [vmem:[%s9982 + $0xc] sm:$0xf]
    %v9991 = vunpack.c.l.b16 %v9983
    %v9992 = vunpack.c.l.b16 %v9984
    %v9993 = vunpack.c.l.b16 %v9985
    %v9994 = vunpack.c.l.b16 %v9986
    %v9995 = vpack.c.b16 %v9992, %v9991
    %v9996 = vpack.c.b16 %v9994, %v9993
    %v10000 = vsel %vm8684, %v8652, 0
    %10002 = vmatprep.subr.bf16.mxu0 0
    %10003 = vmatpush1.bf16.msra.mxu0 %v9995
    %10004 = vmatprep.subr.bf16.mxu0 0
    %10005 = vmatpush1.bf16.msra.mxu0 %v9996
    %10006 = vmatprep.subr.bf16.mxu0 0
    %10007 = vmatpush1.bf16.msra.mxu0 0
    %10008 = vmatprep.subr.bf16.mxu0 0
    %10009 = vmatpush1.bf16.msra.mxu0 0
    %10010 = vmatprep.subr.bf16.mxu0 0
    %10011 = vmatpush1.bf16.msra.mxu0 0
    %10012 = vmatprep.subr.bf16.mxu0 0
    %10013 = vmatpush1.bf16.msra.mxu0 0
    %10014 = vmatprep.subr.bf16.mxu0 0
    %10015 = vmatpush1.bf16.msra.mxu0 0
    %10016 = vmatprep.subr.bf16.mxu0 0
    %10017 = vmatpush1.bf16.msra.mxu0 0
    %10018 = vmatprep.subr.bf16.mxu0 0
    %10019 = vmatpush1.bf16.msra.mxu0 0
    %10020 = vmatprep.subr.bf16.mxu0 0
    %10021 = vmatpush1.bf16.msra.mxu0 0
    %10022 = vmatprep.subr.bf16.mxu0 0
    %10023 = vmatpush1.bf16.msra.mxu0 0
    %10024 = vmatprep.subr.bf16.mxu0 0
    %10025 = vmatpush1.bf16.msra.mxu0 0
    %10026 = vmatprep.subr.bf16.mxu0 0
    %10027 = vmatpush1.bf16.msra.mxu0 0
    %10028 = vmatprep.subr.bf16.mxu0 0
    %10029 = vmatpush1.bf16.msra.mxu0 0
    %10030 = vmatprep.subr.bf16.mxu0 0
    %10031 = vmatpush1.bf16.msra.mxu0 0
    %10032 = vmatprep.subr.bf16.mxu0 0
    %10033 = vmatpush1.bf16.msra.mxu0 0
    %10034 = vmatprep.mubr.bf16.mxu0 0
    %10035 = vmatmul.mubr.bf16.gmra.mrb[0].mxu0 %v10000
    %v10036 = vpop.f32.mrb[0].mxu0
    %v10037 = vadd.f32 0.0, %v10036
    %v10038 = vpop.f32.mrb[0].mxu0
    %v10039 = vpop.f32.mrb[0].mxu0
    %v10040 = vadd.f32 0.0, %v10039
    %v10041 = vpop.f32.mrb[0].mxu0
    %10042 = vdwg.mxu0
    %v10043 = vadd.f32 %v9980, %v10037
    %v10044 = vadd.f32 %v9981, %v10040
    %s10045 = scalar_lea.vmem [#allocation3], 352
    %v10046 = vld [vmem:[%s10045] sm:$0xf]
    %v10047 = vld [vmem:[%s10045 + $0x4] sm:$0xf]
    %v10048 = vld [vmem:[%s10045 + $0x8] sm:$0xf]
    %v10049 = vld [vmem:[%s10045 + $0xc] sm:$0xf]
    %v10054 = vunpack.c.l.b16 %v10046
    %v10055 = vunpack.c.l.b16 %v10047
    %v10056 = vunpack.c.l.b16 %v10048
    %v10057 = vunpack.c.l.b16 %v10049
    %v10058 = vpack.c.b16 %v10055, %v10054
    %v10059 = vpack.c.b16 %v10057, %v10056
    %v10063 = vsel %vm8684, %v8653, 0
    %10065 = vmatprep.subr.bf16.mxu0 0
    %10066 = vmatpush1.bf16.msra.mxu0 %v10058
    %10067 = vmatprep.subr.bf16.mxu0 0
    %10068 = vmatpush1.bf16.msra.mxu0 %v10059
    %10069 = vmatprep.subr.bf16.mxu0 0
    %10070 = vmatpush1.bf16.msra.mxu0 0
    %10071 = vmatprep.subr.bf16.mxu0 0
    %10072 = vmatpush1.bf16.msra.mxu0 0
    %10073 = vmatprep.subr.bf16.mxu0 0
    %10074 = vmatpush1.bf16.msra.mxu0 0
    %10075 = vmatprep.subr.bf16.mxu0 0
    %10076 = vmatpush1.bf16.msra.mxu0 0
    %10077 = vmatprep.subr.bf16.mxu0 0
    %10078 = vmatpush1.bf16.msra.mxu0 0
    %10079 = vmatprep.subr.bf16.mxu0 0
    %10080 = vmatpush1.bf16.msra.mxu0 0
    %10081 = vmatprep.subr.bf16.mxu0 0
    %10082 = vmatpush1.bf16.msra.mxu0 0
    %10083 = vmatprep.subr.bf16.mxu0 0
    %10084 = vmatpush1.bf16.msra.mxu0 0
    %10085 = vmatprep.subr.bf16.mxu0 0
    %10086 = vmatpush1.bf16.msra.mxu0 0
    %10087 = vmatprep.subr.bf16.mxu0 0
    %10088 = vmatpush1.bf16.msra.mxu0 0
    %10089 = vmatprep.subr.bf16.mxu0 0
    %10090 = vmatpush1.bf16.msra.mxu0 0
    %10091 = vmatprep.subr.bf16.mxu0 0
    %10092 = vmatpush1.bf16.msra.mxu0 0
    %10093 = vmatprep.subr.bf16.mxu0 0
    %10094 = vmatpush1.bf16.msra.mxu0 0
    %10095 = vmatprep.subr.bf16.mxu0 0
    %10096 = vmatpush1.bf16.msra.mxu0 0
    %10097 = vmatprep.mubr.bf16.mxu0 0
    %10098 = vmatmul.mubr.bf16.gmra.mrb[0].mxu0 %v10063
    %v10099 = vpop.f32.mrb[0].mxu0
    %v10100 = vadd.f32 0.0, %v10099
    %v10101 = vpop.f32.mrb[0].mxu0
    %v10102 = vpop.f32.mrb[0].mxu0
    %v10103 = vadd.f32 0.0, %v10102
    %v10104 = vpop.f32.mrb[0].mxu0
    %10105 = vdwg.mxu0
    %v10106 = vadd.f32 %v10043, %v10100
    %v10107 = vadd.f32 %v10044, %v10103
    %s10108 = scalar_lea.vmem [#allocation3], 368
    %v10109 = vld [vmem:[%s10108] sm:$0xf]
    %v10110 = vld [vmem:[%s10108 + $0x4] sm:$0xf]
    %v10111 = vld [vmem:[%s10108 + $0x8] sm:$0xf]
    %v10112 = vld [vmem:[%s10108 + $0xc] sm:$0xf]
    %v10117 = vunpack.c.l.b16 %v10109
    %v10118 = vunpack.c.l.b16 %v10110
    %v10119 = vunpack.c.l.b16 %v10111
    %v10120 = vunpack.c.l.b16 %v10112
    %v10121 = vpack.c.b16 %v10118, %v10117
    %v10122 = vpack.c.b16 %v10120, %v10119
    %v10126 = vsel %vm8684, %v8654, 0
    %10128 = vmatprep.subr.bf16.mxu0 0
    %10129 = vmatpush1.bf16.msra.mxu0 %v10121
    %10130 = vmatprep.subr.bf16.mxu0 0
    %10131 = vmatpush1.bf16.msra.mxu0 %v10122
    %10132 = vmatprep.subr.bf16.mxu0 0
    %10133 = vmatpush1.bf16.msra.mxu0 0
    %10134 = vmatprep.subr.bf16.mxu0 0
    %10135 = vmatpush1.bf16.msra.mxu0 0
    %10136 = vmatprep.subr.bf16.mxu0 0
    %10137 = vmatpush1.bf16.msra.mxu0 0
    %10138 = vmatprep.subr.bf16.mxu0 0
    %10139 = vmatpush1.bf16.msra.mxu0 0
    %10140 = vmatprep.subr.bf16.mxu0 0
    %10141 = vmatpush1.bf16.msra.mxu0 0
    %10142 = vmatprep.subr.bf16.mxu0 0
    %10143 = vmatpush1.bf16.msra.mxu0 0
    %10144 = vmatprep.subr.bf16.mxu0 0
    %10145 = vmatpush1.bf16.msra.mxu0 0
    %10146 = vmatprep.subr.bf16.mxu0 0
    %10147 = vmatpush1.bf16.msra.mxu0 0
    %10148 = vmatprep.subr.bf16.mxu0 0
    %10149 = vmatpush1.bf16.msra.mxu0 0
    %10150 = vmatprep.subr.bf16.mxu0 0
    %10151 = vmatpush1.bf16.msra.mxu0 0
    %10152 = vmatprep.subr.bf16.mxu0 0
    %10153 = vmatpush1.bf16.msra.mxu0 0
    %10154 = vmatprep.subr.bf16.mxu0 0
    %10155 = vmatpush1.bf16.msra.mxu0 0
    %10156 = vmatprep.subr.bf16.mxu0 0
    %10157 = vmatpush1.bf16.msra.mxu0 0
    %10158 = vmatprep.subr.bf16.mxu0 0
    %10159 = vmatpush1.bf16.msra.mxu0 0
    %10160 = vmatprep.mubr.bf16.mxu0 0
    %10161 = vmatmul.mubr.bf16.gmra.mrb[0].mxu0 %v10126
    %v10162 = vpop.f32.mrb[0].mxu0
    %v10163 = vadd.f32 0.0, %v10162
    %v10164 = vpop.f32.mrb[0].mxu0
    %v10165 = vpop.f32.mrb[0].mxu0
    %v10166 = vadd.f32 0.0, %v10165
    %v10167 = vpop.f32.mrb[0].mxu0
    %10168 = vdwg.mxu0
    %v10169 = vadd.f32 %v10106, %v10163
    %v10170 = vadd.f32 %v10107, %v10166
    %s10171 = scalar_lea.vmem [#allocation3], 384
    %v10172 = vld [vmem:[%s10171] sm:$0xf]
    %v10173 = vld [vmem:[%s10171 + $0x4] sm:$0xf]
    %v10174 = vld [vmem:[%s10171 + $0x8] sm:$0xf]
    %v10175 = vld [vmem:[%s10171 + $0xc] sm:$0xf]
    %v10180 = vunpack.c.l.b16 %v10172
    %v10181 = vunpack.c.l.b16 %v10173
    %v10182 = vunpack.c.l.b16 %v10174
    %v10183 = vunpack.c.l.b16 %v10175
    %v10184 = vpack.c.b16 %v10181, %v10180
    %v10185 = vpack.c.b16 %v10183, %v10182
    %v10189 = vsel %vm8684, %v8655, 0
    %10191 = vmatprep.subr.bf16.mxu0 0
    %10192 = vmatpush1.bf16.msra.mxu0 %v10184
    %10193 = vmatprep.subr.bf16.mxu0 0
    %10194 = vmatpush1.bf16.msra.mxu0 %v10185
    %10195 = vmatprep.subr.bf16.mxu0 0
    %10196 = vmatpush1.bf16.msra.mxu0 0
    %10197 = vmatprep.subr.bf16.mxu0 0
    %10198 = vmatpush1.bf16.msra.mxu0 0
    %10199 = vmatprep.subr.bf16.mxu0 0
    %10200 = vmatpush1.bf16.msra.mxu0 0
    %10201 = vmatprep.subr.bf16.mxu0 0
    %10202 = vmatpush1.bf16.msra.mxu0 0
    %10203 = vmatprep.subr.bf16.mxu0 0
    %10204 = vmatpush1.bf16.msra.mxu0 0
    %10205 = vmatprep.subr.bf16.mxu0 0
    %10206 = vmatpush1.bf16.msra.mxu0 0
    %10207 = vmatprep.subr.bf16.mxu0 0
    %10208 = vmatpush1.bf16.msra.mxu0 0
    %10209 = vmatprep.subr.bf16.mxu0 0
    %10210 = vmatpush1.bf16.msra.mxu0 0
    %10211 = vmatprep.subr.bf16.mxu0 0
    %10212 = vmatpush1.bf16.msra.mxu0 0
    %10213 = vmatprep.subr.bf16.mxu0 0
    %10214 = vmatpush1.bf16.msra.mxu0 0
    %10215 = vmatprep.subr.bf16.mxu0 0
    %10216 = vmatpush1.bf16.msra.mxu0 0
    %10217 = vmatprep.subr.bf16.mxu0 0
    %10218 = vmatpush1.bf16.msra.mxu0 0
    %10219 = vmatprep.subr.bf16.mxu0 0
    %10220 = vmatpush1.bf16.msra.mxu0 0
    %10221 = vmatprep.subr.bf16.mxu0 0
    %10222 = vmatpush1.bf16.msra.mxu0 0
    %10223 = vmatprep.mubr.bf16.mxu0 0
    %10224 = vmatmul.mubr.bf16.gmra.mrb[0].mxu0 %v10189
    %v10225 = vpop.f32.mrb[0].mxu0
    %v10226 = vadd.f32 0.0, %v10225
    %v10227 = vpop.f32.mrb[0].mxu0
    %v10228 = vpop.f32.mrb[0].mxu0
    %v10229 = vadd.f32 0.0, %v10228
    %v10230 = vpop.f32.mrb[0].mxu0
    %10231 = vdwg.mxu0
    %v10232 = vadd.f32 %v10169, %v10226
    %v10233 = vadd.f32 %v10170, %v10229
    %s10234 = scalar_lea.vmem [#allocation3], 400
    %v10235 = vld [vmem:[%s10234] sm:$0xf]
    %v10236 = vld [vmem:[%s10234 + $0x4] sm:$0xf]
    %v10237 = vld [vmem:[%s10234 + $0x8] sm:$0xf]
    %v10238 = vld [vmem:[%s10234 + $0xc] sm:$0xf]
    %v10243 = vunpack.c.l.b16 %v10235
    %v10244 = vunpack.c.l.b16 %v10236
    %v10245 = vunpack.c.l.b16 %v10237
    %v10246 = vunpack.c.l.b16 %v10238
    %v10247 = vpack.c.b16 %v10244, %v10243
    %v10248 = vpack.c.b16 %v10246, %v10245
    %v10252 = vsel %vm8684, %v8656, 0
    %10254 = vmatprep.subr.bf16.mxu0 0
    %10255 = vmatpush1.bf16.msra.mxu0 %v10247
    %10256 = vmatprep.subr.bf16.mxu0 0
    %10257 = vmatpush1.bf16.msra.mxu0 %v10248
    %10258 = vmatprep.subr.bf16.mxu0 0
    %10259 = vmatpush1.bf16.msra.mxu0 0
    %10260 = vmatprep.subr.bf16.mxu0 0
    %10261 = vmatpush1.bf16.msra.mxu0 0
    %10262 = vmatprep.subr.bf16.mxu0 0
    %10263 = vmatpush1.bf16.msra.mxu0 0
    %10264 = vmatprep.subr.bf16.mxu0 0
    %10265 = vmatpush1.bf16.msra.mxu0 0
    %10266 = vmatprep.subr.bf16.mxu0 0
    %10267 = vmatpush1.bf16.msra.mxu0 0
    %10268 = vmatprep.subr.bf16.mxu0 0
    %10269 = vmatpush1.bf16.msra.mxu0 0
    %10270 = vmatprep.subr.bf16.mxu0 0
    %10271 = vmatpush1.bf16.msra.mxu0 0
    %10272 = vmatprep.subr.bf16.mxu0 0
    %10273 = vmatpush1.bf16.msra.mxu0 0
    %10274 = vmatprep.subr.bf16.mxu0 0
    %10275 = vmatpush1.bf16.msra.mxu0 0
    %10276 = vmatprep.subr.bf16.mxu0 0
    %10277 = vmatpush1.bf16.msra.mxu0 0
    %10278 = vmatprep.subr.bf16.mxu0 0
    %10279 = vmatpush1.bf16.msra.mxu0 0
    %10280 = vmatprep.subr.bf16.mxu0 0
    %10281 = vmatpush1.bf16.msra.mxu0 0
    %10282 = vmatprep.subr.bf16.mxu0 0
    %10283 = vmatpush1.bf16.msra.mxu0 0
    %10284 = vmatprep.subr.bf16.mxu0 0
    %10285 = vmatpush1.bf16.msra.mxu0 0
    %10286 = vmatprep.mubr.bf16.mxu0 0
    %10287 = vmatmul.mubr.bf16.gmra.mrb[0].mxu0 %v10252
    %v10288 = vpop.f32.mrb[0].mxu0
    %v10289 = vadd.f32 0.0, %v10288
    %v10290 = vpop.f32.mrb[0].mxu0
    %v10291 = vpop.f32.mrb[0].mxu0
    %v10292 = vadd.f32 0.0, %v10291
    %v10293 = vpop.f32.mrb[0].mxu0
    %10294 = vdwg.mxu0
    %v10295 = vadd.f32 %v10232, %v10289
    %v10296 = vadd.f32 %v10233, %v10292
    %s10297 = scalar_lea.vmem [#allocation3], 416
    %v10298 = vld [vmem:[%s10297] sm:$0xf]
    %v10299 = vld [vmem:[%s10297 + $0x4] sm:$0xf]
    %v10300 = vld [vmem:[%s10297 + $0x8] sm:$0xf]
    %v10301 = vld [vmem:[%s10297 + $0xc] sm:$0xf]
    %v10306 = vunpack.c.l.b16 %v10298
    %v10307 = vunpack.c.l.b16 %v10299
    %v10308 = vunpack.c.l.b16 %v10300
    %v10309 = vunpack.c.l.b16 %v10301
    %v10310 = vpack.c.b16 %v10307, %v10306
    %v10311 = vpack.c.b16 %v10309, %v10308
    %v10315 = vsel %vm8684, %v8657, 0
    %10317 = vmatprep.subr.bf16.mxu0 0
    %10318 = vmatpush1.bf16.msra.mxu0 %v10310
    %10319 = vmatprep.subr.bf16.mxu0 0
    %10320 = vmatpush1.bf16.msra.mxu0 %v10311
    %10321 = vmatprep.subr.bf16.mxu0 0
    %10322 = vmatpush1.bf16.msra.mxu0 0
    %10323 = vmatprep.subr.bf16.mxu0 0
    %10324 = vmatpush1.bf16.msra.mxu0 0
    %10325 = vmatprep.subr.bf16.mxu0 0
    %10326 = vmatpush1.bf16.msra.mxu0 0
    %10327 = vmatprep.subr.bf16.mxu0 0
    %10328 = vmatpush1.bf16.msra.mxu0 0
    %10329 = vmatprep.subr.bf16.mxu0 0
    %10330 = vmatpush1.bf16.msra.mxu0 0
    %10331 = vmatprep.subr.bf16.mxu0 0
    %10332 = vmatpush1.bf16.msra.mxu0 0
    %10333 = vmatprep.subr.bf16.mxu0 0
    %10334 = vmatpush1.bf16.msra.mxu0 0
    %10335 = vmatprep.subr.bf16.mxu0 0
    %10336 = vmatpush1.bf16.msra.mxu0 0
    %10337 = vmatprep.subr.bf16.mxu0 0
    %10338 = vmatpush1.bf16.msra.mxu0 0
    %10339 = vmatprep.subr.bf16.mxu0 0
    %10340 = vmatpush1.bf16.msra.mxu0 0
    %10341 = vmatprep.subr.bf16.mxu0 0
    %10342 = vmatpush1.bf16.msra.mxu0 0
    %10343 = vmatprep.subr.bf16.mxu0 0
    %10344 = vmatpush1.bf16.msra.mxu0 0
    %10345 = vmatprep.subr.bf16.mxu0 0
    %10346 = vmatpush1.bf16.msra.mxu0 0
    %10347 = vmatprep.subr.bf16.mxu0 0
    %10348 = vmatpush1.bf16.msra.mxu0 0
    %10349 = vmatprep.mubr.bf16.mxu0 0
    %10350 = vmatmul.mubr.bf16.gmra.mrb[0].mxu0 %v10315
    %v10351 = vpop.f32.mrb[0].mxu0
    %v10352 = vadd.f32 0.0, %v10351
    %v10353 = vpop.f32.mrb[0].mxu0
    %v10354 = vpop.f32.mrb[0].mxu0
    %v10355 = vadd.f32 0.0, %v10354
    %v10356 = vpop.f32.mrb[0].mxu0
    %10357 = vdwg.mxu0
    %v10358 = vadd.f32 %v10295, %v10352
    %v10359 = vadd.f32 %v10296, %v10355
    %s10360 = scalar_lea.vmem [#allocation3], 432
    %v10361 = vld [vmem:[%s10360] sm:$0xf]
    %v10362 = vld [vmem:[%s10360 + $0x4] sm:$0xf]
    %v10363 = vld [vmem:[%s10360 + $0x8] sm:$0xf]
    %v10364 = vld [vmem:[%s10360 + $0xc] sm:$0xf]
    %v10369 = vunpack.c.l.b16 %v10361
    %v10370 = vunpack.c.l.b16 %v10362
    %v10371 = vunpack.c.l.b16 %v10363
    %v10372 = vunpack.c.l.b16 %v10364
    %v10373 = vpack.c.b16 %v10370, %v10369
    %v10374 = vpack.c.b16 %v10372, %v10371
    %v10378 = vsel %vm8684, %v8658, 0
    %10380 = vmatprep.subr.bf16.mxu0 0
    %10381 = vmatpush1.bf16.msra.mxu0 %v10373
    %10382 = vmatprep.subr.bf16.mxu0 0
    %10383 = vmatpush1.bf16.msra.mxu0 %v10374
    %10384 = vmatprep.subr.bf16.mxu0 0
    %10385 = vmatpush1.bf16.msra.mxu0 0
    %10386 = vmatprep.subr.bf16.mxu0 0
    %10387 = vmatpush1.bf16.msra.mxu0 0
    %10388 = vmatprep.subr.bf16.mxu0 0
    %10389 = vmatpush1.bf16.msra.mxu0 0
    %10390 = vmatprep.subr.bf16.mxu0 0
    %10391 = vmatpush1.bf16.msra.mxu0 0
    %10392 = vmatprep.subr.bf16.mxu0 0
    %10393 = vmatpush1.bf16.msra.mxu0 0
    %10394 = vmatprep.subr.bf16.mxu0 0
    %10395 = vmatpush1.bf16.msra.mxu0 0
    %10396 = vmatprep.subr.bf16.mxu0 0
    %10397 = vmatpush1.bf16.msra.mxu0 0
    %10398 = vmatprep.subr.bf16.mxu0 0
    %10399 = vmatpush1.bf16.msra.mxu0 0
    %10400 = vmatprep.subr.bf16.mxu0 0
    %10401 = vmatpush1.bf16.msra.mxu0 0
    %10402 = vmatprep.subr.bf16.mxu0 0
    %10403 = vmatpush1.bf16.msra.mxu0 0
    %10404 = vmatprep.subr.bf16.mxu0 0
    %10405 = vmatpush1.bf16.msra.mxu0 0
    %10406 = vmatprep.subr.bf16.mxu0 0
    %10407 = vmatpush1.bf16.msra.mxu0 0
    %10408 = vmatprep.subr.bf16.mxu0 0
    %10409 = vmatpush1.bf16.msra.mxu0 0
    %10410 = vmatprep.subr.bf16.mxu0 0
    %10411 = vmatpush1.bf16.msra.mxu0 0
    %10412 = vmatprep.mubr.bf16.mxu0 0
    %10413 = vmatmul.mubr.bf16.gmra.mrb[0].mxu0 %v10378
    %v10414 = vpop.f32.mrb[0].mxu0
    %v10415 = vadd.f32 0.0, %v10414
    %v10416 = vpop.f32.mrb[0].mxu0
    %v10417 = vpop.f32.mrb[0].mxu0
    %v10418 = vadd.f32 0.0, %v10417
    %v10419 = vpop.f32.mrb[0].mxu0
    %10420 = vdwg.mxu0
    %v10421 = vadd.f32 %v10358, %v10415
    %v10422 = vadd.f32 %v10359, %v10418
    %s10423 = scalar_lea.vmem [#allocation3], 448
    %v10424 = vld [vmem:[%s10423] sm:$0xf]
    %v10425 = vld [vmem:[%s10423 + $0x4] sm:$0xf]
    %v10426 = vld [vmem:[%s10423 + $0x8] sm:$0xf]
    %v10427 = vld [vmem:[%s10423 + $0xc] sm:$0xf]
    %v10432 = vunpack.c.l.b16 %v10424
    %v10433 = vunpack.c.l.b16 %v10425
    %v10434 = vunpack.c.l.b16 %v10426
    %v10435 = vunpack.c.l.b16 %v10427
    %v10436 = vpack.c.b16 %v10433, %v10432
    %v10437 = vpack.c.b16 %v10435, %v10434
    %v10441 = vsel %vm8684, %v8659, 0
    %10443 = vmatprep.subr.bf16.mxu0 0
    %10444 = vmatpush1.bf16.msra.mxu0 %v10436
    %10445 = vmatprep.subr.bf16.mxu0 0
    %10446 = vmatpush1.bf16.msra.mxu0 %v10437
    %10447 = vmatprep.subr.bf16.mxu0 0
    %10448 = vmatpush1.bf16.msra.mxu0 0
    %10449 = vmatprep.subr.bf16.mxu0 0
    %10450 = vmatpush1.bf16.msra.mxu0 0
    %10451 = vmatprep.subr.bf16.mxu0 0
    %10452 = vmatpush1.bf16.msra.mxu0 0
    %10453 = vmatprep.subr.bf16.mxu0 0
    %10454 = vmatpush1.bf16.msra.mxu0 0
    %10455 = vmatprep.subr.bf16.mxu0 0
    %10456 = vmatpush1.bf16.msra.mxu0 0
    %10457 = vmatprep.subr.bf16.mxu0 0
    %10458 = vmatpush1.bf16.msra.mxu0 0
    %10459 = vmatprep.subr.bf16.mxu0 0
    %10460 = vmatpush1.bf16.msra.mxu0 0
    %10461 = vmatprep.subr.bf16.mxu0 0
    %10462 = vmatpush1.bf16.msra.mxu0 0
    %10463 = vmatprep.subr.bf16.mxu0 0
    %10464 = vmatpush1.bf16.msra.mxu0 0
    %10465 = vmatprep.subr.bf16.mxu0 0
    %10466 = vmatpush1.bf16.msra.mxu0 0
    %10467 = vmatprep.subr.bf16.mxu0 0
    %10468 = vmatpush1.bf16.msra.mxu0 0
    %10469 = vmatprep.subr.bf16.mxu0 0
    %10470 = vmatpush1.bf16.msra.mxu0 0
    %10471 = vmatprep.subr.bf16.mxu0 0
    %10472 = vmatpush1.bf16.msra.mxu0 0
    %10473 = vmatprep.subr.bf16.mxu0 0
    %10474 = vmatpush1.bf16.msra.mxu0 0
    %10475 = vmatprep.mubr.bf16.mxu0 0
    %10476 = vmatmul.mubr.bf16.gmra.mrb[0].mxu0 %v10441
    %v10477 = vpop.f32.mrb[0].mxu0
    %v10478 = vadd.f32 0.0, %v10477
    %v10479 = vpop.f32.mrb[0].mxu0
    %v10480 = vpop.f32.mrb[0].mxu0
    %v10481 = vadd.f32 0.0, %v10480
    %v10482 = vpop.f32.mrb[0].mxu0
    %10483 = vdwg.mxu0
    %v10484 = vadd.f32 %v10421, %v10478
    %v10485 = vadd.f32 %v10422, %v10481
    %s10486 = scalar_lea.vmem [#allocation3], 464
    %v10487 = vld [vmem:[%s10486] sm:$0xf]
    %v10488 = vld [vmem:[%s10486 + $0x4] sm:$0xf]
    %v10489 = vld [vmem:[%s10486 + $0x8] sm:$0xf]
    %v10490 = vld [vmem:[%s10486 + $0xc] sm:$0xf]
    %v10495 = vunpack.c.l.b16 %v10487
    %v10496 = vunpack.c.l.b16 %v10488
    %v10497 = vunpack.c.l.b16 %v10489
    %v10498 = vunpack.c.l.b16 %v10490
    %v10499 = vpack.c.b16 %v10496, %v10495
    %v10500 = vpack.c.b16 %v10498, %v10497
    %v10504 = vsel %vm8684, %v8660, 0
    %10506 = vmatprep.subr.bf16.mxu0 0
    %10507 = vmatpush1.bf16.msra.mxu0 %v10499
    %10508 = vmatprep.subr.bf16.mxu0 0
    %10509 = vmatpush1.bf16.msra.mxu0 %v10500
    %10510 = vmatprep.subr.bf16.mxu0 0
    %10511 = vmatpush1.bf16.msra.mxu0 0
    %10512 = vmatprep.subr.bf16.mxu0 0
    %10513 = vmatpush1.bf16.msra.mxu0 0
    %10514 = vmatprep.subr.bf16.mxu0 0
    %10515 = vmatpush1.bf16.msra.mxu0 0
    %10516 = vmatprep.subr.bf16.mxu0 0
    %10517 = vmatpush1.bf16.msra.mxu0 0
    %10518 = vmatprep.subr.bf16.mxu0 0
    %10519 = vmatpush1.bf16.msra.mxu0 0
    %10520 = vmatprep.subr.bf16.mxu0 0
    %10521 = vmatpush1.bf16.msra.mxu0 0
    %10522 = vmatprep.subr.bf16.mxu0 0
    %10523 = vmatpush1.bf16.msra.mxu0 0
    %10524 = vmatprep.subr.bf16.mxu0 0
    %10525 = vmatpush1.bf16.msra.mxu0 0
    %10526 = vmatprep.subr.bf16.mxu0 0
    %10527 = vmatpush1.bf16.msra.mxu0 0
    %10528 = vmatprep.subr.bf16.mxu0 0
    %10529 = vmatpush1.bf16.msra.mxu0 0
    %10530 = vmatprep.subr.bf16.mxu0 0
    %10531 = vmatpush1.bf16.msra.mxu0 0
    %10532 = vmatprep.subr.bf16.mxu0 0
    %10533 = vmatpush1.bf16.msra.mxu0 0
    %10534 = vmatprep.subr.bf16.mxu0 0
    %10535 = vmatpush1.bf16.msra.mxu0 0
    %10536 = vmatprep.subr.bf16.mxu0 0
    %10537 = vmatpush1.bf16.msra.mxu0 0
    %10538 = vmatprep.mubr.bf16.mxu0 0
    %10539 = vmatmul.mubr.bf16.gmra.mrb[0].mxu0 %v10504
    %v10540 = vpop.f32.mrb[0].mxu0
    %v10541 = vadd.f32 0.0, %v10540
    %v10542 = vpop.f32.mrb[0].mxu0
    %v10543 = vpop.f32.mrb[0].mxu0
    %v10544 = vadd.f32 0.0, %v10543
    %v10545 = vpop.f32.mrb[0].mxu0
    %10546 = vdwg.mxu0
    %v10547 = vadd.f32 %v10484, %v10541
    %v10548 = vadd.f32 %v10485, %v10544
    %s10549 = scalar_lea.vmem [#allocation3], 480
    %v10550 = vld [vmem:[%s10549] sm:$0xf]
    %v10551 = vld [vmem:[%s10549 + $0x4] sm:$0xf]
    %v10552 = vld [vmem:[%s10549 + $0x8] sm:$0xf]
    %v10553 = vld [vmem:[%s10549 + $0xc] sm:$0xf]
    %v10558 = vunpack.c.l.b16 %v10550
    %v10559 = vunpack.c.l.b16 %v10551
    %v10560 = vunpack.c.l.b16 %v10552
    %v10561 = vunpack.c.l.b16 %v10553
    %v10562 = vpack.c.b16 %v10559, %v10558
    %v10563 = vpack.c.b16 %v10561, %v10560
    %v10567 = vsel %vm8684, %v8661, 0
    %10569 = vmatprep.subr.bf16.mxu0 0
    %10570 = vmatpush1.bf16.msra.mxu0 %v10562
    %10571 = vmatprep.subr.bf16.mxu0 0
    %10572 = vmatpush1.bf16.msra.mxu0 %v10563
    %10573 = vmatprep.subr.bf16.mxu0 0
    %10574 = vmatpush1.bf16.msra.mxu0 0
    %10575 = vmatprep.subr.bf16.mxu0 0
    %10576 = vmatpush1.bf16.msra.mxu0 0
    %10577 = vmatprep.subr.bf16.mxu0 0
    %10578 = vmatpush1.bf16.msra.mxu0 0
    %10579 = vmatprep.subr.bf16.mxu0 0
    %10580 = vmatpush1.bf16.msra.mxu0 0
    %10581 = vmatprep.subr.bf16.mxu0 0
    %10582 = vmatpush1.bf16.msra.mxu0 0
    %10583 = vmatprep.subr.bf16.mxu0 0
    %10584 = vmatpush1.bf16.msra.mxu0 0
    %10585 = vmatprep.subr.bf16.mxu0 0
    %10586 = vmatpush1.bf16.msra.mxu0 0
    %10587 = vmatprep.subr.bf16.mxu0 0
    %10588 = vmatpush1.bf16.msra.mxu0 0
    %10589 = vmatprep.subr.bf16.mxu0 0
    %10590 = vmatpush1.bf16.msra.mxu0 0
    %10591 = vmatprep.subr.bf16.mxu0 0
    %10592 = vmatpush1.bf16.msra.mxu0 0
    %10593 = vmatprep.subr.bf16.mxu0 0
    %10594 = vmatpush1.bf16.msra.mxu0 0
    %10595 = vmatprep.subr.bf16.mxu0 0
    %10596 = vmatpush1.bf16.msra.mxu0 0
    %10597 = vmatprep.subr.bf16.mxu0 0
    %10598 = vmatpush1.bf16.msra.mxu0 0
    %10599 = vmatprep.subr.bf16.mxu0 0
    %10600 = vmatpush1.bf16.msra.mxu0 0
    %10601 = vmatprep.mubr.bf16.mxu0 0
    %10602 = vmatmul.mubr.bf16.gmra.mrb[0].mxu0 %v10567
    %v10603 = vpop.f32.mrb[0].mxu0
    %v10604 = vadd.f32 0.0, %v10603
    %v10605 = vpop.f32.mrb[0].mxu0
    %v10606 = vpop.f32.mrb[0].mxu0
    %v10607 = vadd.f32 0.0, %v10606
    %v10608 = vpop.f32.mrb[0].mxu0
    %10609 = vdwg.mxu0
    %v10610 = vadd.f32 %v10547, %v10604
    %v10611 = vadd.f32 %v10548, %v10607
    %s10612 = scalar_lea.vmem [#allocation3], 496
    %v10613 = vld [vmem:[%s10612] sm:$0xf]
    %v10614 = vld [vmem:[%s10612 + $0x4] sm:$0xf]
    %v10615 = vld [vmem:[%s10612 + $0x8] sm:$0xf]
    %v10616 = vld [vmem:[%s10612 + $0xc] sm:$0xf]
    %v10621 = vunpack.c.l.b16 %v10613
    %v10622 = vunpack.c.l.b16 %v10614
    %v10623 = vunpack.c.l.b16 %v10615
    %v10624 = vunpack.c.l.b16 %v10616
    %v10625 = vpack.c.b16 %v10622, %v10621
    %v10626 = vpack.c.b16 %v10624, %v10623
    %v10630 = vsel %vm8684, %v8662, 0
    %10632 = vmatprep.subr.bf16.mxu0 0
    %10633 = vmatpush1.bf16.msra.mxu0 %v10625
    %10634 = vmatprep.subr.bf16.mxu0 0
    %10635 = vmatpush1.bf16.msra.mxu0 %v10626
    %10636 = vmatprep.subr.bf16.mxu0 0
    %10637 = vmatpush1.bf16.msra.mxu0 0
    %10638 = vmatprep.subr.bf16.mxu0 0
    %10639 = vmatpush1.bf16.msra.mxu0 0
    %10640 = vmatprep.subr.bf16.mxu0 0
    %10641 = vmatpush1.bf16.msra.mxu0 0
    %10642 = vmatprep.subr.bf16.mxu0 0
    %10643 = vmatpush1.bf16.msra.mxu0 0
    %10644 = vmatprep.subr.bf16.mxu0 0
    %10645 = vmatpush1.bf16.msra.mxu0 0
    %10646 = vmatprep.subr.bf16.mxu0 0
    %10647 = vmatpush1.bf16.msra.mxu0 0
    %10648 = vmatprep.subr.bf16.mxu0 0
    %10649 = vmatpush1.bf16.msra.mxu0 0
    %10650 = vmatprep.subr.bf16.mxu0 0
    %10651 = vmatpush1.bf16.msra.mxu0 0
    %10652 = vmatprep.subr.bf16.mxu0 0
    %10653 = vmatpush1.bf16.msra.mxu0 0
    %10654 = vmatprep.subr.bf16.mxu0 0
    %10655 = vmatpush1.bf16.msra.mxu0 0
    %10656 = vmatprep.subr.bf16.mxu0 0
    %10657 = vmatpush1.bf16.msra.mxu0 0
    %10658 = vmatprep.subr.bf16.mxu0 0
    %10659 = vmatpush1.bf16.msra.mxu0 0
    %10660 = vmatprep.subr.bf16.mxu0 0
    %10661 = vmatpush1.bf16.msra.mxu0 0
    %10662 = vmatprep.subr.bf16.mxu0 0
    %10663 = vmatpush1.bf16.msra.mxu0 0
    %10664 = vmatprep.mubr.bf16.mxu0 0
    %10665 = vmatmul.mubr.bf16.gmra.mrb[0].mxu0 %v10630
    %v10666 = vpop.f32.mrb[0].mxu0
    %v10667 = vadd.f32 0.0, %v10666
    %v10668 = vpop.f32.mrb[0].mxu0
    %v10669 = vpop.f32.mrb[0].mxu0
    %v10670 = vadd.f32 0.0, %v10669
    %v10671 = vpop.f32.mrb[0].mxu0
    %10672 = vdwg.mxu0
    %v10673 = vadd.f32 %v10610, %v10667
    %v10674 = vadd.f32 %v10611, %v10670
    %v10675 = vld [vmem:[%s8] sm:$0x1]
    %v10677 = vlaneseq
    %v10678 = vshrl.u32 %v10677, 7
    %v10679 = vsub.s32 0, %v10678
    %v10680 = vrot.slane %v10675, %v10679
    %v10682 = vadd.f32 %v10673, %v10680
    %v10683 = vadd.f32 %v10674, %v10680
    %10684 = vmax.xlane.f32.xlu0 %v10682
    %v10685 = vpop.xlane.xlu0 %10684
    %10686 = vmax.xlane.f32.xlu0 %v10683
    %v10687 = vpop.xlane.xlu0 %10686
    %v10688 = vsub.f32 %v10682, %v10685
    %v10689 = vsub.f32 %v10683, %v10687
    %v10690 = vmul.f32 %v10688, 1.442695
    %v10691 = vpow.pop %v10690
    %v10692 = vmul.f32 %v10689, 1.442695
    %v10693 = vpow.pop %v10692
    %10694 = vadd.xlane.f32.xlu0 %v10691
    %v10695 = vpop.xlane.xlu0 %10694
    %10696 = vadd.xlane.f32.xlu0 %v10693
    %v10697 = vpop.xlane.xlu0 %10696
    %v10698 = vrcp.pop %v10695
    %v10699 = vmul.f32 %v10691, %v10698
    %v10700 = vrcp.pop %v10697
    %v10701 = vmul.f32 %v10693, %v10700
    %10702 = vst [vmem:[%s9] sm:$0xff] %v10699
    %10703 = vst [vmem:[%s9 + $0x8] sm:$0xff] %v10701
    // Predicated region
    $region42: #{discard_model_forward.1} parent=1 // pred_check
      _
    $region43: #{discard_model_forward.1} parent=1 // pred_check_branch
      %10705 = sbr.rel (0) target = $region45
    $region44: #{discard_model_forward.1} parent=1 // pred_region
      _
    $region45: #{discard_model_forward.1} parent=1 // pred_fallthru
      _
    // Predicated region
    $region46: #{discard_model_forward.1} parent=1 // pred_check
      _
    $region47: #{discard_model_forward.1} parent=1 // pred_check_branch
      %10707 = sbr.rel (0) target = $region49
    $region48: #{discard_model_forward.1} parent=1 // pred_region
      _
    $region49: #{discard_model_forward.1} parent=1 // pred_fallthru
      _
    %10708 = vsyncpa [#allocation4], 1

</llo_original>
